<compile_context>
chip_gen: v7x
topology: tpu7x:2x2x1
jax: 0.10.0
libtpu: 0.0.40
codegen_flags: <defaults>
</compile_context>

<pallas_src>
import math

import jax
import jax.numpy as jnp
from jax.experimental import pallas as pl
from jax.experimental.pallas import tpu as pltpu

# ----------------------------- problem sizes -----------------------------
E = 3      # number of embedding types per node type
DIN = 48   # raw embedding dim of each emb type
H = 32     # hidden dim (adaptor_align / fusioner / denser output dim)
R = 2      # rows of fusioner_router
N = 128    # number of (dst) nodes of the single node type
NE = 64    # number of scoring edges

EDIN = E * DIN   # 144: lane-packed input width
EH = E * H       # 96 : lane-packed adapted / attended width

_HP = jax.lax.Precision.HIGHEST


# ------------------------- fused node + scorer kernel -------------------------
def _fused_kernel(x_ref, src_ref, dst_ref, wa_ref, ba_ref, wpost_ref, bpost_ref,
                  feat_ref, score_ref):
    """adapt (block-diag linear + self-attn over E) + folded fusion/denser
    + fused u_dot_v edge scorer.

    x_ref     : (N, E*DIN)   lane-packed dst node features
    src_ref   : (NE, 1)      int32 edge source node ids
    dst_ref   : (NE, 1)      int32 edge destination node ids
    wa_ref    : (E*DIN, E*H) block-diagonal adaptor weights
    ba_ref    : (1, E*H)     concatenated adaptor biases
    wpost_ref : (E*H, H)     folded router+fusioner+denser weight
    bpost_ref : (1, H)       folded bias
    feat_ref  : (N, H)       output node features
    score_ref : (NE, 1)      output edge scores
    """
    scale = 1.0 / math.sqrt(H)

    # --- adapt: one block-diagonal MXU matmul (full-f32 contraction) ---------
    adapted = jnp.dot(x_ref[...], wa_ref[...], precision=_HP,
                      preferred_element_type=jnp.float32) + ba_ref[...]  # (N, E*H)

    # Hoist the three 32-lane slices once; reused by logits and weighted sums.
    a = [adapted[:, e * H:(e + 1) * H] for e in range(E)]                # E x (N, H)

    # --- self-attention logits; Gram symmetry: only e <= m computed ----------
    g = {}
    for e in range(E):
        for m in range(e, E):
            g[(e, m)] = jnp.sum(a[e] * a[m], axis=-1, keepdims=True) * scale

    def logit(e, m):
        return g[(e, m)] if e <= m else g[(m, e)]

    # --- per-group (per-e) softmax, exact reciprocal --------------------------
    attn_parts = []
    for e in range(E):
        ls = [logit(e, m) for m in range(E)]
        gmax = ls[0]
        for l in ls[1:]:
            gmax = jnp.maximum(gmax, l)                  # per-group max (no underflow)
        es = [jnp.exp(l - gmax) for l in ls]
        denom = es[0]
        for v in es[1:]:
            denom = denom + v
        inv = 1.0 / denom                                # exact; score path amplifies error
        row = (es[0] * inv) * a[0]
        for m in range(1, E):
            row = row + (es[m] * inv) * a[m]
        attn_parts.append(row)                           # (N, H)
    attn = jnp.concatenate(attn_parts, axis=-1)          # (N, E*H), lane-packed

    # --- fusion + denser folded into one (E*H, H) matmul ----------------------
    out = jnp.dot(attn, wpost_ref[...], precision=_HP,
                  preferred_element_type=jnp.float32) + bpost_ref[...]   # (N, H)
    feat_ref[...] = out

    # --- fused scorer: one-hot gathers via MXU, then row-wise dot -------------
    n_nodes = feat_ref.shape[0]
    n_edges = score_ref.shape[0]
    node_iota = jax.lax.broadcasted_iota(jnp.int32, (n_edges, n_nodes), 1)
    src_oh = (src_ref[...] == node_iota).astype(jnp.float32)             # (NE, N)
    dst_oh = (dst_ref[...] == node_iota).astype(jnp.float32)             # (NE, N)
    src_f = jnp.dot(src_oh, out, precision=_HP, preferred_element_type=jnp.float32)
    dst_f = jnp.dot(dst_oh, out, precision=_HP, preferred_element_type=jnp.float32)
    score_ref[...] = jnp.sum(src_f * dst_f, axis=-1, keepdims=True)      # (NE, 1)


# --------------------- one-time parameter folding (off hot path) ---------------------
def prepare_params(params):
    """Fold module weights once; the per-call path only sees pre-folded arrays."""
    wa = params["wa"]                                    # (E, DIN, H)
    wa_bd = jnp.zeros((EDIN, EH), jnp.float32)
    for e in range(E):
        wa_bd = wa_bd.at[e * DIN:(e + 1) * DIN, e * H:(e + 1) * H].set(wa[e])
    ba_cat = params["ba"].reshape(1, EH)                 # (1, E*H)

    # Fold router (R,E), fusioner (R*H,H), denser (H,H) into one (E*H,H) weight:
    #   out = attn_cat @ W_post + b_post
    wf_r = params["wf"].reshape(R, H, H)
    w_mix = jnp.einsum("re,rhj->ehj", params["router"], wf_r,
                       precision=_HP).reshape(EH, H)
    w_post = jnp.dot(w_mix, params["wd"], precision=_HP)                 # (E*H, H)
    b_post = jnp.dot(params["bf"], params["wd"], precision=_HP) + params["bd"]
    return {"wa_bd": wa_bd, "ba_cat": ba_cat, "w_post": w_post, "b_post": b_post}


# ------------------------------- forward wrapper ----------------------------------
def intermediate_model_forward(x, folded, src_idx, dst_idx):
    """Equivalent of IntermediateModel.forward (hetero_conv is None branch)."""
    x_packed = x.reshape(N, EDIN)                        # contiguous reshape, ~free

    vmem = pl.BlockSpec(memory_space=pltpu.MemorySpace.VMEM)
    feats, scores = pl.pallas_call(
        _fused_kernel,
        out_shape=(jax.ShapeDtypeStruct((N, H), jnp.float32),
                   jax.ShapeDtypeStruct((NE, 1), jnp.float32)),
        # no grid: everything (~100 KB) is resident in VMEM in a single step.
        in_specs=[vmem, vmem, vmem, vmem, vmem, vmem, vmem],
        out_specs=(vmem, vmem),
    )(x_packed, src_idx, dst_idx, folded["wa_bd"], folded["ba_cat"],
      folded["w_post"], folded["b_post"])
    return scores, {"node": feats}, None


# ----------------------------- pure-JAX reference ---------------------------------
def reference_forward(x, params, src_idx, dst_idx):
    adapted = jnp.einsum("ned,edh->neh", x, params["wa"], precision=_HP) \
        + params["ba"].reshape(1, E, H)
    scale = 1.0 / math.sqrt(H)
    logits = jnp.einsum("neh,nmh->nem", adapted, adapted, precision=_HP) * scale
    p = jax.nn.softmax(logits, axis=-1)
    attn = jnp.einsum("nem,nmh->neh", p, adapted, precision=_HP)
    fused = jnp.einsum("re,neh->nrh", params["router"], attn,
                       precision=_HP).reshape(N, R * H)
    y = jnp.dot(fused, params["wf"], precision=_HP) + params["bf"]
    out = jnp.dot(y, params["wd"], precision=_HP) + params["bd"]
    scores = jnp.sum(out[src_idx[:, 0]] * out[dst_idx[:, 0]], axis=-1, keepdims=True)
    return scores, out


# --------------------------------- main ------------------------------------
if __name__ == "__main__":
    key = jax.random.PRNGKey(0)
    ks = jax.random.split(key, 10)

    params = {
        "wa": jax.random.normal(ks[0], (E, DIN, H), jnp.float32) / math.sqrt(DIN),
        "ba": jax.random.normal(ks[1], (E, 1, H), jnp.float32) * 0.01,
        "router": jax.random.normal(ks[2], (R, E), jnp.float32),
        "wf": jax.random.normal(ks[3], (R * H, H), jnp.float32) / math.sqrt(R * H),
        "bf": jax.random.normal(ks[4], (1, H), jnp.float32) * 0.01,
        "wd": jax.random.normal(ks[5], (H, H), jnp.float32) / math.sqrt(H),
        "bd": jax.random.normal(ks[6], (1, H), jnp.float32) * 0.01,
    }

    x = jax.random.normal(ks[7], (N, E, DIN), jnp.float32)              # dst node embeddings
    src_idx = jax.random.randint(ks[8], (NE, 1), 0, N, dtype=jnp.int32)  # scoring edges
    dst_idx = jax.random.randint(ks[9], (NE, 1), 0, N, dtype=jnp.int32)

    folded = prepare_params(params)          # one-time weight folding (off the hot path)

    scores, feats, _ = intermediate_model_forward(x, folded, src_idx, dst_idx)
    jax.block_until_ready(scores)
    jax.block_until_ready(feats["node"])

    ref_scores, ref_feats = reference_forward(x, params, src_idx, dst_idx)
    assert jnp.allclose(feats["node"], ref_feats, rtol=1e-2, atol=1e-2), "feat mismatch"
    assert jnp.allclose(scores, ref_scores, rtol=1e-2, atol=1e-2), "score mismatch"

    print("KERNEL_OK")
</pallas_src>

<mosaic_0001>
module attributes {stable_mosaic.version = 11 : i64} {
  func.func @_fused_kernel(%arg0: memref<128x144xf32, #tpu.memory_space<vmem>>, %arg1: memref<64x1xi32, #tpu.memory_space<vmem>>, %arg2: memref<64x1xi32, #tpu.memory_space<vmem>>, %arg3: memref<144x96xf32, #tpu.memory_space<vmem>>, %arg4: memref<1x96xf32, #tpu.memory_space<vmem>>, %arg5: memref<96x32xf32, #tpu.memory_space<vmem>>, %arg6: memref<1x32xf32, #tpu.memory_space<vmem>>, %arg7: memref<128x32xf32, #tpu.memory_space<vmem>>, %arg8: memref<64x1xf32, #tpu.memory_space<vmem>>) attributes {dimension_semantics = [], scalar_prefetch = 0 : i64, scratch_operands = 0 : i64, tpu.core_type = #tpu.core_type<tc>} {
    %c0 = arith.constant 0 : index
    %c0_0 = arith.constant 0 : index
    %0 = vector.load %arg0[%c0, %c0_0] : memref<128x144xf32, #tpu.memory_space<vmem>>, vector<128x144xf32>
    %c0_1 = arith.constant 0 : index
    %c0_2 = arith.constant 0 : index
    %1 = vector.load %arg3[%c0_1, %c0_2] : memref<144x96xf32, #tpu.memory_space<vmem>>, vector<144x96xf32>
    %cst = arith.constant dense<0.000000e+00> : vector<128x96xf32>
    %2 = tpu.matmul %0, %1, %cst {dimension_numbers = #tpu.dot_dimension_numbers<[1], [0], [0], [1], [0, 0, 1, 1], [], []>, precision = #tpu.contract_precision<fp32>} : vector<128x144xf32>, vector<144x96xf32>, vector<128x96xf32> -> vector<128x96xf32>
    %c0_3 = arith.constant 0 : index
    %c0_4 = arith.constant 0 : index
    %3 = vector.load %arg4[%c0_3, %c0_4] : memref<1x96xf32, #tpu.memory_space<vmem>>, vector<1x96xf32>
    %4 = vector.broadcast %3 : vector<1x96xf32> to vector<128x96xf32>
    %5 = arith.addf %2, %4 : vector<128x96xf32>
    %6 = vector.extract_strided_slice %5 {offsets = [0, 0], sizes = [128, 32], strides = [1, 1]} : vector<128x96xf32> to vector<128x32xf32>
    %7 = vector.extract_strided_slice %5 {offsets = [0, 32], sizes = [128, 32], strides = [1, 1]} : vector<128x96xf32> to vector<128x32xf32>
    %8 = vector.extract_strided_slice %5 {offsets = [0, 64], sizes = [128, 32], strides = [1, 1]} : vector<128x96xf32> to vector<128x32xf32>
    %9 = arith.mulf %6, %6 : vector<128x32xf32>
    %cst_5 = arith.constant dense<0.000000e+00> : vector<128xf32>
    %10 = vector.multi_reduction <add>, %9, %cst_5 [1] : vector<128x32xf32> to vector<128xf32>
    %11 = vector.shape_cast %10 : vector<128xf32> to vector<128x1xf32>
    %cst_6 = arith.constant 0.176776692 : f32
    %12 = vector.broadcast %cst_6 : f32 to vector<128x1xf32>
    %13 = arith.mulf %11, %12 : vector<128x1xf32>
    %14 = arith.mulf %6, %7 : vector<128x32xf32>
    %cst_7 = arith.constant dense<0.000000e+00> : vector<128xf32>
    %15 = vector.multi_reduction <add>, %14, %cst_7 [1] : vector<128x32xf32> to vector<128xf32>
    %16 = vector.shape_cast %15 : vector<128xf32> to vector<128x1xf32>
    %cst_8 = arith.constant 0.176776692 : f32
    %17 = vector.broadcast %cst_8 : f32 to vector<128x1xf32>
    %18 = arith.mulf %16, %17 : vector<128x1xf32>
    %19 = arith.mulf %6, %8 : vector<128x32xf32>
    %cst_9 = arith.constant dense<0.000000e+00> : vector<128xf32>
    %20 = vector.multi_reduction <add>, %19, %cst_9 [1] : vector<128x32xf32> to vector<128xf32>
    %21 = vector.shape_cast %20 : vector<128xf32> to vector<128x1xf32>
    %cst_10 = arith.constant 0.176776692 : f32
    %22 = vector.broadcast %cst_10 : f32 to vector<128x1xf32>
    %23 = arith.mulf %21, %22 : vector<128x1xf32>
    %24 = arith.mulf %7, %7 : vector<128x32xf32>
    %cst_11 = arith.constant dense<0.000000e+00> : vector<128xf32>
    %25 = vector.multi_reduction <add>, %24, %cst_11 [1] : vector<128x32xf32> to vector<128xf32>
    %26 = vector.shape_cast %25 : vector<128xf32> to vector<128x1xf32>
    %cst_12 = arith.constant 0.176776692 : f32
    %27 = vector.broadcast %cst_12 : f32 to vector<128x1xf32>
    %28 = arith.mulf %26, %27 : vector<128x1xf32>
    %29 = arith.mulf %7, %8 : vector<128x32xf32>
    %cst_13 = arith.constant dense<0.000000e+00> : vector<128xf32>
    %30 = vector.multi_reduction <add>, %29, %cst_13 [1] : vector<128x32xf32> to vector<128xf32>
    %31 = vector.shape_cast %30 : vector<128xf32> to vector<128x1xf32>
    %cst_14 = arith.constant 0.176776692 : f32
    %32 = vector.broadcast %cst_14 : f32 to vector<128x1xf32>
    %33 = arith.mulf %31, %32 : vector<128x1xf32>
    %34 = arith.mulf %8, %8 : vector<128x32xf32>
    %cst_15 = arith.constant dense<0.000000e+00> : vector<128xf32>
    %35 = vector.multi_reduction <add>, %34, %cst_15 [1] : vector<128x32xf32> to vector<128xf32>
    %36 = vector.shape_cast %35 : vector<128xf32> to vector<128x1xf32>
    %cst_16 = arith.constant 0.176776692 : f32
    %37 = vector.broadcast %cst_16 : f32 to vector<128x1xf32>
    %38 = arith.mulf %36, %37 : vector<128x1xf32>
    %39 = arith.maximumf %13, %18 : vector<128x1xf32>
    %40 = arith.maximumf %39, %23 : vector<128x1xf32>
    %41 = arith.subf %13, %40 : vector<128x1xf32>
    %42 = math.exp %41 : vector<128x1xf32>
    %43 = arith.subf %18, %40 : vector<128x1xf32>
    %44 = math.exp %43 : vector<128x1xf32>
    %45 = arith.subf %23, %40 : vector<128x1xf32>
    %46 = math.exp %45 : vector<128x1xf32>
    %47 = arith.addf %42, %44 : vector<128x1xf32>
    %48 = arith.addf %47, %46 : vector<128x1xf32>
    %cst_17 = arith.constant 1.000000e+00 : f32
    %49 = vector.broadcast %cst_17 : f32 to vector<128x1xf32>
    %50 = arith.divf %49, %48 : vector<128x1xf32>
    %51 = arith.mulf %42, %50 : vector<128x1xf32>
    %52 = vector.broadcast %51 : vector<128x1xf32> to vector<128x32xf32>
    %53 = arith.mulf %52, %6 : vector<128x32xf32>
    %54 = arith.mulf %44, %50 : vector<128x1xf32>
    %55 = vector.broadcast %54 : vector<128x1xf32> to vector<128x32xf32>
    %56 = arith.mulf %55, %7 : vector<128x32xf32>
    %57 = arith.addf %53, %56 : vector<128x32xf32>
    %58 = arith.mulf %46, %50 : vector<128x1xf32>
    %59 = vector.broadcast %58 : vector<128x1xf32> to vector<128x32xf32>
    %60 = arith.mulf %59, %8 : vector<128x32xf32>
    %61 = arith.addf %57, %60 : vector<128x32xf32>
    %62 = arith.maximumf %18, %28 : vector<128x1xf32>
    %63 = arith.maximumf %62, %33 : vector<128x1xf32>
    %64 = arith.subf %18, %63 : vector<128x1xf32>
    %65 = math.exp %64 : vector<128x1xf32>
    %66 = arith.subf %28, %63 : vector<128x1xf32>
    %67 = math.exp %66 : vector<128x1xf32>
    %68 = arith.subf %33, %63 : vector<128x1xf32>
    %69 = math.exp %68 : vector<128x1xf32>
    %70 = arith.addf %65, %67 : vector<128x1xf32>
    %71 = arith.addf %70, %69 : vector<128x1xf32>
    %cst_18 = arith.constant 1.000000e+00 : f32
    %72 = vector.broadcast %cst_18 : f32 to vector<128x1xf32>
    %73 = arith.divf %72, %71 : vector<128x1xf32>
    %74 = arith.mulf %65, %73 : vector<128x1xf32>
    %75 = vector.broadcast %74 : vector<128x1xf32> to vector<128x32xf32>
    %76 = arith.mulf %75, %6 : vector<128x32xf32>
    %77 = arith.mulf %67, %73 : vector<128x1xf32>
    %78 = vector.broadcast %77 : vector<128x1xf32> to vector<128x32xf32>
    %79 = arith.mulf %78, %7 : vector<128x32xf32>
    %80 = arith.addf %76, %79 : vector<128x32xf32>
    %81 = arith.mulf %69, %73 : vector<128x1xf32>
    %82 = vector.broadcast %81 : vector<128x1xf32> to vector<128x32xf32>
    %83 = arith.mulf %82, %8 : vector<128x32xf32>
    %84 = arith.addf %80, %83 : vector<128x32xf32>
    %85 = arith.maximumf %23, %33 : vector<128x1xf32>
    %86 = arith.maximumf %85, %38 : vector<128x1xf32>
    %87 = arith.subf %23, %86 : vector<128x1xf32>
    %88 = math.exp %87 : vector<128x1xf32>
    %89 = arith.subf %33, %86 : vector<128x1xf32>
    %90 = math.exp %89 : vector<128x1xf32>
    %91 = arith.subf %38, %86 : vector<128x1xf32>
    %92 = math.exp %91 : vector<128x1xf32>
    %93 = arith.addf %88, %90 : vector<128x1xf32>
    %94 = arith.addf %93, %92 : vector<128x1xf32>
    %cst_19 = arith.constant 1.000000e+00 : f32
    %95 = vector.broadcast %cst_19 : f32 to vector<128x1xf32>
    %96 = arith.divf %95, %94 : vector<128x1xf32>
    %97 = arith.mulf %88, %96 : vector<128x1xf32>
    %98 = vector.broadcast %97 : vector<128x1xf32> to vector<128x32xf32>
    %99 = arith.mulf %98, %6 : vector<128x32xf32>
    %100 = arith.mulf %90, %96 : vector<128x1xf32>
    %101 = vector.broadcast %100 : vector<128x1xf32> to vector<128x32xf32>
    %102 = arith.mulf %101, %7 : vector<128x32xf32>
    %103 = arith.addf %99, %102 : vector<128x32xf32>
    %104 = arith.mulf %92, %96 : vector<128x1xf32>
    %105 = vector.broadcast %104 : vector<128x1xf32> to vector<128x32xf32>
    %106 = arith.mulf %105, %8 : vector<128x32xf32>
    %107 = arith.addf %103, %106 : vector<128x32xf32>
    %108 = tpu.concatenate %61, %84, %107 in 1 : vector<128x32xf32>, vector<128x32xf32>, vector<128x32xf32> -> vector<128x96xf32>
    %c0_20 = arith.constant 0 : index
    %c0_21 = arith.constant 0 : index
    %109 = vector.load %arg5[%c0_20, %c0_21] : memref<96x32xf32, #tpu.memory_space<vmem>>, vector<96x32xf32>
    %cst_22 = arith.constant dense<0.000000e+00> : vector<128x32xf32>
    %110 = tpu.matmul %108, %109, %cst_22 {dimension_numbers = #tpu.dot_dimension_numbers<[1], [0], [0], [1], [0, 0, 1, 1], [], []>, precision = #tpu.contract_precision<fp32>} : vector<128x96xf32>, vector<96x32xf32>, vector<128x32xf32> -> vector<128x32xf32>
    %c0_23 = arith.constant 0 : index
    %c0_24 = arith.constant 0 : index
    %111 = vector.load %arg6[%c0_23, %c0_24] : memref<1x32xf32, #tpu.memory_space<vmem>>, vector<1x32xf32>
    %112 = vector.broadcast %111 : vector<1x32xf32> to vector<128x32xf32>
    %113 = arith.addf %110, %112 : vector<128x32xf32>
    %c0_25 = arith.constant 0 : index
    %c0_26 = arith.constant 0 : index
    %114 = vector.load %arg7[%c0_25, %c0_26] : memref<128x32xf32, #tpu.memory_space<vmem>>, vector<128x32xf32>
    tpu.vector_store %arg7[%c0_25, %c0_26], %113 {strides = array<i32>} : memref<128x32xf32, #tpu.memory_space<vmem>>, vector<128x32xf32>,
    %115 = tpu.iota {dimensions = array<i32: 1>} : vector<64x128xi32>
    %c0_27 = arith.constant 0 : index
    %c0_28 = arith.constant 0 : index
    %116 = vector.load %arg1[%c0_27, %c0_28] : memref<64x1xi32, #tpu.memory_space<vmem>>, vector<64x1xi32>
    %117 = vector.broadcast %116 : vector<64x1xi32> to vector<64x128xi32>
    %118 = arith.cmpi eq, %117, %115 : vector<64x128xi32>
    %119 = arith.extui %118 : vector<64x128xi1> to vector<64x128xi32>
    %120 = arith.sitofp %119 : vector<64x128xi32> to vector<64x128xf32>
    %c0_29 = arith.constant 0 : index
    %c0_30 = arith.constant 0 : index
    %121 = vector.load %arg2[%c0_29, %c0_30] : memref<64x1xi32, #tpu.memory_space<vmem>>, vector<64x1xi32>
    %122 = vector.broadcast %121 : vector<64x1xi32> to vector<64x128xi32>
    %123 = arith.cmpi eq, %122, %115 : vector<64x128xi32>
    %124 = arith.extui %123 : vector<64x128xi1> to vector<64x128xi32>
    %125 = arith.sitofp %124 : vector<64x128xi32> to vector<64x128xf32>
    %cst_31 = arith.constant dense<0.000000e+00> : vector<64x32xf32>
    %126 = tpu.matmul %120, %113, %cst_31 {dimension_numbers = #tpu.dot_dimension_numbers<[1], [0], [0], [1], [0, 0, 1, 1], [], []>, precision = #tpu.contract_precision<fp32>} : vector<64x128xf32>, vector<128x32xf32>, vector<64x32xf32> -> vector<64x32xf32>
    %cst_32 = arith.constant dense<0.000000e+00> : vector<64x32xf32>
    %127 = tpu.matmul %125, %113, %cst_32 {dimension_numbers = #tpu.dot_dimension_numbers<[1], [0], [0], [1], [0, 0, 1, 1], [], []>, precision = #tpu.contract_precision<fp32>} : vector<64x128xf32>, vector<128x32xf32>, vector<64x32xf32> -> vector<64x32xf32>
    %128 = arith.mulf %126, %127 : vector<64x32xf32>
    %cst_33 = arith.constant dense<0.000000e+00> : vector<64xf32>
    %129 = vector.multi_reduction <add>, %128, %cst_33 [1] : vector<64x32xf32> to vector<64xf32>
    %130 = vector.shape_cast %129 : vector<64xf32> to vector<64x1xf32>
    %c0_34 = arith.constant 0 : index
    %c0_35 = arith.constant 0 : index
    %131 = vector.load %arg8[%c0_34, %c0_35] : memref<64x1xf32, #tpu.memory_space<vmem>>, vector<64x1xf32>
    tpu.vector_store %arg8[%c0_34, %c0_35], %130 {strides = array<i32>} : memref<64x1xf32, #tpu.memory_space<vmem>>, vector<64x1xf32>,
    return
  }
}

</mosaic_0001>

<llo_original>
// kernel: tpu_custom_call.1
$region0: #{tpu_custom_call.1}
  #allocation0 [shape = 'u32[]', space=smem, size = 0x4, offset = 0x4, fixed_abs, tag = 'smem constant byte address 0x4 - core index']
  #allocation1 [shape = 'u32[144,128]{1,0:T(1,128)}', space=vmem, size = 0x12000, scoped, tag = 'internal scratch']
  %s0 = inlined_call_operand.vmem [shape: f32[128,144], index: 0, kind: input, shape index: {}]
  %s1 = inlined_call_operand.vmem [shape: s32[64,1], index: 1, kind: input, shape index: {}]
  %s2 = inlined_call_operand.vmem [shape: s32[64,1], index: 2, kind: input, shape index: {}]
  %s3 = inlined_call_operand.vmem [shape: f32[144,96], index: 3, kind: input, shape index: {}]
  %s4 = inlined_call_operand.vmem [shape: f32[1,96], index: 4, kind: input, shape index: {}]
  %s5 = inlined_call_operand.vmem [shape: f32[96,32], index: 5, kind: input, shape index: {}]
  %s6 = inlined_call_operand.vmem [shape: f32[1,32], index: 6, kind: input, shape index: {}]
  %s7 = inlined_call_operand.vmem [shape: f32[128,32], index: 7, kind: output, shape index: {0}]
  %s8 = inlined_call_operand.vmem [shape: f32[64,1], index: 8, kind: output, shape index: {1}]
  %9 = xla_tuple %s7, %s8
  %s10 = sld [smem:[#allocation0]]
  $region46: #{tpu_custom_call.1} parent=0
    _
  %s12 = ssub.s32 1, %s10
  %s13 = scalar_select 0, %s12, %s10
  // Predicated region
  $region2: #{tpu_custom_call.1} parent=0 // pred_check
    _
  $region3: #{tpu_custom_call.1} parent=0 // pred_check_branch
    %15 = sbr.rel (0) target = $region5
  $region4: #{tpu_custom_call.1} parent=0 // pred_region
    _
  $region5: #{tpu_custom_call.1} parent=0 // pred_fallthru
    _
  // Predicated region
  $region6: #{tpu_custom_call.1} parent=0 // pred_check
    _
  $region7: #{tpu_custom_call.1} parent=0 // pred_check_branch
    %17 = sbr.rel (0) target = $region9
  $region8: #{tpu_custom_call.1} parent=0 // pred_region
    _
  $region9: #{tpu_custom_call.1} parent=0 // pred_fallthru
    _
  // Predicated region
  $region10: #{tpu_custom_call.1} parent=0 // pred_check
    _
  $region11: #{tpu_custom_call.1} parent=0 // pred_check_branch
    %19 = sbr.rel (0) target = $region13
  $region12: #{tpu_custom_call.1} parent=0 // pred_region
    _
  $region13: #{tpu_custom_call.1} parent=0 // pred_fallthru
    _
  // Predicated region
  $region14: #{tpu_custom_call.1} parent=0 // pred_check
    _
  $region15: #{tpu_custom_call.1} parent=0 // pred_check_branch
    %21 = sbr.rel (0) target = $region17
  $region16: #{tpu_custom_call.1} parent=0 // pred_region
    _
  $region17: #{tpu_custom_call.1} parent=0 // pred_fallthru
    _
  // Predicated region
  $region18: #{tpu_custom_call.1} parent=0 // pred_check
    _
  $region19: #{tpu_custom_call.1} parent=0 // pred_check_branch
    %23 = sbr.rel (0) target = $region21
  $region20: #{tpu_custom_call.1} parent=0 // pred_region
    _
  $region21: #{tpu_custom_call.1} parent=0 // pred_fallthru
    _
  // Predicated region
  $region22: #{tpu_custom_call.1} parent=0 // pred_check
    _
  $region23: #{tpu_custom_call.1} parent=0 // pred_check_branch
    %25 = sbr.rel (0) target = $region25
  $region24: #{tpu_custom_call.1} parent=0 // pred_region
    _
  $region25: #{tpu_custom_call.1} parent=0 // pred_fallthru
    _
  // Predicated region
  $region26: #{tpu_custom_call.1} parent=0 // pred_check
    _
  $region27: #{tpu_custom_call.1} parent=0 // pred_check_branch
    %27 = sbr.rel (0) target = $region29
  $region28: #{tpu_custom_call.1} parent=0 // pred_region
    _
  $region29: #{tpu_custom_call.1} parent=0 // pred_fallthru
    _
  %v28 = vld [vmem:[%s0] sm:$0xff]
  %v29 = vld [vmem:[%s0 + $0x8] sm:$0xff]
  %v30 = vld [vmem:[%s0 + $0x10] sm:$0xff]
  %v31 = vld [vmem:[%s0 + $0x18] sm:$0xff]
  %v32 = vld [vmem:[%s0 + $0x20] sm:$0xff]
  %v33 = vld [vmem:[%s0 + $0x28] sm:$0xff]
  %v34 = vld [vmem:[%s0 + $0x30] sm:$0xff]
  %v35 = vld [vmem:[%s0 + $0x38] sm:$0xff]
  %v36 = vld [vmem:[%s0 + $0x40] sm:$0xff]
  %v37 = vld [vmem:[%s0 + $0x48] sm:$0xff]
  %v38 = vld [vmem:[%s0 + $0x50] sm:$0xff]
  %v39 = vld [vmem:[%s0 + $0x58] sm:$0xff]
  %v40 = vld [vmem:[%s0 + $0x60] sm:$0xff]
  %v41 = vld [vmem:[%s0 + $0x68] sm:$0xff]
  %v42 = vld [vmem:[%s0 + $0x70] sm:$0xff]
  %v43 = vld [vmem:[%s0 + $0x78] sm:$0xff]
  %v44 = vld [vmem:[%s0 + $0x80] sm:$0xff]
  %v45 = vld [vmem:[%s0 + $0x88] sm:$0xff]
  %v46 = vld [vmem:[%s0 + $0x90] sm:$0xff]
  %v47 = vld [vmem:[%s0 + $0x98] sm:$0xff]
  %v48 = vld [vmem:[%s0 + $0xa0] sm:$0xff]
  %v49 = vld [vmem:[%s0 + $0xa8] sm:$0xff]
  %v50 = vld [vmem:[%s0 + $0xb0] sm:$0xff]
  %v51 = vld [vmem:[%s0 + $0xb8] sm:$0xff]
  %v52 = vld [vmem:[%s0 + $0xc0] sm:$0xff]
  %v53 = vld [vmem:[%s0 + $0xc8] sm:$0xff]
  %v54 = vld [vmem:[%s0 + $0xd0] sm:$0xff]
  %v55 = vld [vmem:[%s0 + $0xd8] sm:$0xff]
  %v56 = vld [vmem:[%s0 + $0xe0] sm:$0xff]
  %v57 = vld [vmem:[%s0 + $0xe8] sm:$0xff]
  %v58 = vld [vmem:[%s0 + $0xf0] sm:$0xff]
  %v59 = vld [vmem:[%s0 + $0xf8] sm:$0xff]
  %v60 = vld [vmem:[%s3] sm:$0xff]
  %v61 = vld [vmem:[%s3 + $0x8] sm:$0xff]
  %v62 = vld [vmem:[%s3 + $0x10] sm:$0xff]
  %v63 = vld [vmem:[%s3 + $0x18] sm:$0xff]
  %v64 = vld [vmem:[%s3 + $0x20] sm:$0xff]
  %v65 = vld [vmem:[%s3 + $0x28] sm:$0xff]
  %v66 = vld [vmem:[%s3 + $0x30] sm:$0xff]
  %v67 = vld [vmem:[%s3 + $0x38] sm:$0xff]
  %v68 = vld [vmem:[%s3 + $0x40] sm:$0xff]
  %v69 = vld [vmem:[%s3 + $0x48] sm:$0xff]
  %v70 = vld [vmem:[%s3 + $0x50] sm:$0xff]
  %v71 = vld [vmem:[%s3 + $0x58] sm:$0xff]
  %v72 = vld [vmem:[%s3 + $0x60] sm:$0xff]
  %v73 = vld [vmem:[%s3 + $0x68] sm:$0xff]
  %v74 = vld [vmem:[%s3 + $0x70] sm:$0xff]
  %v75 = vld [vmem:[%s3 + $0x78] sm:$0xff]
  %v76 = vld [vmem:[%s3 + $0x80] sm:$0xff]
  %v77 = vld [vmem:[%s3 + $0x88] sm:$0xff]
  %v78 = vld [vmem:[%s4] sm:$0x1]
  %v80 = vlaneseq
  %v81 = vshrl.u32 %v80, 7
  %v82 = vsub.s32 0, %v81
  %v83 = vrot.slane %v78, %v82
  %vm85 = vcmask 130048
  %v87 = vsel %vm85, %v29, 0
  %v90 = vsel %vm85, %v31, 0
  %v93 = vsel %vm85, %v33, 0
  %v96 = vsel %vm85, %v35, 0
  %v99 = vsel %vm85, %v37, 0
  %v102 = vsel %vm85, %v39, 0
  %v105 = vsel %vm85, %v41, 0
  %v108 = vsel %vm85, %v43, 0
  %v111 = vsel %vm85, %v45, 0
  %v114 = vsel %vm85, %v47, 0
  %v117 = vsel %vm85, %v49, 0
  %v120 = vsel %vm85, %v51, 0
  %v123 = vsel %vm85, %v53, 0
  %v126 = vsel %vm85, %v55, 0
  %v129 = vsel %vm85, %v57, 0
  %v132 = vsel %vm85, %v59, 0
  %134 = vmatprep.subr.mxu0 0.0
  %v135 = vand.u32 %v60, 4294901760
  %136 = vmatpush1.msra.mxu0 %v135
  %137 = vmatprep.subr.mxu0 0.0
  %v138 = vand.u32 %v61, 4294901760
  %139 = vmatpush1.msra.mxu0 %v138
  %140 = vmatprep.subr.mxu0 0.0
  %v141 = vand.u32 %v62, 4294901760
  %142 = vmatpush1.msra.mxu0 %v141
  %143 = vmatprep.subr.mxu0 0.0
  %v144 = vand.u32 %v63, 4294901760
  %145 = vmatpush1.msra.mxu0 %v144
  %146 = vmatprep.subr.mxu0 0.0
  %v147 = vand.u32 %v64, 4294901760
  %148 = vmatpush1.msra.mxu0 %v147
  %149 = vmatprep.subr.mxu0 0.0
  %v150 = vand.u32 %v65, 4294901760
  %151 = vmatpush1.msra.mxu0 %v150
  %152 = vmatprep.subr.mxu0 0.0
  %v153 = vand.u32 %v66, 4294901760
  %154 = vmatpush1.msra.mxu0 %v153
  %155 = vmatprep.subr.mxu0 0.0
  %v156 = vand.u32 %v67, 4294901760
  %157 = vmatpush1.msra.mxu0 %v156
  %158 = vmatprep.subr.mxu0 0.0
  %v159 = vand.u32 %v68, 4294901760
  %160 = vmatpush1.msra.mxu0 %v159
  %161 = vmatprep.subr.mxu0 0.0
  %v162 = vand.u32 %v69, 4294901760
  %163 = vmatpush1.msra.mxu0 %v162
  %164 = vmatprep.subr.mxu0 0.0
  %v165 = vand.u32 %v70, 4294901760
  %166 = vmatpush1.msra.mxu0 %v165
  %167 = vmatprep.subr.mxu0 0.0
  %v168 = vand.u32 %v71, 4294901760
  %169 = vmatpush1.msra.mxu0 %v168
  %170 = vmatprep.subr.mxu0 0.0
  %v171 = vand.u32 %v72, 4294901760
  %172 = vmatpush1.msra.mxu0 %v171
  %173 = vmatprep.subr.mxu0 0.0
  %v174 = vand.u32 %v73, 4294901760
  %175 = vmatpush1.msra.mxu0 %v174
  %176 = vmatprep.subr.mxu0 0.0
  %v177 = vand.u32 %v74, 4294901760
  %178 = vmatpush1.msra.mxu0 %v177
  %179 = vmatprep.subr.mxu0 0.0
  %v180 = vand.u32 %v75, 4294901760
  %181 = vmatpush1.msra.mxu0 %v180
  %182 = vmatprep.subr.mxu0 0.0
  %v183 = vand.u32 %v76, 4294901760
  %184 = vmatpush1.msra.mxu0 %v183
  %185 = vmatprep.subr.mxu0 0.0
  %v186 = vand.u32 %v77, 4294901760
  %187 = vmatpush1.msra.mxu0 %v186
  %188 = vmatprep.subr.mxu0 0.0
  %189 = vmatpush1.msra.mxu0 0.0
  %190 = vmatprep.subr.mxu0 0.0
  %191 = vmatpush1.msra.mxu0 0.0
  %192 = vmatprep.subr.mxu0 0.0
  %193 = vmatpush1.msra.mxu0 0.0
  %194 = vmatprep.subr.mxu0 0.0
  %195 = vmatpush1.msra.mxu0 0.0
  %196 = vmatprep.subr.mxu0 0.0
  %197 = vmatpush1.msra.mxu0 0.0
  %198 = vmatprep.subr.mxu0 0.0
  %199 = vmatpush1.msra.mxu0 0.0
  %200 = vmatprep.subr.mxu0 0.0
  %201 = vmatpush1.msra.mxu0 0.0
  %202 = vmatprep.subr.mxu0 0.0
  %203 = vmatpush1.msra.mxu0 0.0
  %204 = vmatprep.subr.mxu0 0.0
  %205 = vmatpush1.msra.mxu0 0.0
  %206 = vmatprep.subr.mxu0 0.0
  %207 = vmatpush1.msra.mxu0 0.0
  %208 = vmatprep.subr.mxu0 0.0
  %209 = vmatpush1.msra.mxu0 0.0
  %210 = vmatprep.subr.mxu0 0.0
  %211 = vmatpush1.msra.mxu0 0.0
  %212 = vmatprep.subr.mxu0 0.0
  %213 = vmatpush1.msra.mxu0 0.0
  %214 = vmatprep.subr.mxu0 0.0
  %215 = vmatpush1.msra.mxu0 0.0
  %v216 = vand.u32 %v87, 4294901760
  %v217 = vsub.f32 %v87, %v216
  %v218 = vand.u32 %v217, 4294901760
  %v219 = vsub.f32 %v217, %v218
  %v220 = vand.u32 %v219, 4294901760
  %221 = vmatprep.mubr.f32.mxu0 %v220
  %v222 = vand.u32 %v28, 4294901760
  %v223 = vsub.f32 %v28, %v222
  %v224 = vand.u32 %v223, 4294901760
  %v225 = vsub.f32 %v223, %v224
  %v226 = vand.u32 %v225, 4294901760
  %227 = vmatmul.mubr.f32.gmra.mrb[0].mxu0 %v226
  %v228 = vpop.f32.mrb[0].mxu0
  %v229 = vadd.f32 %v83, %v228
  %v230 = vpop.f32.mrb[0].mxu0
  %v231 = vand.u32 %v90, 4294901760
  %v232 = vsub.f32 %v90, %v231
  %v233 = vand.u32 %v232, 4294901760
  %v234 = vsub.f32 %v232, %v233
  %v235 = vand.u32 %v234, 4294901760
  %236 = vmatprep.mubr.f32.mxu0 %v235
  %v237 = vand.u32 %v30, 4294901760
  %v238 = vsub.f32 %v30, %v237
  %v239 = vand.u32 %v238, 4294901760
  %v240 = vsub.f32 %v238, %v239
  %v241 = vand.u32 %v240, 4294901760
  %242 = vmatmul.mubr.f32.gmra.mrb[0].mxu0 %v241
  %v243 = vpop.f32.mrb[0].mxu0
  %v244 = vadd.f32 %v83, %v243
  %v245 = vpop.f32.mrb[0].mxu0
  %v246 = vand.u32 %v93, 4294901760
  %v247 = vsub.f32 %v93, %v246
  %v248 = vand.u32 %v247, 4294901760
  %v249 = vsub.f32 %v247, %v248
  %v250 = vand.u32 %v249, 4294901760
  %251 = vmatprep.mubr.f32.mxu0 %v250
  %v252 = vand.u32 %v32, 4294901760
  %v253 = vsub.f32 %v32, %v252
  %v254 = vand.u32 %v253, 4294901760
  %v255 = vsub.f32 %v253, %v254
  %v256 = vand.u32 %v255, 4294901760
  %257 = vmatmul.mubr.f32.gmra.mrb[0].mxu0 %v256
  %v258 = vpop.f32.mrb[0].mxu0
  %v259 = vadd.f32 %v83, %v258
  %v260 = vpop.f32.mrb[0].mxu0
  %v261 = vand.u32 %v96, 4294901760
  %v262 = vsub.f32 %v96, %v261
  %v263 = vand.u32 %v262, 4294901760
  %v264 = vsub.f32 %v262, %v263
  %v265 = vand.u32 %v264, 4294901760
  %266 = vmatprep.mubr.f32.mxu0 %v265
  %v267 = vand.u32 %v34, 4294901760
  %v268 = vsub.f32 %v34, %v267
  %v269 = vand.u32 %v268, 4294901760
  %v270 = vsub.f32 %v268, %v269
  %v271 = vand.u32 %v270, 4294901760
  %272 = vmatmul.mubr.f32.gmra.mrb[0].mxu0 %v271
  %v273 = vpop.f32.mrb[0].mxu0
  %v274 = vadd.f32 %v83, %v273
  %v275 = vpop.f32.mrb[0].mxu0
  %v276 = vand.u32 %v99, 4294901760
  %v277 = vsub.f32 %v99, %v276
  %v278 = vand.u32 %v277, 4294901760
  %v279 = vsub.f32 %v277, %v278
  %v280 = vand.u32 %v279, 4294901760
  %281 = vmatprep.mubr.f32.mxu0 %v280
  %v282 = vand.u32 %v36, 4294901760
  %v283 = vsub.f32 %v36, %v282
  %v284 = vand.u32 %v283, 4294901760
  %v285 = vsub.f32 %v283, %v284
  %v286 = vand.u32 %v285, 4294901760
  %287 = vmatmul.mubr.f32.gmra.mrb[0].mxu0 %v286
  %v288 = vpop.f32.mrb[0].mxu0
  %v289 = vadd.f32 %v83, %v288
  %v290 = vpop.f32.mrb[0].mxu0
  %v291 = vand.u32 %v102, 4294901760
  %v292 = vsub.f32 %v102, %v291
  %v293 = vand.u32 %v292, 4294901760
  %v294 = vsub.f32 %v292, %v293
  %v295 = vand.u32 %v294, 4294901760
  %296 = vmatprep.mubr.f32.mxu0 %v295
  %v297 = vand.u32 %v38, 4294901760
  %v298 = vsub.f32 %v38, %v297
  %v299 = vand.u32 %v298, 4294901760
  %v300 = vsub.f32 %v298, %v299
  %v301 = vand.u32 %v300, 4294901760
  %302 = vmatmul.mubr.f32.gmra.mrb[0].mxu0 %v301
  %v303 = vpop.f32.mrb[0].mxu0
  %v304 = vadd.f32 %v83, %v303
  %v305 = vpop.f32.mrb[0].mxu0
  %v306 = vand.u32 %v105, 4294901760
  %v307 = vsub.f32 %v105, %v306
  %v308 = vand.u32 %v307, 4294901760
  %v309 = vsub.f32 %v307, %v308
  %v310 = vand.u32 %v309, 4294901760
  %311 = vmatprep.mubr.f32.mxu0 %v310
  %v312 = vand.u32 %v40, 4294901760
  %v313 = vsub.f32 %v40, %v312
  %v314 = vand.u32 %v313, 4294901760
  %v315 = vsub.f32 %v313, %v314
  %v316 = vand.u32 %v315, 4294901760
  %317 = vmatmul.mubr.f32.gmra.mrb[0].mxu0 %v316
  %v318 = vpop.f32.mrb[0].mxu0
  %v319 = vadd.f32 %v83, %v318
  %v320 = vpop.f32.mrb[0].mxu0
  %v321 = vand.u32 %v108, 4294901760
  %v322 = vsub.f32 %v108, %v321
  %v323 = vand.u32 %v322, 4294901760
  %v324 = vsub.f32 %v322, %v323
  %v325 = vand.u32 %v324, 4294901760
  %326 = vmatprep.mubr.f32.mxu0 %v325
  %v327 = vand.u32 %v42, 4294901760
  %v328 = vsub.f32 %v42, %v327
  %v329 = vand.u32 %v328, 4294901760
  %v330 = vsub.f32 %v328, %v329
  %v331 = vand.u32 %v330, 4294901760
  %332 = vmatmul.mubr.f32.gmra.mrb[0].mxu0 %v331
  %v333 = vpop.f32.mrb[0].mxu0
  %v334 = vadd.f32 %v83, %v333
  %v335 = vpop.f32.mrb[0].mxu0
  %v336 = vand.u32 %v111, 4294901760
  %v337 = vsub.f32 %v111, %v336
  %v338 = vand.u32 %v337, 4294901760
  %v339 = vsub.f32 %v337, %v338
  %v340 = vand.u32 %v339, 4294901760
  %341 = vmatprep.mubr.f32.mxu0 %v340
  %v342 = vand.u32 %v44, 4294901760
  %v343 = vsub.f32 %v44, %v342
  %v344 = vand.u32 %v343, 4294901760
  %v345 = vsub.f32 %v343, %v344
  %v346 = vand.u32 %v345, 4294901760
  %347 = vmatmul.mubr.f32.gmra.mrb[0].mxu0 %v346
  %v348 = vpop.f32.mrb[0].mxu0
  %v349 = vadd.f32 %v83, %v348
  %v350 = vpop.f32.mrb[0].mxu0
  %v351 = vand.u32 %v114, 4294901760
  %v352 = vsub.f32 %v114, %v351
  %v353 = vand.u32 %v352, 4294901760
  %v354 = vsub.f32 %v352, %v353
  %v355 = vand.u32 %v354, 4294901760
  %356 = vmatprep.mubr.f32.mxu0 %v355
  %v357 = vand.u32 %v46, 4294901760
  %v358 = vsub.f32 %v46, %v357
  %v359 = vand.u32 %v358, 4294901760
  %v360 = vsub.f32 %v358, %v359
  %v361 = vand.u32 %v360, 4294901760
  %362 = vmatmul.mubr.f32.gmra.mrb[0].mxu0 %v361
  %v363 = vpop.f32.mrb[0].mxu0
  %v364 = vadd.f32 %v83, %v363
  %v365 = vpop.f32.mrb[0].mxu0
  %v366 = vand.u32 %v117, 4294901760
  %v367 = vsub.f32 %v117, %v366
  %v368 = vand.u32 %v367, 4294901760
  %v369 = vsub.f32 %v367, %v368
  %v370 = vand.u32 %v369, 4294901760
  %371 = vmatprep.mubr.f32.mxu0 %v370
  %v372 = vand.u32 %v48, 4294901760
  %v373 = vsub.f32 %v48, %v372
  %v374 = vand.u32 %v373, 4294901760
  %v375 = vsub.f32 %v373, %v374
  %v376 = vand.u32 %v375, 4294901760
  %377 = vmatmul.mubr.f32.gmra.mrb[0].mxu0 %v376
  %v378 = vpop.f32.mrb[0].mxu0
  %v379 = vadd.f32 %v83, %v378
  %v380 = vpop.f32.mrb[0].mxu0
  %v381 = vand.u32 %v120, 4294901760
  %v382 = vsub.f32 %v120, %v381
  %v383 = vand.u32 %v382, 4294901760
  %v384 = vsub.f32 %v382, %v383
  %v385 = vand.u32 %v384, 4294901760
  %386 = vmatprep.mubr.f32.mxu0 %v385
  %v387 = vand.u32 %v50, 4294901760
  %v388 = vsub.f32 %v50, %v387
  %v389 = vand.u32 %v388, 4294901760
  %v390 = vsub.f32 %v388, %v389
  %v391 = vand.u32 %v390, 4294901760
  %392 = vmatmul.mubr.f32.gmra.mrb[0].mxu0 %v391
  %v393 = vpop.f32.mrb[0].mxu0
  %v394 = vadd.f32 %v83, %v393
  %v395 = vpop.f32.mrb[0].mxu0
  %v396 = vand.u32 %v123, 4294901760
  %v397 = vsub.f32 %v123, %v396
  %v398 = vand.u32 %v397, 4294901760
  %v399 = vsub.f32 %v397, %v398
  %v400 = vand.u32 %v399, 4294901760
  %401 = vmatprep.mubr.f32.mxu0 %v400
  %v402 = vand.u32 %v52, 4294901760
  %v403 = vsub.f32 %v52, %v402
  %v404 = vand.u32 %v403, 4294901760
  %v405 = vsub.f32 %v403, %v404
  %v406 = vand.u32 %v405, 4294901760
  %407 = vmatmul.mubr.f32.gmra.mrb[0].mxu0 %v406
  %v408 = vpop.f32.mrb[0].mxu0
  %v409 = vadd.f32 %v83, %v408
  %v410 = vpop.f32.mrb[0].mxu0
  %v411 = vand.u32 %v126, 4294901760
  %v412 = vsub.f32 %v126, %v411
  %v413 = vand.u32 %v412, 4294901760
  %v414 = vsub.f32 %v412, %v413
  %v415 = vand.u32 %v414, 4294901760
  %416 = vmatprep.mubr.f32.mxu0 %v415
  %v417 = vand.u32 %v54, 4294901760
  %v418 = vsub.f32 %v54, %v417
  %v419 = vand.u32 %v418, 4294901760
  %v420 = vsub.f32 %v418, %v419
  %v421 = vand.u32 %v420, 4294901760
  %422 = vmatmul.mubr.f32.gmra.mrb[0].mxu0 %v421
  %v423 = vpop.f32.mrb[0].mxu0
  %v424 = vadd.f32 %v83, %v423
  %v425 = vpop.f32.mrb[0].mxu0
  %v426 = vand.u32 %v129, 4294901760
  %v427 = vsub.f32 %v129, %v426
  %v428 = vand.u32 %v427, 4294901760
  %v429 = vsub.f32 %v427, %v428
  %v430 = vand.u32 %v429, 4294901760
  %431 = vmatprep.mubr.f32.mxu0 %v430
  %v432 = vand.u32 %v56, 4294901760
  %v433 = vsub.f32 %v56, %v432
  %v434 = vand.u32 %v433, 4294901760
  %v435 = vsub.f32 %v433, %v434
  %v436 = vand.u32 %v435, 4294901760
  %437 = vmatmul.mubr.f32.gmra.mrb[0].mxu0 %v436
  %v438 = vpop.f32.mrb[0].mxu0
  %v439 = vadd.f32 %v83, %v438
  %v440 = vpop.f32.mrb[0].mxu0
  %v441 = vand.u32 %v132, 4294901760
  %v442 = vsub.f32 %v132, %v441
  %v443 = vand.u32 %v442, 4294901760
  %v444 = vsub.f32 %v442, %v443
  %v445 = vand.u32 %v444, 4294901760
  %446 = vmatprep.mubr.f32.mxu0 %v445
  %v447 = vand.u32 %v58, 4294901760
  %v448 = vsub.f32 %v58, %v447
  %v449 = vand.u32 %v448, 4294901760
  %v450 = vsub.f32 %v448, %v449
  %v451 = vand.u32 %v450, 4294901760
  %452 = vmatmul.mubr.f32.gmra.mrb[0].mxu0 %v451
  %v453 = vpop.f32.mrb[0].mxu0
  %v454 = vadd.f32 %v83, %v453
  %v455 = vpop.f32.mrb[0].mxu0
  %456 = vdwg.mxu0
  %457 = vmatprep.subr.mxu0 0.0
  %v458 = vand.u32 %v60, 4294901760
  %v459 = vsub.f32 %v60, %v458
  %v460 = vand.u32 %v459, 4294901760
  %v461 = vsub.f32 %v459, %v460
  %v462 = vand.u32 %v461, 4294901760
  %463 = vmatpush1.msra.mxu0 %v462
  %464 = vmatprep.subr.mxu0 0.0
  %v465 = vand.u32 %v61, 4294901760
  %v466 = vsub.f32 %v61, %v465
  %v467 = vand.u32 %v466, 4294901760
  %v468 = vsub.f32 %v466, %v467
  %v469 = vand.u32 %v468, 4294901760
  %470 = vmatpush1.msra.mxu0 %v469
  %471 = vmatprep.subr.mxu0 0.0
  %v472 = vand.u32 %v62, 4294901760
  %v473 = vsub.f32 %v62, %v472
  %v474 = vand.u32 %v473, 4294901760
  %v475 = vsub.f32 %v473, %v474
  %v476 = vand.u32 %v475, 4294901760
  %477 = vmatpush1.msra.mxu0 %v476
  %478 = vmatprep.subr.mxu0 0.0
  %v479 = vand.u32 %v63, 4294901760
  %v480 = vsub.f32 %v63, %v479
  %v481 = vand.u32 %v480, 4294901760
  %v482 = vsub.f32 %v480, %v481
  %v483 = vand.u32 %v482, 4294901760
  %484 = vmatpush1.msra.mxu0 %v483
  %485 = vmatprep.subr.mxu0 0.0
  %v486 = vand.u32 %v64, 4294901760
  %v487 = vsub.f32 %v64, %v486
  %v488 = vand.u32 %v487, 4294901760
  %v489 = vsub.f32 %v487, %v488
  %v490 = vand.u32 %v489, 4294901760
  %491 = vmatpush1.msra.mxu0 %v490
  %492 = vmatprep.subr.mxu0 0.0
  %v493 = vand.u32 %v65, 4294901760
  %v494 = vsub.f32 %v65, %v493
  %v495 = vand.u32 %v494, 4294901760
  %v496 = vsub.f32 %v494, %v495
  %v497 = vand.u32 %v496, 4294901760
  %498 = vmatpush1.msra.mxu0 %v497
  %499 = vmatprep.subr.mxu0 0.0
  %v500 = vand.u32 %v66, 4294901760
  %v501 = vsub.f32 %v66, %v500
  %v502 = vand.u32 %v501, 4294901760
  %v503 = vsub.f32 %v501, %v502
  %v504 = vand.u32 %v503, 4294901760
  %505 = vmatpush1.msra.mxu0 %v504
  %506 = vmatprep.subr.mxu0 0.0
  %v507 = vand.u32 %v67, 4294901760
  %v508 = vsub.f32 %v67, %v507
  %v509 = vand.u32 %v508, 4294901760
  %v510 = vsub.f32 %v508, %v509
  %v511 = vand.u32 %v510, 4294901760
  %512 = vmatpush1.msra.mxu0 %v511
  %513 = vmatprep.subr.mxu0 0.0
  %v514 = vand.u32 %v68, 4294901760
  %v515 = vsub.f32 %v68, %v514
  %v516 = vand.u32 %v515, 4294901760
  %v517 = vsub.f32 %v515, %v516
  %v518 = vand.u32 %v517, 4294901760
  %519 = vmatpush1.msra.mxu0 %v518
  %520 = vmatprep.subr.mxu0 0.0
  %v521 = vand.u32 %v69, 4294901760
  %v522 = vsub.f32 %v69, %v521
  %v523 = vand.u32 %v522, 4294901760
  %v524 = vsub.f32 %v522, %v523
  %v525 = vand.u32 %v524, 4294901760
  %526 = vmatpush1.msra.mxu0 %v525
  %527 = vmatprep.subr.mxu0 0.0
  %v528 = vand.u32 %v70, 4294901760
  %v529 = vsub.f32 %v70, %v528
  %v530 = vand.u32 %v529, 4294901760
  %v531 = vsub.f32 %v529, %v530
  %v532 = vand.u32 %v531, 4294901760
  %533 = vmatpush1.msra.mxu0 %v532
  %534 = vmatprep.subr.mxu0 0.0
  %v535 = vand.u32 %v71, 4294901760
  %v536 = vsub.f32 %v71, %v535
  %v537 = vand.u32 %v536, 4294901760
  %v538 = vsub.f32 %v536, %v537
  %v539 = vand.u32 %v538, 4294901760
  %540 = vmatpush1.msra.mxu0 %v539
  %541 = vmatprep.subr.mxu0 0.0
  %v542 = vand.u32 %v72, 4294901760
  %v543 = vsub.f32 %v72, %v542
  %v544 = vand.u32 %v543, 4294901760
  %v545 = vsub.f32 %v543, %v544
  %v546 = vand.u32 %v545, 4294901760
  %547 = vmatpush1.msra.mxu0 %v546
  %548 = vmatprep.subr.mxu0 0.0
  %v549 = vand.u32 %v73, 4294901760
  %v550 = vsub.f32 %v73, %v549
  %v551 = vand.u32 %v550, 4294901760
  %v552 = vsub.f32 %v550, %v551
  %v553 = vand.u32 %v552, 4294901760
  %554 = vmatpush1.msra.mxu0 %v553
  %555 = vmatprep.subr.mxu0 0.0
  %v556 = vand.u32 %v74, 4294901760
  %v557 = vsub.f32 %v74, %v556
  %v558 = vand.u32 %v557, 4294901760
  %v559 = vsub.f32 %v557, %v558
  %v560 = vand.u32 %v559, 4294901760
  %561 = vmatpush1.msra.mxu0 %v560
  %562 = vmatprep.subr.mxu0 0.0
  %v563 = vand.u32 %v75, 4294901760
  %v564 = vsub.f32 %v75, %v563
  %v565 = vand.u32 %v564, 4294901760
  %v566 = vsub.f32 %v564, %v565
  %v567 = vand.u32 %v566, 4294901760
  %568 = vmatpush1.msra.mxu0 %v567
  %569 = vmatprep.subr.mxu0 0.0
  %v570 = vand.u32 %v76, 4294901760
  %v571 = vsub.f32 %v76, %v570
  %v572 = vand.u32 %v571, 4294901760
  %v573 = vsub.f32 %v571, %v572
  %v574 = vand.u32 %v573, 4294901760
  %575 = vmatpush1.msra.mxu0 %v574
  %576 = vmatprep.subr.mxu0 0.0
  %v577 = vand.u32 %v77, 4294901760
  %v578 = vsub.f32 %v77, %v577
  %v579 = vand.u32 %v578, 4294901760
  %v580 = vsub.f32 %v578, %v579
  %v581 = vand.u32 %v580, 4294901760
  %582 = vmatpush1.msra.mxu0 %v581
  %583 = vmatprep.subr.mxu0 0.0
  %584 = vmatpush1.msra.mxu0 0.0
  %585 = vmatprep.subr.mxu0 0.0
  %586 = vmatpush1.msra.mxu0 0.0
  %587 = vmatprep.subr.mxu0 0.0
  %588 = vmatpush1.msra.mxu0 0.0
  %589 = vmatprep.subr.mxu0 0.0
  %590 = vmatpush1.msra.mxu0 0.0
  %591 = vmatprep.subr.mxu0 0.0
  %592 = vmatpush1.msra.mxu0 0.0
  %593 = vmatprep.subr.mxu0 0.0
  %594 = vmatpush1.msra.mxu0 0.0
  %595 = vmatprep.subr.mxu0 0.0
  %596 = vmatpush1.msra.mxu0 0.0
  %597 = vmatprep.subr.mxu0 0.0
  %598 = vmatpush1.msra.mxu0 0.0
  %599 = vmatprep.subr.mxu0 0.0
  %600 = vmatpush1.msra.mxu0 0.0
  %601 = vmatprep.subr.mxu0 0.0
  %602 = vmatpush1.msra.mxu0 0.0
  %603 = vmatprep.subr.mxu0 0.0
  %604 = vmatpush1.msra.mxu0 0.0
  %605 = vmatprep.subr.mxu0 0.0
  %606 = vmatpush1.msra.mxu0 0.0
  %607 = vmatprep.subr.mxu0 0.0
  %608 = vmatpush1.msra.mxu0 0.0
  %609 = vmatprep.subr.mxu0 0.0
  %610 = vmatpush1.msra.mxu0 0.0
  %v611 = vand.u32 %v87, 4294901760
  %612 = vmatprep.mubr.f32.mxu0 %v611
  %v613 = vand.u32 %v28, 4294901760
  %614 = vmatmul.mubr.f32.gmra.mrb[0].mxu0 %v613
  %v615 = vpop.f32.mrb[0].mxu0
  %v616 = vadd.f32 %v229, %v615
  %v617 = vpop.f32.mrb[0].mxu0
  %v618 = vand.u32 %v90, 4294901760
  %619 = vmatprep.mubr.f32.mxu0 %v618
  %v620 = vand.u32 %v30, 4294901760
  %621 = vmatmul.mubr.f32.gmra.mrb[0].mxu0 %v620
  %v622 = vpop.f32.mrb[0].mxu0
  %v623 = vadd.f32 %v244, %v622
  %v624 = vpop.f32.mrb[0].mxu0
  %v625 = vand.u32 %v93, 4294901760
  %626 = vmatprep.mubr.f32.mxu0 %v625
  %v627 = vand.u32 %v32, 4294901760
  %628 = vmatmul.mubr.f32.gmra.mrb[0].mxu0 %v627
  %v629 = vpop.f32.mrb[0].mxu0
  %v630 = vadd.f32 %v259, %v629
  %v631 = vpop.f32.mrb[0].mxu0
  %v632 = vand.u32 %v96, 4294901760
  %633 = vmatprep.mubr.f32.mxu0 %v632
  %v634 = vand.u32 %v34, 4294901760
  %635 = vmatmul.mubr.f32.gmra.mrb[0].mxu0 %v634
  %v636 = vpop.f32.mrb[0].mxu0
  %v637 = vadd.f32 %v274, %v636
  %v638 = vpop.f32.mrb[0].mxu0
  %v639 = vand.u32 %v99, 4294901760
  %640 = vmatprep.mubr.f32.mxu0 %v639
  %v641 = vand.u32 %v36, 4294901760
  %642 = vmatmul.mubr.f32.gmra.mrb[0].mxu0 %v641
  %v643 = vpop.f32.mrb[0].mxu0
  %v644 = vadd.f32 %v289, %v643
  %v645 = vpop.f32.mrb[0].mxu0
  %v646 = vand.u32 %v102, 4294901760
  %647 = vmatprep.mubr.f32.mxu0 %v646
  %v648 = vand.u32 %v38, 4294901760
  %649 = vmatmul.mubr.f32.gmra.mrb[0].mxu0 %v648
  %v650 = vpop.f32.mrb[0].mxu0
  %v651 = vadd.f32 %v304, %v650
  %v652 = vpop.f32.mrb[0].mxu0
  %v653 = vand.u32 %v105, 4294901760
  %654 = vmatprep.mubr.f32.mxu0 %v653
  %v655 = vand.u32 %v40, 4294901760
  %656 = vmatmul.mubr.f32.gmra.mrb[0].mxu0 %v655
  %v657 = vpop.f32.mrb[0].mxu0
  %v658 = vadd.f32 %v319, %v657
  %v659 = vpop.f32.mrb[0].mxu0
  %v660 = vand.u32 %v108, 4294901760
  %661 = vmatprep.mubr.f32.mxu0 %v660
  %v662 = vand.u32 %v42, 4294901760
  %663 = vmatmul.mubr.f32.gmra.mrb[0].mxu0 %v662
  %v664 = vpop.f32.mrb[0].mxu0
  %v665 = vadd.f32 %v334, %v664
  %v666 = vpop.f32.mrb[0].mxu0
  %v667 = vand.u32 %v111, 4294901760
  %668 = vmatprep.mubr.f32.mxu0 %v667
  %v669 = vand.u32 %v44, 4294901760
  %670 = vmatmul.mubr.f32.gmra.mrb[0].mxu0 %v669
  %v671 = vpop.f32.mrb[0].mxu0
  %v672 = vadd.f32 %v349, %v671
  %v673 = vpop.f32.mrb[0].mxu0
  %v674 = vand.u32 %v114, 4294901760
  %675 = vmatprep.mubr.f32.mxu0 %v674
  %v676 = vand.u32 %v46, 4294901760
  %677 = vmatmul.mubr.f32.gmra.mrb[0].mxu0 %v676
  %v678 = vpop.f32.mrb[0].mxu0
  %v679 = vadd.f32 %v364, %v678
  %v680 = vpop.f32.mrb[0].mxu0
  %v681 = vand.u32 %v117, 4294901760
  %682 = vmatprep.mubr.f32.mxu0 %v681
  %v683 = vand.u32 %v48, 4294901760
  %684 = vmatmul.mubr.f32.gmra.mrb[0].mxu0 %v683
  %v685 = vpop.f32.mrb[0].mxu0
  %v686 = vadd.f32 %v379, %v685
  %v687 = vpop.f32.mrb[0].mxu0
  %v688 = vand.u32 %v120, 4294901760
  %689 = vmatprep.mubr.f32.mxu0 %v688
  %v690 = vand.u32 %v50, 4294901760
  %691 = vmatmul.mubr.f32.gmra.mrb[0].mxu0 %v690
  %v692 = vpop.f32.mrb[0].mxu0
  %v693 = vadd.f32 %v394, %v692
  %v694 = vpop.f32.mrb[0].mxu0
  %v695 = vand.u32 %v123, 4294901760
  %696 = vmatprep.mubr.f32.mxu0 %v695
  %v697 = vand.u32 %v52, 4294901760
  %698 = vmatmul.mubr.f32.gmra.mrb[0].mxu0 %v697
  %v699 = vpop.f32.mrb[0].mxu0
  %v700 = vadd.f32 %v409, %v699
  %v701 = vpop.f32.mrb[0].mxu0
  %v702 = vand.u32 %v126, 4294901760
  %703 = vmatprep.mubr.f32.mxu0 %v702
  %v704 = vand.u32 %v54, 4294901760
  %705 = vmatmul.mubr.f32.gmra.mrb[0].mxu0 %v704
  %v706 = vpop.f32.mrb[0].mxu0
  %v707 = vadd.f32 %v424, %v706
  %v708 = vpop.f32.mrb[0].mxu0
  %v709 = vand.u32 %v129, 4294901760
  %710 = vmatprep.mubr.f32.mxu0 %v709
  %v711 = vand.u32 %v56, 4294901760
  %712 = vmatmul.mubr.f32.gmra.mrb[0].mxu0 %v711
  %v713 = vpop.f32.mrb[0].mxu0
  %v714 = vadd.f32 %v439, %v713
  %v715 = vpop.f32.mrb[0].mxu0
  %v716 = vand.u32 %v132, 4294901760
  %717 = vmatprep.mubr.f32.mxu0 %v716
  %v718 = vand.u32 %v58, 4294901760
  %719 = vmatmul.mubr.f32.gmra.mrb[0].mxu0 %v718
  %v720 = vpop.f32.mrb[0].mxu0
  %v721 = vadd.f32 %v454, %v720
  %v722 = vpop.f32.mrb[0].mxu0
  %723 = vdwg.mxu0
  %724 = vmatprep.subr.mxu0 0.0
  %v725 = vand.u32 %v60, 4294901760
  %v726 = vsub.f32 %v60, %v725
  %727 = vmatpush1.msra.mxu0 %v726
  %728 = vmatprep.subr.mxu0 0.0
  %v729 = vand.u32 %v61, 4294901760
  %v730 = vsub.f32 %v61, %v729
  %731 = vmatpush1.msra.mxu0 %v730
  %732 = vmatprep.subr.mxu0 0.0
  %v733 = vand.u32 %v62, 4294901760
  %v734 = vsub.f32 %v62, %v733
  %735 = vmatpush1.msra.mxu0 %v734
  %736 = vmatprep.subr.mxu0 0.0
  %v737 = vand.u32 %v63, 4294901760
  %v738 = vsub.f32 %v63, %v737
  %739 = vmatpush1.msra.mxu0 %v738
  %740 = vmatprep.subr.mxu0 0.0
  %v741 = vand.u32 %v64, 4294901760
  %v742 = vsub.f32 %v64, %v741
  %743 = vmatpush1.msra.mxu0 %v742
  %744 = vmatprep.subr.mxu0 0.0
  %v745 = vand.u32 %v65, 4294901760
  %v746 = vsub.f32 %v65, %v745
  %747 = vmatpush1.msra.mxu0 %v746
  %748 = vmatprep.subr.mxu0 0.0
  %v749 = vand.u32 %v66, 4294901760
  %v750 = vsub.f32 %v66, %v749
  %751 = vmatpush1.msra.mxu0 %v750
  %752 = vmatprep.subr.mxu0 0.0
  %v753 = vand.u32 %v67, 4294901760
  %v754 = vsub.f32 %v67, %v753
  %755 = vmatpush1.msra.mxu0 %v754
  %756 = vmatprep.subr.mxu0 0.0
  %v757 = vand.u32 %v68, 4294901760
  %v758 = vsub.f32 %v68, %v757
  %759 = vmatpush1.msra.mxu0 %v758
  %760 = vmatprep.subr.mxu0 0.0
  %v761 = vand.u32 %v69, 4294901760
  %v762 = vsub.f32 %v69, %v761
  %763 = vmatpush1.msra.mxu0 %v762
  %764 = vmatprep.subr.mxu0 0.0
  %v765 = vand.u32 %v70, 4294901760
  %v766 = vsub.f32 %v70, %v765
  %767 = vmatpush1.msra.mxu0 %v766
  %768 = vmatprep.subr.mxu0 0.0
  %v769 = vand.u32 %v71, 4294901760
  %v770 = vsub.f32 %v71, %v769
  %771 = vmatpush1.msra.mxu0 %v770
  %772 = vmatprep.subr.mxu0 0.0
  %v773 = vand.u32 %v72, 4294901760
  %v774 = vsub.f32 %v72, %v773
  %775 = vmatpush1.msra.mxu0 %v774
  %776 = vmatprep.subr.mxu0 0.0
  %v777 = vand.u32 %v73, 4294901760
  %v778 = vsub.f32 %v73, %v777
  %779 = vmatpush1.msra.mxu0 %v778
  %780 = vmatprep.subr.mxu0 0.0
  %v781 = vand.u32 %v74, 4294901760
  %v782 = vsub.f32 %v74, %v781
  %783 = vmatpush1.msra.mxu0 %v782
  %784 = vmatprep.subr.mxu0 0.0
  %v785 = vand.u32 %v75, 4294901760
  %v786 = vsub.f32 %v75, %v785
  %787 = vmatpush1.msra.mxu0 %v786
  %788 = vmatprep.subr.mxu0 0.0
  %v789 = vand.u32 %v76, 4294901760
  %v790 = vsub.f32 %v76, %v789
  %791 = vmatpush1.msra.mxu0 %v790
  %792 = vmatprep.subr.mxu0 0.0
  %v793 = vand.u32 %v77, 4294901760
  %v794 = vsub.f32 %v77, %v793
  %795 = vmatpush1.msra.mxu0 %v794
  %796 = vmatprep.subr.mxu0 0.0
  %797 = vmatpush1.msra.mxu0 0.0
  %798 = vmatprep.subr.mxu0 0.0
  %799 = vmatpush1.msra.mxu0 0.0
  %800 = vmatprep.subr.mxu0 0.0
  %801 = vmatpush1.msra.mxu0 0.0
  %802 = vmatprep.subr.mxu0 0.0
  %803 = vmatpush1.msra.mxu0 0.0
  %804 = vmatprep.subr.mxu0 0.0
  %805 = vmatpush1.msra.mxu0 0.0
  %806 = vmatprep.subr.mxu0 0.0
  %807 = vmatpush1.msra.mxu0 0.0
  %808 = vmatprep.subr.mxu0 0.0
  %809 = vmatpush1.msra.mxu0 0.0
  %810 = vmatprep.subr.mxu0 0.0
  %811 = vmatpush1.msra.mxu0 0.0
  %812 = vmatprep.subr.mxu0 0.0
  %813 = vmatpush1.msra.mxu0 0.0
  %814 = vmatprep.subr.mxu0 0.0
  %815 = vmatpush1.msra.mxu0 0.0
  %816 = vmatprep.subr.mxu0 0.0
  %817 = vmatpush1.msra.mxu0 0.0
  %818 = vmatprep.subr.mxu0 0.0
  %819 = vmatpush1.msra.mxu0 0.0
  %820 = vmatprep.subr.mxu0 0.0
  %821 = vmatpush1.msra.mxu0 0.0
  %822 = vmatprep.subr.mxu0 0.0
  %823 = vmatpush1.msra.mxu0 0.0
  %v824 = vand.u32 %v87, 4294901760
  %v825 = vsub.f32 %v87, %v824
  %826 = vmatprep.mubr.f32.mxu0 %v825
  %v827 = vand.u32 %v28, 4294901760
  %v828 = vsub.f32 %v28, %v827
  %829 = vmatmul.mubr.f32.gmra.mrb[0].mxu0 %v828
  %v830 = vpop.f32.mrb[0].mxu0
  %v831 = vadd.f32 %v616, %v830
  %v832 = vpop.f32.mrb[0].mxu0
  %v833 = vand.u32 %v90, 4294901760
  %v834 = vsub.f32 %v90, %v833
  %835 = vmatprep.mubr.f32.mxu0 %v834
  %v836 = vand.u32 %v30, 4294901760
  %v837 = vsub.f32 %v30, %v836
  %838 = vmatmul.mubr.f32.gmra.mrb[0].mxu0 %v837
  %v839 = vpop.f32.mrb[0].mxu0
  %v840 = vadd.f32 %v623, %v839
  %v841 = vpop.f32.mrb[0].mxu0
  %v842 = vand.u32 %v93, 4294901760
  %v843 = vsub.f32 %v93, %v842
  %844 = vmatprep.mubr.f32.mxu0 %v843
  %v845 = vand.u32 %v32, 4294901760
  %v846 = vsub.f32 %v32, %v845
  %847 = vmatmul.mubr.f32.gmra.mrb[0].mxu0 %v846
  %v848 = vpop.f32.mrb[0].mxu0
  %v849 = vadd.f32 %v630, %v848
  %v850 = vpop.f32.mrb[0].mxu0
  %v851 = vand.u32 %v96, 4294901760
  %v852 = vsub.f32 %v96, %v851
  %853 = vmatprep.mubr.f32.mxu0 %v852
  %v854 = vand.u32 %v34, 4294901760
  %v855 = vsub.f32 %v34, %v854
  %856 = vmatmul.mubr.f32.gmra.mrb[0].mxu0 %v855
  %v857 = vpop.f32.mrb[0].mxu0
  %v858 = vadd.f32 %v637, %v857
  %v859 = vpop.f32.mrb[0].mxu0
  %v860 = vand.u32 %v99, 4294901760
  %v861 = vsub.f32 %v99, %v860
  %862 = vmatprep.mubr.f32.mxu0 %v861
  %v863 = vand.u32 %v36, 4294901760
  %v864 = vsub.f32 %v36, %v863
  %865 = vmatmul.mubr.f32.gmra.mrb[0].mxu0 %v864
  %v866 = vpop.f32.mrb[0].mxu0
  %v867 = vadd.f32 %v644, %v866
  %v868 = vpop.f32.mrb[0].mxu0
  %v869 = vand.u32 %v102, 4294901760
  %v870 = vsub.f32 %v102, %v869
  %871 = vmatprep.mubr.f32.mxu0 %v870
  %v872 = vand.u32 %v38, 4294901760
  %v873 = vsub.f32 %v38, %v872
  %874 = vmatmul.mubr.f32.gmra.mrb[0].mxu0 %v873
  %v875 = vpop.f32.mrb[0].mxu0
  %v876 = vadd.f32 %v651, %v875
  %v877 = vpop.f32.mrb[0].mxu0
  %v878 = vand.u32 %v105, 4294901760
  %v879 = vsub.f32 %v105, %v878
  %880 = vmatprep.mubr.f32.mxu0 %v879
  %v881 = vand.u32 %v40, 4294901760
  %v882 = vsub.f32 %v40, %v881
  %883 = vmatmul.mubr.f32.gmra.mrb[0].mxu0 %v882
  %v884 = vpop.f32.mrb[0].mxu0
  %v885 = vadd.f32 %v658, %v884
  %v886 = vpop.f32.mrb[0].mxu0
  %v887 = vand.u32 %v108, 4294901760
  %v888 = vsub.f32 %v108, %v887
  %889 = vmatprep.mubr.f32.mxu0 %v888
  %v890 = vand.u32 %v42, 4294901760
  %v891 = vsub.f32 %v42, %v890
  %892 = vmatmul.mubr.f32.gmra.mrb[0].mxu0 %v891
  %v893 = vpop.f32.mrb[0].mxu0
  %v894 = vadd.f32 %v665, %v893
  %v895 = vpop.f32.mrb[0].mxu0
  %v896 = vand.u32 %v111, 4294901760
  %v897 = vsub.f32 %v111, %v896
  %898 = vmatprep.mubr.f32.mxu0 %v897
  %v899 = vand.u32 %v44, 4294901760
  %v900 = vsub.f32 %v44, %v899
  %901 = vmatmul.mubr.f32.gmra.mrb[0].mxu0 %v900
  %v902 = vpop.f32.mrb[0].mxu0
  %v903 = vadd.f32 %v672, %v902
  %v904 = vpop.f32.mrb[0].mxu0
  %v905 = vand.u32 %v114, 4294901760
  %v906 = vsub.f32 %v114, %v905
  %907 = vmatprep.mubr.f32.mxu0 %v906
  %v908 = vand.u32 %v46, 4294901760
  %v909 = vsub.f32 %v46, %v908
  %910 = vmatmul.mubr.f32.gmra.mrb[0].mxu0 %v909
  %v911 = vpop.f32.mrb[0].mxu0
  %v912 = vadd.f32 %v679, %v911
  %v913 = vpop.f32.mrb[0].mxu0
  %v914 = vand.u32 %v117, 4294901760
  %v915 = vsub.f32 %v117, %v914
  %916 = vmatprep.mubr.f32.mxu0 %v915
  %v917 = vand.u32 %v48, 4294901760
  %v918 = vsub.f32 %v48, %v917
  %919 = vmatmul.mubr.f32.gmra.mrb[0].mxu0 %v918
  %v920 = vpop.f32.mrb[0].mxu0
  %v921 = vadd.f32 %v686, %v920
  %v922 = vpop.f32.mrb[0].mxu0
  %v923 = vand.u32 %v120, 4294901760
  %v924 = vsub.f32 %v120, %v923
  %925 = vmatprep.mubr.f32.mxu0 %v924
  %v926 = vand.u32 %v50, 4294901760
  %v927 = vsub.f32 %v50, %v926
  %928 = vmatmul.mubr.f32.gmra.mrb[0].mxu0 %v927
  %v929 = vpop.f32.mrb[0].mxu0
  %v930 = vadd.f32 %v693, %v929
  %v931 = vpop.f32.mrb[0].mxu0
  %v932 = vand.u32 %v123, 4294901760
  %v933 = vsub.f32 %v123, %v932
  %934 = vmatprep.mubr.f32.mxu0 %v933
  %v935 = vand.u32 %v52, 4294901760
  %v936 = vsub.f32 %v52, %v935
  %937 = vmatmul.mubr.f32.gmra.mrb[0].mxu0 %v936
  %v938 = vpop.f32.mrb[0].mxu0
  %v939 = vadd.f32 %v700, %v938
  %v940 = vpop.f32.mrb[0].mxu0
  %v941 = vand.u32 %v126, 4294901760
  %v942 = vsub.f32 %v126, %v941
  %943 = vmatprep.mubr.f32.mxu0 %v942
  %v944 = vand.u32 %v54, 4294901760
  %v945 = vsub.f32 %v54, %v944
  %946 = vmatmul.mubr.f32.gmra.mrb[0].mxu0 %v945
  %v947 = vpop.f32.mrb[0].mxu0
  %v948 = vadd.f32 %v707, %v947
  %v949 = vpop.f32.mrb[0].mxu0
  %v950 = vand.u32 %v129, 4294901760
  %v951 = vsub.f32 %v129, %v950
  %952 = vmatprep.mubr.f32.mxu0 %v951
  %v953 = vand.u32 %v56, 4294901760
  %v954 = vsub.f32 %v56, %v953
  %955 = vmatmul.mubr.f32.gmra.mrb[0].mxu0 %v954
  %v956 = vpop.f32.mrb[0].mxu0
  %v957 = vadd.f32 %v714, %v956
  %v958 = vpop.f32.mrb[0].mxu0
  %v959 = vand.u32 %v132, 4294901760
  %v960 = vsub.f32 %v132, %v959
  %961 = vmatprep.mubr.f32.mxu0 %v960
  %v962 = vand.u32 %v58, 4294901760
  %v963 = vsub.f32 %v58, %v962
  %964 = vmatmul.mubr.f32.gmra.mrb[0].mxu0 %v963
  %v965 = vpop.f32.mrb[0].mxu0
  %v966 = vadd.f32 %v721, %v965
  %v967 = vpop.f32.mrb[0].mxu0
  %968 = vdwg.mxu0
  %969 = vmatprep.subr.mxu0 0.0
  %v970 = vand.u32 %v60, 4294901760
  %971 = vmatpush1.msra.mxu0 %v970
  %972 = vmatprep.subr.mxu0 0.0
  %v973 = vand.u32 %v61, 4294901760
  %974 = vmatpush1.msra.mxu0 %v973
  %975 = vmatprep.subr.mxu0 0.0
  %v976 = vand.u32 %v62, 4294901760
  %977 = vmatpush1.msra.mxu0 %v976
  %978 = vmatprep.subr.mxu0 0.0
  %v979 = vand.u32 %v63, 4294901760
  %980 = vmatpush1.msra.mxu0 %v979
  %981 = vmatprep.subr.mxu0 0.0
  %v982 = vand.u32 %v64, 4294901760
  %983 = vmatpush1.msra.mxu0 %v982
  %984 = vmatprep.subr.mxu0 0.0
  %v985 = vand.u32 %v65, 4294901760
  %986 = vmatpush1.msra.mxu0 %v985
  %987 = vmatprep.subr.mxu0 0.0
  %v988 = vand.u32 %v66, 4294901760
  %989 = vmatpush1.msra.mxu0 %v988
  %990 = vmatprep.subr.mxu0 0.0
  %v991 = vand.u32 %v67, 4294901760
  %992 = vmatpush1.msra.mxu0 %v991
  %993 = vmatprep.subr.mxu0 0.0
  %v994 = vand.u32 %v68, 4294901760
  %995 = vmatpush1.msra.mxu0 %v994
  %996 = vmatprep.subr.mxu0 0.0
  %v997 = vand.u32 %v69, 4294901760
  %998 = vmatpush1.msra.mxu0 %v997
  %999 = vmatprep.subr.mxu0 0.0
  %v1000 = vand.u32 %v70, 4294901760
  %1001 = vmatpush1.msra.mxu0 %v1000
  %1002 = vmatprep.subr.mxu0 0.0
  %v1003 = vand.u32 %v71, 4294901760
  %1004 = vmatpush1.msra.mxu0 %v1003
  %1005 = vmatprep.subr.mxu0 0.0
  %v1006 = vand.u32 %v72, 4294901760
  %1007 = vmatpush1.msra.mxu0 %v1006
  %1008 = vmatprep.subr.mxu0 0.0
  %v1009 = vand.u32 %v73, 4294901760
  %1010 = vmatpush1.msra.mxu0 %v1009
  %1011 = vmatprep.subr.mxu0 0.0
  %v1012 = vand.u32 %v74, 4294901760
  %1013 = vmatpush1.msra.mxu0 %v1012
  %1014 = vmatprep.subr.mxu0 0.0
  %v1015 = vand.u32 %v75, 4294901760
  %1016 = vmatpush1.msra.mxu0 %v1015
  %1017 = vmatprep.subr.mxu0 0.0
  %v1018 = vand.u32 %v76, 4294901760
  %1019 = vmatpush1.msra.mxu0 %v1018
  %1020 = vmatprep.subr.mxu0 0.0
  %v1021 = vand.u32 %v77, 4294901760
  %1022 = vmatpush1.msra.mxu0 %v1021
  %1023 = vmatprep.subr.mxu0 0.0
  %1024 = vmatpush1.msra.mxu0 0.0
  %1025 = vmatprep.subr.mxu0 0.0
  %1026 = vmatpush1.msra.mxu0 0.0
  %1027 = vmatprep.subr.mxu0 0.0
  %1028 = vmatpush1.msra.mxu0 0.0
  %1029 = vmatprep.subr.mxu0 0.0
  %1030 = vmatpush1.msra.mxu0 0.0
  %1031 = vmatprep.subr.mxu0 0.0
  %1032 = vmatpush1.msra.mxu0 0.0
  %1033 = vmatprep.subr.mxu0 0.0
  %1034 = vmatpush1.msra.mxu0 0.0
  %1035 = vmatprep.subr.mxu0 0.0
  %1036 = vmatpush1.msra.mxu0 0.0
  %1037 = vmatprep.subr.mxu0 0.0
  %1038 = vmatpush1.msra.mxu0 0.0
  %1039 = vmatprep.subr.mxu0 0.0
  %1040 = vmatpush1.msra.mxu0 0.0
  %1041 = vmatprep.subr.mxu0 0.0
  %1042 = vmatpush1.msra.mxu0 0.0
  %1043 = vmatprep.subr.mxu0 0.0
  %1044 = vmatpush1.msra.mxu0 0.0
  %1045 = vmatprep.subr.mxu0 0.0
  %1046 = vmatpush1.msra.mxu0 0.0
  %1047 = vmatprep.subr.mxu0 0.0
  %1048 = vmatpush1.msra.mxu0 0.0
  %1049 = vmatprep.subr.mxu0 0.0
  %1050 = vmatpush1.msra.mxu0 0.0
  %v1051 = vand.u32 %v87, 4294901760
  %v1052 = vsub.f32 %v87, %v1051
  %v1053 = vand.u32 %v1052, 4294901760
  %1054 = vmatprep.mubr.f32.mxu0 %v1053
  %v1055 = vand.u32 %v28, 4294901760
  %v1056 = vsub.f32 %v28, %v1055
  %v1057 = vand.u32 %v1056, 4294901760
  %1058 = vmatmul.mubr.f32.gmra.mrb[0].mxu0 %v1057
  %v1059 = vpop.f32.mrb[0].mxu0
  %v1060 = vadd.f32 %v831, %v1059
  %v1061 = vpop.f32.mrb[0].mxu0
  %v1062 = vand.u32 %v90, 4294901760
  %v1063 = vsub.f32 %v90, %v1062
  %v1064 = vand.u32 %v1063, 4294901760
  %1065 = vmatprep.mubr.f32.mxu0 %v1064
  %v1066 = vand.u32 %v30, 4294901760
  %v1067 = vsub.f32 %v30, %v1066
  %v1068 = vand.u32 %v1067, 4294901760
  %1069 = vmatmul.mubr.f32.gmra.mrb[0].mxu0 %v1068
  %v1070 = vpop.f32.mrb[0].mxu0
  %v1071 = vadd.f32 %v840, %v1070
  %v1072 = vpop.f32.mrb[0].mxu0
  %v1073 = vand.u32 %v93, 4294901760
  %v1074 = vsub.f32 %v93, %v1073
  %v1075 = vand.u32 %v1074, 4294901760
  %1076 = vmatprep.mubr.f32.mxu0 %v1075
  %v1077 = vand.u32 %v32, 4294901760
  %v1078 = vsub.f32 %v32, %v1077
  %v1079 = vand.u32 %v1078, 4294901760
  %1080 = vmatmul.mubr.f32.gmra.mrb[0].mxu0 %v1079
  %v1081 = vpop.f32.mrb[0].mxu0
  %v1082 = vadd.f32 %v849, %v1081
  %v1083 = vpop.f32.mrb[0].mxu0
  %v1084 = vand.u32 %v96, 4294901760
  %v1085 = vsub.f32 %v96, %v1084
  %v1086 = vand.u32 %v1085, 4294901760
  %1087 = vmatprep.mubr.f32.mxu0 %v1086
  %v1088 = vand.u32 %v34, 4294901760
  %v1089 = vsub.f32 %v34, %v1088
  %v1090 = vand.u32 %v1089, 4294901760
  %1091 = vmatmul.mubr.f32.gmra.mrb[0].mxu0 %v1090
  %v1092 = vpop.f32.mrb[0].mxu0
  %v1093 = vadd.f32 %v858, %v1092
  %v1094 = vpop.f32.mrb[0].mxu0
  %v1095 = vand.u32 %v99, 4294901760
  %v1096 = vsub.f32 %v99, %v1095
  %v1097 = vand.u32 %v1096, 4294901760
  %1098 = vmatprep.mubr.f32.mxu0 %v1097
  %v1099 = vand.u32 %v36, 4294901760
  %v1100 = vsub.f32 %v36, %v1099
  %v1101 = vand.u32 %v1100, 4294901760
  %1102 = vmatmul.mubr.f32.gmra.mrb[0].mxu0 %v1101
  %v1103 = vpop.f32.mrb[0].mxu0
  %v1104 = vadd.f32 %v867, %v1103
  %v1105 = vpop.f32.mrb[0].mxu0
  %v1106 = vand.u32 %v102, 4294901760
  %v1107 = vsub.f32 %v102, %v1106
  %v1108 = vand.u32 %v1107, 4294901760
  %1109 = vmatprep.mubr.f32.mxu0 %v1108
  %v1110 = vand.u32 %v38, 4294901760
  %v1111 = vsub.f32 %v38, %v1110
  %v1112 = vand.u32 %v1111, 4294901760
  %1113 = vmatmul.mubr.f32.gmra.mrb[0].mxu0 %v1112
  %v1114 = vpop.f32.mrb[0].mxu0
  %v1115 = vadd.f32 %v876, %v1114
  %v1116 = vpop.f32.mrb[0].mxu0
  %v1117 = vand.u32 %v105, 4294901760
  %v1118 = vsub.f32 %v105, %v1117
  %v1119 = vand.u32 %v1118, 4294901760
  %1120 = vmatprep.mubr.f32.mxu0 %v1119
  %v1121 = vand.u32 %v40, 4294901760
  %v1122 = vsub.f32 %v40, %v1121
  %v1123 = vand.u32 %v1122, 4294901760
  %1124 = vmatmul.mubr.f32.gmra.mrb[0].mxu0 %v1123
  %v1125 = vpop.f32.mrb[0].mxu0
  %v1126 = vadd.f32 %v885, %v1125
  %v1127 = vpop.f32.mrb[0].mxu0
  %v1128 = vand.u32 %v108, 4294901760
  %v1129 = vsub.f32 %v108, %v1128
  %v1130 = vand.u32 %v1129, 4294901760
  %1131 = vmatprep.mubr.f32.mxu0 %v1130
  %v1132 = vand.u32 %v42, 4294901760
  %v1133 = vsub.f32 %v42, %v1132
  %v1134 = vand.u32 %v1133, 4294901760
  %1135 = vmatmul.mubr.f32.gmra.mrb[0].mxu0 %v1134
  %v1136 = vpop.f32.mrb[0].mxu0
  %v1137 = vadd.f32 %v894, %v1136
  %v1138 = vpop.f32.mrb[0].mxu0
  %v1139 = vand.u32 %v111, 4294901760
  %v1140 = vsub.f32 %v111, %v1139
  %v1141 = vand.u32 %v1140, 4294901760
  %1142 = vmatprep.mubr.f32.mxu0 %v1141
  %v1143 = vand.u32 %v44, 4294901760
  %v1144 = vsub.f32 %v44, %v1143
  %v1145 = vand.u32 %v1144, 4294901760
  %1146 = vmatmul.mubr.f32.gmra.mrb[0].mxu0 %v1145
  %v1147 = vpop.f32.mrb[0].mxu0
  %v1148 = vadd.f32 %v903, %v1147
  %v1149 = vpop.f32.mrb[0].mxu0
  %v1150 = vand.u32 %v114, 4294901760
  %v1151 = vsub.f32 %v114, %v1150
  %v1152 = vand.u32 %v1151, 4294901760
  %1153 = vmatprep.mubr.f32.mxu0 %v1152
  %v1154 = vand.u32 %v46, 4294901760
  %v1155 = vsub.f32 %v46, %v1154
  %v1156 = vand.u32 %v1155, 4294901760
  %1157 = vmatmul.mubr.f32.gmra.mrb[0].mxu0 %v1156
  %v1158 = vpop.f32.mrb[0].mxu0
  %v1159 = vadd.f32 %v912, %v1158
  %v1160 = vpop.f32.mrb[0].mxu0
  %v1161 = vand.u32 %v117, 4294901760
  %v1162 = vsub.f32 %v117, %v1161
  %v1163 = vand.u32 %v1162, 4294901760
  %1164 = vmatprep.mubr.f32.mxu0 %v1163
  %v1165 = vand.u32 %v48, 4294901760
  %v1166 = vsub.f32 %v48, %v1165
  %v1167 = vand.u32 %v1166, 4294901760
  %1168 = vmatmul.mubr.f32.gmra.mrb[0].mxu0 %v1167
  %v1169 = vpop.f32.mrb[0].mxu0
  %v1170 = vadd.f32 %v921, %v1169
  %v1171 = vpop.f32.mrb[0].mxu0
  %v1172 = vand.u32 %v120, 4294901760
  %v1173 = vsub.f32 %v120, %v1172
  %v1174 = vand.u32 %v1173, 4294901760
  %1175 = vmatprep.mubr.f32.mxu0 %v1174
  %v1176 = vand.u32 %v50, 4294901760
  %v1177 = vsub.f32 %v50, %v1176
  %v1178 = vand.u32 %v1177, 4294901760
  %1179 = vmatmul.mubr.f32.gmra.mrb[0].mxu0 %v1178
  %v1180 = vpop.f32.mrb[0].mxu0
  %v1181 = vadd.f32 %v930, %v1180
  %v1182 = vpop.f32.mrb[0].mxu0
  %v1183 = vand.u32 %v123, 4294901760
  %v1184 = vsub.f32 %v123, %v1183
  %v1185 = vand.u32 %v1184, 4294901760
  %1186 = vmatprep.mubr.f32.mxu0 %v1185
  %v1187 = vand.u32 %v52, 4294901760
  %v1188 = vsub.f32 %v52, %v1187
  %v1189 = vand.u32 %v1188, 4294901760
  %1190 = vmatmul.mubr.f32.gmra.mrb[0].mxu0 %v1189
  %v1191 = vpop.f32.mrb[0].mxu0
  %v1192 = vadd.f32 %v939, %v1191
  %v1193 = vpop.f32.mrb[0].mxu0
  %v1194 = vand.u32 %v126, 4294901760
  %v1195 = vsub.f32 %v126, %v1194
  %v1196 = vand.u32 %v1195, 4294901760
  %1197 = vmatprep.mubr.f32.mxu0 %v1196
  %v1198 = vand.u32 %v54, 4294901760
  %v1199 = vsub.f32 %v54, %v1198
  %v1200 = vand.u32 %v1199, 4294901760
  %1201 = vmatmul.mubr.f32.gmra.mrb[0].mxu0 %v1200
  %v1202 = vpop.f32.mrb[0].mxu0
  %v1203 = vadd.f32 %v948, %v1202
  %v1204 = vpop.f32.mrb[0].mxu0
  %v1205 = vand.u32 %v129, 4294901760
  %v1206 = vsub.f32 %v129, %v1205
  %v1207 = vand.u32 %v1206, 4294901760
  %1208 = vmatprep.mubr.f32.mxu0 %v1207
  %v1209 = vand.u32 %v56, 4294901760
  %v1210 = vsub.f32 %v56, %v1209
  %v1211 = vand.u32 %v1210, 4294901760
  %1212 = vmatmul.mubr.f32.gmra.mrb[0].mxu0 %v1211
  %v1213 = vpop.f32.mrb[0].mxu0
  %v1214 = vadd.f32 %v957, %v1213
  %v1215 = vpop.f32.mrb[0].mxu0
  %v1216 = vand.u32 %v132, 4294901760
  %v1217 = vsub.f32 %v132, %v1216
  %v1218 = vand.u32 %v1217, 4294901760
  %1219 = vmatprep.mubr.f32.mxu0 %v1218
  %v1220 = vand.u32 %v58, 4294901760
  %v1221 = vsub.f32 %v58, %v1220
  %v1222 = vand.u32 %v1221, 4294901760
  %1223 = vmatmul.mubr.f32.gmra.mrb[0].mxu0 %v1222
  %v1224 = vpop.f32.mrb[0].mxu0
  %v1225 = vadd.f32 %v966, %v1224
  %v1226 = vpop.f32.mrb[0].mxu0
  %1227 = vdwg.mxu0
  %1228 = vmatprep.subr.mxu0 0.0
  %v1229 = vand.u32 %v60, 4294901760
  %v1230 = vsub.f32 %v60, %v1229
  %v1231 = vand.u32 %v1230, 4294901760
  %1232 = vmatpush1.msra.mxu0 %v1231
  %1233 = vmatprep.subr.mxu0 0.0
  %v1234 = vand.u32 %v61, 4294901760
  %v1235 = vsub.f32 %v61, %v1234
  %v1236 = vand.u32 %v1235, 4294901760
  %1237 = vmatpush1.msra.mxu0 %v1236
  %1238 = vmatprep.subr.mxu0 0.0
  %v1239 = vand.u32 %v62, 4294901760
  %v1240 = vsub.f32 %v62, %v1239
  %v1241 = vand.u32 %v1240, 4294901760
  %1242 = vmatpush1.msra.mxu0 %v1241
  %1243 = vmatprep.subr.mxu0 0.0
  %v1244 = vand.u32 %v63, 4294901760
  %v1245 = vsub.f32 %v63, %v1244
  %v1246 = vand.u32 %v1245, 4294901760
  %1247 = vmatpush1.msra.mxu0 %v1246
  %1248 = vmatprep.subr.mxu0 0.0
  %v1249 = vand.u32 %v64, 4294901760
  %v1250 = vsub.f32 %v64, %v1249
  %v1251 = vand.u32 %v1250, 4294901760
  %1252 = vmatpush1.msra.mxu0 %v1251
  %1253 = vmatprep.subr.mxu0 0.0
  %v1254 = vand.u32 %v65, 4294901760
  %v1255 = vsub.f32 %v65, %v1254
  %v1256 = vand.u32 %v1255, 4294901760
  %1257 = vmatpush1.msra.mxu0 %v1256
  %1258 = vmatprep.subr.mxu0 0.0
  %v1259 = vand.u32 %v66, 4294901760
  %v1260 = vsub.f32 %v66, %v1259
  %v1261 = vand.u32 %v1260, 4294901760
  %1262 = vmatpush1.msra.mxu0 %v1261
  %1263 = vmatprep.subr.mxu0 0.0
  %v1264 = vand.u32 %v67, 4294901760
  %v1265 = vsub.f32 %v67, %v1264
  %v1266 = vand.u32 %v1265, 4294901760
  %1267 = vmatpush1.msra.mxu0 %v1266
  %1268 = vmatprep.subr.mxu0 0.0
  %v1269 = vand.u32 %v68, 4294901760
  %v1270 = vsub.f32 %v68, %v1269
  %v1271 = vand.u32 %v1270, 4294901760
  %1272 = vmatpush1.msra.mxu0 %v1271
  %1273 = vmatprep.subr.mxu0 0.0
  %v1274 = vand.u32 %v69, 4294901760
  %v1275 = vsub.f32 %v69, %v1274
  %v1276 = vand.u32 %v1275, 4294901760
  %1277 = vmatpush1.msra.mxu0 %v1276
  %1278 = vmatprep.subr.mxu0 0.0
  %v1279 = vand.u32 %v70, 4294901760
  %v1280 = vsub.f32 %v70, %v1279
  %v1281 = vand.u32 %v1280, 4294901760
  %1282 = vmatpush1.msra.mxu0 %v1281
  %1283 = vmatprep.subr.mxu0 0.0
  %v1284 = vand.u32 %v71, 4294901760
  %v1285 = vsub.f32 %v71, %v1284
  %v1286 = vand.u32 %v1285, 4294901760
  %1287 = vmatpush1.msra.mxu0 %v1286
  %1288 = vmatprep.subr.mxu0 0.0
  %v1289 = vand.u32 %v72, 4294901760
  %v1290 = vsub.f32 %v72, %v1289
  %v1291 = vand.u32 %v1290, 4294901760
  %1292 = vmatpush1.msra.mxu0 %v1291
  %1293 = vmatprep.subr.mxu0 0.0
  %v1294 = vand.u32 %v73, 4294901760
  %v1295 = vsub.f32 %v73, %v1294
  %v1296 = vand.u32 %v1295, 4294901760
  %1297 = vmatpush1.msra.mxu0 %v1296
  %1298 = vmatprep.subr.mxu0 0.0
  %v1299 = vand.u32 %v74, 4294901760
  %v1300 = vsub.f32 %v74, %v1299
  %v1301 = vand.u32 %v1300, 4294901760
  %1302 = vmatpush1.msra.mxu0 %v1301
  %1303 = vmatprep.subr.mxu0 0.0
  %v1304 = vand.u32 %v75, 4294901760
  %v1305 = vsub.f32 %v75, %v1304
  %v1306 = vand.u32 %v1305, 4294901760
  %1307 = vmatpush1.msra.mxu0 %v1306
  %1308 = vmatprep.subr.mxu0 0.0
  %v1309 = vand.u32 %v76, 4294901760
  %v1310 = vsub.f32 %v76, %v1309
  %v1311 = vand.u32 %v1310, 4294901760
  %1312 = vmatpush1.msra.mxu0 %v1311
  %1313 = vmatprep.subr.mxu0 0.0
  %v1314 = vand.u32 %v77, 4294901760
  %v1315 = vsub.f32 %v77, %v1314
  %v1316 = vand.u32 %v1315, 4294901760
  %1317 = vmatpush1.msra.mxu0 %v1316
  %1318 = vmatprep.subr.mxu0 0.0
  %1319 = vmatpush1.msra.mxu0 0.0
  %1320 = vmatprep.subr.mxu0 0.0
  %1321 = vmatpush1.msra.mxu0 0.0
  %1322 = vmatprep.subr.mxu0 0.0
  %1323 = vmatpush1.msra.mxu0 0.0
  %1324 = vmatprep.subr.mxu0 0.0
  %1325 = vmatpush1.msra.mxu0 0.0
  %1326 = vmatprep.subr.mxu0 0.0
  %1327 = vmatpush1.msra.mxu0 0.0
  %1328 = vmatprep.subr.mxu0 0.0
  %1329 = vmatpush1.msra.mxu0 0.0
  %1330 = vmatprep.subr.mxu0 0.0
  %1331 = vmatpush1.msra.mxu0 0.0
  %1332 = vmatprep.subr.mxu0 0.0
  %1333 = vmatpush1.msra.mxu0 0.0
  %1334 = vmatprep.subr.mxu0 0.0
  %1335 = vmatpush1.msra.mxu0 0.0
  %1336 = vmatprep.subr.mxu0 0.0
  %1337 = vmatpush1.msra.mxu0 0.0
  %1338 = vmatprep.subr.mxu0 0.0
  %1339 = vmatpush1.msra.mxu0 0.0
  %1340 = vmatprep.subr.mxu0 0.0
  %1341 = vmatpush1.msra.mxu0 0.0
  %1342 = vmatprep.subr.mxu0 0.0
  %1343 = vmatpush1.msra.mxu0 0.0
  %1344 = vmatprep.subr.mxu0 0.0
  %1345 = vmatpush1.msra.mxu0 0.0
  %v1346 = vand.u32 %v87, 4294901760
  %1347 = vmatprep.mubr.f32.mxu0 %v1346
  %v1348 = vand.u32 %v28, 4294901760
  %1349 = vmatmul.mubr.f32.gmra.mrb[0].mxu0 %v1348
  %v1350 = vpop.f32.mrb[0].mxu0
  %v1351 = vadd.f32 %v1060, %v1350
  %v1352 = vpop.f32.mrb[0].mxu0
  %v1353 = vand.u32 %v90, 4294901760
  %1354 = vmatprep.mubr.f32.mxu0 %v1353
  %v1355 = vand.u32 %v30, 4294901760
  %1356 = vmatmul.mubr.f32.gmra.mrb[0].mxu0 %v1355
  %v1357 = vpop.f32.mrb[0].mxu0
  %v1358 = vadd.f32 %v1071, %v1357
  %v1359 = vpop.f32.mrb[0].mxu0
  %v1360 = vand.u32 %v93, 4294901760
  %1361 = vmatprep.mubr.f32.mxu0 %v1360
  %v1362 = vand.u32 %v32, 4294901760
  %1363 = vmatmul.mubr.f32.gmra.mrb[0].mxu0 %v1362
  %v1364 = vpop.f32.mrb[0].mxu0
  %v1365 = vadd.f32 %v1082, %v1364
  %v1366 = vpop.f32.mrb[0].mxu0
  %v1367 = vand.u32 %v96, 4294901760
  %1368 = vmatprep.mubr.f32.mxu0 %v1367
  %v1369 = vand.u32 %v34, 4294901760
  %1370 = vmatmul.mubr.f32.gmra.mrb[0].mxu0 %v1369
  %v1371 = vpop.f32.mrb[0].mxu0
  %v1372 = vadd.f32 %v1093, %v1371
  %v1373 = vpop.f32.mrb[0].mxu0
  %v1374 = vand.u32 %v99, 4294901760
  %1375 = vmatprep.mubr.f32.mxu0 %v1374
  %v1376 = vand.u32 %v36, 4294901760
  %1377 = vmatmul.mubr.f32.gmra.mrb[0].mxu0 %v1376
  %v1378 = vpop.f32.mrb[0].mxu0
  %v1379 = vadd.f32 %v1104, %v1378
  %v1380 = vpop.f32.mrb[0].mxu0
  %v1381 = vand.u32 %v102, 4294901760
  %1382 = vmatprep.mubr.f32.mxu0 %v1381
  %v1383 = vand.u32 %v38, 4294901760
  %1384 = vmatmul.mubr.f32.gmra.mrb[0].mxu0 %v1383
  %v1385 = vpop.f32.mrb[0].mxu0
  %v1386 = vadd.f32 %v1115, %v1385
  %v1387 = vpop.f32.mrb[0].mxu0
  %v1388 = vand.u32 %v105, 4294901760
  %1389 = vmatprep.mubr.f32.mxu0 %v1388
  %v1390 = vand.u32 %v40, 4294901760
  %1391 = vmatmul.mubr.f32.gmra.mrb[0].mxu0 %v1390
  %v1392 = vpop.f32.mrb[0].mxu0
  %v1393 = vadd.f32 %v1126, %v1392
  %v1394 = vpop.f32.mrb[0].mxu0
  %v1395 = vand.u32 %v108, 4294901760
  %1396 = vmatprep.mubr.f32.mxu0 %v1395
  %v1397 = vand.u32 %v42, 4294901760
  %1398 = vmatmul.mubr.f32.gmra.mrb[0].mxu0 %v1397
  %v1399 = vpop.f32.mrb[0].mxu0
  %v1400 = vadd.f32 %v1137, %v1399
  %v1401 = vpop.f32.mrb[0].mxu0
  %v1402 = vand.u32 %v111, 4294901760
  %1403 = vmatprep.mubr.f32.mxu0 %v1402
  %v1404 = vand.u32 %v44, 4294901760
  %1405 = vmatmul.mubr.f32.gmra.mrb[0].mxu0 %v1404
  %v1406 = vpop.f32.mrb[0].mxu0
  %v1407 = vadd.f32 %v1148, %v1406
  %v1408 = vpop.f32.mrb[0].mxu0
  %v1409 = vand.u32 %v114, 4294901760
  %1410 = vmatprep.mubr.f32.mxu0 %v1409
  %v1411 = vand.u32 %v46, 4294901760
  %1412 = vmatmul.mubr.f32.gmra.mrb[0].mxu0 %v1411
  %v1413 = vpop.f32.mrb[0].mxu0
  %v1414 = vadd.f32 %v1159, %v1413
  %v1415 = vpop.f32.mrb[0].mxu0
  %v1416 = vand.u32 %v117, 4294901760
  %1417 = vmatprep.mubr.f32.mxu0 %v1416
  %v1418 = vand.u32 %v48, 4294901760
  %1419 = vmatmul.mubr.f32.gmra.mrb[0].mxu0 %v1418
  %v1420 = vpop.f32.mrb[0].mxu0
  %v1421 = vadd.f32 %v1170, %v1420
  %v1422 = vpop.f32.mrb[0].mxu0
  %v1423 = vand.u32 %v120, 4294901760
  %1424 = vmatprep.mubr.f32.mxu0 %v1423
  %v1425 = vand.u32 %v50, 4294901760
  %1426 = vmatmul.mubr.f32.gmra.mrb[0].mxu0 %v1425
  %v1427 = vpop.f32.mrb[0].mxu0
  %v1428 = vadd.f32 %v1181, %v1427
  %v1429 = vpop.f32.mrb[0].mxu0
  %v1430 = vand.u32 %v123, 4294901760
  %1431 = vmatprep.mubr.f32.mxu0 %v1430
  %v1432 = vand.u32 %v52, 4294901760
  %1433 = vmatmul.mubr.f32.gmra.mrb[0].mxu0 %v1432
  %v1434 = vpop.f32.mrb[0].mxu0
  %v1435 = vadd.f32 %v1192, %v1434
  %v1436 = vpop.f32.mrb[0].mxu0
  %v1437 = vand.u32 %v126, 4294901760
  %1438 = vmatprep.mubr.f32.mxu0 %v1437
  %v1439 = vand.u32 %v54, 4294901760
  %1440 = vmatmul.mubr.f32.gmra.mrb[0].mxu0 %v1439
  %v1441 = vpop.f32.mrb[0].mxu0
  %v1442 = vadd.f32 %v1203, %v1441
  %v1443 = vpop.f32.mrb[0].mxu0
  %v1444 = vand.u32 %v129, 4294901760
  %1445 = vmatprep.mubr.f32.mxu0 %v1444
  %v1446 = vand.u32 %v56, 4294901760
  %1447 = vmatmul.mubr.f32.gmra.mrb[0].mxu0 %v1446
  %v1448 = vpop.f32.mrb[0].mxu0
  %v1449 = vadd.f32 %v1214, %v1448
  %v1450 = vpop.f32.mrb[0].mxu0
  %v1451 = vand.u32 %v132, 4294901760
  %1452 = vmatprep.mubr.f32.mxu0 %v1451
  %v1453 = vand.u32 %v58, 4294901760
  %1454 = vmatmul.mubr.f32.gmra.mrb[0].mxu0 %v1453
  %v1455 = vpop.f32.mrb[0].mxu0
  %v1456 = vadd.f32 %v1225, %v1455
  %v1457 = vpop.f32.mrb[0].mxu0
  %1458 = vdwg.mxu0
  %1459 = vmatprep.subr.mxu0 0.0
  %v1460 = vand.u32 %v60, 4294901760
  %1461 = vmatpush1.msra.mxu0 %v1460
  %1462 = vmatprep.subr.mxu0 0.0
  %v1463 = vand.u32 %v61, 4294901760
  %1464 = vmatpush1.msra.mxu0 %v1463
  %1465 = vmatprep.subr.mxu0 0.0
  %v1466 = vand.u32 %v62, 4294901760
  %1467 = vmatpush1.msra.mxu0 %v1466
  %1468 = vmatprep.subr.mxu0 0.0
  %v1469 = vand.u32 %v63, 4294901760
  %1470 = vmatpush1.msra.mxu0 %v1469
  %1471 = vmatprep.subr.mxu0 0.0
  %v1472 = vand.u32 %v64, 4294901760
  %1473 = vmatpush1.msra.mxu0 %v1472
  %1474 = vmatprep.subr.mxu0 0.0
  %v1475 = vand.u32 %v65, 4294901760
  %1476 = vmatpush1.msra.mxu0 %v1475
  %1477 = vmatprep.subr.mxu0 0.0
  %v1478 = vand.u32 %v66, 4294901760
  %1479 = vmatpush1.msra.mxu0 %v1478
  %1480 = vmatprep.subr.mxu0 0.0
  %v1481 = vand.u32 %v67, 4294901760
  %1482 = vmatpush1.msra.mxu0 %v1481
  %1483 = vmatprep.subr.mxu0 0.0
  %v1484 = vand.u32 %v68, 4294901760
  %1485 = vmatpush1.msra.mxu0 %v1484
  %1486 = vmatprep.subr.mxu0 0.0
  %v1487 = vand.u32 %v69, 4294901760
  %1488 = vmatpush1.msra.mxu0 %v1487
  %1489 = vmatprep.subr.mxu0 0.0
  %v1490 = vand.u32 %v70, 4294901760
  %1491 = vmatpush1.msra.mxu0 %v1490
  %1492 = vmatprep.subr.mxu0 0.0
  %v1493 = vand.u32 %v71, 4294901760
  %1494 = vmatpush1.msra.mxu0 %v1493
  %1495 = vmatprep.subr.mxu0 0.0
  %v1496 = vand.u32 %v72, 4294901760
  %1497 = vmatpush1.msra.mxu0 %v1496
  %1498 = vmatprep.subr.mxu0 0.0
  %v1499 = vand.u32 %v73, 4294901760
  %1500 = vmatpush1.msra.mxu0 %v1499
  %1501 = vmatprep.subr.mxu0 0.0
  %v1502 = vand.u32 %v74, 4294901760
  %1503 = vmatpush1.msra.mxu0 %v1502
  %1504 = vmatprep.subr.mxu0 0.0
  %v1505 = vand.u32 %v75, 4294901760
  %1506 = vmatpush1.msra.mxu0 %v1505
  %1507 = vmatprep.subr.mxu0 0.0
  %v1508 = vand.u32 %v76, 4294901760
  %1509 = vmatpush1.msra.mxu0 %v1508
  %1510 = vmatprep.subr.mxu0 0.0
  %v1511 = vand.u32 %v77, 4294901760
  %1512 = vmatpush1.msra.mxu0 %v1511
  %1513 = vmatprep.subr.mxu0 0.0
  %1514 = vmatpush1.msra.mxu0 0.0
  %1515 = vmatprep.subr.mxu0 0.0
  %1516 = vmatpush1.msra.mxu0 0.0
  %1517 = vmatprep.subr.mxu0 0.0
  %1518 = vmatpush1.msra.mxu0 0.0
  %1519 = vmatprep.subr.mxu0 0.0
  %1520 = vmatpush1.msra.mxu0 0.0
  %1521 = vmatprep.subr.mxu0 0.0
  %1522 = vmatpush1.msra.mxu0 0.0
  %1523 = vmatprep.subr.mxu0 0.0
  %1524 = vmatpush1.msra.mxu0 0.0
  %1525 = vmatprep.subr.mxu0 0.0
  %1526 = vmatpush1.msra.mxu0 0.0
  %1527 = vmatprep.subr.mxu0 0.0
  %1528 = vmatpush1.msra.mxu0 0.0
  %1529 = vmatprep.subr.mxu0 0.0
  %1530 = vmatpush1.msra.mxu0 0.0
  %1531 = vmatprep.subr.mxu0 0.0
  %1532 = vmatpush1.msra.mxu0 0.0
  %1533 = vmatprep.subr.mxu0 0.0
  %1534 = vmatpush1.msra.mxu0 0.0
  %1535 = vmatprep.subr.mxu0 0.0
  %1536 = vmatpush1.msra.mxu0 0.0
  %1537 = vmatprep.subr.mxu0 0.0
  %1538 = vmatpush1.msra.mxu0 0.0
  %1539 = vmatprep.subr.mxu0 0.0
  %1540 = vmatpush1.msra.mxu0 0.0
  %v1541 = vand.u32 %v87, 4294901760
  %1542 = vmatprep.mubr.f32.mxu0 %v1541
  %v1543 = vand.u32 %v28, 4294901760
  %1544 = vmatmul.mubr.f32.gmra.mrb[0].mxu0 %v1543
  %v1545 = vpop.f32.mrb[0].mxu0
  %v1546 = vadd.f32 %v1351, %v1545
  %v1547 = vpop.f32.mrb[0].mxu0
  %v1548 = vand.u32 %v90, 4294901760
  %1549 = vmatprep.mubr.f32.mxu0 %v1548
  %v1550 = vand.u32 %v30, 4294901760
  %1551 = vmatmul.mubr.f32.gmra.mrb[0].mxu0 %v1550
  %v1552 = vpop.f32.mrb[0].mxu0
  %v1553 = vadd.f32 %v1358, %v1552
  %v1554 = vpop.f32.mrb[0].mxu0
  %v1555 = vand.u32 %v93, 4294901760
  %1556 = vmatprep.mubr.f32.mxu0 %v1555
  %v1557 = vand.u32 %v32, 4294901760
  %1558 = vmatmul.mubr.f32.gmra.mrb[0].mxu0 %v1557
  %v1559 = vpop.f32.mrb[0].mxu0
  %v1560 = vadd.f32 %v1365, %v1559
  %v1561 = vpop.f32.mrb[0].mxu0
  %v1562 = vand.u32 %v96, 4294901760
  %1563 = vmatprep.mubr.f32.mxu0 %v1562
  %v1564 = vand.u32 %v34, 4294901760
  %1565 = vmatmul.mubr.f32.gmra.mrb[0].mxu0 %v1564
  %v1566 = vpop.f32.mrb[0].mxu0
  %v1567 = vadd.f32 %v1372, %v1566
  %v1568 = vpop.f32.mrb[0].mxu0
  %v1569 = vand.u32 %v99, 4294901760
  %1570 = vmatprep.mubr.f32.mxu0 %v1569
  %v1571 = vand.u32 %v36, 4294901760
  %1572 = vmatmul.mubr.f32.gmra.mrb[0].mxu0 %v1571
  %v1573 = vpop.f32.mrb[0].mxu0
  %v1574 = vadd.f32 %v1379, %v1573
  %v1575 = vpop.f32.mrb[0].mxu0
  %v1576 = vand.u32 %v102, 4294901760
  %1577 = vmatprep.mubr.f32.mxu0 %v1576
  %v1578 = vand.u32 %v38, 4294901760
  %1579 = vmatmul.mubr.f32.gmra.mrb[0].mxu0 %v1578
  %v1580 = vpop.f32.mrb[0].mxu0
  %v1581 = vadd.f32 %v1386, %v1580
  %v1582 = vpop.f32.mrb[0].mxu0
  %v1583 = vand.u32 %v105, 4294901760
  %1584 = vmatprep.mubr.f32.mxu0 %v1583
  %v1585 = vand.u32 %v40, 4294901760
  %1586 = vmatmul.mubr.f32.gmra.mrb[0].mxu0 %v1585
  %v1587 = vpop.f32.mrb[0].mxu0
  %v1588 = vadd.f32 %v1393, %v1587
  %v1589 = vpop.f32.mrb[0].mxu0
  %v1590 = vand.u32 %v108, 4294901760
  %1591 = vmatprep.mubr.f32.mxu0 %v1590
  %v1592 = vand.u32 %v42, 4294901760
  %1593 = vmatmul.mubr.f32.gmra.mrb[0].mxu0 %v1592
  %v1594 = vpop.f32.mrb[0].mxu0
  %v1595 = vadd.f32 %v1400, %v1594
  %v1596 = vpop.f32.mrb[0].mxu0
  %v1597 = vand.u32 %v111, 4294901760
  %1598 = vmatprep.mubr.f32.mxu0 %v1597
  %v1599 = vand.u32 %v44, 4294901760
  %1600 = vmatmul.mubr.f32.gmra.mrb[0].mxu0 %v1599
  %v1601 = vpop.f32.mrb[0].mxu0
  %v1602 = vadd.f32 %v1407, %v1601
  %v1603 = vpop.f32.mrb[0].mxu0
  %v1604 = vand.u32 %v114, 4294901760
  %1605 = vmatprep.mubr.f32.mxu0 %v1604
  %v1606 = vand.u32 %v46, 4294901760
  %1607 = vmatmul.mubr.f32.gmra.mrb[0].mxu0 %v1606
  %v1608 = vpop.f32.mrb[0].mxu0
  %v1609 = vadd.f32 %v1414, %v1608
  %v1610 = vpop.f32.mrb[0].mxu0
  %v1611 = vand.u32 %v117, 4294901760
  %1612 = vmatprep.mubr.f32.mxu0 %v1611
  %v1613 = vand.u32 %v48, 4294901760
  %1614 = vmatmul.mubr.f32.gmra.mrb[0].mxu0 %v1613
  %v1615 = vpop.f32.mrb[0].mxu0
  %v1616 = vadd.f32 %v1421, %v1615
  %v1617 = vpop.f32.mrb[0].mxu0
  %v1618 = vand.u32 %v120, 4294901760
  %1619 = vmatprep.mubr.f32.mxu0 %v1618
  %v1620 = vand.u32 %v50, 4294901760
  %1621 = vmatmul.mubr.f32.gmra.mrb[0].mxu0 %v1620
  %v1622 = vpop.f32.mrb[0].mxu0
  %v1623 = vadd.f32 %v1428, %v1622
  %v1624 = vpop.f32.mrb[0].mxu0
  %v1625 = vand.u32 %v123, 4294901760
  %1626 = vmatprep.mubr.f32.mxu0 %v1625
  %v1627 = vand.u32 %v52, 4294901760
  %1628 = vmatmul.mubr.f32.gmra.mrb[0].mxu0 %v1627
  %v1629 = vpop.f32.mrb[0].mxu0
  %v1630 = vadd.f32 %v1435, %v1629
  %v1631 = vpop.f32.mrb[0].mxu0
  %v1632 = vand.u32 %v126, 4294901760
  %1633 = vmatprep.mubr.f32.mxu0 %v1632
  %v1634 = vand.u32 %v54, 4294901760
  %1635 = vmatmul.mubr.f32.gmra.mrb[0].mxu0 %v1634
  %v1636 = vpop.f32.mrb[0].mxu0
  %v1637 = vadd.f32 %v1442, %v1636
  %v1638 = vpop.f32.mrb[0].mxu0
  %v1639 = vand.u32 %v129, 4294901760
  %1640 = vmatprep.mubr.f32.mxu0 %v1639
  %v1641 = vand.u32 %v56, 4294901760
  %1642 = vmatmul.mubr.f32.gmra.mrb[0].mxu0 %v1641
  %v1643 = vpop.f32.mrb[0].mxu0
  %v1644 = vadd.f32 %v1449, %v1643
  %v1645 = vpop.f32.mrb[0].mxu0
  %v1646 = vand.u32 %v132, 4294901760
  %1647 = vmatprep.mubr.f32.mxu0 %v1646
  %v1648 = vand.u32 %v58, 4294901760
  %1649 = vmatmul.mubr.f32.gmra.mrb[0].mxu0 %v1648
  %v1650 = vpop.f32.mrb[0].mxu0
  %v1651 = vadd.f32 %v1456, %v1650
  %v1652 = vpop.f32.mrb[0].mxu0
  %1653 = vdwg.mxu0
  %v1654 = vmul.f32 %v1546, %v1546
  %v1655 = vmul.f32 %v1553, %v1553
  %v1656 = vmul.f32 %v1560, %v1560
  %v1657 = vmul.f32 %v1567, %v1567
  %v1658 = vmul.f32 %v1574, %v1574
  %v1659 = vmul.f32 %v1581, %v1581
  %v1660 = vmul.f32 %v1588, %v1588
  %v1661 = vmul.f32 %v1595, %v1595
  %v1662 = vmul.f32 %v1602, %v1602
  %v1663 = vmul.f32 %v1609, %v1609
  %v1664 = vmul.f32 %v1616, %v1616
  %v1665 = vmul.f32 %v1623, %v1623
  %v1666 = vmul.f32 %v1630, %v1630
  %v1667 = vmul.f32 %v1637, %v1637
  %v1668 = vmul.f32 %v1644, %v1644
  %v1669 = vmul.f32 %v1651, %v1651
  %vm1670 = vcmask 261120
  %v1671 = vsel %vm1670, %v1654, 0.0
  %1672 = vadd.xlane.f32.xlu0 %v1671
  %v1673 = vpop.xlane.xlu0 %1672
  %v1674 = vsel %vm1670, %v1655, 0.0
  %1675 = vadd.xlane.f32.xlu0 %v1674
  %v1676 = vpop.xlane.xlu0 %1675
  %v1677 = vsel %vm1670, %v1656, 0.0
  %1678 = vadd.xlane.f32.xlu0 %v1677
  %v1679 = vpop.xlane.xlu0 %1678
  %v1680 = vsel %vm1670, %v1657, 0.0
  %1681 = vadd.xlane.f32.xlu0 %v1680
  %v1682 = vpop.xlane.xlu0 %1681
  %v1683 = vsel %vm1670, %v1658, 0.0
  %1684 = vadd.xlane.f32.xlu0 %v1683
  %v1685 = vpop.xlane.xlu0 %1684
  %v1686 = vsel %vm1670, %v1659, 0.0
  %1687 = vadd.xlane.f32.xlu0 %v1686
  %v1688 = vpop.xlane.xlu0 %1687
  %v1689 = vsel %vm1670, %v1660, 0.0
  %1690 = vadd.xlane.f32.xlu0 %v1689
  %v1691 = vpop.xlane.xlu0 %1690
  %v1692 = vsel %vm1670, %v1661, 0.0
  %1693 = vadd.xlane.f32.xlu0 %v1692
  %v1694 = vpop.xlane.xlu0 %1693
  %v1695 = vsel %vm1670, %v1662, 0.0
  %1696 = vadd.xlane.f32.xlu0 %v1695
  %v1697 = vpop.xlane.xlu0 %1696
  %v1698 = vsel %vm1670, %v1663, 0.0
  %1699 = vadd.xlane.f32.xlu0 %v1698
  %v1700 = vpop.xlane.xlu0 %1699
  %v1701 = vsel %vm1670, %v1664, 0.0
  %1702 = vadd.xlane.f32.xlu0 %v1701
  %v1703 = vpop.xlane.xlu0 %1702
  %v1704 = vsel %vm1670, %v1665, 0.0
  %1705 = vadd.xlane.f32.xlu0 %v1704
  %v1706 = vpop.xlane.xlu0 %1705
  %v1707 = vsel %vm1670, %v1666, 0.0
  %1708 = vadd.xlane.f32.xlu0 %v1707
  %v1709 = vpop.xlane.xlu0 %1708
  %v1710 = vsel %vm1670, %v1667, 0.0
  %1711 = vadd.xlane.f32.xlu0 %v1710
  %v1712 = vpop.xlane.xlu0 %1711
  %v1713 = vsel %vm1670, %v1668, 0.0
  %1714 = vadd.xlane.f32.xlu0 %v1713
  %v1715 = vpop.xlane.xlu0 %1714
  %v1716 = vsel %vm1670, %v1669, 0.0
  %1717 = vadd.xlane.f32.xlu0 %v1716
  %v1718 = vpop.xlane.xlu0 %1717
  %v1719 = vmul.f32 %v1673, 0.17677669
  %v1720 = vmul.f32 %v1676, 0.17677669
  %v1721 = vmul.f32 %v1679, 0.17677669
  %v1722 = vmul.f32 %v1682, 0.17677669
  %v1723 = vmul.f32 %v1685, 0.17677669
  %v1724 = vmul.f32 %v1688, 0.17677669
  %v1725 = vmul.f32 %v1691, 0.17677669
  %v1726 = vmul.f32 %v1694, 0.17677669
  %v1727 = vmul.f32 %v1697, 0.17677669
  %v1728 = vmul.f32 %v1700, 0.17677669
  %v1729 = vmul.f32 %v1703, 0.17677669
  %v1730 = vmul.f32 %v1706, 0.17677669
  %v1731 = vmul.f32 %v1709, 0.17677669
  %v1732 = vmul.f32 %v1712, 0.17677669
  %v1733 = vmul.f32 %v1715, 0.17677669
  %v1734 = vmul.f32 %v1718, 0.17677669
  %1751 = vrot.lane.b32.xlu0 %v1546, 96
  %v1752 = vpop.permute.xlu0 %1751
  %1753 = vrot.lane.b32.xlu0 %v1553, 96
  %v1754 = vpop.permute.xlu0 %1753
  %1755 = vrot.lane.b32.xlu0 %v1560, 96
  %v1756 = vpop.permute.xlu0 %1755
  %1757 = vrot.lane.b32.xlu0 %v1567, 96
  %v1758 = vpop.permute.xlu0 %1757
  %1759 = vrot.lane.b32.xlu0 %v1574, 96
  %v1760 = vpop.permute.xlu0 %1759
  %1761 = vrot.lane.b32.xlu0 %v1581, 96
  %v1762 = vpop.permute.xlu0 %1761
  %1763 = vrot.lane.b32.xlu0 %v1588, 96
  %v1764 = vpop.permute.xlu0 %1763
  %1765 = vrot.lane.b32.xlu0 %v1595, 96
  %v1766 = vpop.permute.xlu0 %1765
  %1767 = vrot.lane.b32.xlu0 %v1602, 96
  %v1768 = vpop.permute.xlu0 %1767
  %1769 = vrot.lane.b32.xlu0 %v1609, 96
  %v1770 = vpop.permute.xlu0 %1769
  %1771 = vrot.lane.b32.xlu0 %v1616, 96
  %v1772 = vpop.permute.xlu0 %1771
  %1773 = vrot.lane.b32.xlu0 %v1623, 96
  %v1774 = vpop.permute.xlu0 %1773
  %1775 = vrot.lane.b32.xlu0 %v1630, 96
  %v1776 = vpop.permute.xlu0 %1775
  %1777 = vrot.lane.b32.xlu0 %v1637, 96
  %v1778 = vpop.permute.xlu0 %1777
  %1779 = vrot.lane.b32.xlu0 %v1644, 96
  %v1780 = vpop.permute.xlu0 %1779
  %1781 = vrot.lane.b32.xlu0 %v1651, 96
  %v1782 = vpop.permute.xlu0 %1781
  %v1799 = vmul.f32 %v1546, %v1752
  %v1800 = vmul.f32 %v1553, %v1754
  %v1801 = vmul.f32 %v1560, %v1756
  %v1802 = vmul.f32 %v1567, %v1758
  %v1803 = vmul.f32 %v1574, %v1760
  %v1804 = vmul.f32 %v1581, %v1762
  %v1805 = vmul.f32 %v1588, %v1764
  %v1806 = vmul.f32 %v1595, %v1766
  %v1807 = vmul.f32 %v1602, %v1768
  %v1808 = vmul.f32 %v1609, %v1770
  %v1809 = vmul.f32 %v1616, %v1772
  %v1810 = vmul.f32 %v1623, %v1774
  %v1811 = vmul.f32 %v1630, %v1776
  %v1812 = vmul.f32 %v1637, %v1778
  %v1813 = vmul.f32 %v1644, %v1780
  %v1814 = vmul.f32 %v1651, %v1782
  %v1815 = vsel %vm1670, %v1799, 0.0
  %1816 = vadd.xlane.f32.xlu0 %v1815
  %v1817 = vpop.xlane.xlu0 %1816
  %v1818 = vsel %vm1670, %v1800, 0.0
  %1819 = vadd.xlane.f32.xlu0 %v1818
  %v1820 = vpop.xlane.xlu0 %1819
  %v1821 = vsel %vm1670, %v1801, 0.0
  %1822 = vadd.xlane.f32.xlu0 %v1821
  %v1823 = vpop.xlane.xlu0 %1822
  %v1824 = vsel %vm1670, %v1802, 0.0
  %1825 = vadd.xlane.f32.xlu0 %v1824
  %v1826 = vpop.xlane.xlu0 %1825
  %v1827 = vsel %vm1670, %v1803, 0.0
  %1828 = vadd.xlane.f32.xlu0 %v1827
  %v1829 = vpop.xlane.xlu0 %1828
  %v1830 = vsel %vm1670, %v1804, 0.0
  %1831 = vadd.xlane.f32.xlu0 %v1830
  %v1832 = vpop.xlane.xlu0 %1831
  %v1833 = vsel %vm1670, %v1805, 0.0
  %1834 = vadd.xlane.f32.xlu0 %v1833
  %v1835 = vpop.xlane.xlu0 %1834
  %v1836 = vsel %vm1670, %v1806, 0.0
  %1837 = vadd.xlane.f32.xlu0 %v1836
  %v1838 = vpop.xlane.xlu0 %1837
  %v1839 = vsel %vm1670, %v1807, 0.0
  %1840 = vadd.xlane.f32.xlu0 %v1839
  %v1841 = vpop.xlane.xlu0 %1840
  %v1842 = vsel %vm1670, %v1808, 0.0
  %1843 = vadd.xlane.f32.xlu0 %v1842
  %v1844 = vpop.xlane.xlu0 %1843
  %v1845 = vsel %vm1670, %v1809, 0.0
  %1846 = vadd.xlane.f32.xlu0 %v1845
  %v1847 = vpop.xlane.xlu0 %1846
  %v1848 = vsel %vm1670, %v1810, 0.0
  %1849 = vadd.xlane.f32.xlu0 %v1848
  %v1850 = vpop.xlane.xlu0 %1849
  %v1851 = vsel %vm1670, %v1811, 0.0
  %1852 = vadd.xlane.f32.xlu0 %v1851
  %v1853 = vpop.xlane.xlu0 %1852
  %v1854 = vsel %vm1670, %v1812, 0.0
  %1855 = vadd.xlane.f32.xlu0 %v1854
  %v1856 = vpop.xlane.xlu0 %1855
  %v1857 = vsel %vm1670, %v1813, 0.0
  %1858 = vadd.xlane.f32.xlu0 %v1857
  %v1859 = vpop.xlane.xlu0 %1858
  %v1860 = vsel %vm1670, %v1814, 0.0
  %1861 = vadd.xlane.f32.xlu0 %v1860
  %v1862 = vpop.xlane.xlu0 %1861
  %v1863 = vmul.f32 %v1817, 0.17677669
  %v1864 = vmul.f32 %v1820, 0.17677669
  %v1865 = vmul.f32 %v1823, 0.17677669
  %v1866 = vmul.f32 %v1826, 0.17677669
  %v1867 = vmul.f32 %v1829, 0.17677669
  %v1868 = vmul.f32 %v1832, 0.17677669
  %v1869 = vmul.f32 %v1835, 0.17677669
  %v1870 = vmul.f32 %v1838, 0.17677669
  %v1871 = vmul.f32 %v1841, 0.17677669
  %v1872 = vmul.f32 %v1844, 0.17677669
  %v1873 = vmul.f32 %v1847, 0.17677669
  %v1874 = vmul.f32 %v1850, 0.17677669
  %v1875 = vmul.f32 %v1853, 0.17677669
  %v1876 = vmul.f32 %v1856, 0.17677669
  %v1877 = vmul.f32 %v1859, 0.17677669
  %v1878 = vmul.f32 %v1862, 0.17677669
  %1879 = vrot.lane.b32.xlu0 %v1546, 64
  %v1880 = vpop.permute.xlu0 %1879
  %1881 = vrot.lane.b32.xlu0 %v1553, 64
  %v1882 = vpop.permute.xlu0 %1881
  %1883 = vrot.lane.b32.xlu0 %v1560, 64
  %v1884 = vpop.permute.xlu0 %1883
  %1885 = vrot.lane.b32.xlu0 %v1567, 64
  %v1886 = vpop.permute.xlu0 %1885
  %1887 = vrot.lane.b32.xlu0 %v1574, 64
  %v1888 = vpop.permute.xlu0 %1887
  %1889 = vrot.lane.b32.xlu0 %v1581, 64
  %v1890 = vpop.permute.xlu0 %1889
  %1891 = vrot.lane.b32.xlu0 %v1588, 64
  %v1892 = vpop.permute.xlu0 %1891
  %1893 = vrot.lane.b32.xlu0 %v1595, 64
  %v1894 = vpop.permute.xlu0 %1893
  %1895 = vrot.lane.b32.xlu0 %v1602, 64
  %v1896 = vpop.permute.xlu0 %1895
  %1897 = vrot.lane.b32.xlu0 %v1609, 64
  %v1898 = vpop.permute.xlu0 %1897
  %1899 = vrot.lane.b32.xlu0 %v1616, 64
  %v1900 = vpop.permute.xlu0 %1899
  %1901 = vrot.lane.b32.xlu0 %v1623, 64
  %v1902 = vpop.permute.xlu0 %1901
  %1903 = vrot.lane.b32.xlu0 %v1630, 64
  %v1904 = vpop.permute.xlu0 %1903
  %1905 = vrot.lane.b32.xlu0 %v1637, 64
  %v1906 = vpop.permute.xlu0 %1905
  %1907 = vrot.lane.b32.xlu0 %v1644, 64
  %v1908 = vpop.permute.xlu0 %1907
  %1909 = vrot.lane.b32.xlu0 %v1651, 64
  %v1910 = vpop.permute.xlu0 %1909
  %v1927 = vmul.f32 %v1546, %v1880
  %v1928 = vmul.f32 %v1553, %v1882
  %v1929 = vmul.f32 %v1560, %v1884
  %v1930 = vmul.f32 %v1567, %v1886
  %v1931 = vmul.f32 %v1574, %v1888
  %v1932 = vmul.f32 %v1581, %v1890
  %v1933 = vmul.f32 %v1588, %v1892
  %v1934 = vmul.f32 %v1595, %v1894
  %v1935 = vmul.f32 %v1602, %v1896
  %v1936 = vmul.f32 %v1609, %v1898
  %v1937 = vmul.f32 %v1616, %v1900
  %v1938 = vmul.f32 %v1623, %v1902
  %v1939 = vmul.f32 %v1630, %v1904
  %v1940 = vmul.f32 %v1637, %v1906
  %v1941 = vmul.f32 %v1644, %v1908
  %v1942 = vmul.f32 %v1651, %v1910
  %v1943 = vsel %vm1670, %v1927, 0.0
  %1944 = vadd.xlane.f32.xlu0 %v1943
  %v1945 = vpop.xlane.xlu0 %1944
  %v1946 = vsel %vm1670, %v1928, 0.0
  %1947 = vadd.xlane.f32.xlu0 %v1946
  %v1948 = vpop.xlane.xlu0 %1947
  %v1949 = vsel %vm1670, %v1929, 0.0
  %1950 = vadd.xlane.f32.xlu0 %v1949
  %v1951 = vpop.xlane.xlu0 %1950
  %v1952 = vsel %vm1670, %v1930, 0.0
  %1953 = vadd.xlane.f32.xlu0 %v1952
  %v1954 = vpop.xlane.xlu0 %1953
  %v1955 = vsel %vm1670, %v1931, 0.0
  %1956 = vadd.xlane.f32.xlu0 %v1955
  %v1957 = vpop.xlane.xlu0 %1956
  %v1958 = vsel %vm1670, %v1932, 0.0
  %1959 = vadd.xlane.f32.xlu0 %v1958
  %v1960 = vpop.xlane.xlu0 %1959
  %v1961 = vsel %vm1670, %v1933, 0.0
  %1962 = vadd.xlane.f32.xlu0 %v1961
  %v1963 = vpop.xlane.xlu0 %1962
  %v1964 = vsel %vm1670, %v1934, 0.0
  %1965 = vadd.xlane.f32.xlu0 %v1964
  %v1966 = vpop.xlane.xlu0 %1965
  %v1967 = vsel %vm1670, %v1935, 0.0
  %1968 = vadd.xlane.f32.xlu0 %v1967
  %v1969 = vpop.xlane.xlu0 %1968
  %v1970 = vsel %vm1670, %v1936, 0.0
  %1971 = vadd.xlane.f32.xlu0 %v1970
  %v1972 = vpop.xlane.xlu0 %1971
  %v1973 = vsel %vm1670, %v1937, 0.0
  %1974 = vadd.xlane.f32.xlu0 %v1973
  %v1975 = vpop.xlane.xlu0 %1974
  %v1976 = vsel %vm1670, %v1938, 0.0
  %1977 = vadd.xlane.f32.xlu0 %v1976
  %v1978 = vpop.xlane.xlu0 %1977
  %v1979 = vsel %vm1670, %v1939, 0.0
  %1980 = vadd.xlane.f32.xlu0 %v1979
  %v1981 = vpop.xlane.xlu0 %1980
  %v1982 = vsel %vm1670, %v1940, 0.0
  %1983 = vadd.xlane.f32.xlu0 %v1982
  %v1984 = vpop.xlane.xlu0 %1983
  %v1985 = vsel %vm1670, %v1941, 0.0
  %1986 = vadd.xlane.f32.xlu0 %v1985
  %v1987 = vpop.xlane.xlu0 %1986
  %v1988 = vsel %vm1670, %v1942, 0.0
  %1989 = vadd.xlane.f32.xlu0 %v1988
  %v1990 = vpop.xlane.xlu0 %1989
  %v1991 = vmul.f32 %v1945, 0.17677669
  %v1992 = vmul.f32 %v1948, 0.17677669
  %v1993 = vmul.f32 %v1951, 0.17677669
  %v1994 = vmul.f32 %v1954, 0.17677669
  %v1995 = vmul.f32 %v1957, 0.17677669
  %v1996 = vmul.f32 %v1960, 0.17677669
  %v1997 = vmul.f32 %v1963, 0.17677669
  %v1998 = vmul.f32 %v1966, 0.17677669
  %v1999 = vmul.f32 %v1969, 0.17677669
  %v2000 = vmul.f32 %v1972, 0.17677669
  %v2001 = vmul.f32 %v1975, 0.17677669
  %v2002 = vmul.f32 %v1978, 0.17677669
  %v2003 = vmul.f32 %v1981, 0.17677669
  %v2004 = vmul.f32 %v1984, 0.17677669
  %v2005 = vmul.f32 %v1987, 0.17677669
  %v2006 = vmul.f32 %v1990, 0.17677669
  %2023 = vrot.lane.b32.xlu0 %v1654, 96
  %v2024 = vpop.permute.xlu0 %2023
  %2025 = vrot.lane.b32.xlu0 %v1655, 96
  %v2026 = vpop.permute.xlu0 %2025
  %2027 = vrot.lane.b32.xlu0 %v1656, 96
  %v2028 = vpop.permute.xlu0 %2027
  %2029 = vrot.lane.b32.xlu0 %v1657, 96
  %v2030 = vpop.permute.xlu0 %2029
  %2031 = vrot.lane.b32.xlu0 %v1658, 96
  %v2032 = vpop.permute.xlu0 %2031
  %2033 = vrot.lane.b32.xlu0 %v1659, 96
  %v2034 = vpop.permute.xlu0 %2033
  %2035 = vrot.lane.b32.xlu0 %v1660, 96
  %v2036 = vpop.permute.xlu0 %2035
  %2037 = vrot.lane.b32.xlu0 %v1661, 96
  %v2038 = vpop.permute.xlu0 %2037
  %2039 = vrot.lane.b32.xlu0 %v1662, 96
  %v2040 = vpop.permute.xlu0 %2039
  %2041 = vrot.lane.b32.xlu0 %v1663, 96
  %v2042 = vpop.permute.xlu0 %2041
  %2043 = vrot.lane.b32.xlu0 %v1664, 96
  %v2044 = vpop.permute.xlu0 %2043
  %2045 = vrot.lane.b32.xlu0 %v1665, 96
  %v2046 = vpop.permute.xlu0 %2045
  %2047 = vrot.lane.b32.xlu0 %v1666, 96
  %v2048 = vpop.permute.xlu0 %2047
  %2049 = vrot.lane.b32.xlu0 %v1667, 96
  %v2050 = vpop.permute.xlu0 %2049
  %2051 = vrot.lane.b32.xlu0 %v1668, 96
  %v2052 = vpop.permute.xlu0 %2051
  %2053 = vrot.lane.b32.xlu0 %v1669, 96
  %v2054 = vpop.permute.xlu0 %2053
  %v2071 = vsel %vm1670, %v2024, 0.0
  %2072 = vadd.xlane.f32.xlu0 %v2071
  %v2073 = vpop.xlane.xlu0 %2072
  %v2074 = vsel %vm1670, %v2026, 0.0
  %2075 = vadd.xlane.f32.xlu0 %v2074
  %v2076 = vpop.xlane.xlu0 %2075
  %v2077 = vsel %vm1670, %v2028, 0.0
  %2078 = vadd.xlane.f32.xlu0 %v2077
  %v2079 = vpop.xlane.xlu0 %2078
  %v2080 = vsel %vm1670, %v2030, 0.0
  %2081 = vadd.xlane.f32.xlu0 %v2080
  %v2082 = vpop.xlane.xlu0 %2081
  %v2083 = vsel %vm1670, %v2032, 0.0
  %2084 = vadd.xlane.f32.xlu0 %v2083
  %v2085 = vpop.xlane.xlu0 %2084
  %v2086 = vsel %vm1670, %v2034, 0.0
  %2087 = vadd.xlane.f32.xlu0 %v2086
  %v2088 = vpop.xlane.xlu0 %2087
  %v2089 = vsel %vm1670, %v2036, 0.0
  %2090 = vadd.xlane.f32.xlu0 %v2089
  %v2091 = vpop.xlane.xlu0 %2090
  %v2092 = vsel %vm1670, %v2038, 0.0
  %2093 = vadd.xlane.f32.xlu0 %v2092
  %v2094 = vpop.xlane.xlu0 %2093
  %v2095 = vsel %vm1670, %v2040, 0.0
  %2096 = vadd.xlane.f32.xlu0 %v2095
  %v2097 = vpop.xlane.xlu0 %2096
  %v2098 = vsel %vm1670, %v2042, 0.0
  %2099 = vadd.xlane.f32.xlu0 %v2098
  %v2100 = vpop.xlane.xlu0 %2099
  %v2101 = vsel %vm1670, %v2044, 0.0
  %2102 = vadd.xlane.f32.xlu0 %v2101
  %v2103 = vpop.xlane.xlu0 %2102
  %v2104 = vsel %vm1670, %v2046, 0.0
  %2105 = vadd.xlane.f32.xlu0 %v2104
  %v2106 = vpop.xlane.xlu0 %2105
  %v2107 = vsel %vm1670, %v2048, 0.0
  %2108 = vadd.xlane.f32.xlu0 %v2107
  %v2109 = vpop.xlane.xlu0 %2108
  %v2110 = vsel %vm1670, %v2050, 0.0
  %2111 = vadd.xlane.f32.xlu0 %v2110
  %v2112 = vpop.xlane.xlu0 %2111
  %v2113 = vsel %vm1670, %v2052, 0.0
  %2114 = vadd.xlane.f32.xlu0 %v2113
  %v2115 = vpop.xlane.xlu0 %2114
  %v2116 = vsel %vm1670, %v2054, 0.0
  %2117 = vadd.xlane.f32.xlu0 %v2116
  %v2118 = vpop.xlane.xlu0 %2117
  %v2119 = vmul.f32 %v2073, 0.17677669
  %v2120 = vmul.f32 %v2076, 0.17677669
  %v2121 = vmul.f32 %v2079, 0.17677669
  %v2122 = vmul.f32 %v2082, 0.17677669
  %v2123 = vmul.f32 %v2085, 0.17677669
  %v2124 = vmul.f32 %v2088, 0.17677669
  %v2125 = vmul.f32 %v2091, 0.17677669
  %v2126 = vmul.f32 %v2094, 0.17677669
  %v2127 = vmul.f32 %v2097, 0.17677669
  %v2128 = vmul.f32 %v2100, 0.17677669
  %v2129 = vmul.f32 %v2103, 0.17677669
  %v2130 = vmul.f32 %v2106, 0.17677669
  %v2131 = vmul.f32 %v2109, 0.17677669
  %v2132 = vmul.f32 %v2112, 0.17677669
  %v2133 = vmul.f32 %v2115, 0.17677669
  %v2134 = vmul.f32 %v2118, 0.17677669
  %2151 = vrot.lane.b32.xlu0 %v1799, 96
  %v2152 = vpop.permute.xlu0 %2151
  %2153 = vrot.lane.b32.xlu0 %v1800, 96
  %v2154 = vpop.permute.xlu0 %2153
  %2155 = vrot.lane.b32.xlu0 %v1801, 96
  %v2156 = vpop.permute.xlu0 %2155
  %2157 = vrot.lane.b32.xlu0 %v1802, 96
  %v2158 = vpop.permute.xlu0 %2157
  %2159 = vrot.lane.b32.xlu0 %v1803, 96
  %v2160 = vpop.permute.xlu0 %2159
  %2161 = vrot.lane.b32.xlu0 %v1804, 96
  %v2162 = vpop.permute.xlu0 %2161
  %2163 = vrot.lane.b32.xlu0 %v1805, 96
  %v2164 = vpop.permute.xlu0 %2163
  %2165 = vrot.lane.b32.xlu0 %v1806, 96
  %v2166 = vpop.permute.xlu0 %2165
  %2167 = vrot.lane.b32.xlu0 %v1807, 96
  %v2168 = vpop.permute.xlu0 %2167
  %2169 = vrot.lane.b32.xlu0 %v1808, 96
  %v2170 = vpop.permute.xlu0 %2169
  %2171 = vrot.lane.b32.xlu0 %v1809, 96
  %v2172 = vpop.permute.xlu0 %2171
  %2173 = vrot.lane.b32.xlu0 %v1810, 96
  %v2174 = vpop.permute.xlu0 %2173
  %2175 = vrot.lane.b32.xlu0 %v1811, 96
  %v2176 = vpop.permute.xlu0 %2175
  %2177 = vrot.lane.b32.xlu0 %v1812, 96
  %v2178 = vpop.permute.xlu0 %2177
  %2179 = vrot.lane.b32.xlu0 %v1813, 96
  %v2180 = vpop.permute.xlu0 %2179
  %2181 = vrot.lane.b32.xlu0 %v1814, 96
  %v2182 = vpop.permute.xlu0 %2181
  %v2199 = vsel %vm1670, %v2152, 0.0
  %2200 = vadd.xlane.f32.xlu0 %v2199
  %v2201 = vpop.xlane.xlu0 %2200
  %v2202 = vsel %vm1670, %v2154, 0.0
  %2203 = vadd.xlane.f32.xlu0 %v2202
  %v2204 = vpop.xlane.xlu0 %2203
  %v2205 = vsel %vm1670, %v2156, 0.0
  %2206 = vadd.xlane.f32.xlu0 %v2205
  %v2207 = vpop.xlane.xlu0 %2206
  %v2208 = vsel %vm1670, %v2158, 0.0
  %2209 = vadd.xlane.f32.xlu0 %v2208
  %v2210 = vpop.xlane.xlu0 %2209
  %v2211 = vsel %vm1670, %v2160, 0.0
  %2212 = vadd.xlane.f32.xlu0 %v2211
  %v2213 = vpop.xlane.xlu0 %2212
  %v2214 = vsel %vm1670, %v2162, 0.0
  %2215 = vadd.xlane.f32.xlu0 %v2214
  %v2216 = vpop.xlane.xlu0 %2215
  %v2217 = vsel %vm1670, %v2164, 0.0
  %2218 = vadd.xlane.f32.xlu0 %v2217
  %v2219 = vpop.xlane.xlu0 %2218
  %v2220 = vsel %vm1670, %v2166, 0.0
  %2221 = vadd.xlane.f32.xlu0 %v2220
  %v2222 = vpop.xlane.xlu0 %2221
  %v2223 = vsel %vm1670, %v2168, 0.0
  %2224 = vadd.xlane.f32.xlu0 %v2223
  %v2225 = vpop.xlane.xlu0 %2224
  %v2226 = vsel %vm1670, %v2170, 0.0
  %2227 = vadd.xlane.f32.xlu0 %v2226
  %v2228 = vpop.xlane.xlu0 %2227
  %v2229 = vsel %vm1670, %v2172, 0.0
  %2230 = vadd.xlane.f32.xlu0 %v2229
  %v2231 = vpop.xlane.xlu0 %2230
  %v2232 = vsel %vm1670, %v2174, 0.0
  %2233 = vadd.xlane.f32.xlu0 %v2232
  %v2234 = vpop.xlane.xlu0 %2233
  %v2235 = vsel %vm1670, %v2176, 0.0
  %2236 = vadd.xlane.f32.xlu0 %v2235
  %v2237 = vpop.xlane.xlu0 %2236
  %v2238 = vsel %vm1670, %v2178, 0.0
  %2239 = vadd.xlane.f32.xlu0 %v2238
  %v2240 = vpop.xlane.xlu0 %2239
  %v2241 = vsel %vm1670, %v2180, 0.0
  %2242 = vadd.xlane.f32.xlu0 %v2241
  %v2243 = vpop.xlane.xlu0 %2242
  %v2244 = vsel %vm1670, %v2182, 0.0
  %2245 = vadd.xlane.f32.xlu0 %v2244
  %v2246 = vpop.xlane.xlu0 %2245
  %v2247 = vmul.f32 %v2201, 0.17677669
  %v2248 = vmul.f32 %v2204, 0.17677669
  %v2249 = vmul.f32 %v2207, 0.17677669
  %v2250 = vmul.f32 %v2210, 0.17677669
  %v2251 = vmul.f32 %v2213, 0.17677669
  %v2252 = vmul.f32 %v2216, 0.17677669
  %v2253 = vmul.f32 %v2219, 0.17677669
  %v2254 = vmul.f32 %v2222, 0.17677669
  %v2255 = vmul.f32 %v2225, 0.17677669
  %v2256 = vmul.f32 %v2228, 0.17677669
  %v2257 = vmul.f32 %v2231, 0.17677669
  %v2258 = vmul.f32 %v2234, 0.17677669
  %v2259 = vmul.f32 %v2237, 0.17677669
  %v2260 = vmul.f32 %v2240, 0.17677669
  %v2261 = vmul.f32 %v2243, 0.17677669
  %v2262 = vmul.f32 %v2246, 0.17677669
  %2263 = vrot.lane.b32.xlu0 %v1654, 64
  %v2264 = vpop.permute.xlu0 %2263
  %2265 = vrot.lane.b32.xlu0 %v1655, 64
  %v2266 = vpop.permute.xlu0 %2265
  %2267 = vrot.lane.b32.xlu0 %v1656, 64
  %v2268 = vpop.permute.xlu0 %2267
  %2269 = vrot.lane.b32.xlu0 %v1657, 64
  %v2270 = vpop.permute.xlu0 %2269
  %2271 = vrot.lane.b32.xlu0 %v1658, 64
  %v2272 = vpop.permute.xlu0 %2271
  %2273 = vrot.lane.b32.xlu0 %v1659, 64
  %v2274 = vpop.permute.xlu0 %2273
  %2275 = vrot.lane.b32.xlu0 %v1660, 64
  %v2276 = vpop.permute.xlu0 %2275
  %2277 = vrot.lane.b32.xlu0 %v1661, 64
  %v2278 = vpop.permute.xlu0 %2277
  %2279 = vrot.lane.b32.xlu0 %v1662, 64
  %v2280 = vpop.permute.xlu0 %2279
  %2281 = vrot.lane.b32.xlu0 %v1663, 64
  %v2282 = vpop.permute.xlu0 %2281
  %2283 = vrot.lane.b32.xlu0 %v1664, 64
  %v2284 = vpop.permute.xlu0 %2283
  %2285 = vrot.lane.b32.xlu0 %v1665, 64
  %v2286 = vpop.permute.xlu0 %2285
  %2287 = vrot.lane.b32.xlu0 %v1666, 64
  %v2288 = vpop.permute.xlu0 %2287
  %2289 = vrot.lane.b32.xlu0 %v1667, 64
  %v2290 = vpop.permute.xlu0 %2289
  %2291 = vrot.lane.b32.xlu0 %v1668, 64
  %v2292 = vpop.permute.xlu0 %2291
  %2293 = vrot.lane.b32.xlu0 %v1669, 64
  %v2294 = vpop.permute.xlu0 %2293
  %v2311 = vsel %vm1670, %v2264, 0.0
  %2312 = vadd.xlane.f32.xlu0 %v2311
  %v2313 = vpop.xlane.xlu0 %2312
  %v2314 = vsel %vm1670, %v2266, 0.0
  %2315 = vadd.xlane.f32.xlu0 %v2314
  %v2316 = vpop.xlane.xlu0 %2315
  %v2317 = vsel %vm1670, %v2268, 0.0
  %2318 = vadd.xlane.f32.xlu0 %v2317
  %v2319 = vpop.xlane.xlu0 %2318
  %v2320 = vsel %vm1670, %v2270, 0.0
  %2321 = vadd.xlane.f32.xlu0 %v2320
  %v2322 = vpop.xlane.xlu0 %2321
  %v2323 = vsel %vm1670, %v2272, 0.0
  %2324 = vadd.xlane.f32.xlu0 %v2323
  %v2325 = vpop.xlane.xlu0 %2324
  %v2326 = vsel %vm1670, %v2274, 0.0
  %2327 = vadd.xlane.f32.xlu0 %v2326
  %v2328 = vpop.xlane.xlu0 %2327
  %v2329 = vsel %vm1670, %v2276, 0.0
  %2330 = vadd.xlane.f32.xlu0 %v2329
  %v2331 = vpop.xlane.xlu0 %2330
  %v2332 = vsel %vm1670, %v2278, 0.0
  %2333 = vadd.xlane.f32.xlu0 %v2332
  %v2334 = vpop.xlane.xlu0 %2333
  %v2335 = vsel %vm1670, %v2280, 0.0
  %2336 = vadd.xlane.f32.xlu0 %v2335
  %v2337 = vpop.xlane.xlu0 %2336
  %v2338 = vsel %vm1670, %v2282, 0.0
  %2339 = vadd.xlane.f32.xlu0 %v2338
  %v2340 = vpop.xlane.xlu0 %2339
  %v2341 = vsel %vm1670, %v2284, 0.0
  %2342 = vadd.xlane.f32.xlu0 %v2341
  %v2343 = vpop.xlane.xlu0 %2342
  %v2344 = vsel %vm1670, %v2286, 0.0
  %2345 = vadd.xlane.f32.xlu0 %v2344
  %v2346 = vpop.xlane.xlu0 %2345
  %v2347 = vsel %vm1670, %v2288, 0.0
  %2348 = vadd.xlane.f32.xlu0 %v2347
  %v2349 = vpop.xlane.xlu0 %2348
  %v2350 = vsel %vm1670, %v2290, 0.0
  %2351 = vadd.xlane.f32.xlu0 %v2350
  %v2352 = vpop.xlane.xlu0 %2351
  %v2353 = vsel %vm1670, %v2292, 0.0
  %2354 = vadd.xlane.f32.xlu0 %v2353
  %v2355 = vpop.xlane.xlu0 %2354
  %v2356 = vsel %vm1670, %v2294, 0.0
  %2357 = vadd.xlane.f32.xlu0 %v2356
  %v2358 = vpop.xlane.xlu0 %2357
  %v2359 = vmul.f32 %v2313, 0.17677669
  %v2360 = vmul.f32 %v2316, 0.17677669
  %v2361 = vmul.f32 %v2319, 0.17677669
  %v2362 = vmul.f32 %v2322, 0.17677669
  %v2363 = vmul.f32 %v2325, 0.17677669
  %v2364 = vmul.f32 %v2328, 0.17677669
  %v2365 = vmul.f32 %v2331, 0.17677669
  %v2366 = vmul.f32 %v2334, 0.17677669
  %v2367 = vmul.f32 %v2337, 0.17677669
  %v2368 = vmul.f32 %v2340, 0.17677669
  %v2369 = vmul.f32 %v2343, 0.17677669
  %v2370 = vmul.f32 %v2346, 0.17677669
  %v2371 = vmul.f32 %v2349, 0.17677669
  %v2372 = vmul.f32 %v2352, 0.17677669
  %v2373 = vmul.f32 %v2355, 0.17677669
  %v2374 = vmul.f32 %v2358, 0.17677669
  %v2375 = vmax.f32 %v1719, %v1863
  %v2376 = vmax.f32 %v1720, %v1864
  %v2377 = vmax.f32 %v1721, %v1865
  %v2378 = vmax.f32 %v1722, %v1866
  %v2379 = vmax.f32 %v1723, %v1867
  %v2380 = vmax.f32 %v1724, %v1868
  %v2381 = vmax.f32 %v1725, %v1869
  %v2382 = vmax.f32 %v1726, %v1870
  %v2383 = vmax.f32 %v1727, %v1871
  %v2384 = vmax.f32 %v1728, %v1872
  %v2385 = vmax.f32 %v1729, %v1873
  %v2386 = vmax.f32 %v1730, %v1874
  %v2387 = vmax.f32 %v1731, %v1875
  %v2388 = vmax.f32 %v1732, %v1876
  %v2389 = vmax.f32 %v1733, %v1877
  %v2390 = vmax.f32 %v1734, %v1878
  %v2391 = vmax.f32 %v2375, %v1991
  %v2392 = vmax.f32 %v2376, %v1992
  %v2393 = vmax.f32 %v2377, %v1993
  %v2394 = vmax.f32 %v2378, %v1994
  %v2395 = vmax.f32 %v2379, %v1995
  %v2396 = vmax.f32 %v2380, %v1996
  %v2397 = vmax.f32 %v2381, %v1997
  %v2398 = vmax.f32 %v2382, %v1998
  %v2399 = vmax.f32 %v2383, %v1999
  %v2400 = vmax.f32 %v2384, %v2000
  %v2401 = vmax.f32 %v2385, %v2001
  %v2402 = vmax.f32 %v2386, %v2002
  %v2403 = vmax.f32 %v2387, %v2003
  %v2404 = vmax.f32 %v2388, %v2004
  %v2405 = vmax.f32 %v2389, %v2005
  %v2406 = vmax.f32 %v2390, %v2006
  %v2407 = vsub.f32 %v1719, %v2391
  %v2408 = vsub.f32 %v1720, %v2392
  %v2409 = vsub.f32 %v1721, %v2393
  %v2410 = vsub.f32 %v1722, %v2394
  %v2411 = vsub.f32 %v1723, %v2395
  %v2412 = vsub.f32 %v1724, %v2396
  %v2413 = vsub.f32 %v1725, %v2397
  %v2414 = vsub.f32 %v1726, %v2398
  %v2415 = vsub.f32 %v1727, %v2399
  %v2416 = vsub.f32 %v1728, %v2400
  %v2417 = vsub.f32 %v1729, %v2401
  %v2418 = vsub.f32 %v1730, %v2402
  %v2419 = vsub.f32 %v1731, %v2403
  %v2420 = vsub.f32 %v1732, %v2404
  %v2421 = vsub.f32 %v1733, %v2405
  %v2422 = vsub.f32 %v1734, %v2406
  %v2423 = vmul.f32 %v2407, 1.442695
  %v2424 = vpow.pop %v2423
  %v2425 = vmul.f32 %v2408, 1.442695
  %v2426 = vpow.pop %v2425
  %v2427 = vmul.f32 %v2409, 1.442695
  %v2428 = vpow.pop %v2427
  %v2429 = vmul.f32 %v2410, 1.442695
  %v2430 = vpow.pop %v2429
  %v2431 = vmul.f32 %v2411, 1.442695
  %v2432 = vpow.pop %v2431
  %v2433 = vmul.f32 %v2412, 1.442695
  %v2434 = vpow.pop %v2433
  %v2435 = vmul.f32 %v2413, 1.442695
  %v2436 = vpow.pop %v2435
  %v2437 = vmul.f32 %v2414, 1.442695
  %v2438 = vpow.pop %v2437
  %v2439 = vmul.f32 %v2415, 1.442695
  %v2440 = vpow.pop %v2439
  %v2441 = vmul.f32 %v2416, 1.442695
  %v2442 = vpow.pop %v2441
  %v2443 = vmul.f32 %v2417, 1.442695
  %v2444 = vpow.pop %v2443
  %v2445 = vmul.f32 %v2418, 1.442695
  %v2446 = vpow.pop %v2445
  %v2447 = vmul.f32 %v2419, 1.442695
  %v2448 = vpow.pop %v2447
  %v2449 = vmul.f32 %v2420, 1.442695
  %v2450 = vpow.pop %v2449
  %v2451 = vmul.f32 %v2421, 1.442695
  %v2452 = vpow.pop %v2451
  %v2453 = vmul.f32 %v2422, 1.442695
  %v2454 = vpow.pop %v2453
  %v2455 = vsub.f32 %v1863, %v2391
  %v2456 = vsub.f32 %v1864, %v2392
  %v2457 = vsub.f32 %v1865, %v2393
  %v2458 = vsub.f32 %v1866, %v2394
  %v2459 = vsub.f32 %v1867, %v2395
  %v2460 = vsub.f32 %v1868, %v2396
  %v2461 = vsub.f32 %v1869, %v2397
  %v2462 = vsub.f32 %v1870, %v2398
  %v2463 = vsub.f32 %v1871, %v2399
  %v2464 = vsub.f32 %v1872, %v2400
  %v2465 = vsub.f32 %v1873, %v2401
  %v2466 = vsub.f32 %v1874, %v2402
  %v2467 = vsub.f32 %v1875, %v2403
  %v2468 = vsub.f32 %v1876, %v2404
  %v2469 = vsub.f32 %v1877, %v2405
  %v2470 = vsub.f32 %v1878, %v2406
  %v2471 = vmul.f32 %v2455, 1.442695
  %v2472 = vpow.pop %v2471
  %v2473 = vmul.f32 %v2456, 1.442695
  %v2474 = vpow.pop %v2473
  %v2475 = vmul.f32 %v2457, 1.442695
  %v2476 = vpow.pop %v2475
  %v2477 = vmul.f32 %v2458, 1.442695
  %v2478 = vpow.pop %v2477
  %v2479 = vmul.f32 %v2459, 1.442695
  %v2480 = vpow.pop %v2479
  %v2481 = vmul.f32 %v2460, 1.442695
  %v2482 = vpow.pop %v2481
  %v2483 = vmul.f32 %v2461, 1.442695
  %v2484 = vpow.pop %v2483
  %v2485 = vmul.f32 %v2462, 1.442695
  %v2486 = vpow.pop %v2485
  %v2487 = vmul.f32 %v2463, 1.442695
  %v2488 = vpow.pop %v2487
  %v2489 = vmul.f32 %v2464, 1.442695
  %v2490 = vpow.pop %v2489
  %v2491 = vmul.f32 %v2465, 1.442695
  %v2492 = vpow.pop %v2491
  %v2493 = vmul.f32 %v2466, 1.442695
  %v2494 = vpow.pop %v2493
  %v2495 = vmul.f32 %v2467, 1.442695
  %v2496 = vpow.pop %v2495
  %v2497 = vmul.f32 %v2468, 1.442695
  %v2498 = vpow.pop %v2497
  %v2499 = vmul.f32 %v2469, 1.442695
  %v2500 = vpow.pop %v2499
  %v2501 = vmul.f32 %v2470, 1.442695
  %v2502 = vpow.pop %v2501
  %v2503 = vsub.f32 %v1991, %v2391
  %v2504 = vsub.f32 %v1992, %v2392
  %v2505 = vsub.f32 %v1993, %v2393
  %v2506 = vsub.f32 %v1994, %v2394
  %v2507 = vsub.f32 %v1995, %v2395
  %v2508 = vsub.f32 %v1996, %v2396
  %v2509 = vsub.f32 %v1997, %v2397
  %v2510 = vsub.f32 %v1998, %v2398
  %v2511 = vsub.f32 %v1999, %v2399
  %v2512 = vsub.f32 %v2000, %v2400
  %v2513 = vsub.f32 %v2001, %v2401
  %v2514 = vsub.f32 %v2002, %v2402
  %v2515 = vsub.f32 %v2003, %v2403
  %v2516 = vsub.f32 %v2004, %v2404
  %v2517 = vsub.f32 %v2005, %v2405
  %v2518 = vsub.f32 %v2006, %v2406
  %v2519 = vmul.f32 %v2503, 1.442695
  %v2520 = vpow.pop %v2519
  %v2521 = vmul.f32 %v2504, 1.442695
  %v2522 = vpow.pop %v2521
  %v2523 = vmul.f32 %v2505, 1.442695
  %v2524 = vpow.pop %v2523
  %v2525 = vmul.f32 %v2506, 1.442695
  %v2526 = vpow.pop %v2525
  %v2527 = vmul.f32 %v2507, 1.442695
  %v2528 = vpow.pop %v2527
  %v2529 = vmul.f32 %v2508, 1.442695
  %v2530 = vpow.pop %v2529
  %v2531 = vmul.f32 %v2509, 1.442695
  %v2532 = vpow.pop %v2531
  %v2533 = vmul.f32 %v2510, 1.442695
  %v2534 = vpow.pop %v2533
  %v2535 = vmul.f32 %v2511, 1.442695
  %v2536 = vpow.pop %v2535
  %v2537 = vmul.f32 %v2512, 1.442695
  %v2538 = vpow.pop %v2537
  %v2539 = vmul.f32 %v2513, 1.442695
  %v2540 = vpow.pop %v2539
  %v2541 = vmul.f32 %v2514, 1.442695
  %v2542 = vpow.pop %v2541
  %v2543 = vmul.f32 %v2515, 1.442695
  %v2544 = vpow.pop %v2543
  %v2545 = vmul.f32 %v2516, 1.442695
  %v2546 = vpow.pop %v2545
  %v2547 = vmul.f32 %v2517, 1.442695
  %v2548 = vpow.pop %v2547
  %v2549 = vmul.f32 %v2518, 1.442695
  %v2550 = vpow.pop %v2549
  %v2551 = vadd.f32 %v2424, %v2472
  %v2552 = vadd.f32 %v2426, %v2474
  %v2553 = vadd.f32 %v2428, %v2476
  %v2554 = vadd.f32 %v2430, %v2478
  %v2555 = vadd.f32 %v2432, %v2480
  %v2556 = vadd.f32 %v2434, %v2482
  %v2557 = vadd.f32 %v2436, %v2484
  %v2558 = vadd.f32 %v2438, %v2486
  %v2559 = vadd.f32 %v2440, %v2488
  %v2560 = vadd.f32 %v2442, %v2490
  %v2561 = vadd.f32 %v2444, %v2492
  %v2562 = vadd.f32 %v2446, %v2494
  %v2563 = vadd.f32 %v2448, %v2496
  %v2564 = vadd.f32 %v2450, %v2498
  %v2565 = vadd.f32 %v2452, %v2500
  %v2566 = vadd.f32 %v2454, %v2502
  %v2567 = vadd.f32 %v2551, %v2520
  %v2568 = vadd.f32 %v2552, %v2522
  %v2569 = vadd.f32 %v2553, %v2524
  %v2570 = vadd.f32 %v2554, %v2526
  %v2571 = vadd.f32 %v2555, %v2528
  %v2572 = vadd.f32 %v2556, %v2530
  %v2573 = vadd.f32 %v2557, %v2532
  %v2574 = vadd.f32 %v2558, %v2534
  %v2575 = vadd.f32 %v2559, %v2536
  %v2576 = vadd.f32 %v2560, %v2538
  %v2577 = vadd.f32 %v2561, %v2540
  %v2578 = vadd.f32 %v2562, %v2542
  %v2579 = vadd.f32 %v2563, %v2544
  %v2580 = vadd.f32 %v2564, %v2546
  %v2581 = vadd.f32 %v2565, %v2548
  %v2582 = vadd.f32 %v2566, %v2550
  %v2583 = vrcp.pop %v2567
  %v2584 = vmul.f32 1.0, %v2583
  %v2585 = vrcp.pop %v2568
  %v2586 = vmul.f32 1.0, %v2585
  %v2587 = vrcp.pop %v2569
  %v2588 = vmul.f32 1.0, %v2587
  %v2589 = vrcp.pop %v2570
  %v2590 = vmul.f32 1.0, %v2589
  %v2591 = vrcp.pop %v2571
  %v2592 = vmul.f32 1.0, %v2591
  %v2593 = vrcp.pop %v2572
  %v2594 = vmul.f32 1.0, %v2593
  %v2595 = vrcp.pop %v2573
  %v2596 = vmul.f32 1.0, %v2595
  %v2597 = vrcp.pop %v2574
  %v2598 = vmul.f32 1.0, %v2597
  %v2599 = vrcp.pop %v2575
  %v2600 = vmul.f32 1.0, %v2599
  %v2601 = vrcp.pop %v2576
  %v2602 = vmul.f32 1.0, %v2601
  %v2603 = vrcp.pop %v2577
  %v2604 = vmul.f32 1.0, %v2603
  %v2605 = vrcp.pop %v2578
  %v2606 = vmul.f32 1.0, %v2605
  %v2607 = vrcp.pop %v2579
  %v2608 = vmul.f32 1.0, %v2607
  %v2609 = vrcp.pop %v2580
  %v2610 = vmul.f32 1.0, %v2609
  %v2611 = vrcp.pop %v2581
  %v2612 = vmul.f32 1.0, %v2611
  %v2613 = vrcp.pop %v2582
  %v2614 = vmul.f32 1.0, %v2613
  %v2615 = vmul.f32 %v2424, %v2584
  %v2616 = vmul.f32 %v2426, %v2586
  %v2617 = vmul.f32 %v2428, %v2588
  %v2618 = vmul.f32 %v2430, %v2590
  %v2619 = vmul.f32 %v2432, %v2592
  %v2620 = vmul.f32 %v2434, %v2594
  %v2621 = vmul.f32 %v2436, %v2596
  %v2622 = vmul.f32 %v2438, %v2598
  %v2623 = vmul.f32 %v2440, %v2600
  %v2624 = vmul.f32 %v2442, %v2602
  %v2625 = vmul.f32 %v2444, %v2604
  %v2626 = vmul.f32 %v2446, %v2606
  %v2627 = vmul.f32 %v2448, %v2608
  %v2628 = vmul.f32 %v2450, %v2610
  %v2629 = vmul.f32 %v2452, %v2612
  %v2630 = vmul.f32 %v2454, %v2614
  %v2631 = vmul.f32 %v2615, %v1546
  %v2632 = vmul.f32 %v2616, %v1553
  %v2633 = vmul.f32 %v2617, %v1560
  %v2634 = vmul.f32 %v2618, %v1567
  %v2635 = vmul.f32 %v2619, %v1574
  %v2636 = vmul.f32 %v2620, %v1581
  %v2637 = vmul.f32 %v2621, %v1588
  %v2638 = vmul.f32 %v2622, %v1595
  %v2639 = vmul.f32 %v2623, %v1602
  %v2640 = vmul.f32 %v2624, %v1609
  %v2641 = vmul.f32 %v2625, %v1616
  %v2642 = vmul.f32 %v2626, %v1623
  %v2643 = vmul.f32 %v2627, %v1630
  %v2644 = vmul.f32 %v2628, %v1637
  %v2645 = vmul.f32 %v2629, %v1644
  %v2646 = vmul.f32 %v2630, %v1651
  %v2647 = vmul.f32 %v2472, %v2584
  %v2648 = vmul.f32 %v2474, %v2586
  %v2649 = vmul.f32 %v2476, %v2588
  %v2650 = vmul.f32 %v2478, %v2590
  %v2651 = vmul.f32 %v2480, %v2592
  %v2652 = vmul.f32 %v2482, %v2594
  %v2653 = vmul.f32 %v2484, %v2596
  %v2654 = vmul.f32 %v2486, %v2598
  %v2655 = vmul.f32 %v2488, %v2600
  %v2656 = vmul.f32 %v2490, %v2602
  %v2657 = vmul.f32 %v2492, %v2604
  %v2658 = vmul.f32 %v2494, %v2606
  %v2659 = vmul.f32 %v2496, %v2608
  %v2660 = vmul.f32 %v2498, %v2610
  %v2661 = vmul.f32 %v2500, %v2612
  %v2662 = vmul.f32 %v2502, %v2614
  %v2663 = vmul.f32 %v2647, %v1546
  %v2664 = vmul.f32 %v2648, %v1553
  %v2665 = vmul.f32 %v2649, %v1560
  %v2666 = vmul.f32 %v2650, %v1567
  %v2667 = vmul.f32 %v2651, %v1574
  %v2668 = vmul.f32 %v2652, %v1581
  %v2669 = vmul.f32 %v2653, %v1588
  %v2670 = vmul.f32 %v2654, %v1595
  %v2671 = vmul.f32 %v2655, %v1602
  %v2672 = vmul.f32 %v2656, %v1609
  %v2673 = vmul.f32 %v2657, %v1616
  %v2674 = vmul.f32 %v2658, %v1623
  %v2675 = vmul.f32 %v2659, %v1630
  %v2676 = vmul.f32 %v2660, %v1637
  %v2677 = vmul.f32 %v2661, %v1644
  %v2678 = vmul.f32 %v2662, %v1651
  %2695 = vrot.lane.b32.xlu0 %v2663, 96
  %v2696 = vpop.permute.xlu0 %2695
  %2697 = vrot.lane.b32.xlu0 %v2664, 96
  %v2698 = vpop.permute.xlu0 %2697
  %2699 = vrot.lane.b32.xlu0 %v2665, 96
  %v2700 = vpop.permute.xlu0 %2699
  %2701 = vrot.lane.b32.xlu0 %v2666, 96
  %v2702 = vpop.permute.xlu0 %2701
  %2703 = vrot.lane.b32.xlu0 %v2667, 96
  %v2704 = vpop.permute.xlu0 %2703
  %2705 = vrot.lane.b32.xlu0 %v2668, 96
  %v2706 = vpop.permute.xlu0 %2705
  %2707 = vrot.lane.b32.xlu0 %v2669, 96
  %v2708 = vpop.permute.xlu0 %2707
  %2709 = vrot.lane.b32.xlu0 %v2670, 96
  %v2710 = vpop.permute.xlu0 %2709
  %2711 = vrot.lane.b32.xlu0 %v2671, 96
  %v2712 = vpop.permute.xlu0 %2711
  %2713 = vrot.lane.b32.xlu0 %v2672, 96
  %v2714 = vpop.permute.xlu0 %2713
  %2715 = vrot.lane.b32.xlu0 %v2673, 96
  %v2716 = vpop.permute.xlu0 %2715
  %2717 = vrot.lane.b32.xlu0 %v2674, 96
  %v2718 = vpop.permute.xlu0 %2717
  %2719 = vrot.lane.b32.xlu0 %v2675, 96
  %v2720 = vpop.permute.xlu0 %2719
  %2721 = vrot.lane.b32.xlu0 %v2676, 96
  %v2722 = vpop.permute.xlu0 %2721
  %2723 = vrot.lane.b32.xlu0 %v2677, 96
  %v2724 = vpop.permute.xlu0 %2723
  %2725 = vrot.lane.b32.xlu0 %v2678, 96
  %v2726 = vpop.permute.xlu0 %2725
  %v2743 = vadd.f32 %v2631, %v2696
  %v2744 = vadd.f32 %v2632, %v2698
  %v2745 = vadd.f32 %v2633, %v2700
  %v2746 = vadd.f32 %v2634, %v2702
  %v2747 = vadd.f32 %v2635, %v2704
  %v2748 = vadd.f32 %v2636, %v2706
  %v2749 = vadd.f32 %v2637, %v2708
  %v2750 = vadd.f32 %v2638, %v2710
  %v2751 = vadd.f32 %v2639, %v2712
  %v2752 = vadd.f32 %v2640, %v2714
  %v2753 = vadd.f32 %v2641, %v2716
  %v2754 = vadd.f32 %v2642, %v2718
  %v2755 = vadd.f32 %v2643, %v2720
  %v2756 = vadd.f32 %v2644, %v2722
  %v2757 = vadd.f32 %v2645, %v2724
  %v2758 = vadd.f32 %v2646, %v2726
  %v2759 = vmul.f32 %v2520, %v2584
  %v2760 = vmul.f32 %v2522, %v2586
  %v2761 = vmul.f32 %v2524, %v2588
  %v2762 = vmul.f32 %v2526, %v2590
  %v2763 = vmul.f32 %v2528, %v2592
  %v2764 = vmul.f32 %v2530, %v2594
  %v2765 = vmul.f32 %v2532, %v2596
  %v2766 = vmul.f32 %v2534, %v2598
  %v2767 = vmul.f32 %v2536, %v2600
  %v2768 = vmul.f32 %v2538, %v2602
  %v2769 = vmul.f32 %v2540, %v2604
  %v2770 = vmul.f32 %v2542, %v2606
  %v2771 = vmul.f32 %v2544, %v2608
  %v2772 = vmul.f32 %v2546, %v2610
  %v2773 = vmul.f32 %v2548, %v2612
  %v2774 = vmul.f32 %v2550, %v2614
  %v2775 = vmul.f32 %v2759, %v1546
  %v2776 = vmul.f32 %v2760, %v1553
  %v2777 = vmul.f32 %v2761, %v1560
  %v2778 = vmul.f32 %v2762, %v1567
  %v2779 = vmul.f32 %v2763, %v1574
  %v2780 = vmul.f32 %v2764, %v1581
  %v2781 = vmul.f32 %v2765, %v1588
  %v2782 = vmul.f32 %v2766, %v1595
  %v2783 = vmul.f32 %v2767, %v1602
  %v2784 = vmul.f32 %v2768, %v1609
  %v2785 = vmul.f32 %v2769, %v1616
  %v2786 = vmul.f32 %v2770, %v1623
  %v2787 = vmul.f32 %v2771, %v1630
  %v2788 = vmul.f32 %v2772, %v1637
  %v2789 = vmul.f32 %v2773, %v1644
  %v2790 = vmul.f32 %v2774, %v1651
  %2807 = vrot.lane.b32.xlu0 %v2775, 64
  %v2808 = vpop.permute.xlu0 %2807
  %2809 = vrot.lane.b32.xlu0 %v2776, 64
  %v2810 = vpop.permute.xlu0 %2809
  %2811 = vrot.lane.b32.xlu0 %v2777, 64
  %v2812 = vpop.permute.xlu0 %2811
  %2813 = vrot.lane.b32.xlu0 %v2778, 64
  %v2814 = vpop.permute.xlu0 %2813
  %2815 = vrot.lane.b32.xlu0 %v2779, 64
  %v2816 = vpop.permute.xlu0 %2815
  %2817 = vrot.lane.b32.xlu0 %v2780, 64
  %v2818 = vpop.permute.xlu0 %2817
  %2819 = vrot.lane.b32.xlu0 %v2781, 64
  %v2820 = vpop.permute.xlu0 %2819
  %2821 = vrot.lane.b32.xlu0 %v2782, 64
  %v2822 = vpop.permute.xlu0 %2821
  %2823 = vrot.lane.b32.xlu0 %v2783, 64
  %v2824 = vpop.permute.xlu0 %2823
  %2825 = vrot.lane.b32.xlu0 %v2784, 64
  %v2826 = vpop.permute.xlu0 %2825
  %2827 = vrot.lane.b32.xlu0 %v2785, 64
  %v2828 = vpop.permute.xlu0 %2827
  %2829 = vrot.lane.b32.xlu0 %v2786, 64
  %v2830 = vpop.permute.xlu0 %2829
  %2831 = vrot.lane.b32.xlu0 %v2787, 64
  %v2832 = vpop.permute.xlu0 %2831
  %2833 = vrot.lane.b32.xlu0 %v2788, 64
  %v2834 = vpop.permute.xlu0 %2833
  %2835 = vrot.lane.b32.xlu0 %v2789, 64
  %v2836 = vpop.permute.xlu0 %2835
  %2837 = vrot.lane.b32.xlu0 %v2790, 64
  %v2838 = vpop.permute.xlu0 %2837
  %v2855 = vadd.f32 %v2743, %v2808
  %v2856 = vadd.f32 %v2744, %v2810
  %v2857 = vadd.f32 %v2745, %v2812
  %v2858 = vadd.f32 %v2746, %v2814
  %v2859 = vadd.f32 %v2747, %v2816
  %v2860 = vadd.f32 %v2748, %v2818
  %v2861 = vadd.f32 %v2749, %v2820
  %v2862 = vadd.f32 %v2750, %v2822
  %v2863 = vadd.f32 %v2751, %v2824
  %v2864 = vadd.f32 %v2752, %v2826
  %v2865 = vadd.f32 %v2753, %v2828
  %v2866 = vadd.f32 %v2754, %v2830
  %v2867 = vadd.f32 %v2755, %v2832
  %v2868 = vadd.f32 %v2756, %v2834
  %v2869 = vadd.f32 %v2757, %v2836
  %v2870 = vadd.f32 %v2758, %v2838
  %v2871 = vmax.f32 %v1863, %v2119
  %v2872 = vmax.f32 %v1864, %v2120
  %v2873 = vmax.f32 %v1865, %v2121
  %v2874 = vmax.f32 %v1866, %v2122
  %v2875 = vmax.f32 %v1867, %v2123
  %v2876 = vmax.f32 %v1868, %v2124
  %v2877 = vmax.f32 %v1869, %v2125
  %v2878 = vmax.f32 %v1870, %v2126
  %v2879 = vmax.f32 %v1871, %v2127
  %v2880 = vmax.f32 %v1872, %v2128
  %v2881 = vmax.f32 %v1873, %v2129
  %v2882 = vmax.f32 %v1874, %v2130
  %v2883 = vmax.f32 %v1875, %v2131
  %v2884 = vmax.f32 %v1876, %v2132
  %v2885 = vmax.f32 %v1877, %v2133
  %v2886 = vmax.f32 %v1878, %v2134
  %v2887 = vmax.f32 %v2871, %v2247
  %v2888 = vmax.f32 %v2872, %v2248
  %v2889 = vmax.f32 %v2873, %v2249
  %v2890 = vmax.f32 %v2874, %v2250
  %v2891 = vmax.f32 %v2875, %v2251
  %v2892 = vmax.f32 %v2876, %v2252
  %v2893 = vmax.f32 %v2877, %v2253
  %v2894 = vmax.f32 %v2878, %v2254
  %v2895 = vmax.f32 %v2879, %v2255
  %v2896 = vmax.f32 %v2880, %v2256
  %v2897 = vmax.f32 %v2881, %v2257
  %v2898 = vmax.f32 %v2882, %v2258
  %v2899 = vmax.f32 %v2883, %v2259
  %v2900 = vmax.f32 %v2884, %v2260
  %v2901 = vmax.f32 %v2885, %v2261
  %v2902 = vmax.f32 %v2886, %v2262
  %v2903 = vsub.f32 %v1863, %v2887
  %v2904 = vsub.f32 %v1864, %v2888
  %v2905 = vsub.f32 %v1865, %v2889
  %v2906 = vsub.f32 %v1866, %v2890
  %v2907 = vsub.f32 %v1867, %v2891
  %v2908 = vsub.f32 %v1868, %v2892
  %v2909 = vsub.f32 %v1869, %v2893
  %v2910 = vsub.f32 %v1870, %v2894
  %v2911 = vsub.f32 %v1871, %v2895
  %v2912 = vsub.f32 %v1872, %v2896
  %v2913 = vsub.f32 %v1873, %v2897
  %v2914 = vsub.f32 %v1874, %v2898
  %v2915 = vsub.f32 %v1875, %v2899
  %v2916 = vsub.f32 %v1876, %v2900
  %v2917 = vsub.f32 %v1877, %v2901
  %v2918 = vsub.f32 %v1878, %v2902
  %v2919 = vmul.f32 %v2903, 1.442695
  %v2920 = vpow.pop %v2919
  %v2921 = vmul.f32 %v2904, 1.442695
  %v2922 = vpow.pop %v2921
  %v2923 = vmul.f32 %v2905, 1.442695
  %v2924 = vpow.pop %v2923
  %v2925 = vmul.f32 %v2906, 1.442695
  %v2926 = vpow.pop %v2925
  %v2927 = vmul.f32 %v2907, 1.442695
  %v2928 = vpow.pop %v2927
  %v2929 = vmul.f32 %v2908, 1.442695
  %v2930 = vpow.pop %v2929
  %v2931 = vmul.f32 %v2909, 1.442695
  %v2932 = vpow.pop %v2931
  %v2933 = vmul.f32 %v2910, 1.442695
  %v2934 = vpow.pop %v2933
  %v2935 = vmul.f32 %v2911, 1.442695
  %v2936 = vpow.pop %v2935
  %v2937 = vmul.f32 %v2912, 1.442695
  %v2938 = vpow.pop %v2937
  %v2939 = vmul.f32 %v2913, 1.442695
  %v2940 = vpow.pop %v2939
  %v2941 = vmul.f32 %v2914, 1.442695
  %v2942 = vpow.pop %v2941
  %v2943 = vmul.f32 %v2915, 1.442695
  %v2944 = vpow.pop %v2943
  %v2945 = vmul.f32 %v2916, 1.442695
  %v2946 = vpow.pop %v2945
  %v2947 = vmul.f32 %v2917, 1.442695
  %v2948 = vpow.pop %v2947
  %v2949 = vmul.f32 %v2918, 1.442695
  %v2950 = vpow.pop %v2949
  %v2951 = vsub.f32 %v2119, %v2887
  %v2952 = vsub.f32 %v2120, %v2888
  %v2953 = vsub.f32 %v2121, %v2889
  %v2954 = vsub.f32 %v2122, %v2890
  %v2955 = vsub.f32 %v2123, %v2891
  %v2956 = vsub.f32 %v2124, %v2892
  %v2957 = vsub.f32 %v2125, %v2893
  %v2958 = vsub.f32 %v2126, %v2894
  %v2959 = vsub.f32 %v2127, %v2895
  %v2960 = vsub.f32 %v2128, %v2896
  %v2961 = vsub.f32 %v2129, %v2897
  %v2962 = vsub.f32 %v2130, %v2898
  %v2963 = vsub.f32 %v2131, %v2899
  %v2964 = vsub.f32 %v2132, %v2900
  %v2965 = vsub.f32 %v2133, %v2901
  %v2966 = vsub.f32 %v2134, %v2902
  %v2967 = vmul.f32 %v2951, 1.442695
  %v2968 = vpow.pop %v2967
  %v2969 = vmul.f32 %v2952, 1.442695
  %v2970 = vpow.pop %v2969
  %v2971 = vmul.f32 %v2953, 1.442695
  %v2972 = vpow.pop %v2971
  %v2973 = vmul.f32 %v2954, 1.442695
  %v2974 = vpow.pop %v2973
  %v2975 = vmul.f32 %v2955, 1.442695
  %v2976 = vpow.pop %v2975
  %v2977 = vmul.f32 %v2956, 1.442695
  %v2978 = vpow.pop %v2977
  %v2979 = vmul.f32 %v2957, 1.442695
  %v2980 = vpow.pop %v2979
  %v2981 = vmul.f32 %v2958, 1.442695
  %v2982 = vpow.pop %v2981
  %v2983 = vmul.f32 %v2959, 1.442695
  %v2984 = vpow.pop %v2983
  %v2985 = vmul.f32 %v2960, 1.442695
  %v2986 = vpow.pop %v2985
  %v2987 = vmul.f32 %v2961, 1.442695
  %v2988 = vpow.pop %v2987
  %v2989 = vmul.f32 %v2962, 1.442695
  %v2990 = vpow.pop %v2989
  %v2991 = vmul.f32 %v2963, 1.442695
  %v2992 = vpow.pop %v2991
  %v2993 = vmul.f32 %v2964, 1.442695
  %v2994 = vpow.pop %v2993
  %v2995 = vmul.f32 %v2965, 1.442695
  %v2996 = vpow.pop %v2995
  %v2997 = vmul.f32 %v2966, 1.442695
  %v2998 = vpow.pop %v2997
  %v2999 = vsub.f32 %v2247, %v2887
  %v3000 = vsub.f32 %v2248, %v2888
  %v3001 = vsub.f32 %v2249, %v2889
  %v3002 = vsub.f32 %v2250, %v2890
  %v3003 = vsub.f32 %v2251, %v2891
  %v3004 = vsub.f32 %v2252, %v2892
  %v3005 = vsub.f32 %v2253, %v2893
  %v3006 = vsub.f32 %v2254, %v2894
  %v3007 = vsub.f32 %v2255, %v2895
  %v3008 = vsub.f32 %v2256, %v2896
  %v3009 = vsub.f32 %v2257, %v2897
  %v3010 = vsub.f32 %v2258, %v2898
  %v3011 = vsub.f32 %v2259, %v2899
  %v3012 = vsub.f32 %v2260, %v2900
  %v3013 = vsub.f32 %v2261, %v2901
  %v3014 = vsub.f32 %v2262, %v2902
  %v3015 = vmul.f32 %v2999, 1.442695
  %v3016 = vpow.pop %v3015
  %v3017 = vmul.f32 %v3000, 1.442695
  %v3018 = vpow.pop %v3017
  %v3019 = vmul.f32 %v3001, 1.442695
  %v3020 = vpow.pop %v3019
  %v3021 = vmul.f32 %v3002, 1.442695
  %v3022 = vpow.pop %v3021
  %v3023 = vmul.f32 %v3003, 1.442695
  %v3024 = vpow.pop %v3023
  %v3025 = vmul.f32 %v3004, 1.442695
  %v3026 = vpow.pop %v3025
  %v3027 = vmul.f32 %v3005, 1.442695
  %v3028 = vpow.pop %v3027
  %v3029 = vmul.f32 %v3006, 1.442695
  %v3030 = vpow.pop %v3029
  %v3031 = vmul.f32 %v3007, 1.442695
  %v3032 = vpow.pop %v3031
  %v3033 = vmul.f32 %v3008, 1.442695
  %v3034 = vpow.pop %v3033
  %v3035 = vmul.f32 %v3009, 1.442695
  %v3036 = vpow.pop %v3035
  %v3037 = vmul.f32 %v3010, 1.442695
  %v3038 = vpow.pop %v3037
  %v3039 = vmul.f32 %v3011, 1.442695
  %v3040 = vpow.pop %v3039
  %v3041 = vmul.f32 %v3012, 1.442695
  %v3042 = vpow.pop %v3041
  %v3043 = vmul.f32 %v3013, 1.442695
  %v3044 = vpow.pop %v3043
  %v3045 = vmul.f32 %v3014, 1.442695
  %v3046 = vpow.pop %v3045
  %v3047 = vadd.f32 %v2920, %v2968
  %v3048 = vadd.f32 %v2922, %v2970
  %v3049 = vadd.f32 %v2924, %v2972
  %v3050 = vadd.f32 %v2926, %v2974
  %v3051 = vadd.f32 %v2928, %v2976
  %v3052 = vadd.f32 %v2930, %v2978
  %v3053 = vadd.f32 %v2932, %v2980
  %v3054 = vadd.f32 %v2934, %v2982
  %v3055 = vadd.f32 %v2936, %v2984
  %v3056 = vadd.f32 %v2938, %v2986
  %v3057 = vadd.f32 %v2940, %v2988
  %v3058 = vadd.f32 %v2942, %v2990
  %v3059 = vadd.f32 %v2944, %v2992
  %v3060 = vadd.f32 %v2946, %v2994
  %v3061 = vadd.f32 %v2948, %v2996
  %v3062 = vadd.f32 %v2950, %v2998
  %v3063 = vadd.f32 %v3047, %v3016
  %v3064 = vadd.f32 %v3048, %v3018
  %v3065 = vadd.f32 %v3049, %v3020
  %v3066 = vadd.f32 %v3050, %v3022
  %v3067 = vadd.f32 %v3051, %v3024
  %v3068 = vadd.f32 %v3052, %v3026
  %v3069 = vadd.f32 %v3053, %v3028
  %v3070 = vadd.f32 %v3054, %v3030
  %v3071 = vadd.f32 %v3055, %v3032
  %v3072 = vadd.f32 %v3056, %v3034
  %v3073 = vadd.f32 %v3057, %v3036
  %v3074 = vadd.f32 %v3058, %v3038
  %v3075 = vadd.f32 %v3059, %v3040
  %v3076 = vadd.f32 %v3060, %v3042
  %v3077 = vadd.f32 %v3061, %v3044
  %v3078 = vadd.f32 %v3062, %v3046
  %v3079 = vrcp.pop %v3063
  %v3080 = vmul.f32 1.0, %v3079
  %v3081 = vrcp.pop %v3064
  %v3082 = vmul.f32 1.0, %v3081
  %v3083 = vrcp.pop %v3065
  %v3084 = vmul.f32 1.0, %v3083
  %v3085 = vrcp.pop %v3066
  %v3086 = vmul.f32 1.0, %v3085
  %v3087 = vrcp.pop %v3067
  %v3088 = vmul.f32 1.0, %v3087
  %v3089 = vrcp.pop %v3068
  %v3090 = vmul.f32 1.0, %v3089
  %v3091 = vrcp.pop %v3069
  %v3092 = vmul.f32 1.0, %v3091
  %v3093 = vrcp.pop %v3070
  %v3094 = vmul.f32 1.0, %v3093
  %v3095 = vrcp.pop %v3071
  %v3096 = vmul.f32 1.0, %v3095
  %v3097 = vrcp.pop %v3072
  %v3098 = vmul.f32 1.0, %v3097
  %v3099 = vrcp.pop %v3073
  %v3100 = vmul.f32 1.0, %v3099
  %v3101 = vrcp.pop %v3074
  %v3102 = vmul.f32 1.0, %v3101
  %v3103 = vrcp.pop %v3075
  %v3104 = vmul.f32 1.0, %v3103
  %v3105 = vrcp.pop %v3076
  %v3106 = vmul.f32 1.0, %v3105
  %v3107 = vrcp.pop %v3077
  %v3108 = vmul.f32 1.0, %v3107
  %v3109 = vrcp.pop %v3078
  %v3110 = vmul.f32 1.0, %v3109
  %v3111 = vmul.f32 %v2920, %v3080
  %v3112 = vmul.f32 %v2922, %v3082
  %v3113 = vmul.f32 %v2924, %v3084
  %v3114 = vmul.f32 %v2926, %v3086
  %v3115 = vmul.f32 %v2928, %v3088
  %v3116 = vmul.f32 %v2930, %v3090
  %v3117 = vmul.f32 %v2932, %v3092
  %v3118 = vmul.f32 %v2934, %v3094
  %v3119 = vmul.f32 %v2936, %v3096
  %v3120 = vmul.f32 %v2938, %v3098
  %v3121 = vmul.f32 %v2940, %v3100
  %v3122 = vmul.f32 %v2942, %v3102
  %v3123 = vmul.f32 %v2944, %v3104
  %v3124 = vmul.f32 %v2946, %v3106
  %v3125 = vmul.f32 %v2948, %v3108
  %v3126 = vmul.f32 %v2950, %v3110
  %v3127 = vmul.f32 %v3111, %v1546
  %v3128 = vmul.f32 %v3112, %v1553
  %v3129 = vmul.f32 %v3113, %v1560
  %v3130 = vmul.f32 %v3114, %v1567
  %v3131 = vmul.f32 %v3115, %v1574
  %v3132 = vmul.f32 %v3116, %v1581
  %v3133 = vmul.f32 %v3117, %v1588
  %v3134 = vmul.f32 %v3118, %v1595
  %v3135 = vmul.f32 %v3119, %v1602
  %v3136 = vmul.f32 %v3120, %v1609
  %v3137 = vmul.f32 %v3121, %v1616
  %v3138 = vmul.f32 %v3122, %v1623
  %v3139 = vmul.f32 %v3123, %v1630
  %v3140 = vmul.f32 %v3124, %v1637
  %v3141 = vmul.f32 %v3125, %v1644
  %v3142 = vmul.f32 %v3126, %v1651
  %v3143 = vmul.f32 %v2968, %v3080
  %v3144 = vmul.f32 %v2970, %v3082
  %v3145 = vmul.f32 %v2972, %v3084
  %v3146 = vmul.f32 %v2974, %v3086
  %v3147 = vmul.f32 %v2976, %v3088
  %v3148 = vmul.f32 %v2978, %v3090
  %v3149 = vmul.f32 %v2980, %v3092
  %v3150 = vmul.f32 %v2982, %v3094
  %v3151 = vmul.f32 %v2984, %v3096
  %v3152 = vmul.f32 %v2986, %v3098
  %v3153 = vmul.f32 %v2988, %v3100
  %v3154 = vmul.f32 %v2990, %v3102
  %v3155 = vmul.f32 %v2992, %v3104
  %v3156 = vmul.f32 %v2994, %v3106
  %v3157 = vmul.f32 %v2996, %v3108
  %v3158 = vmul.f32 %v2998, %v3110
  %v3159 = vmul.f32 %v3143, %v1546
  %v3160 = vmul.f32 %v3144, %v1553
  %v3161 = vmul.f32 %v3145, %v1560
  %v3162 = vmul.f32 %v3146, %v1567
  %v3163 = vmul.f32 %v3147, %v1574
  %v3164 = vmul.f32 %v3148, %v1581
  %v3165 = vmul.f32 %v3149, %v1588
  %v3166 = vmul.f32 %v3150, %v1595
  %v3167 = vmul.f32 %v3151, %v1602
  %v3168 = vmul.f32 %v3152, %v1609
  %v3169 = vmul.f32 %v3153, %v1616
  %v3170 = vmul.f32 %v3154, %v1623
  %v3171 = vmul.f32 %v3155, %v1630
  %v3172 = vmul.f32 %v3156, %v1637
  %v3173 = vmul.f32 %v3157, %v1644
  %v3174 = vmul.f32 %v3158, %v1651
  %3191 = vrot.lane.b32.xlu0 %v3159, 96
  %v3192 = vpop.permute.xlu0 %3191
  %3193 = vrot.lane.b32.xlu0 %v3160, 96
  %v3194 = vpop.permute.xlu0 %3193
  %3195 = vrot.lane.b32.xlu0 %v3161, 96
  %v3196 = vpop.permute.xlu0 %3195
  %3197 = vrot.lane.b32.xlu0 %v3162, 96
  %v3198 = vpop.permute.xlu0 %3197
  %3199 = vrot.lane.b32.xlu0 %v3163, 96
  %v3200 = vpop.permute.xlu0 %3199
  %3201 = vrot.lane.b32.xlu0 %v3164, 96
  %v3202 = vpop.permute.xlu0 %3201
  %3203 = vrot.lane.b32.xlu0 %v3165, 96
  %v3204 = vpop.permute.xlu0 %3203
  %3205 = vrot.lane.b32.xlu0 %v3166, 96
  %v3206 = vpop.permute.xlu0 %3205
  %3207 = vrot.lane.b32.xlu0 %v3167, 96
  %v3208 = vpop.permute.xlu0 %3207
  %3209 = vrot.lane.b32.xlu0 %v3168, 96
  %v3210 = vpop.permute.xlu0 %3209
  %3211 = vrot.lane.b32.xlu0 %v3169, 96
  %v3212 = vpop.permute.xlu0 %3211
  %3213 = vrot.lane.b32.xlu0 %v3170, 96
  %v3214 = vpop.permute.xlu0 %3213
  %3215 = vrot.lane.b32.xlu0 %v3171, 96
  %v3216 = vpop.permute.xlu0 %3215
  %3217 = vrot.lane.b32.xlu0 %v3172, 96
  %v3218 = vpop.permute.xlu0 %3217
  %3219 = vrot.lane.b32.xlu0 %v3173, 96
  %v3220 = vpop.permute.xlu0 %3219
  %3221 = vrot.lane.b32.xlu0 %v3174, 96
  %v3222 = vpop.permute.xlu0 %3221
  %v3239 = vadd.f32 %v3127, %v3192
  %v3240 = vadd.f32 %v3128, %v3194
  %v3241 = vadd.f32 %v3129, %v3196
  %v3242 = vadd.f32 %v3130, %v3198
  %v3243 = vadd.f32 %v3131, %v3200
  %v3244 = vadd.f32 %v3132, %v3202
  %v3245 = vadd.f32 %v3133, %v3204
  %v3246 = vadd.f32 %v3134, %v3206
  %v3247 = vadd.f32 %v3135, %v3208
  %v3248 = vadd.f32 %v3136, %v3210
  %v3249 = vadd.f32 %v3137, %v3212
  %v3250 = vadd.f32 %v3138, %v3214
  %v3251 = vadd.f32 %v3139, %v3216
  %v3252 = vadd.f32 %v3140, %v3218
  %v3253 = vadd.f32 %v3141, %v3220
  %v3254 = vadd.f32 %v3142, %v3222
  %v3255 = vmul.f32 %v3016, %v3080
  %v3256 = vmul.f32 %v3018, %v3082
  %v3257 = vmul.f32 %v3020, %v3084
  %v3258 = vmul.f32 %v3022, %v3086
  %v3259 = vmul.f32 %v3024, %v3088
  %v3260 = vmul.f32 %v3026, %v3090
  %v3261 = vmul.f32 %v3028, %v3092
  %v3262 = vmul.f32 %v3030, %v3094
  %v3263 = vmul.f32 %v3032, %v3096
  %v3264 = vmul.f32 %v3034, %v3098
  %v3265 = vmul.f32 %v3036, %v3100
  %v3266 = vmul.f32 %v3038, %v3102
  %v3267 = vmul.f32 %v3040, %v3104
  %v3268 = vmul.f32 %v3042, %v3106
  %v3269 = vmul.f32 %v3044, %v3108
  %v3270 = vmul.f32 %v3046, %v3110
  %v3271 = vmul.f32 %v3255, %v1546
  %v3272 = vmul.f32 %v3256, %v1553
  %v3273 = vmul.f32 %v3257, %v1560
  %v3274 = vmul.f32 %v3258, %v1567
  %v3275 = vmul.f32 %v3259, %v1574
  %v3276 = vmul.f32 %v3260, %v1581
  %v3277 = vmul.f32 %v3261, %v1588
  %v3278 = vmul.f32 %v3262, %v1595
  %v3279 = vmul.f32 %v3263, %v1602
  %v3280 = vmul.f32 %v3264, %v1609
  %v3281 = vmul.f32 %v3265, %v1616
  %v3282 = vmul.f32 %v3266, %v1623
  %v3283 = vmul.f32 %v3267, %v1630
  %v3284 = vmul.f32 %v3268, %v1637
  %v3285 = vmul.f32 %v3269, %v1644
  %v3286 = vmul.f32 %v3270, %v1651
  %3303 = vrot.lane.b32.xlu0 %v3271, 64
  %v3304 = vpop.permute.xlu0 %3303
  %3305 = vrot.lane.b32.xlu0 %v3272, 64
  %v3306 = vpop.permute.xlu0 %3305
  %3307 = vrot.lane.b32.xlu0 %v3273, 64
  %v3308 = vpop.permute.xlu0 %3307
  %3309 = vrot.lane.b32.xlu0 %v3274, 64
  %v3310 = vpop.permute.xlu0 %3309
  %3311 = vrot.lane.b32.xlu0 %v3275, 64
  %v3312 = vpop.permute.xlu0 %3311
  %3313 = vrot.lane.b32.xlu0 %v3276, 64
  %v3314 = vpop.permute.xlu0 %3313
  %3315 = vrot.lane.b32.xlu0 %v3277, 64
  %v3316 = vpop.permute.xlu0 %3315
  %3317 = vrot.lane.b32.xlu0 %v3278, 64
  %v3318 = vpop.permute.xlu0 %3317
  %3319 = vrot.lane.b32.xlu0 %v3279, 64
  %v3320 = vpop.permute.xlu0 %3319
  %3321 = vrot.lane.b32.xlu0 %v3280, 64
  %v3322 = vpop.permute.xlu0 %3321
  %3323 = vrot.lane.b32.xlu0 %v3281, 64
  %v3324 = vpop.permute.xlu0 %3323
  %3325 = vrot.lane.b32.xlu0 %v3282, 64
  %v3326 = vpop.permute.xlu0 %3325
  %3327 = vrot.lane.b32.xlu0 %v3283, 64
  %v3328 = vpop.permute.xlu0 %3327
  %3329 = vrot.lane.b32.xlu0 %v3284, 64
  %v3330 = vpop.permute.xlu0 %3329
  %3331 = vrot.lane.b32.xlu0 %v3285, 64
  %v3332 = vpop.permute.xlu0 %3331
  %3333 = vrot.lane.b32.xlu0 %v3286, 64
  %v3334 = vpop.permute.xlu0 %3333
  %v3351 = vadd.f32 %v3239, %v3304
  %v3352 = vadd.f32 %v3240, %v3306
  %v3353 = vadd.f32 %v3241, %v3308
  %v3354 = vadd.f32 %v3242, %v3310
  %v3355 = vadd.f32 %v3243, %v3312
  %v3356 = vadd.f32 %v3244, %v3314
  %v3357 = vadd.f32 %v3245, %v3316
  %v3358 = vadd.f32 %v3246, %v3318
  %v3359 = vadd.f32 %v3247, %v3320
  %v3360 = vadd.f32 %v3248, %v3322
  %v3361 = vadd.f32 %v3249, %v3324
  %v3362 = vadd.f32 %v3250, %v3326
  %v3363 = vadd.f32 %v3251, %v3328
  %v3364 = vadd.f32 %v3252, %v3330
  %v3365 = vadd.f32 %v3253, %v3332
  %v3366 = vadd.f32 %v3254, %v3334
  %v3367 = vmax.f32 %v1991, %v2247
  %v3368 = vmax.f32 %v1992, %v2248
  %v3369 = vmax.f32 %v1993, %v2249
  %v3370 = vmax.f32 %v1994, %v2250
  %v3371 = vmax.f32 %v1995, %v2251
  %v3372 = vmax.f32 %v1996, %v2252
  %v3373 = vmax.f32 %v1997, %v2253
  %v3374 = vmax.f32 %v1998, %v2254
  %v3375 = vmax.f32 %v1999, %v2255
  %v3376 = vmax.f32 %v2000, %v2256
  %v3377 = vmax.f32 %v2001, %v2257
  %v3378 = vmax.f32 %v2002, %v2258
  %v3379 = vmax.f32 %v2003, %v2259
  %v3380 = vmax.f32 %v2004, %v2260
  %v3381 = vmax.f32 %v2005, %v2261
  %v3382 = vmax.f32 %v2006, %v2262
  %v3383 = vmax.f32 %v3367, %v2359
  %v3384 = vmax.f32 %v3368, %v2360
  %v3385 = vmax.f32 %v3369, %v2361
  %v3386 = vmax.f32 %v3370, %v2362
  %v3387 = vmax.f32 %v3371, %v2363
  %v3388 = vmax.f32 %v3372, %v2364
  %v3389 = vmax.f32 %v3373, %v2365
  %v3390 = vmax.f32 %v3374, %v2366
  %v3391 = vmax.f32 %v3375, %v2367
  %v3392 = vmax.f32 %v3376, %v2368
  %v3393 = vmax.f32 %v3377, %v2369
  %v3394 = vmax.f32 %v3378, %v2370
  %v3395 = vmax.f32 %v3379, %v2371
  %v3396 = vmax.f32 %v3380, %v2372
  %v3397 = vmax.f32 %v3381, %v2373
  %v3398 = vmax.f32 %v3382, %v2374
  %v3399 = vsub.f32 %v1991, %v3383
  %v3400 = vsub.f32 %v1992, %v3384
  %v3401 = vsub.f32 %v1993, %v3385
  %v3402 = vsub.f32 %v1994, %v3386
  %v3403 = vsub.f32 %v1995, %v3387
  %v3404 = vsub.f32 %v1996, %v3388
  %v3405 = vsub.f32 %v1997, %v3389
  %v3406 = vsub.f32 %v1998, %v3390
  %v3407 = vsub.f32 %v1999, %v3391
  %v3408 = vsub.f32 %v2000, %v3392
  %v3409 = vsub.f32 %v2001, %v3393
  %v3410 = vsub.f32 %v2002, %v3394
  %v3411 = vsub.f32 %v2003, %v3395
  %v3412 = vsub.f32 %v2004, %v3396
  %v3413 = vsub.f32 %v2005, %v3397
  %v3414 = vsub.f32 %v2006, %v3398
  %v3415 = vmul.f32 %v3399, 1.442695
  %v3416 = vpow.pop %v3415
  %v3417 = vmul.f32 %v3400, 1.442695
  %v3418 = vpow.pop %v3417
  %v3419 = vmul.f32 %v3401, 1.442695
  %v3420 = vpow.pop %v3419
  %v3421 = vmul.f32 %v3402, 1.442695
  %v3422 = vpow.pop %v3421
  %v3423 = vmul.f32 %v3403, 1.442695
  %v3424 = vpow.pop %v3423
  %v3425 = vmul.f32 %v3404, 1.442695
  %v3426 = vpow.pop %v3425
  %v3427 = vmul.f32 %v3405, 1.442695
  %v3428 = vpow.pop %v3427
  %v3429 = vmul.f32 %v3406, 1.442695
  %v3430 = vpow.pop %v3429
  %v3431 = vmul.f32 %v3407, 1.442695
  %v3432 = vpow.pop %v3431
  %v3433 = vmul.f32 %v3408, 1.442695
  %v3434 = vpow.pop %v3433
  %v3435 = vmul.f32 %v3409, 1.442695
  %v3436 = vpow.pop %v3435
  %v3437 = vmul.f32 %v3410, 1.442695
  %v3438 = vpow.pop %v3437
  %v3439 = vmul.f32 %v3411, 1.442695
  %v3440 = vpow.pop %v3439
  %v3441 = vmul.f32 %v3412, 1.442695
  %v3442 = vpow.pop %v3441
  %v3443 = vmul.f32 %v3413, 1.442695
  %v3444 = vpow.pop %v3443
  %v3445 = vmul.f32 %v3414, 1.442695
  %v3446 = vpow.pop %v3445
  %v3447 = vsub.f32 %v2247, %v3383
  %v3448 = vsub.f32 %v2248, %v3384
  %v3449 = vsub.f32 %v2249, %v3385
  %v3450 = vsub.f32 %v2250, %v3386
  %v3451 = vsub.f32 %v2251, %v3387
  %v3452 = vsub.f32 %v2252, %v3388
  %v3453 = vsub.f32 %v2253, %v3389
  %v3454 = vsub.f32 %v2254, %v3390
  %v3455 = vsub.f32 %v2255, %v3391
  %v3456 = vsub.f32 %v2256, %v3392
  %v3457 = vsub.f32 %v2257, %v3393
  %v3458 = vsub.f32 %v2258, %v3394
  %v3459 = vsub.f32 %v2259, %v3395
  %v3460 = vsub.f32 %v2260, %v3396
  %v3461 = vsub.f32 %v2261, %v3397
  %v3462 = vsub.f32 %v2262, %v3398
  %v3463 = vmul.f32 %v3447, 1.442695
  %v3464 = vpow.pop %v3463
  %v3465 = vmul.f32 %v3448, 1.442695
  %v3466 = vpow.pop %v3465
  %v3467 = vmul.f32 %v3449, 1.442695
  %v3468 = vpow.pop %v3467
  %v3469 = vmul.f32 %v3450, 1.442695
  %v3470 = vpow.pop %v3469
  %v3471 = vmul.f32 %v3451, 1.442695
  %v3472 = vpow.pop %v3471
  %v3473 = vmul.f32 %v3452, 1.442695
  %v3474 = vpow.pop %v3473
  %v3475 = vmul.f32 %v3453, 1.442695
  %v3476 = vpow.pop %v3475
  %v3477 = vmul.f32 %v3454, 1.442695
  %v3478 = vpow.pop %v3477
  %v3479 = vmul.f32 %v3455, 1.442695
  %v3480 = vpow.pop %v3479
  %v3481 = vmul.f32 %v3456, 1.442695
  %v3482 = vpow.pop %v3481
  %v3483 = vmul.f32 %v3457, 1.442695
  %v3484 = vpow.pop %v3483
  %v3485 = vmul.f32 %v3458, 1.442695
  %v3486 = vpow.pop %v3485
  %v3487 = vmul.f32 %v3459, 1.442695
  %v3488 = vpow.pop %v3487
  %v3489 = vmul.f32 %v3460, 1.442695
  %v3490 = vpow.pop %v3489
  %v3491 = vmul.f32 %v3461, 1.442695
  %v3492 = vpow.pop %v3491
  %v3493 = vmul.f32 %v3462, 1.442695
  %v3494 = vpow.pop %v3493
  %v3495 = vsub.f32 %v2359, %v3383
  %v3496 = vsub.f32 %v2360, %v3384
  %v3497 = vsub.f32 %v2361, %v3385
  %v3498 = vsub.f32 %v2362, %v3386
  %v3499 = vsub.f32 %v2363, %v3387
  %v3500 = vsub.f32 %v2364, %v3388
  %v3501 = vsub.f32 %v2365, %v3389
  %v3502 = vsub.f32 %v2366, %v3390
  %v3503 = vsub.f32 %v2367, %v3391
  %v3504 = vsub.f32 %v2368, %v3392
  %v3505 = vsub.f32 %v2369, %v3393
  %v3506 = vsub.f32 %v2370, %v3394
  %v3507 = vsub.f32 %v2371, %v3395
  %v3508 = vsub.f32 %v2372, %v3396
  %v3509 = vsub.f32 %v2373, %v3397
  %v3510 = vsub.f32 %v2374, %v3398
  %v3511 = vmul.f32 %v3495, 1.442695
  %v3512 = vpow.pop %v3511
  %v3513 = vmul.f32 %v3496, 1.442695
  %v3514 = vpow.pop %v3513
  %v3515 = vmul.f32 %v3497, 1.442695
  %v3516 = vpow.pop %v3515
  %v3517 = vmul.f32 %v3498, 1.442695
  %v3518 = vpow.pop %v3517
  %v3519 = vmul.f32 %v3499, 1.442695
  %v3520 = vpow.pop %v3519
  %v3521 = vmul.f32 %v3500, 1.442695
  %v3522 = vpow.pop %v3521
  %v3523 = vmul.f32 %v3501, 1.442695
  %v3524 = vpow.pop %v3523
  %v3525 = vmul.f32 %v3502, 1.442695
  %v3526 = vpow.pop %v3525
  %v3527 = vmul.f32 %v3503, 1.442695
  %v3528 = vpow.pop %v3527
  %v3529 = vmul.f32 %v3504, 1.442695
  %v3530 = vpow.pop %v3529
  %v3531 = vmul.f32 %v3505, 1.442695
  %v3532 = vpow.pop %v3531
  %v3533 = vmul.f32 %v3506, 1.442695
  %v3534 = vpow.pop %v3533
  %v3535 = vmul.f32 %v3507, 1.442695
  %v3536 = vpow.pop %v3535
  %v3537 = vmul.f32 %v3508, 1.442695
  %v3538 = vpow.pop %v3537
  %v3539 = vmul.f32 %v3509, 1.442695
  %v3540 = vpow.pop %v3539
  %v3541 = vmul.f32 %v3510, 1.442695
  %v3542 = vpow.pop %v3541
  %v3543 = vadd.f32 %v3416, %v3464
  %v3544 = vadd.f32 %v3418, %v3466
  %v3545 = vadd.f32 %v3420, %v3468
  %v3546 = vadd.f32 %v3422, %v3470
  %v3547 = vadd.f32 %v3424, %v3472
  %v3548 = vadd.f32 %v3426, %v3474
  %v3549 = vadd.f32 %v3428, %v3476
  %v3550 = vadd.f32 %v3430, %v3478
  %v3551 = vadd.f32 %v3432, %v3480
  %v3552 = vadd.f32 %v3434, %v3482
  %v3553 = vadd.f32 %v3436, %v3484
  %v3554 = vadd.f32 %v3438, %v3486
  %v3555 = vadd.f32 %v3440, %v3488
  %v3556 = vadd.f32 %v3442, %v3490
  %v3557 = vadd.f32 %v3444, %v3492
  %v3558 = vadd.f32 %v3446, %v3494
  %v3559 = vadd.f32 %v3543, %v3512
  %v3560 = vadd.f32 %v3544, %v3514
  %v3561 = vadd.f32 %v3545, %v3516
  %v3562 = vadd.f32 %v3546, %v3518
  %v3563 = vadd.f32 %v3547, %v3520
  %v3564 = vadd.f32 %v3548, %v3522
  %v3565 = vadd.f32 %v3549, %v3524
  %v3566 = vadd.f32 %v3550, %v3526
  %v3567 = vadd.f32 %v3551, %v3528
  %v3568 = vadd.f32 %v3552, %v3530
  %v3569 = vadd.f32 %v3553, %v3532
  %v3570 = vadd.f32 %v3554, %v3534
  %v3571 = vadd.f32 %v3555, %v3536
  %v3572 = vadd.f32 %v3556, %v3538
  %v3573 = vadd.f32 %v3557, %v3540
  %v3574 = vadd.f32 %v3558, %v3542
  %v3575 = vrcp.pop %v3559
  %v3576 = vmul.f32 1.0, %v3575
  %v3577 = vrcp.pop %v3560
  %v3578 = vmul.f32 1.0, %v3577
  %v3579 = vrcp.pop %v3561
  %v3580 = vmul.f32 1.0, %v3579
  %v3581 = vrcp.pop %v3562
  %v3582 = vmul.f32 1.0, %v3581
  %v3583 = vrcp.pop %v3563
  %v3584 = vmul.f32 1.0, %v3583
  %v3585 = vrcp.pop %v3564
  %v3586 = vmul.f32 1.0, %v3585
  %v3587 = vrcp.pop %v3565
  %v3588 = vmul.f32 1.0, %v3587
  %v3589 = vrcp.pop %v3566
  %v3590 = vmul.f32 1.0, %v3589
  %v3591 = vrcp.pop %v3567
  %v3592 = vmul.f32 1.0, %v3591
  %v3593 = vrcp.pop %v3568
  %v3594 = vmul.f32 1.0, %v3593
  %v3595 = vrcp.pop %v3569
  %v3596 = vmul.f32 1.0, %v3595
  %v3597 = vrcp.pop %v3570
  %v3598 = vmul.f32 1.0, %v3597
  %v3599 = vrcp.pop %v3571
  %v3600 = vmul.f32 1.0, %v3599
  %v3601 = vrcp.pop %v3572
  %v3602 = vmul.f32 1.0, %v3601
  %v3603 = vrcp.pop %v3573
  %v3604 = vmul.f32 1.0, %v3603
  %v3605 = vrcp.pop %v3574
  %v3606 = vmul.f32 1.0, %v3605
  %v3607 = vmul.f32 %v3416, %v3576
  %v3608 = vmul.f32 %v3418, %v3578
  %v3609 = vmul.f32 %v3420, %v3580
  %v3610 = vmul.f32 %v3422, %v3582
  %v3611 = vmul.f32 %v3424, %v3584
  %v3612 = vmul.f32 %v3426, %v3586
  %v3613 = vmul.f32 %v3428, %v3588
  %v3614 = vmul.f32 %v3430, %v3590
  %v3615 = vmul.f32 %v3432, %v3592
  %v3616 = vmul.f32 %v3434, %v3594
  %v3617 = vmul.f32 %v3436, %v3596
  %v3618 = vmul.f32 %v3438, %v3598
  %v3619 = vmul.f32 %v3440, %v3600
  %v3620 = vmul.f32 %v3442, %v3602
  %v3621 = vmul.f32 %v3444, %v3604
  %v3622 = vmul.f32 %v3446, %v3606
  %v3623 = vmul.f32 %v3607, %v1546
  %v3624 = vmul.f32 %v3608, %v1553
  %v3625 = vmul.f32 %v3609, %v1560
  %v3626 = vmul.f32 %v3610, %v1567
  %v3627 = vmul.f32 %v3611, %v1574
  %v3628 = vmul.f32 %v3612, %v1581
  %v3629 = vmul.f32 %v3613, %v1588
  %v3630 = vmul.f32 %v3614, %v1595
  %v3631 = vmul.f32 %v3615, %v1602
  %v3632 = vmul.f32 %v3616, %v1609
  %v3633 = vmul.f32 %v3617, %v1616
  %v3634 = vmul.f32 %v3618, %v1623
  %v3635 = vmul.f32 %v3619, %v1630
  %v3636 = vmul.f32 %v3620, %v1637
  %v3637 = vmul.f32 %v3621, %v1644
  %v3638 = vmul.f32 %v3622, %v1651
  %v3639 = vmul.f32 %v3464, %v3576
  %v3640 = vmul.f32 %v3466, %v3578
  %v3641 = vmul.f32 %v3468, %v3580
  %v3642 = vmul.f32 %v3470, %v3582
  %v3643 = vmul.f32 %v3472, %v3584
  %v3644 = vmul.f32 %v3474, %v3586
  %v3645 = vmul.f32 %v3476, %v3588
  %v3646 = vmul.f32 %v3478, %v3590
  %v3647 = vmul.f32 %v3480, %v3592
  %v3648 = vmul.f32 %v3482, %v3594
  %v3649 = vmul.f32 %v3484, %v3596
  %v3650 = vmul.f32 %v3486, %v3598
  %v3651 = vmul.f32 %v3488, %v3600
  %v3652 = vmul.f32 %v3490, %v3602
  %v3653 = vmul.f32 %v3492, %v3604
  %v3654 = vmul.f32 %v3494, %v3606
  %v3655 = vmul.f32 %v3639, %v1546
  %v3656 = vmul.f32 %v3640, %v1553
  %v3657 = vmul.f32 %v3641, %v1560
  %v3658 = vmul.f32 %v3642, %v1567
  %v3659 = vmul.f32 %v3643, %v1574
  %v3660 = vmul.f32 %v3644, %v1581
  %v3661 = vmul.f32 %v3645, %v1588
  %v3662 = vmul.f32 %v3646, %v1595
  %v3663 = vmul.f32 %v3647, %v1602
  %v3664 = vmul.f32 %v3648, %v1609
  %v3665 = vmul.f32 %v3649, %v1616
  %v3666 = vmul.f32 %v3650, %v1623
  %v3667 = vmul.f32 %v3651, %v1630
  %v3668 = vmul.f32 %v3652, %v1637
  %v3669 = vmul.f32 %v3653, %v1644
  %v3670 = vmul.f32 %v3654, %v1651
  %3687 = vrot.lane.b32.xlu0 %v3655, 96
  %v3688 = vpop.permute.xlu0 %3687
  %3689 = vrot.lane.b32.xlu0 %v3656, 96
  %v3690 = vpop.permute.xlu0 %3689
  %3691 = vrot.lane.b32.xlu0 %v3657, 96
  %v3692 = vpop.permute.xlu0 %3691
  %3693 = vrot.lane.b32.xlu0 %v3658, 96
  %v3694 = vpop.permute.xlu0 %3693
  %3695 = vrot.lane.b32.xlu0 %v3659, 96
  %v3696 = vpop.permute.xlu0 %3695
  %3697 = vrot.lane.b32.xlu0 %v3660, 96
  %v3698 = vpop.permute.xlu0 %3697
  %3699 = vrot.lane.b32.xlu0 %v3661, 96
  %v3700 = vpop.permute.xlu0 %3699
  %3701 = vrot.lane.b32.xlu0 %v3662, 96
  %v3702 = vpop.permute.xlu0 %3701
  %3703 = vrot.lane.b32.xlu0 %v3663, 96
  %v3704 = vpop.permute.xlu0 %3703
  %3705 = vrot.lane.b32.xlu0 %v3664, 96
  %v3706 = vpop.permute.xlu0 %3705
  %3707 = vrot.lane.b32.xlu0 %v3665, 96
  %v3708 = vpop.permute.xlu0 %3707
  %3709 = vrot.lane.b32.xlu0 %v3666, 96
  %v3710 = vpop.permute.xlu0 %3709
  %3711 = vrot.lane.b32.xlu0 %v3667, 96
  %v3712 = vpop.permute.xlu0 %3711
  %3713 = vrot.lane.b32.xlu0 %v3668, 96
  %v3714 = vpop.permute.xlu0 %3713
  %3715 = vrot.lane.b32.xlu0 %v3669, 96
  %v3716 = vpop.permute.xlu0 %3715
  %3717 = vrot.lane.b32.xlu0 %v3670, 96
  %v3718 = vpop.permute.xlu0 %3717
  %v3735 = vadd.f32 %v3623, %v3688
  %v3736 = vadd.f32 %v3624, %v3690
  %v3737 = vadd.f32 %v3625, %v3692
  %v3738 = vadd.f32 %v3626, %v3694
  %v3739 = vadd.f32 %v3627, %v3696
  %v3740 = vadd.f32 %v3628, %v3698
  %v3741 = vadd.f32 %v3629, %v3700
  %v3742 = vadd.f32 %v3630, %v3702
  %v3743 = vadd.f32 %v3631, %v3704
  %v3744 = vadd.f32 %v3632, %v3706
  %v3745 = vadd.f32 %v3633, %v3708
  %v3746 = vadd.f32 %v3634, %v3710
  %v3747 = vadd.f32 %v3635, %v3712
  %v3748 = vadd.f32 %v3636, %v3714
  %v3749 = vadd.f32 %v3637, %v3716
  %v3750 = vadd.f32 %v3638, %v3718
  %v3751 = vmul.f32 %v3512, %v3576
  %v3752 = vmul.f32 %v3514, %v3578
  %v3753 = vmul.f32 %v3516, %v3580
  %v3754 = vmul.f32 %v3518, %v3582
  %v3755 = vmul.f32 %v3520, %v3584
  %v3756 = vmul.f32 %v3522, %v3586
  %v3757 = vmul.f32 %v3524, %v3588
  %v3758 = vmul.f32 %v3526, %v3590
  %v3759 = vmul.f32 %v3528, %v3592
  %v3760 = vmul.f32 %v3530, %v3594
  %v3761 = vmul.f32 %v3532, %v3596
  %v3762 = vmul.f32 %v3534, %v3598
  %v3763 = vmul.f32 %v3536, %v3600
  %v3764 = vmul.f32 %v3538, %v3602
  %v3765 = vmul.f32 %v3540, %v3604
  %v3766 = vmul.f32 %v3542, %v3606
  %v3767 = vmul.f32 %v3751, %v1546
  %v3768 = vmul.f32 %v3752, %v1553
  %v3769 = vmul.f32 %v3753, %v1560
  %v3770 = vmul.f32 %v3754, %v1567
  %v3771 = vmul.f32 %v3755, %v1574
  %v3772 = vmul.f32 %v3756, %v1581
  %v3773 = vmul.f32 %v3757, %v1588
  %v3774 = vmul.f32 %v3758, %v1595
  %v3775 = vmul.f32 %v3759, %v1602
  %v3776 = vmul.f32 %v3760, %v1609
  %v3777 = vmul.f32 %v3761, %v1616
  %v3778 = vmul.f32 %v3762, %v1623
  %v3779 = vmul.f32 %v3763, %v1630
  %v3780 = vmul.f32 %v3764, %v1637
  %v3781 = vmul.f32 %v3765, %v1644
  %v3782 = vmul.f32 %v3766, %v1651
  %3799 = vrot.lane.b32.xlu0 %v3767, 64
  %v3800 = vpop.permute.xlu0 %3799
  %3801 = vrot.lane.b32.xlu0 %v3768, 64
  %v3802 = vpop.permute.xlu0 %3801
  %3803 = vrot.lane.b32.xlu0 %v3769, 64
  %v3804 = vpop.permute.xlu0 %3803
  %3805 = vrot.lane.b32.xlu0 %v3770, 64
  %v3806 = vpop.permute.xlu0 %3805
  %3807 = vrot.lane.b32.xlu0 %v3771, 64
  %v3808 = vpop.permute.xlu0 %3807
  %3809 = vrot.lane.b32.xlu0 %v3772, 64
  %v3810 = vpop.permute.xlu0 %3809
  %3811 = vrot.lane.b32.xlu0 %v3773, 64
  %v3812 = vpop.permute.xlu0 %3811
  %3813 = vrot.lane.b32.xlu0 %v3774, 64
  %v3814 = vpop.permute.xlu0 %3813
  %3815 = vrot.lane.b32.xlu0 %v3775, 64
  %v3816 = vpop.permute.xlu0 %3815
  %3817 = vrot.lane.b32.xlu0 %v3776, 64
  %v3818 = vpop.permute.xlu0 %3817
  %3819 = vrot.lane.b32.xlu0 %v3777, 64
  %v3820 = vpop.permute.xlu0 %3819
  %3821 = vrot.lane.b32.xlu0 %v3778, 64
  %v3822 = vpop.permute.xlu0 %3821
  %3823 = vrot.lane.b32.xlu0 %v3779, 64
  %v3824 = vpop.permute.xlu0 %3823
  %3825 = vrot.lane.b32.xlu0 %v3780, 64
  %v3826 = vpop.permute.xlu0 %3825
  %3827 = vrot.lane.b32.xlu0 %v3781, 64
  %v3828 = vpop.permute.xlu0 %3827
  %3829 = vrot.lane.b32.xlu0 %v3782, 64
  %v3830 = vpop.permute.xlu0 %3829
  %v3847 = vadd.f32 %v3735, %v3800
  %v3848 = vadd.f32 %v3736, %v3802
  %v3849 = vadd.f32 %v3737, %v3804
  %v3850 = vadd.f32 %v3738, %v3806
  %v3851 = vadd.f32 %v3739, %v3808
  %v3852 = vadd.f32 %v3740, %v3810
  %v3853 = vadd.f32 %v3741, %v3812
  %v3854 = vadd.f32 %v3742, %v3814
  %v3855 = vadd.f32 %v3743, %v3816
  %v3856 = vadd.f32 %v3744, %v3818
  %v3857 = vadd.f32 %v3745, %v3820
  %v3858 = vadd.f32 %v3746, %v3822
  %v3859 = vadd.f32 %v3747, %v3824
  %v3860 = vadd.f32 %v3748, %v3826
  %v3861 = vadd.f32 %v3749, %v3828
  %v3862 = vadd.f32 %v3750, %v3830
  %3879 = vrot.lane.b32.xlu0 %v3351, 32
  %v3880 = vpop.permute.xlu0 %3879
  %3881 = vrot.lane.b32.xlu0 %v3352, 32
  %v3882 = vpop.permute.xlu0 %3881
  %3883 = vrot.lane.b32.xlu0 %v3353, 32
  %v3884 = vpop.permute.xlu0 %3883
  %3885 = vrot.lane.b32.xlu0 %v3354, 32
  %v3886 = vpop.permute.xlu0 %3885
  %3887 = vrot.lane.b32.xlu0 %v3355, 32
  %v3888 = vpop.permute.xlu0 %3887
  %3889 = vrot.lane.b32.xlu0 %v3356, 32
  %v3890 = vpop.permute.xlu0 %3889
  %3891 = vrot.lane.b32.xlu0 %v3357, 32
  %v3892 = vpop.permute.xlu0 %3891
  %3893 = vrot.lane.b32.xlu0 %v3358, 32
  %v3894 = vpop.permute.xlu0 %3893
  %3895 = vrot.lane.b32.xlu0 %v3359, 32
  %v3896 = vpop.permute.xlu0 %3895
  %3897 = vrot.lane.b32.xlu0 %v3360, 32
  %v3898 = vpop.permute.xlu0 %3897
  %3899 = vrot.lane.b32.xlu0 %v3361, 32
  %v3900 = vpop.permute.xlu0 %3899
  %3901 = vrot.lane.b32.xlu0 %v3362, 32
  %v3902 = vpop.permute.xlu0 %3901
  %3903 = vrot.lane.b32.xlu0 %v3363, 32
  %v3904 = vpop.permute.xlu0 %3903
  %3905 = vrot.lane.b32.xlu0 %v3364, 32
  %v3906 = vpop.permute.xlu0 %3905
  %3907 = vrot.lane.b32.xlu0 %v3365, 32
  %v3908 = vpop.permute.xlu0 %3907
  %3909 = vrot.lane.b32.xlu0 %v3366, 32
  %v3910 = vpop.permute.xlu0 %3909
  %3943 = vrot.lane.b32.xlu0 %v3847, 64
  %v3944 = vpop.permute.xlu0 %3943
  %3945 = vrot.lane.b32.xlu0 %v3848, 64
  %v3946 = vpop.permute.xlu0 %3945
  %3947 = vrot.lane.b32.xlu0 %v3849, 64
  %v3948 = vpop.permute.xlu0 %3947
  %3949 = vrot.lane.b32.xlu0 %v3850, 64
  %v3950 = vpop.permute.xlu0 %3949
  %3951 = vrot.lane.b32.xlu0 %v3851, 64
  %v3952 = vpop.permute.xlu0 %3951
  %3953 = vrot.lane.b32.xlu0 %v3852, 64
  %v3954 = vpop.permute.xlu0 %3953
  %3955 = vrot.lane.b32.xlu0 %v3853, 64
  %v3956 = vpop.permute.xlu0 %3955
  %3957 = vrot.lane.b32.xlu0 %v3854, 64
  %v3958 = vpop.permute.xlu0 %3957
  %3959 = vrot.lane.b32.xlu0 %v3855, 64
  %v3960 = vpop.permute.xlu0 %3959
  %3961 = vrot.lane.b32.xlu0 %v3856, 64
  %v3962 = vpop.permute.xlu0 %3961
  %3963 = vrot.lane.b32.xlu0 %v3857, 64
  %v3964 = vpop.permute.xlu0 %3963
  %3965 = vrot.lane.b32.xlu0 %v3858, 64
  %v3966 = vpop.permute.xlu0 %3965
  %3967 = vrot.lane.b32.xlu0 %v3859, 64
  %v3968 = vpop.permute.xlu0 %3967
  %3969 = vrot.lane.b32.xlu0 %v3860, 64
  %v3970 = vpop.permute.xlu0 %3969
  %3971 = vrot.lane.b32.xlu0 %v3861, 64
  %v3972 = vpop.permute.xlu0 %3971
  %3973 = vrot.lane.b32.xlu0 %v3862, 64
  %v3974 = vpop.permute.xlu0 %3973
  %v3991 = vsel %vm1670, %v2855, %v3880
  %v3992 = vsel %vm1670, %v2856, %v3882
  %v3993 = vsel %vm1670, %v2857, %v3884
  %v3994 = vsel %vm1670, %v2858, %v3886
  %v3995 = vsel %vm1670, %v2859, %v3888
  %v3996 = vsel %vm1670, %v2860, %v3890
  %v3997 = vsel %vm1670, %v2861, %v3892
  %v3998 = vsel %vm1670, %v2862, %v3894
  %v3999 = vsel %vm1670, %v2863, %v3896
  %v4000 = vsel %vm1670, %v2864, %v3898
  %v4001 = vsel %vm1670, %v2865, %v3900
  %v4002 = vsel %vm1670, %v2866, %v3902
  %v4003 = vsel %vm1670, %v2867, %v3904
  %v4004 = vsel %vm1670, %v2868, %v3906
  %v4005 = vsel %vm1670, %v2869, %v3908
  %v4006 = vsel %vm1670, %v2870, %v3910
  %vm4007 = vcmask 523264
  %v4008 = vsel %vm4007, %v3991, %v3944
  %v4009 = vsel %vm4007, %v3992, %v3946
  %v4010 = vsel %vm4007, %v3993, %v3948
  %v4011 = vsel %vm4007, %v3994, %v3950
  %v4012 = vsel %vm4007, %v3995, %v3952
  %v4013 = vsel %vm4007, %v3996, %v3954
  %v4014 = vsel %vm4007, %v3997, %v3956
  %v4015 = vsel %vm4007, %v3998, %v3958
  %v4016 = vsel %vm4007, %v3999, %v3960
  %v4017 = vsel %vm4007, %v4000, %v3962
  %v4018 = vsel %vm4007, %v4001, %v3964
  %v4019 = vsel %vm4007, %v4002, %v3966
  %v4020 = vsel %vm4007, %v4003, %v3968
  %v4021 = vsel %vm4007, %v4004, %v3970
  %v4022 = vsel %vm4007, %v4005, %v3972
  %v4023 = vsel %vm4007, %v4006, %v3974
  %v4024 = vld [vmem:[%s5] sm:$0xff]
  %v4025 = vld [vmem:[%s5 + $0x8] sm:$0xff]
  %v4026 = vld [vmem:[%s5 + $0x10] sm:$0xff]
  %v4027 = vld [vmem:[%s5 + $0x18] sm:$0xff]
  %v4028 = vld [vmem:[%s5 + $0x20] sm:$0xff]
  %v4029 = vld [vmem:[%s5 + $0x28] sm:$0xff]
  %v4030 = vld [vmem:[%s5 + $0x30] sm:$0xff]
  %v4031 = vld [vmem:[%s5 + $0x38] sm:$0xff]
  %v4032 = vld [vmem:[%s5 + $0x40] sm:$0xff]
  %v4033 = vld [vmem:[%s5 + $0x48] sm:$0xff]
  %v4034 = vld [vmem:[%s5 + $0x50] sm:$0xff]
  %v4035 = vld [vmem:[%s5 + $0x58] sm:$0xff]
  %v4036 = vld [vmem:[%s6] sm:$0x1]
  %v4038 = vlaneseq
  %v4039 = vshrl.u32 %v4038, 7
  %v4040 = vsub.s32 0, %v4039
  %v4041 = vrot.slane %v4036, %v4040
  %vm4043 = vcmask 785408
  %v4045 = vsel %vm4043, %v4008, 0
  %v4048 = vsel %vm4043, %v4009, 0
  %v4051 = vsel %vm4043, %v4010, 0
  %v4054 = vsel %vm4043, %v4011, 0
  %v4057 = vsel %vm4043, %v4012, 0
  %v4060 = vsel %vm4043, %v4013, 0
  %v4063 = vsel %vm4043, %v4014, 0
  %v4066 = vsel %vm4043, %v4015, 0
  %v4069 = vsel %vm4043, %v4016, 0
  %v4072 = vsel %vm4043, %v4017, 0
  %v4075 = vsel %vm4043, %v4018, 0
  %v4078 = vsel %vm4043, %v4019, 0
  %v4081 = vsel %vm4043, %v4020, 0
  %v4084 = vsel %vm4043, %v4021, 0
  %v4087 = vsel %vm4043, %v4022, 0
  %v4090 = vsel %vm4043, %v4023, 0
  %4092 = vmatprep.subr.mxu0 0.0
  %v4093 = vand.u32 %v4024, 4294901760
  %4094 = vmatpush1.msra.mxu0 %v4093
  %4095 = vmatprep.subr.mxu0 0.0
  %v4096 = vand.u32 %v4025, 4294901760
  %4097 = vmatpush1.msra.mxu0 %v4096
  %4098 = vmatprep.subr.mxu0 0.0
  %v4099 = vand.u32 %v4026, 4294901760
  %4100 = vmatpush1.msra.mxu0 %v4099
  %4101 = vmatprep.subr.mxu0 0.0
  %v4102 = vand.u32 %v4027, 4294901760
  %4103 = vmatpush1.msra.mxu0 %v4102
  %4104 = vmatprep.subr.mxu0 0.0
  %v4105 = vand.u32 %v4028, 4294901760
  %4106 = vmatpush1.msra.mxu0 %v4105
  %4107 = vmatprep.subr.mxu0 0.0
  %v4108 = vand.u32 %v4029, 4294901760
  %4109 = vmatpush1.msra.mxu0 %v4108
  %4110 = vmatprep.subr.mxu0 0.0
  %v4111 = vand.u32 %v4030, 4294901760
  %4112 = vmatpush1.msra.mxu0 %v4111
  %4113 = vmatprep.subr.mxu0 0.0
  %v4114 = vand.u32 %v4031, 4294901760
  %4115 = vmatpush1.msra.mxu0 %v4114
  %4116 = vmatprep.subr.mxu0 0.0
  %v4117 = vand.u32 %v4032, 4294901760
  %4118 = vmatpush1.msra.mxu0 %v4117
  %4119 = vmatprep.subr.mxu0 0.0
  %v4120 = vand.u32 %v4033, 4294901760
  %4121 = vmatpush1.msra.mxu0 %v4120
  %4122 = vmatprep.subr.mxu0 0.0
  %v4123 = vand.u32 %v4034, 4294901760
  %4124 = vmatpush1.msra.mxu0 %v4123
  %4125 = vmatprep.subr.mxu0 0.0
  %v4126 = vand.u32 %v4035, 4294901760
  %4127 = vmatpush1.msra.mxu0 %v4126
  %4128 = vmatprep.subr.mxu0 0.0
  %4129 = vmatpush1.msra.mxu0 0.0
  %4130 = vmatprep.subr.mxu0 0.0
  %4131 = vmatpush1.msra.mxu0 0.0
  %4132 = vmatprep.subr.mxu0 0.0
  %4133 = vmatpush1.msra.mxu0 0.0
  %4134 = vmatprep.subr.mxu0 0.0
  %4135 = vmatpush1.msra.mxu0 0.0
  %4136 = vmatprep.subr.mxu0 0.0
  %4137 = vmatpush1.msra.mxu0 0.0
  %4138 = vmatprep.subr.mxu0 0.0
  %4139 = vmatpush1.msra.mxu0 0.0
  %4140 = vmatprep.subr.mxu0 0.0
  %4141 = vmatpush1.msra.mxu0 0.0
  %4142 = vmatprep.subr.mxu0 0.0
  %4143 = vmatpush1.msra.mxu0 0.0
  %4144 = vmatprep.subr.mxu0 0.0
  %4145 = vmatpush1.msra.mxu0 0.0
  %4146 = vmatprep.subr.mxu0 0.0
  %4147 = vmatpush1.msra.mxu0 0.0
  %4148 = vmatprep.subr.mxu0 0.0
  %4149 = vmatpush1.msra.mxu0 0.0
  %4150 = vmatprep.subr.mxu0 0.0
  %4151 = vmatpush1.msra.mxu0 0.0
  %4152 = vmatprep.subr.mxu0 0.0
  %4153 = vmatpush1.msra.mxu0 0.0
  %4154 = vmatprep.subr.mxu0 0.0
  %4155 = vmatpush1.msra.mxu0 0.0
  %4156 = vmatprep.subr.mxu0 0.0
  %4157 = vmatpush1.msra.mxu0 0.0
  %4158 = vmatprep.subr.mxu0 0.0
  %4159 = vmatpush1.msra.mxu0 0.0
  %4160 = vmatprep.subr.mxu0 0.0
  %4161 = vmatpush1.msra.mxu0 0.0
  %4162 = vmatprep.subr.mxu0 0.0
  %4163 = vmatpush1.msra.mxu0 0.0
  %4164 = vmatprep.subr.mxu0 0.0
  %4165 = vmatpush1.msra.mxu0 0.0
  %4166 = vmatprep.subr.mxu0 0.0
  %4167 = vmatpush1.msra.mxu0 0.0
  %4168 = vmatprep.mubr.f32.mxu0 0.0
  %v4169 = vand.u32 %v4045, 4294901760
  %v4170 = vsub.f32 %v4045, %v4169
  %v4171 = vand.u32 %v4170, 4294901760
  %v4172 = vsub.f32 %v4170, %v4171
  %v4173 = vand.u32 %v4172, 4294901760
  %4174 = vmatmul.mubr.f32.gmra.mrb[0].mxu0 %v4173
  %v4175 = vpop.f32.mrb[0].mxu0
  %v4176 = vadd.f32 %v4041, %v4175
  %v4177 = vpop.f32.mrb[0].mxu0
  %4178 = vmatprep.mubr.f32.mxu0 0.0
  %v4179 = vand.u32 %v4048, 4294901760
  %v4180 = vsub.f32 %v4048, %v4179
  %v4181 = vand.u32 %v4180, 4294901760
  %v4182 = vsub.f32 %v4180, %v4181
  %v4183 = vand.u32 %v4182, 4294901760
  %4184 = vmatmul.mubr.f32.gmra.mrb[0].mxu0 %v4183
  %v4185 = vpop.f32.mrb[0].mxu0
  %v4186 = vadd.f32 %v4041, %v4185
  %v4187 = vpop.f32.mrb[0].mxu0
  %4188 = vmatprep.mubr.f32.mxu0 0.0
  %v4189 = vand.u32 %v4051, 4294901760
  %v4190 = vsub.f32 %v4051, %v4189
  %v4191 = vand.u32 %v4190, 4294901760
  %v4192 = vsub.f32 %v4190, %v4191
  %v4193 = vand.u32 %v4192, 4294901760
  %4194 = vmatmul.mubr.f32.gmra.mrb[0].mxu0 %v4193
  %v4195 = vpop.f32.mrb[0].mxu0
  %v4196 = vadd.f32 %v4041, %v4195
  %v4197 = vpop.f32.mrb[0].mxu0
  %4198 = vmatprep.mubr.f32.mxu0 0.0
  %v4199 = vand.u32 %v4054, 4294901760
  %v4200 = vsub.f32 %v4054, %v4199
  %v4201 = vand.u32 %v4200, 4294901760
  %v4202 = vsub.f32 %v4200, %v4201
  %v4203 = vand.u32 %v4202, 4294901760
  %4204 = vmatmul.mubr.f32.gmra.mrb[0].mxu0 %v4203
  %v4205 = vpop.f32.mrb[0].mxu0
  %v4206 = vadd.f32 %v4041, %v4205
  %v4207 = vpop.f32.mrb[0].mxu0
  %4208 = vmatprep.mubr.f32.mxu0 0.0
  %v4209 = vand.u32 %v4057, 4294901760
  %v4210 = vsub.f32 %v4057, %v4209
  %v4211 = vand.u32 %v4210, 4294901760
  %v4212 = vsub.f32 %v4210, %v4211
  %v4213 = vand.u32 %v4212, 4294901760
  %4214 = vmatmul.mubr.f32.gmra.mrb[0].mxu0 %v4213
  %v4215 = vpop.f32.mrb[0].mxu0
  %v4216 = vadd.f32 %v4041, %v4215
  %v4217 = vpop.f32.mrb[0].mxu0
  %4218 = vmatprep.mubr.f32.mxu0 0.0
  %v4219 = vand.u32 %v4060, 4294901760
  %v4220 = vsub.f32 %v4060, %v4219
  %v4221 = vand.u32 %v4220, 4294901760
  %v4222 = vsub.f32 %v4220, %v4221
  %v4223 = vand.u32 %v4222, 4294901760
  %4224 = vmatmul.mubr.f32.gmra.mrb[0].mxu0 %v4223
  %v4225 = vpop.f32.mrb[0].mxu0
  %v4226 = vadd.f32 %v4041, %v4225
  %v4227 = vpop.f32.mrb[0].mxu0
  %4228 = vmatprep.mubr.f32.mxu0 0.0
  %v4229 = vand.u32 %v4063, 4294901760
  %v4230 = vsub.f32 %v4063, %v4229
  %v4231 = vand.u32 %v4230, 4294901760
  %v4232 = vsub.f32 %v4230, %v4231
  %v4233 = vand.u32 %v4232, 4294901760
  %4234 = vmatmul.mubr.f32.gmra.mrb[0].mxu0 %v4233
  %v4235 = vpop.f32.mrb[0].mxu0
  %v4236 = vadd.f32 %v4041, %v4235
  %v4237 = vpop.f32.mrb[0].mxu0
  %4238 = vmatprep.mubr.f32.mxu0 0.0
  %v4239 = vand.u32 %v4066, 4294901760
  %v4240 = vsub.f32 %v4066, %v4239
  %v4241 = vand.u32 %v4240, 4294901760
  %v4242 = vsub.f32 %v4240, %v4241
  %v4243 = vand.u32 %v4242, 4294901760
  %4244 = vmatmul.mubr.f32.gmra.mrb[0].mxu0 %v4243
  %v4245 = vpop.f32.mrb[0].mxu0
  %v4246 = vadd.f32 %v4041, %v4245
  %v4247 = vpop.f32.mrb[0].mxu0
  %4248 = vmatprep.mubr.f32.mxu0 0.0
  %v4249 = vand.u32 %v4069, 4294901760
  %v4250 = vsub.f32 %v4069, %v4249
  %v4251 = vand.u32 %v4250, 4294901760
  %v4252 = vsub.f32 %v4250, %v4251
  %v4253 = vand.u32 %v4252, 4294901760
  %4254 = vmatmul.mubr.f32.gmra.mrb[0].mxu0 %v4253
  %v4255 = vpop.f32.mrb[0].mxu0
  %v4256 = vadd.f32 %v4041, %v4255
  %v4257 = vpop.f32.mrb[0].mxu0
  %4258 = vmatprep.mubr.f32.mxu0 0.0
  %v4259 = vand.u32 %v4072, 4294901760
  %v4260 = vsub.f32 %v4072, %v4259
  %v4261 = vand.u32 %v4260, 4294901760
  %v4262 = vsub.f32 %v4260, %v4261
  %v4263 = vand.u32 %v4262, 4294901760
  %4264 = vmatmul.mubr.f32.gmra.mrb[0].mxu0 %v4263
  %v4265 = vpop.f32.mrb[0].mxu0
  %v4266 = vadd.f32 %v4041, %v4265
  %v4267 = vpop.f32.mrb[0].mxu0
  %4268 = vmatprep.mubr.f32.mxu0 0.0
  %v4269 = vand.u32 %v4075, 4294901760
  %v4270 = vsub.f32 %v4075, %v4269
  %v4271 = vand.u32 %v4270, 4294901760
  %v4272 = vsub.f32 %v4270, %v4271
  %v4273 = vand.u32 %v4272, 4294901760
  %4274 = vmatmul.mubr.f32.gmra.mrb[0].mxu0 %v4273
  %v4275 = vpop.f32.mrb[0].mxu0
  %v4276 = vadd.f32 %v4041, %v4275
  %v4277 = vpop.f32.mrb[0].mxu0
  %4278 = vmatprep.mubr.f32.mxu0 0.0
  %v4279 = vand.u32 %v4078, 4294901760
  %v4280 = vsub.f32 %v4078, %v4279
  %v4281 = vand.u32 %v4280, 4294901760
  %v4282 = vsub.f32 %v4280, %v4281
  %v4283 = vand.u32 %v4282, 4294901760
  %4284 = vmatmul.mubr.f32.gmra.mrb[0].mxu0 %v4283
  %v4285 = vpop.f32.mrb[0].mxu0
  %v4286 = vadd.f32 %v4041, %v4285
  %v4287 = vpop.f32.mrb[0].mxu0
  %4288 = vmatprep.mubr.f32.mxu0 0.0
  %v4289 = vand.u32 %v4081, 4294901760
  %v4290 = vsub.f32 %v4081, %v4289
  %v4291 = vand.u32 %v4290, 4294901760
  %v4292 = vsub.f32 %v4290, %v4291
  %v4293 = vand.u32 %v4292, 4294901760
  %4294 = vmatmul.mubr.f32.gmra.mrb[0].mxu0 %v4293
  %v4295 = vpop.f32.mrb[0].mxu0
  %v4296 = vadd.f32 %v4041, %v4295
  %v4297 = vpop.f32.mrb[0].mxu0
  %4298 = vmatprep.mubr.f32.mxu0 0.0
  %v4299 = vand.u32 %v4084, 4294901760
  %v4300 = vsub.f32 %v4084, %v4299
  %v4301 = vand.u32 %v4300, 4294901760
  %v4302 = vsub.f32 %v4300, %v4301
  %v4303 = vand.u32 %v4302, 4294901760
  %4304 = vmatmul.mubr.f32.gmra.mrb[0].mxu0 %v4303
  %v4305 = vpop.f32.mrb[0].mxu0
  %v4306 = vadd.f32 %v4041, %v4305
  %v4307 = vpop.f32.mrb[0].mxu0
  %4308 = vmatprep.mubr.f32.mxu0 0.0
  %v4309 = vand.u32 %v4087, 4294901760
  %v4310 = vsub.f32 %v4087, %v4309
  %v4311 = vand.u32 %v4310, 4294901760
  %v4312 = vsub.f32 %v4310, %v4311
  %v4313 = vand.u32 %v4312, 4294901760
  %4314 = vmatmul.mubr.f32.gmra.mrb[0].mxu0 %v4313
  %v4315 = vpop.f32.mrb[0].mxu0
  %v4316 = vadd.f32 %v4041, %v4315
  %v4317 = vpop.f32.mrb[0].mxu0
  %4318 = vmatprep.mubr.f32.mxu0 0.0
  %v4319 = vand.u32 %v4090, 4294901760
  %v4320 = vsub.f32 %v4090, %v4319
  %v4321 = vand.u32 %v4320, 4294901760
  %v4322 = vsub.f32 %v4320, %v4321
  %v4323 = vand.u32 %v4322, 4294901760
  %4324 = vmatmul.mubr.f32.gmra.mrb[0].mxu0 %v4323
  %v4325 = vpop.f32.mrb[0].mxu0
  %v4326 = vadd.f32 %v4041, %v4325
  %v4327 = vpop.f32.mrb[0].mxu0
  %4328 = vdwg.mxu0
  %4329 = vmatprep.subr.mxu0 0.0
  %v4330 = vand.u32 %v4024, 4294901760
  %v4331 = vsub.f32 %v4024, %v4330
  %v4332 = vand.u32 %v4331, 4294901760
  %v4333 = vsub.f32 %v4331, %v4332
  %v4334 = vand.u32 %v4333, 4294901760
  %4335 = vmatpush1.msra.mxu0 %v4334
  %4336 = vmatprep.subr.mxu0 0.0
  %v4337 = vand.u32 %v4025, 4294901760
  %v4338 = vsub.f32 %v4025, %v4337
  %v4339 = vand.u32 %v4338, 4294901760
  %v4340 = vsub.f32 %v4338, %v4339
  %v4341 = vand.u32 %v4340, 4294901760
  %4342 = vmatpush1.msra.mxu0 %v4341
  %4343 = vmatprep.subr.mxu0 0.0
  %v4344 = vand.u32 %v4026, 4294901760
  %v4345 = vsub.f32 %v4026, %v4344
  %v4346 = vand.u32 %v4345, 4294901760
  %v4347 = vsub.f32 %v4345, %v4346
  %v4348 = vand.u32 %v4347, 4294901760
  %4349 = vmatpush1.msra.mxu0 %v4348
  %4350 = vmatprep.subr.mxu0 0.0
  %v4351 = vand.u32 %v4027, 4294901760
  %v4352 = vsub.f32 %v4027, %v4351
  %v4353 = vand.u32 %v4352, 4294901760
  %v4354 = vsub.f32 %v4352, %v4353
  %v4355 = vand.u32 %v4354, 4294901760
  %4356 = vmatpush1.msra.mxu0 %v4355
  %4357 = vmatprep.subr.mxu0 0.0
  %v4358 = vand.u32 %v4028, 4294901760
  %v4359 = vsub.f32 %v4028, %v4358
  %v4360 = vand.u32 %v4359, 4294901760
  %v4361 = vsub.f32 %v4359, %v4360
  %v4362 = vand.u32 %v4361, 4294901760
  %4363 = vmatpush1.msra.mxu0 %v4362
  %4364 = vmatprep.subr.mxu0 0.0
  %v4365 = vand.u32 %v4029, 4294901760
  %v4366 = vsub.f32 %v4029, %v4365
  %v4367 = vand.u32 %v4366, 4294901760
  %v4368 = vsub.f32 %v4366, %v4367
  %v4369 = vand.u32 %v4368, 4294901760
  %4370 = vmatpush1.msra.mxu0 %v4369
  %4371 = vmatprep.subr.mxu0 0.0
  %v4372 = vand.u32 %v4030, 4294901760
  %v4373 = vsub.f32 %v4030, %v4372
  %v4374 = vand.u32 %v4373, 4294901760
  %v4375 = vsub.f32 %v4373, %v4374
  %v4376 = vand.u32 %v4375, 4294901760
  %4377 = vmatpush1.msra.mxu0 %v4376
  %4378 = vmatprep.subr.mxu0 0.0
  %v4379 = vand.u32 %v4031, 4294901760
  %v4380 = vsub.f32 %v4031, %v4379
  %v4381 = vand.u32 %v4380, 4294901760
  %v4382 = vsub.f32 %v4380, %v4381
  %v4383 = vand.u32 %v4382, 4294901760
  %4384 = vmatpush1.msra.mxu0 %v4383
  %4385 = vmatprep.subr.mxu0 0.0
  %v4386 = vand.u32 %v4032, 4294901760
  %v4387 = vsub.f32 %v4032, %v4386
  %v4388 = vand.u32 %v4387, 4294901760
  %v4389 = vsub.f32 %v4387, %v4388
  %v4390 = vand.u32 %v4389, 4294901760
  %4391 = vmatpush1.msra.mxu0 %v4390
  %4392 = vmatprep.subr.mxu0 0.0
  %v4393 = vand.u32 %v4033, 4294901760
  %v4394 = vsub.f32 %v4033, %v4393
  %v4395 = vand.u32 %v4394, 4294901760
  %v4396 = vsub.f32 %v4394, %v4395
  %v4397 = vand.u32 %v4396, 4294901760
  %4398 = vmatpush1.msra.mxu0 %v4397
  %4399 = vmatprep.subr.mxu0 0.0
  %v4400 = vand.u32 %v4034, 4294901760
  %v4401 = vsub.f32 %v4034, %v4400
  %v4402 = vand.u32 %v4401, 4294901760
  %v4403 = vsub.f32 %v4401, %v4402
  %v4404 = vand.u32 %v4403, 4294901760
  %4405 = vmatpush1.msra.mxu0 %v4404
  %4406 = vmatprep.subr.mxu0 0.0
  %v4407 = vand.u32 %v4035, 4294901760
  %v4408 = vsub.f32 %v4035, %v4407
  %v4409 = vand.u32 %v4408, 4294901760
  %v4410 = vsub.f32 %v4408, %v4409
  %v4411 = vand.u32 %v4410, 4294901760
  %4412 = vmatpush1.msra.mxu0 %v4411
  %4413 = vmatprep.subr.mxu0 0.0
  %4414 = vmatpush1.msra.mxu0 0.0
  %4415 = vmatprep.subr.mxu0 0.0
  %4416 = vmatpush1.msra.mxu0 0.0
  %4417 = vmatprep.subr.mxu0 0.0
  %4418 = vmatpush1.msra.mxu0 0.0
  %4419 = vmatprep.subr.mxu0 0.0
  %4420 = vmatpush1.msra.mxu0 0.0
  %4421 = vmatprep.subr.mxu0 0.0
  %4422 = vmatpush1.msra.mxu0 0.0
  %4423 = vmatprep.subr.mxu0 0.0
  %4424 = vmatpush1.msra.mxu0 0.0
  %4425 = vmatprep.subr.mxu0 0.0
  %4426 = vmatpush1.msra.mxu0 0.0
  %4427 = vmatprep.subr.mxu0 0.0
  %4428 = vmatpush1.msra.mxu0 0.0
  %4429 = vmatprep.subr.mxu0 0.0
  %4430 = vmatpush1.msra.mxu0 0.0
  %4431 = vmatprep.subr.mxu0 0.0
  %4432 = vmatpush1.msra.mxu0 0.0
  %4433 = vmatprep.subr.mxu0 0.0
  %4434 = vmatpush1.msra.mxu0 0.0
  %4435 = vmatprep.subr.mxu0 0.0
  %4436 = vmatpush1.msra.mxu0 0.0
  %4437 = vmatprep.subr.mxu0 0.0
  %4438 = vmatpush1.msra.mxu0 0.0
  %4439 = vmatprep.subr.mxu0 0.0
  %4440 = vmatpush1.msra.mxu0 0.0
  %4441 = vmatprep.subr.mxu0 0.0
  %4442 = vmatpush1.msra.mxu0 0.0
  %4443 = vmatprep.subr.mxu0 0.0
  %4444 = vmatpush1.msra.mxu0 0.0
  %4445 = vmatprep.subr.mxu0 0.0
  %4446 = vmatpush1.msra.mxu0 0.0
  %4447 = vmatprep.subr.mxu0 0.0
  %4448 = vmatpush1.msra.mxu0 0.0
  %4449 = vmatprep.subr.mxu0 0.0
  %4450 = vmatpush1.msra.mxu0 0.0
  %4451 = vmatprep.subr.mxu0 0.0
  %4452 = vmatpush1.msra.mxu0 0.0
  %4453 = vmatprep.mubr.f32.mxu0 0.0
  %v4454 = vand.u32 %v4045, 4294901760
  %4455 = vmatmul.mubr.f32.gmra.mrb[0].mxu0 %v4454
  %v4456 = vpop.f32.mrb[0].mxu0
  %v4457 = vadd.f32 %v4176, %v4456
  %v4458 = vpop.f32.mrb[0].mxu0
  %4459 = vmatprep.mubr.f32.mxu0 0.0
  %v4460 = vand.u32 %v4048, 4294901760
  %4461 = vmatmul.mubr.f32.gmra.mrb[0].mxu0 %v4460
  %v4462 = vpop.f32.mrb[0].mxu0
  %v4463 = vadd.f32 %v4186, %v4462
  %v4464 = vpop.f32.mrb[0].mxu0
  %4465 = vmatprep.mubr.f32.mxu0 0.0
  %v4466 = vand.u32 %v4051, 4294901760
  %4467 = vmatmul.mubr.f32.gmra.mrb[0].mxu0 %v4466
  %v4468 = vpop.f32.mrb[0].mxu0
  %v4469 = vadd.f32 %v4196, %v4468
  %v4470 = vpop.f32.mrb[0].mxu0
  %4471 = vmatprep.mubr.f32.mxu0 0.0
  %v4472 = vand.u32 %v4054, 4294901760
  %4473 = vmatmul.mubr.f32.gmra.mrb[0].mxu0 %v4472
  %v4474 = vpop.f32.mrb[0].mxu0
  %v4475 = vadd.f32 %v4206, %v4474
  %v4476 = vpop.f32.mrb[0].mxu0
  %4477 = vmatprep.mubr.f32.mxu0 0.0
  %v4478 = vand.u32 %v4057, 4294901760
  %4479 = vmatmul.mubr.f32.gmra.mrb[0].mxu0 %v4478
  %v4480 = vpop.f32.mrb[0].mxu0
  %v4481 = vadd.f32 %v4216, %v4480
  %v4482 = vpop.f32.mrb[0].mxu0
  %4483 = vmatprep.mubr.f32.mxu0 0.0
  %v4484 = vand.u32 %v4060, 4294901760
  %4485 = vmatmul.mubr.f32.gmra.mrb[0].mxu0 %v4484
  %v4486 = vpop.f32.mrb[0].mxu0
  %v4487 = vadd.f32 %v4226, %v4486
  %v4488 = vpop.f32.mrb[0].mxu0
  %4489 = vmatprep.mubr.f32.mxu0 0.0
  %v4490 = vand.u32 %v4063, 4294901760
  %4491 = vmatmul.mubr.f32.gmra.mrb[0].mxu0 %v4490
  %v4492 = vpop.f32.mrb[0].mxu0
  %v4493 = vadd.f32 %v4236, %v4492
  %v4494 = vpop.f32.mrb[0].mxu0
  %4495 = vmatprep.mubr.f32.mxu0 0.0
  %v4496 = vand.u32 %v4066, 4294901760
  %4497 = vmatmul.mubr.f32.gmra.mrb[0].mxu0 %v4496
  %v4498 = vpop.f32.mrb[0].mxu0
  %v4499 = vadd.f32 %v4246, %v4498
  %v4500 = vpop.f32.mrb[0].mxu0
  %4501 = vmatprep.mubr.f32.mxu0 0.0
  %v4502 = vand.u32 %v4069, 4294901760
  %4503 = vmatmul.mubr.f32.gmra.mrb[0].mxu0 %v4502
  %v4504 = vpop.f32.mrb[0].mxu0
  %v4505 = vadd.f32 %v4256, %v4504
  %v4506 = vpop.f32.mrb[0].mxu0
  %4507 = vmatprep.mubr.f32.mxu0 0.0
  %v4508 = vand.u32 %v4072, 4294901760
  %4509 = vmatmul.mubr.f32.gmra.mrb[0].mxu0 %v4508
  %v4510 = vpop.f32.mrb[0].mxu0
  %v4511 = vadd.f32 %v4266, %v4510
  %v4512 = vpop.f32.mrb[0].mxu0
  %4513 = vmatprep.mubr.f32.mxu0 0.0
  %v4514 = vand.u32 %v4075, 4294901760
  %4515 = vmatmul.mubr.f32.gmra.mrb[0].mxu0 %v4514
  %v4516 = vpop.f32.mrb[0].mxu0
  %v4517 = vadd.f32 %v4276, %v4516
  %v4518 = vpop.f32.mrb[0].mxu0
  %4519 = vmatprep.mubr.f32.mxu0 0.0
  %v4520 = vand.u32 %v4078, 4294901760
  %4521 = vmatmul.mubr.f32.gmra.mrb[0].mxu0 %v4520
  %v4522 = vpop.f32.mrb[0].mxu0
  %v4523 = vadd.f32 %v4286, %v4522
  %v4524 = vpop.f32.mrb[0].mxu0
  %4525 = vmatprep.mubr.f32.mxu0 0.0
  %v4526 = vand.u32 %v4081, 4294901760
  %4527 = vmatmul.mubr.f32.gmra.mrb[0].mxu0 %v4526
  %v4528 = vpop.f32.mrb[0].mxu0
  %v4529 = vadd.f32 %v4296, %v4528
  %v4530 = vpop.f32.mrb[0].mxu0
  %4531 = vmatprep.mubr.f32.mxu0 0.0
  %v4532 = vand.u32 %v4084, 4294901760
  %4533 = vmatmul.mubr.f32.gmra.mrb[0].mxu0 %v4532
  %v4534 = vpop.f32.mrb[0].mxu0
  %v4535 = vadd.f32 %v4306, %v4534
  %v4536 = vpop.f32.mrb[0].mxu0
  %4537 = vmatprep.mubr.f32.mxu0 0.0
  %v4538 = vand.u32 %v4087, 4294901760
  %4539 = vmatmul.mubr.f32.gmra.mrb[0].mxu0 %v4538
  %v4540 = vpop.f32.mrb[0].mxu0
  %v4541 = vadd.f32 %v4316, %v4540
  %v4542 = vpop.f32.mrb[0].mxu0
  %4543 = vmatprep.mubr.f32.mxu0 0.0
  %v4544 = vand.u32 %v4090, 4294901760
  %4545 = vmatmul.mubr.f32.gmra.mrb[0].mxu0 %v4544
  %v4546 = vpop.f32.mrb[0].mxu0
  %v4547 = vadd.f32 %v4326, %v4546
  %v4548 = vpop.f32.mrb[0].mxu0
  %4549 = vdwg.mxu0
  %4550 = vmatprep.subr.mxu0 0.0
  %v4551 = vand.u32 %v4024, 4294901760
  %v4552 = vsub.f32 %v4024, %v4551
  %4553 = vmatpush1.msra.mxu0 %v4552
  %4554 = vmatprep.subr.mxu0 0.0
  %v4555 = vand.u32 %v4025, 4294901760
  %v4556 = vsub.f32 %v4025, %v4555
  %4557 = vmatpush1.msra.mxu0 %v4556
  %4558 = vmatprep.subr.mxu0 0.0
  %v4559 = vand.u32 %v4026, 4294901760
  %v4560 = vsub.f32 %v4026, %v4559
  %4561 = vmatpush1.msra.mxu0 %v4560
  %4562 = vmatprep.subr.mxu0 0.0
  %v4563 = vand.u32 %v4027, 4294901760
  %v4564 = vsub.f32 %v4027, %v4563
  %4565 = vmatpush1.msra.mxu0 %v4564
  %4566 = vmatprep.subr.mxu0 0.0
  %v4567 = vand.u32 %v4028, 4294901760
  %v4568 = vsub.f32 %v4028, %v4567
  %4569 = vmatpush1.msra.mxu0 %v4568
  %4570 = vmatprep.subr.mxu0 0.0
  %v4571 = vand.u32 %v4029, 4294901760
  %v4572 = vsub.f32 %v4029, %v4571
  %4573 = vmatpush1.msra.mxu0 %v4572
  %4574 = vmatprep.subr.mxu0 0.0
  %v4575 = vand.u32 %v4030, 4294901760
  %v4576 = vsub.f32 %v4030, %v4575
  %4577 = vmatpush1.msra.mxu0 %v4576
  %4578 = vmatprep.subr.mxu0 0.0
  %v4579 = vand.u32 %v4031, 4294901760
  %v4580 = vsub.f32 %v4031, %v4579
  %4581 = vmatpush1.msra.mxu0 %v4580
  %4582 = vmatprep.subr.mxu0 0.0
  %v4583 = vand.u32 %v4032, 4294901760
  %v4584 = vsub.f32 %v4032, %v4583
  %4585 = vmatpush1.msra.mxu0 %v4584
  %4586 = vmatprep.subr.mxu0 0.0
  %v4587 = vand.u32 %v4033, 4294901760
  %v4588 = vsub.f32 %v4033, %v4587
  %4589 = vmatpush1.msra.mxu0 %v4588
  %4590 = vmatprep.subr.mxu0 0.0
  %v4591 = vand.u32 %v4034, 4294901760
  %v4592 = vsub.f32 %v4034, %v4591
  %4593 = vmatpush1.msra.mxu0 %v4592
  %4594 = vmatprep.subr.mxu0 0.0
  %v4595 = vand.u32 %v4035, 4294901760
  %v4596 = vsub.f32 %v4035, %v4595
  %4597 = vmatpush1.msra.mxu0 %v4596
  %4598 = vmatprep.subr.mxu0 0.0
  %4599 = vmatpush1.msra.mxu0 0.0
  %4600 = vmatprep.subr.mxu0 0.0
  %4601 = vmatpush1.msra.mxu0 0.0
  %4602 = vmatprep.subr.mxu0 0.0
  %4603 = vmatpush1.msra.mxu0 0.0
  %4604 = vmatprep.subr.mxu0 0.0
  %4605 = vmatpush1.msra.mxu0 0.0
  %4606 = vmatprep.subr.mxu0 0.0
  %4607 = vmatpush1.msra.mxu0 0.0
  %4608 = vmatprep.subr.mxu0 0.0
  %4609 = vmatpush1.msra.mxu0 0.0
  %4610 = vmatprep.subr.mxu0 0.0
  %4611 = vmatpush1.msra.mxu0 0.0
  %4612 = vmatprep.subr.mxu0 0.0
  %4613 = vmatpush1.msra.mxu0 0.0
  %4614 = vmatprep.subr.mxu0 0.0
  %4615 = vmatpush1.msra.mxu0 0.0
  %4616 = vmatprep.subr.mxu0 0.0
  %4617 = vmatpush1.msra.mxu0 0.0
  %4618 = vmatprep.subr.mxu0 0.0
  %4619 = vmatpush1.msra.mxu0 0.0
  %4620 = vmatprep.subr.mxu0 0.0
  %4621 = vmatpush1.msra.mxu0 0.0
  %4622 = vmatprep.subr.mxu0 0.0
  %4623 = vmatpush1.msra.mxu0 0.0
  %4624 = vmatprep.subr.mxu0 0.0
  %4625 = vmatpush1.msra.mxu0 0.0
  %4626 = vmatprep.subr.mxu0 0.0
  %4627 = vmatpush1.msra.mxu0 0.0
  %4628 = vmatprep.subr.mxu0 0.0
  %4629 = vmatpush1.msra.mxu0 0.0
  %4630 = vmatprep.subr.mxu0 0.0
  %4631 = vmatpush1.msra.mxu0 0.0
  %4632 = vmatprep.subr.mxu0 0.0
  %4633 = vmatpush1.msra.mxu0 0.0
  %4634 = vmatprep.subr.mxu0 0.0
  %4635 = vmatpush1.msra.mxu0 0.0
  %4636 = vmatprep.subr.mxu0 0.0
  %4637 = vmatpush1.msra.mxu0 0.0
  %4638 = vmatprep.mubr.f32.mxu0 0.0
  %v4639 = vand.u32 %v4045, 4294901760
  %v4640 = vsub.f32 %v4045, %v4639
  %4641 = vmatmul.mubr.f32.gmra.mrb[0].mxu0 %v4640
  %v4642 = vpop.f32.mrb[0].mxu0
  %v4643 = vadd.f32 %v4457, %v4642
  %v4644 = vpop.f32.mrb[0].mxu0
  %4645 = vmatprep.mubr.f32.mxu0 0.0
  %v4646 = vand.u32 %v4048, 4294901760
  %v4647 = vsub.f32 %v4048, %v4646
  %4648 = vmatmul.mubr.f32.gmra.mrb[0].mxu0 %v4647
  %v4649 = vpop.f32.mrb[0].mxu0
  %v4650 = vadd.f32 %v4463, %v4649
  %v4651 = vpop.f32.mrb[0].mxu0
  %4652 = vmatprep.mubr.f32.mxu0 0.0
  %v4653 = vand.u32 %v4051, 4294901760
  %v4654 = vsub.f32 %v4051, %v4653
  %4655 = vmatmul.mubr.f32.gmra.mrb[0].mxu0 %v4654
  %v4656 = vpop.f32.mrb[0].mxu0
  %v4657 = vadd.f32 %v4469, %v4656
  %v4658 = vpop.f32.mrb[0].mxu0
  %4659 = vmatprep.mubr.f32.mxu0 0.0
  %v4660 = vand.u32 %v4054, 4294901760
  %v4661 = vsub.f32 %v4054, %v4660
  %4662 = vmatmul.mubr.f32.gmra.mrb[0].mxu0 %v4661
  %v4663 = vpop.f32.mrb[0].mxu0
  %v4664 = vadd.f32 %v4475, %v4663
  %v4665 = vpop.f32.mrb[0].mxu0
  %4666 = vmatprep.mubr.f32.mxu0 0.0
  %v4667 = vand.u32 %v4057, 4294901760
  %v4668 = vsub.f32 %v4057, %v4667
  %4669 = vmatmul.mubr.f32.gmra.mrb[0].mxu0 %v4668
  %v4670 = vpop.f32.mrb[0].mxu0
  %v4671 = vadd.f32 %v4481, %v4670
  %v4672 = vpop.f32.mrb[0].mxu0
  %4673 = vmatprep.mubr.f32.mxu0 0.0
  %v4674 = vand.u32 %v4060, 4294901760
  %v4675 = vsub.f32 %v4060, %v4674
  %4676 = vmatmul.mubr.f32.gmra.mrb[0].mxu0 %v4675
  %v4677 = vpop.f32.mrb[0].mxu0
  %v4678 = vadd.f32 %v4487, %v4677
  %v4679 = vpop.f32.mrb[0].mxu0
  %4680 = vmatprep.mubr.f32.mxu0 0.0
  %v4681 = vand.u32 %v4063, 4294901760
  %v4682 = vsub.f32 %v4063, %v4681
  %4683 = vmatmul.mubr.f32.gmra.mrb[0].mxu0 %v4682
  %v4684 = vpop.f32.mrb[0].mxu0
  %v4685 = vadd.f32 %v4493, %v4684
  %v4686 = vpop.f32.mrb[0].mxu0
  %4687 = vmatprep.mubr.f32.mxu0 0.0
  %v4688 = vand.u32 %v4066, 4294901760
  %v4689 = vsub.f32 %v4066, %v4688
  %4690 = vmatmul.mubr.f32.gmra.mrb[0].mxu0 %v4689
  %v4691 = vpop.f32.mrb[0].mxu0
  %v4692 = vadd.f32 %v4499, %v4691
  %v4693 = vpop.f32.mrb[0].mxu0
  %4694 = vmatprep.mubr.f32.mxu0 0.0
  %v4695 = vand.u32 %v4069, 4294901760
  %v4696 = vsub.f32 %v4069, %v4695
  %4697 = vmatmul.mubr.f32.gmra.mrb[0].mxu0 %v4696
  %v4698 = vpop.f32.mrb[0].mxu0
  %v4699 = vadd.f32 %v4505, %v4698
  %v4700 = vpop.f32.mrb[0].mxu0
  %4701 = vmatprep.mubr.f32.mxu0 0.0
  %v4702 = vand.u32 %v4072, 4294901760
  %v4703 = vsub.f32 %v4072, %v4702
  %4704 = vmatmul.mubr.f32.gmra.mrb[0].mxu0 %v4703
  %v4705 = vpop.f32.mrb[0].mxu0
  %v4706 = vadd.f32 %v4511, %v4705
  %v4707 = vpop.f32.mrb[0].mxu0
  %4708 = vmatprep.mubr.f32.mxu0 0.0
  %v4709 = vand.u32 %v4075, 4294901760
  %v4710 = vsub.f32 %v4075, %v4709
  %4711 = vmatmul.mubr.f32.gmra.mrb[0].mxu0 %v4710
  %v4712 = vpop.f32.mrb[0].mxu0
  %v4713 = vadd.f32 %v4517, %v4712
  %v4714 = vpop.f32.mrb[0].mxu0
  %4715 = vmatprep.mubr.f32.mxu0 0.0
  %v4716 = vand.u32 %v4078, 4294901760
  %v4717 = vsub.f32 %v4078, %v4716
  %4718 = vmatmul.mubr.f32.gmra.mrb[0].mxu0 %v4717
  %v4719 = vpop.f32.mrb[0].mxu0
  %v4720 = vadd.f32 %v4523, %v4719
  %v4721 = vpop.f32.mrb[0].mxu0
  %4722 = vmatprep.mubr.f32.mxu0 0.0
  %v4723 = vand.u32 %v4081, 4294901760
  %v4724 = vsub.f32 %v4081, %v4723
  %4725 = vmatmul.mubr.f32.gmra.mrb[0].mxu0 %v4724
  %v4726 = vpop.f32.mrb[0].mxu0
  %v4727 = vadd.f32 %v4529, %v4726
  %v4728 = vpop.f32.mrb[0].mxu0
  %4729 = vmatprep.mubr.f32.mxu0 0.0
  %v4730 = vand.u32 %v4084, 4294901760
  %v4731 = vsub.f32 %v4084, %v4730
  %4732 = vmatmul.mubr.f32.gmra.mrb[0].mxu0 %v4731
  %v4733 = vpop.f32.mrb[0].mxu0
  %v4734 = vadd.f32 %v4535, %v4733
  %v4735 = vpop.f32.mrb[0].mxu0
  %4736 = vmatprep.mubr.f32.mxu0 0.0
  %v4737 = vand.u32 %v4087, 4294901760
  %v4738 = vsub.f32 %v4087, %v4737
  %4739 = vmatmul.mubr.f32.gmra.mrb[0].mxu0 %v4738
  %v4740 = vpop.f32.mrb[0].mxu0
  %v4741 = vadd.f32 %v4541, %v4740
  %v4742 = vpop.f32.mrb[0].mxu0
  %4743 = vmatprep.mubr.f32.mxu0 0.0
  %v4744 = vand.u32 %v4090, 4294901760
  %v4745 = vsub.f32 %v4090, %v4744
  %4746 = vmatmul.mubr.f32.gmra.mrb[0].mxu0 %v4745
  %v4747 = vpop.f32.mrb[0].mxu0
  %v4748 = vadd.f32 %v4547, %v4747
  %v4749 = vpop.f32.mrb[0].mxu0
  %4750 = vdwg.mxu0
  %4751 = vmatprep.subr.mxu0 0.0
  %v4752 = vand.u32 %v4024, 4294901760
  %4753 = vmatpush1.msra.mxu0 %v4752
  %4754 = vmatprep.subr.mxu0 0.0
  %v4755 = vand.u32 %v4025, 4294901760
  %4756 = vmatpush1.msra.mxu0 %v4755
  %4757 = vmatprep.subr.mxu0 0.0
  %v4758 = vand.u32 %v4026, 4294901760
  %4759 = vmatpush1.msra.mxu0 %v4758
  %4760 = vmatprep.subr.mxu0 0.0
  %v4761 = vand.u32 %v4027, 4294901760
  %4762 = vmatpush1.msra.mxu0 %v4761
  %4763 = vmatprep.subr.mxu0 0.0
  %v4764 = vand.u32 %v4028, 4294901760
  %4765 = vmatpush1.msra.mxu0 %v4764
  %4766 = vmatprep.subr.mxu0 0.0
  %v4767 = vand.u32 %v4029, 4294901760
  %4768 = vmatpush1.msra.mxu0 %v4767
  %4769 = vmatprep.subr.mxu0 0.0
  %v4770 = vand.u32 %v4030, 4294901760
  %4771 = vmatpush1.msra.mxu0 %v4770
  %4772 = vmatprep.subr.mxu0 0.0
  %v4773 = vand.u32 %v4031, 4294901760
  %4774 = vmatpush1.msra.mxu0 %v4773
  %4775 = vmatprep.subr.mxu0 0.0
  %v4776 = vand.u32 %v4032, 4294901760
  %4777 = vmatpush1.msra.mxu0 %v4776
  %4778 = vmatprep.subr.mxu0 0.0
  %v4779 = vand.u32 %v4033, 4294901760
  %4780 = vmatpush1.msra.mxu0 %v4779
  %4781 = vmatprep.subr.mxu0 0.0
  %v4782 = vand.u32 %v4034, 4294901760
  %4783 = vmatpush1.msra.mxu0 %v4782
  %4784 = vmatprep.subr.mxu0 0.0
  %v4785 = vand.u32 %v4035, 4294901760
  %4786 = vmatpush1.msra.mxu0 %v4785
  %4787 = vmatprep.subr.mxu0 0.0
  %4788 = vmatpush1.msra.mxu0 0.0
  %4789 = vmatprep.subr.mxu0 0.0
  %4790 = vmatpush1.msra.mxu0 0.0
  %4791 = vmatprep.subr.mxu0 0.0
  %4792 = vmatpush1.msra.mxu0 0.0
  %4793 = vmatprep.subr.mxu0 0.0
  %4794 = vmatpush1.msra.mxu0 0.0
  %4795 = vmatprep.subr.mxu0 0.0
  %4796 = vmatpush1.msra.mxu0 0.0
  %4797 = vmatprep.subr.mxu0 0.0
  %4798 = vmatpush1.msra.mxu0 0.0
  %4799 = vmatprep.subr.mxu0 0.0
  %4800 = vmatpush1.msra.mxu0 0.0
  %4801 = vmatprep.subr.mxu0 0.0
  %4802 = vmatpush1.msra.mxu0 0.0
  %4803 = vmatprep.subr.mxu0 0.0
  %4804 = vmatpush1.msra.mxu0 0.0
  %4805 = vmatprep.subr.mxu0 0.0
  %4806 = vmatpush1.msra.mxu0 0.0
  %4807 = vmatprep.subr.mxu0 0.0
  %4808 = vmatpush1.msra.mxu0 0.0
  %4809 = vmatprep.subr.mxu0 0.0
  %4810 = vmatpush1.msra.mxu0 0.0
  %4811 = vmatprep.subr.mxu0 0.0
  %4812 = vmatpush1.msra.mxu0 0.0
  %4813 = vmatprep.subr.mxu0 0.0
  %4814 = vmatpush1.msra.mxu0 0.0
  %4815 = vmatprep.subr.mxu0 0.0
  %4816 = vmatpush1.msra.mxu0 0.0
  %4817 = vmatprep.subr.mxu0 0.0
  %4818 = vmatpush1.msra.mxu0 0.0
  %4819 = vmatprep.subr.mxu0 0.0
  %4820 = vmatpush1.msra.mxu0 0.0
  %4821 = vmatprep.subr.mxu0 0.0
  %4822 = vmatpush1.msra.mxu0 0.0
  %4823 = vmatprep.subr.mxu0 0.0
  %4824 = vmatpush1.msra.mxu0 0.0
  %4825 = vmatprep.subr.mxu0 0.0
  %4826 = vmatpush1.msra.mxu0 0.0
  %4827 = vmatprep.mubr.f32.mxu0 0.0
  %v4828 = vand.u32 %v4045, 4294901760
  %v4829 = vsub.f32 %v4045, %v4828
  %v4830 = vand.u32 %v4829, 4294901760
  %4831 = vmatmul.mubr.f32.gmra.mrb[0].mxu0 %v4830
  %v4832 = vpop.f32.mrb[0].mxu0
  %v4833 = vadd.f32 %v4643, %v4832
  %v4834 = vpop.f32.mrb[0].mxu0
  %4835 = vmatprep.mubr.f32.mxu0 0.0
  %v4836 = vand.u32 %v4048, 4294901760
  %v4837 = vsub.f32 %v4048, %v4836
  %v4838 = vand.u32 %v4837, 4294901760
  %4839 = vmatmul.mubr.f32.gmra.mrb[0].mxu0 %v4838
  %v4840 = vpop.f32.mrb[0].mxu0
  %v4841 = vadd.f32 %v4650, %v4840
  %v4842 = vpop.f32.mrb[0].mxu0
  %4843 = vmatprep.mubr.f32.mxu0 0.0
  %v4844 = vand.u32 %v4051, 4294901760
  %v4845 = vsub.f32 %v4051, %v4844
  %v4846 = vand.u32 %v4845, 4294901760
  %4847 = vmatmul.mubr.f32.gmra.mrb[0].mxu0 %v4846
  %v4848 = vpop.f32.mrb[0].mxu0
  %v4849 = vadd.f32 %v4657, %v4848
  %v4850 = vpop.f32.mrb[0].mxu0
  %4851 = vmatprep.mubr.f32.mxu0 0.0
  %v4852 = vand.u32 %v4054, 4294901760
  %v4853 = vsub.f32 %v4054, %v4852
  %v4854 = vand.u32 %v4853, 4294901760
  %4855 = vmatmul.mubr.f32.gmra.mrb[0].mxu0 %v4854
  %v4856 = vpop.f32.mrb[0].mxu0
  %v4857 = vadd.f32 %v4664, %v4856
  %v4858 = vpop.f32.mrb[0].mxu0
  %4859 = vmatprep.mubr.f32.mxu0 0.0
  %v4860 = vand.u32 %v4057, 4294901760
  %v4861 = vsub.f32 %v4057, %v4860
  %v4862 = vand.u32 %v4861, 4294901760
  %4863 = vmatmul.mubr.f32.gmra.mrb[0].mxu0 %v4862
  %v4864 = vpop.f32.mrb[0].mxu0
  %v4865 = vadd.f32 %v4671, %v4864
  %v4866 = vpop.f32.mrb[0].mxu0
  %4867 = vmatprep.mubr.f32.mxu0 0.0
  %v4868 = vand.u32 %v4060, 4294901760
  %v4869 = vsub.f32 %v4060, %v4868
  %v4870 = vand.u32 %v4869, 4294901760
  %4871 = vmatmul.mubr.f32.gmra.mrb[0].mxu0 %v4870
  %v4872 = vpop.f32.mrb[0].mxu0
  %v4873 = vadd.f32 %v4678, %v4872
  %v4874 = vpop.f32.mrb[0].mxu0
  %4875 = vmatprep.mubr.f32.mxu0 0.0
  %v4876 = vand.u32 %v4063, 4294901760
  %v4877 = vsub.f32 %v4063, %v4876
  %v4878 = vand.u32 %v4877, 4294901760
  %4879 = vmatmul.mubr.f32.gmra.mrb[0].mxu0 %v4878
  %v4880 = vpop.f32.mrb[0].mxu0
  %v4881 = vadd.f32 %v4685, %v4880
  %v4882 = vpop.f32.mrb[0].mxu0
  %4883 = vmatprep.mubr.f32.mxu0 0.0
  %v4884 = vand.u32 %v4066, 4294901760
  %v4885 = vsub.f32 %v4066, %v4884
  %v4886 = vand.u32 %v4885, 4294901760
  %4887 = vmatmul.mubr.f32.gmra.mrb[0].mxu0 %v4886
  %v4888 = vpop.f32.mrb[0].mxu0
  %v4889 = vadd.f32 %v4692, %v4888
  %v4890 = vpop.f32.mrb[0].mxu0
  %4891 = vmatprep.mubr.f32.mxu0 0.0
  %v4892 = vand.u32 %v4069, 4294901760
  %v4893 = vsub.f32 %v4069, %v4892
  %v4894 = vand.u32 %v4893, 4294901760
  %4895 = vmatmul.mubr.f32.gmra.mrb[0].mxu0 %v4894
  %v4896 = vpop.f32.mrb[0].mxu0
  %v4897 = vadd.f32 %v4699, %v4896
  %v4898 = vpop.f32.mrb[0].mxu0
  %4899 = vmatprep.mubr.f32.mxu0 0.0
  %v4900 = vand.u32 %v4072, 4294901760
  %v4901 = vsub.f32 %v4072, %v4900
  %v4902 = vand.u32 %v4901, 4294901760
  %4903 = vmatmul.mubr.f32.gmra.mrb[0].mxu0 %v4902
  %v4904 = vpop.f32.mrb[0].mxu0
  %v4905 = vadd.f32 %v4706, %v4904
  %v4906 = vpop.f32.mrb[0].mxu0
  %4907 = vmatprep.mubr.f32.mxu0 0.0
  %v4908 = vand.u32 %v4075, 4294901760
  %v4909 = vsub.f32 %v4075, %v4908
  %v4910 = vand.u32 %v4909, 4294901760
  %4911 = vmatmul.mubr.f32.gmra.mrb[0].mxu0 %v4910
  %v4912 = vpop.f32.mrb[0].mxu0
  %v4913 = vadd.f32 %v4713, %v4912
  %v4914 = vpop.f32.mrb[0].mxu0
  %4915 = vmatprep.mubr.f32.mxu0 0.0
  %v4916 = vand.u32 %v4078, 4294901760
  %v4917 = vsub.f32 %v4078, %v4916
  %v4918 = vand.u32 %v4917, 4294901760
  %4919 = vmatmul.mubr.f32.gmra.mrb[0].mxu0 %v4918
  %v4920 = vpop.f32.mrb[0].mxu0
  %v4921 = vadd.f32 %v4720, %v4920
  %v4922 = vpop.f32.mrb[0].mxu0
  %4923 = vmatprep.mubr.f32.mxu0 0.0
  %v4924 = vand.u32 %v4081, 4294901760
  %v4925 = vsub.f32 %v4081, %v4924
  %v4926 = vand.u32 %v4925, 4294901760
  %4927 = vmatmul.mubr.f32.gmra.mrb[0].mxu0 %v4926
  %v4928 = vpop.f32.mrb[0].mxu0
  %v4929 = vadd.f32 %v4727, %v4928
  %v4930 = vpop.f32.mrb[0].mxu0
  %4931 = vmatprep.mubr.f32.mxu0 0.0
  %v4932 = vand.u32 %v4084, 4294901760
  %v4933 = vsub.f32 %v4084, %v4932
  %v4934 = vand.u32 %v4933, 4294901760
  %4935 = vmatmul.mubr.f32.gmra.mrb[0].mxu0 %v4934
  %v4936 = vpop.f32.mrb[0].mxu0
  %v4937 = vadd.f32 %v4734, %v4936
  %v4938 = vpop.f32.mrb[0].mxu0
  %4939 = vmatprep.mubr.f32.mxu0 0.0
  %v4940 = vand.u32 %v4087, 4294901760
  %v4941 = vsub.f32 %v4087, %v4940
  %v4942 = vand.u32 %v4941, 4294901760
  %4943 = vmatmul.mubr.f32.gmra.mrb[0].mxu0 %v4942
  %v4944 = vpop.f32.mrb[0].mxu0
  %v4945 = vadd.f32 %v4741, %v4944
  %v4946 = vpop.f32.mrb[0].mxu0
  %4947 = vmatprep.mubr.f32.mxu0 0.0
  %v4948 = vand.u32 %v4090, 4294901760
  %v4949 = vsub.f32 %v4090, %v4948
  %v4950 = vand.u32 %v4949, 4294901760
  %4951 = vmatmul.mubr.f32.gmra.mrb[0].mxu0 %v4950
  %v4952 = vpop.f32.mrb[0].mxu0
  %v4953 = vadd.f32 %v4748, %v4952
  %v4954 = vpop.f32.mrb[0].mxu0
  %4955 = vdwg.mxu0
  %4956 = vmatprep.subr.mxu0 0.0
  %v4957 = vand.u32 %v4024, 4294901760
  %v4958 = vsub.f32 %v4024, %v4957
  %v4959 = vand.u32 %v4958, 4294901760
  %4960 = vmatpush1.msra.mxu0 %v4959
  %4961 = vmatprep.subr.mxu0 0.0
  %v4962 = vand.u32 %v4025, 4294901760
  %v4963 = vsub.f32 %v4025, %v4962
  %v4964 = vand.u32 %v4963, 4294901760
  %4965 = vmatpush1.msra.mxu0 %v4964
  %4966 = vmatprep.subr.mxu0 0.0
  %v4967 = vand.u32 %v4026, 4294901760
  %v4968 = vsub.f32 %v4026, %v4967
  %v4969 = vand.u32 %v4968, 4294901760
  %4970 = vmatpush1.msra.mxu0 %v4969
  %4971 = vmatprep.subr.mxu0 0.0
  %v4972 = vand.u32 %v4027, 4294901760
  %v4973 = vsub.f32 %v4027, %v4972
  %v4974 = vand.u32 %v4973, 4294901760
  %4975 = vmatpush1.msra.mxu0 %v4974
  %4976 = vmatprep.subr.mxu0 0.0
  %v4977 = vand.u32 %v4028, 4294901760
  %v4978 = vsub.f32 %v4028, %v4977
  %v4979 = vand.u32 %v4978, 4294901760
  %4980 = vmatpush1.msra.mxu0 %v4979
  %4981 = vmatprep.subr.mxu0 0.0
  %v4982 = vand.u32 %v4029, 4294901760
  %v4983 = vsub.f32 %v4029, %v4982
  %v4984 = vand.u32 %v4983, 4294901760
  %4985 = vmatpush1.msra.mxu0 %v4984
  %4986 = vmatprep.subr.mxu0 0.0
  %v4987 = vand.u32 %v4030, 4294901760
  %v4988 = vsub.f32 %v4030, %v4987
  %v4989 = vand.u32 %v4988, 4294901760
  %4990 = vmatpush1.msra.mxu0 %v4989
  %4991 = vmatprep.subr.mxu0 0.0
  %v4992 = vand.u32 %v4031, 4294901760
  %v4993 = vsub.f32 %v4031, %v4992
  %v4994 = vand.u32 %v4993, 4294901760
  %4995 = vmatpush1.msra.mxu0 %v4994
  %4996 = vmatprep.subr.mxu0 0.0
  %v4997 = vand.u32 %v4032, 4294901760
  %v4998 = vsub.f32 %v4032, %v4997
  %v4999 = vand.u32 %v4998, 4294901760
  %5000 = vmatpush1.msra.mxu0 %v4999
  %5001 = vmatprep.subr.mxu0 0.0
  %v5002 = vand.u32 %v4033, 4294901760
  %v5003 = vsub.f32 %v4033, %v5002
  %v5004 = vand.u32 %v5003, 4294901760
  %5005 = vmatpush1.msra.mxu0 %v5004
  %5006 = vmatprep.subr.mxu0 0.0
  %v5007 = vand.u32 %v4034, 4294901760
  %v5008 = vsub.f32 %v4034, %v5007
  %v5009 = vand.u32 %v5008, 4294901760
  %5010 = vmatpush1.msra.mxu0 %v5009
  %5011 = vmatprep.subr.mxu0 0.0
  %v5012 = vand.u32 %v4035, 4294901760
  %v5013 = vsub.f32 %v4035, %v5012
  %v5014 = vand.u32 %v5013, 4294901760
  %5015 = vmatpush1.msra.mxu0 %v5014
  %5016 = vmatprep.subr.mxu0 0.0
  %5017 = vmatpush1.msra.mxu0 0.0
  %5018 = vmatprep.subr.mxu0 0.0
  %5019 = vmatpush1.msra.mxu0 0.0
  %5020 = vmatprep.subr.mxu0 0.0
  %5021 = vmatpush1.msra.mxu0 0.0
  %5022 = vmatprep.subr.mxu0 0.0
  %5023 = vmatpush1.msra.mxu0 0.0
  %5024 = vmatprep.subr.mxu0 0.0
  %5025 = vmatpush1.msra.mxu0 0.0
  %5026 = vmatprep.subr.mxu0 0.0
  %5027 = vmatpush1.msra.mxu0 0.0
  %5028 = vmatprep.subr.mxu0 0.0
  %5029 = vmatpush1.msra.mxu0 0.0
  %5030 = vmatprep.subr.mxu0 0.0
  %5031 = vmatpush1.msra.mxu0 0.0
  %5032 = vmatprep.subr.mxu0 0.0
  %5033 = vmatpush1.msra.mxu0 0.0
  %5034 = vmatprep.subr.mxu0 0.0
  %5035 = vmatpush1.msra.mxu0 0.0
  %5036 = vmatprep.subr.mxu0 0.0
  %5037 = vmatpush1.msra.mxu0 0.0
  %5038 = vmatprep.subr.mxu0 0.0
  %5039 = vmatpush1.msra.mxu0 0.0
  %5040 = vmatprep.subr.mxu0 0.0
  %5041 = vmatpush1.msra.mxu0 0.0
  %5042 = vmatprep.subr.mxu0 0.0
  %5043 = vmatpush1.msra.mxu0 0.0
  %5044 = vmatprep.subr.mxu0 0.0
  %5045 = vmatpush1.msra.mxu0 0.0
  %5046 = vmatprep.subr.mxu0 0.0
  %5047 = vmatpush1.msra.mxu0 0.0
  %5048 = vmatprep.subr.mxu0 0.0
  %5049 = vmatpush1.msra.mxu0 0.0
  %5050 = vmatprep.subr.mxu0 0.0
  %5051 = vmatpush1.msra.mxu0 0.0
  %5052 = vmatprep.subr.mxu0 0.0
  %5053 = vmatpush1.msra.mxu0 0.0
  %5054 = vmatprep.subr.mxu0 0.0
  %5055 = vmatpush1.msra.mxu0 0.0
  %5056 = vmatprep.mubr.f32.mxu0 0.0
  %v5057 = vand.u32 %v4045, 4294901760
  %5058 = vmatmul.mubr.f32.gmra.mrb[0].mxu0 %v5057
  %v5059 = vpop.f32.mrb[0].mxu0
  %v5060 = vadd.f32 %v4833, %v5059
  %v5061 = vpop.f32.mrb[0].mxu0
  %5062 = vmatprep.mubr.f32.mxu0 0.0
  %v5063 = vand.u32 %v4048, 4294901760
  %5064 = vmatmul.mubr.f32.gmra.mrb[0].mxu0 %v5063
  %v5065 = vpop.f32.mrb[0].mxu0
  %v5066 = vadd.f32 %v4841, %v5065
  %v5067 = vpop.f32.mrb[0].mxu0
  %5068 = vmatprep.mubr.f32.mxu0 0.0
  %v5069 = vand.u32 %v4051, 4294901760
  %5070 = vmatmul.mubr.f32.gmra.mrb[0].mxu0 %v5069
  %v5071 = vpop.f32.mrb[0].mxu0
  %v5072 = vadd.f32 %v4849, %v5071
  %v5073 = vpop.f32.mrb[0].mxu0
  %5074 = vmatprep.mubr.f32.mxu0 0.0
  %v5075 = vand.u32 %v4054, 4294901760
  %5076 = vmatmul.mubr.f32.gmra.mrb[0].mxu0 %v5075
  %v5077 = vpop.f32.mrb[0].mxu0
  %v5078 = vadd.f32 %v4857, %v5077
  %v5079 = vpop.f32.mrb[0].mxu0
  %5080 = vmatprep.mubr.f32.mxu0 0.0
  %v5081 = vand.u32 %v4057, 4294901760
  %5082 = vmatmul.mubr.f32.gmra.mrb[0].mxu0 %v5081
  %v5083 = vpop.f32.mrb[0].mxu0
  %v5084 = vadd.f32 %v4865, %v5083
  %v5085 = vpop.f32.mrb[0].mxu0
  %5086 = vmatprep.mubr.f32.mxu0 0.0
  %v5087 = vand.u32 %v4060, 4294901760
  %5088 = vmatmul.mubr.f32.gmra.mrb[0].mxu0 %v5087
  %v5089 = vpop.f32.mrb[0].mxu0
  %v5090 = vadd.f32 %v4873, %v5089
  %v5091 = vpop.f32.mrb[0].mxu0
  %5092 = vmatprep.mubr.f32.mxu0 0.0
  %v5093 = vand.u32 %v4063, 4294901760
  %5094 = vmatmul.mubr.f32.gmra.mrb[0].mxu0 %v5093
  %v5095 = vpop.f32.mrb[0].mxu0
  %v5096 = vadd.f32 %v4881, %v5095
  %v5097 = vpop.f32.mrb[0].mxu0
  %5098 = vmatprep.mubr.f32.mxu0 0.0
  %v5099 = vand.u32 %v4066, 4294901760
  %5100 = vmatmul.mubr.f32.gmra.mrb[0].mxu0 %v5099
  %v5101 = vpop.f32.mrb[0].mxu0
  %v5102 = vadd.f32 %v4889, %v5101
  %v5103 = vpop.f32.mrb[0].mxu0
  %5104 = vmatprep.mubr.f32.mxu0 0.0
  %v5105 = vand.u32 %v4069, 4294901760
  %5106 = vmatmul.mubr.f32.gmra.mrb[0].mxu0 %v5105
  %v5107 = vpop.f32.mrb[0].mxu0
  %v5108 = vadd.f32 %v4897, %v5107
  %v5109 = vpop.f32.mrb[0].mxu0
  %5110 = vmatprep.mubr.f32.mxu0 0.0
  %v5111 = vand.u32 %v4072, 4294901760
  %5112 = vmatmul.mubr.f32.gmra.mrb[0].mxu0 %v5111
  %v5113 = vpop.f32.mrb[0].mxu0
  %v5114 = vadd.f32 %v4905, %v5113
  %v5115 = vpop.f32.mrb[0].mxu0
  %5116 = vmatprep.mubr.f32.mxu0 0.0
  %v5117 = vand.u32 %v4075, 4294901760
  %5118 = vmatmul.mubr.f32.gmra.mrb[0].mxu0 %v5117
  %v5119 = vpop.f32.mrb[0].mxu0
  %v5120 = vadd.f32 %v4913, %v5119
  %v5121 = vpop.f32.mrb[0].mxu0
  %5122 = vmatprep.mubr.f32.mxu0 0.0
  %v5123 = vand.u32 %v4078, 4294901760
  %5124 = vmatmul.mubr.f32.gmra.mrb[0].mxu0 %v5123
  %v5125 = vpop.f32.mrb[0].mxu0
  %v5126 = vadd.f32 %v4921, %v5125
  %v5127 = vpop.f32.mrb[0].mxu0
  %5128 = vmatprep.mubr.f32.mxu0 0.0
  %v5129 = vand.u32 %v4081, 4294901760
  %5130 = vmatmul.mubr.f32.gmra.mrb[0].mxu0 %v5129
  %v5131 = vpop.f32.mrb[0].mxu0
  %v5132 = vadd.f32 %v4929, %v5131
  %v5133 = vpop.f32.mrb[0].mxu0
  %5134 = vmatprep.mubr.f32.mxu0 0.0
  %v5135 = vand.u32 %v4084, 4294901760
  %5136 = vmatmul.mubr.f32.gmra.mrb[0].mxu0 %v5135
  %v5137 = vpop.f32.mrb[0].mxu0
  %v5138 = vadd.f32 %v4937, %v5137
  %v5139 = vpop.f32.mrb[0].mxu0
  %5140 = vmatprep.mubr.f32.mxu0 0.0
  %v5141 = vand.u32 %v4087, 4294901760
  %5142 = vmatmul.mubr.f32.gmra.mrb[0].mxu0 %v5141
  %v5143 = vpop.f32.mrb[0].mxu0
  %v5144 = vadd.f32 %v4945, %v5143
  %v5145 = vpop.f32.mrb[0].mxu0
  %5146 = vmatprep.mubr.f32.mxu0 0.0
  %v5147 = vand.u32 %v4090, 4294901760
  %5148 = vmatmul.mubr.f32.gmra.mrb[0].mxu0 %v5147
  %v5149 = vpop.f32.mrb[0].mxu0
  %v5150 = vadd.f32 %v4953, %v5149
  %v5151 = vpop.f32.mrb[0].mxu0
  %5152 = vdwg.mxu0
  %5153 = vmatprep.subr.mxu0 0.0
  %v5154 = vand.u32 %v4024, 4294901760
  %5155 = vmatpush1.msra.mxu0 %v5154
  %5156 = vmatprep.subr.mxu0 0.0
  %v5157 = vand.u32 %v4025, 4294901760
  %5158 = vmatpush1.msra.mxu0 %v5157
  %5159 = vmatprep.subr.mxu0 0.0
  %v5160 = vand.u32 %v4026, 4294901760
  %5161 = vmatpush1.msra.mxu0 %v5160
  %5162 = vmatprep.subr.mxu0 0.0
  %v5163 = vand.u32 %v4027, 4294901760
  %5164 = vmatpush1.msra.mxu0 %v5163
  %5165 = vmatprep.subr.mxu0 0.0
  %v5166 = vand.u32 %v4028, 4294901760
  %5167 = vmatpush1.msra.mxu0 %v5166
  %5168 = vmatprep.subr.mxu0 0.0
  %v5169 = vand.u32 %v4029, 4294901760
  %5170 = vmatpush1.msra.mxu0 %v5169
  %5171 = vmatprep.subr.mxu0 0.0
  %v5172 = vand.u32 %v4030, 4294901760
  %5173 = vmatpush1.msra.mxu0 %v5172
  %5174 = vmatprep.subr.mxu0 0.0
  %v5175 = vand.u32 %v4031, 4294901760
  %5176 = vmatpush1.msra.mxu0 %v5175
  %5177 = vmatprep.subr.mxu0 0.0
  %v5178 = vand.u32 %v4032, 4294901760
  %5179 = vmatpush1.msra.mxu0 %v5178
  %5180 = vmatprep.subr.mxu0 0.0
  %v5181 = vand.u32 %v4033, 4294901760
  %5182 = vmatpush1.msra.mxu0 %v5181
  %5183 = vmatprep.subr.mxu0 0.0
  %v5184 = vand.u32 %v4034, 4294901760
  %5185 = vmatpush1.msra.mxu0 %v5184
  %5186 = vmatprep.subr.mxu0 0.0
  %v5187 = vand.u32 %v4035, 4294901760
  %5188 = vmatpush1.msra.mxu0 %v5187
  %5189 = vmatprep.subr.mxu0 0.0
  %5190 = vmatpush1.msra.mxu0 0.0
  %5191 = vmatprep.subr.mxu0 0.0
  %5192 = vmatpush1.msra.mxu0 0.0
  %5193 = vmatprep.subr.mxu0 0.0
  %5194 = vmatpush1.msra.mxu0 0.0
  %5195 = vmatprep.subr.mxu0 0.0
  %5196 = vmatpush1.msra.mxu0 0.0
  %5197 = vmatprep.subr.mxu0 0.0
  %5198 = vmatpush1.msra.mxu0 0.0
  %5199 = vmatprep.subr.mxu0 0.0
  %5200 = vmatpush1.msra.mxu0 0.0
  %5201 = vmatprep.subr.mxu0 0.0
  %5202 = vmatpush1.msra.mxu0 0.0
  %5203 = vmatprep.subr.mxu0 0.0
  %5204 = vmatpush1.msra.mxu0 0.0
  %5205 = vmatprep.subr.mxu0 0.0
  %5206 = vmatpush1.msra.mxu0 0.0
  %5207 = vmatprep.subr.mxu0 0.0
  %5208 = vmatpush1.msra.mxu0 0.0
  %5209 = vmatprep.subr.mxu0 0.0
  %5210 = vmatpush1.msra.mxu0 0.0
  %5211 = vmatprep.subr.mxu0 0.0
  %5212 = vmatpush1.msra.mxu0 0.0
  %5213 = vmatprep.subr.mxu0 0.0
  %5214 = vmatpush1.msra.mxu0 0.0
  %5215 = vmatprep.subr.mxu0 0.0
  %5216 = vmatpush1.msra.mxu0 0.0
  %5217 = vmatprep.subr.mxu0 0.0
  %5218 = vmatpush1.msra.mxu0 0.0
  %5219 = vmatprep.subr.mxu0 0.0
  %5220 = vmatpush1.msra.mxu0 0.0
  %5221 = vmatprep.subr.mxu0 0.0
  %5222 = vmatpush1.msra.mxu0 0.0
  %5223 = vmatprep.subr.mxu0 0.0
  %5224 = vmatpush1.msra.mxu0 0.0
  %5225 = vmatprep.subr.mxu0 0.0
  %5226 = vmatpush1.msra.mxu0 0.0
  %5227 = vmatprep.subr.mxu0 0.0
  %5228 = vmatpush1.msra.mxu0 0.0
  %5229 = vmatprep.mubr.f32.mxu0 0.0
  %v5230 = vand.u32 %v4045, 4294901760
  %5231 = vmatmul.mubr.f32.gmra.mrb[0].mxu0 %v5230
  %v5232 = vpop.f32.mrb[0].mxu0
  %v5233 = vadd.f32 %v5060, %v5232
  %v5234 = vpop.f32.mrb[0].mxu0
  %5235 = vmatprep.mubr.f32.mxu0 0.0
  %v5236 = vand.u32 %v4048, 4294901760
  %5237 = vmatmul.mubr.f32.gmra.mrb[0].mxu0 %v5236
  %v5238 = vpop.f32.mrb[0].mxu0
  %v5239 = vadd.f32 %v5066, %v5238
  %v5240 = vpop.f32.mrb[0].mxu0
  %5241 = vmatprep.mubr.f32.mxu0 0.0
  %v5242 = vand.u32 %v4051, 4294901760
  %5243 = vmatmul.mubr.f32.gmra.mrb[0].mxu0 %v5242
  %v5244 = vpop.f32.mrb[0].mxu0
  %v5245 = vadd.f32 %v5072, %v5244
  %v5246 = vpop.f32.mrb[0].mxu0
  %5247 = vmatprep.mubr.f32.mxu0 0.0
  %v5248 = vand.u32 %v4054, 4294901760
  %5249 = vmatmul.mubr.f32.gmra.mrb[0].mxu0 %v5248
  %v5250 = vpop.f32.mrb[0].mxu0
  %v5251 = vadd.f32 %v5078, %v5250
  %v5252 = vpop.f32.mrb[0].mxu0
  %5253 = vmatprep.mubr.f32.mxu0 0.0
  %v5254 = vand.u32 %v4057, 4294901760
  %5255 = vmatmul.mubr.f32.gmra.mrb[0].mxu0 %v5254
  %v5256 = vpop.f32.mrb[0].mxu0
  %v5257 = vadd.f32 %v5084, %v5256
  %v5258 = vpop.f32.mrb[0].mxu0
  %5259 = vmatprep.mubr.f32.mxu0 0.0
  %v5260 = vand.u32 %v4060, 4294901760
  %5261 = vmatmul.mubr.f32.gmra.mrb[0].mxu0 %v5260
  %v5262 = vpop.f32.mrb[0].mxu0
  %v5263 = vadd.f32 %v5090, %v5262
  %v5264 = vpop.f32.mrb[0].mxu0
  %5265 = vmatprep.mubr.f32.mxu0 0.0
  %v5266 = vand.u32 %v4063, 4294901760
  %5267 = vmatmul.mubr.f32.gmra.mrb[0].mxu0 %v5266
  %v5268 = vpop.f32.mrb[0].mxu0
  %v5269 = vadd.f32 %v5096, %v5268
  %v5270 = vpop.f32.mrb[0].mxu0
  %5271 = vmatprep.mubr.f32.mxu0 0.0
  %v5272 = vand.u32 %v4066, 4294901760
  %5273 = vmatmul.mubr.f32.gmra.mrb[0].mxu0 %v5272
  %v5274 = vpop.f32.mrb[0].mxu0
  %v5275 = vadd.f32 %v5102, %v5274
  %v5276 = vpop.f32.mrb[0].mxu0
  %5277 = vmatprep.mubr.f32.mxu0 0.0
  %v5278 = vand.u32 %v4069, 4294901760
  %5279 = vmatmul.mubr.f32.gmra.mrb[0].mxu0 %v5278
  %v5280 = vpop.f32.mrb[0].mxu0
  %v5281 = vadd.f32 %v5108, %v5280
  %v5282 = vpop.f32.mrb[0].mxu0
  %5283 = vmatprep.mubr.f32.mxu0 0.0
  %v5284 = vand.u32 %v4072, 4294901760
  %5285 = vmatmul.mubr.f32.gmra.mrb[0].mxu0 %v5284
  %v5286 = vpop.f32.mrb[0].mxu0
  %v5287 = vadd.f32 %v5114, %v5286
  %v5288 = vpop.f32.mrb[0].mxu0
  %5289 = vmatprep.mubr.f32.mxu0 0.0
  %v5290 = vand.u32 %v4075, 4294901760
  %5291 = vmatmul.mubr.f32.gmra.mrb[0].mxu0 %v5290
  %v5292 = vpop.f32.mrb[0].mxu0
  %v5293 = vadd.f32 %v5120, %v5292
  %v5294 = vpop.f32.mrb[0].mxu0
  %5295 = vmatprep.mubr.f32.mxu0 0.0
  %v5296 = vand.u32 %v4078, 4294901760
  %5297 = vmatmul.mubr.f32.gmra.mrb[0].mxu0 %v5296
  %v5298 = vpop.f32.mrb[0].mxu0
  %v5299 = vadd.f32 %v5126, %v5298
  %v5300 = vpop.f32.mrb[0].mxu0
  %5301 = vmatprep.mubr.f32.mxu0 0.0
  %v5302 = vand.u32 %v4081, 4294901760
  %5303 = vmatmul.mubr.f32.gmra.mrb[0].mxu0 %v5302
  %v5304 = vpop.f32.mrb[0].mxu0
  %v5305 = vadd.f32 %v5132, %v5304
  %v5306 = vpop.f32.mrb[0].mxu0
  %5307 = vmatprep.mubr.f32.mxu0 0.0
  %v5308 = vand.u32 %v4084, 4294901760
  %5309 = vmatmul.mubr.f32.gmra.mrb[0].mxu0 %v5308
  %v5310 = vpop.f32.mrb[0].mxu0
  %v5311 = vadd.f32 %v5138, %v5310
  %v5312 = vpop.f32.mrb[0].mxu0
  %5313 = vmatprep.mubr.f32.mxu0 0.0
  %v5314 = vand.u32 %v4087, 4294901760
  %5315 = vmatmul.mubr.f32.gmra.mrb[0].mxu0 %v5314
  %v5316 = vpop.f32.mrb[0].mxu0
  %v5317 = vadd.f32 %v5144, %v5316
  %v5318 = vpop.f32.mrb[0].mxu0
  %5319 = vmatprep.mubr.f32.mxu0 0.0
  %v5320 = vand.u32 %v4090, 4294901760
  %5321 = vmatmul.mubr.f32.gmra.mrb[0].mxu0 %v5320
  %v5322 = vpop.f32.mrb[0].mxu0
  %v5323 = vadd.f32 %v5150, %v5322
  %v5324 = vpop.f32.mrb[0].mxu0
  %5325 = vdwg.mxu0
  %5326 = vst.msk [vmem:[%s7] sm:$0xff] %vm1670, %v5233
  %5327 = vst.msk [vmem:[%s7 + $0x8] sm:$0xff] %vm1670, %v5239
  %5328 = vst.msk [vmem:[%s7 + $0x10] sm:$0xff] %vm1670, %v5245
  %5329 = vst.msk [vmem:[%s7 + $0x18] sm:$0xff] %vm1670, %v5251
  %5330 = vst.msk [vmem:[%s7 + $0x20] sm:$0xff] %vm1670, %v5257
  %5331 = vst.msk [vmem:[%s7 + $0x28] sm:$0xff] %vm1670, %v5263
  %5332 = vst.msk [vmem:[%s7 + $0x30] sm:$0xff] %vm1670, %v5269
  %5333 = vst.msk [vmem:[%s7 + $0x38] sm:$0xff] %vm1670, %v5275
  %5334 = vst.msk [vmem:[%s7 + $0x40] sm:$0xff] %vm1670, %v5281
  %5335 = vst.msk [vmem:[%s7 + $0x48] sm:$0xff] %vm1670, %v5287
  %5336 = vst.msk [vmem:[%s7 + $0x50] sm:$0xff] %vm1670, %v5293
  %5337 = vst.msk [vmem:[%s7 + $0x58] sm:$0xff] %vm1670, %v5299
  %5338 = vst.msk [vmem:[%s7 + $0x60] sm:$0xff] %vm1670, %v5305
  %5339 = vst.msk [vmem:[%s7 + $0x68] sm:$0xff] %vm1670, %v5311
  %5340 = vst.msk [vmem:[%s7 + $0x70] sm:$0xff] %vm1670, %v5317
  %5341 = vst.msk [vmem:[%s7 + $0x78] sm:$0xff] %vm1670, %v5323
  %v5342 = vlaneseq
  %v5343 = vand.u32 %v5342, 127
  %v5344 = vld [vmem:[%s1] sm:$0xff]
  %v5345 = vld [vmem:[%s1 + $0x8] sm:$0xff]
  %v5346 = vld [vmem:[%s1 + $0x10] sm:$0xff]
  %v5347 = vld [vmem:[%s1 + $0x18] sm:$0xff]
  %v5348 = vld [vmem:[%s1 + $0x20] sm:$0xff]
  %v5349 = vld [vmem:[%s1 + $0x28] sm:$0xff]
  %v5350 = vld [vmem:[%s1 + $0x30] sm:$0xff]
  %v5351 = vld [vmem:[%s1 + $0x38] sm:$0xff]
  %5352 = vset.pattern.permute.xlu0 0
  %5353 = vperm.xlu0 %5352, %v5344
  %v5354 = vpop.permute.xlu0 %5353
  %5355 = vset.pattern.permute.xlu0 0
  %5356 = vperm.xlu0 %5355, %v5345
  %v5357 = vpop.permute.xlu0 %5356
  %5358 = vset.pattern.permute.xlu0 0
  %5359 = vperm.xlu0 %5358, %v5346
  %v5360 = vpop.permute.xlu0 %5359
  %5361 = vset.pattern.permute.xlu0 0
  %5362 = vperm.xlu0 %5361, %v5347
  %v5363 = vpop.permute.xlu0 %5362
  %5364 = vset.pattern.permute.xlu0 0
  %5365 = vperm.xlu0 %5364, %v5348
  %v5366 = vpop.permute.xlu0 %5365
  %5367 = vset.pattern.permute.xlu0 0
  %5368 = vperm.xlu0 %5367, %v5349
  %v5369 = vpop.permute.xlu0 %5368
  %5370 = vset.pattern.permute.xlu0 0
  %5371 = vperm.xlu0 %5370, %v5350
  %v5372 = vpop.permute.xlu0 %5371
  %5373 = vset.pattern.permute.xlu0 0
  %5374 = vperm.xlu0 %5373, %v5351
  %v5375 = vpop.permute.xlu0 %5374
  %vm5376 = vcmp.eq.s32.totalorder %v5354, %v5343
  %vm5377 = vcmp.eq.s32.totalorder %v5357, %v5343
  %vm5378 = vcmp.eq.s32.totalorder %v5360, %v5343
  %vm5379 = vcmp.eq.s32.totalorder %v5363, %v5343
  %vm5380 = vcmp.eq.s32.totalorder %v5366, %v5343
  %vm5381 = vcmp.eq.s32.totalorder %v5369, %v5343
  %vm5382 = vcmp.eq.s32.totalorder %v5372, %v5343
  %vm5383 = vcmp.eq.s32.totalorder %v5375, %v5343
  %v5384 = vsel %vm5376, 1, 0
  %v5385 = vsel %vm5377, 1, 0
  %v5386 = vsel %vm5378, 1, 0
  %v5387 = vsel %vm5379, 1, 0
  %v5388 = vsel %vm5380, 1, 0
  %v5389 = vsel %vm5381, 1, 0
  %v5390 = vsel %vm5382, 1, 0
  %v5391 = vsel %vm5383, 1, 0
  %v5392 = vcvt.s32.f32 %v5384
  %v5393 = vcvt.s32.f32 %v5385
  %v5394 = vcvt.s32.f32 %v5386
  %v5395 = vcvt.s32.f32 %v5387
  %v5396 = vcvt.s32.f32 %v5388
  %v5397 = vcvt.s32.f32 %v5389
  %v5398 = vcvt.s32.f32 %v5390
  %v5399 = vcvt.s32.f32 %v5391
  %v5400 = vld [vmem:[%s2] sm:$0xff]
  %v5401 = vld [vmem:[%s2 + $0x8] sm:$0xff]
  %v5402 = vld [vmem:[%s2 + $0x10] sm:$0xff]
  %v5403 = vld [vmem:[%s2 + $0x18] sm:$0xff]
  %v5404 = vld [vmem:[%s2 + $0x20] sm:$0xff]
  %v5405 = vld [vmem:[%s2 + $0x28] sm:$0xff]
  %v5406 = vld [vmem:[%s2 + $0x30] sm:$0xff]
  %v5407 = vld [vmem:[%s2 + $0x38] sm:$0xff]
  %5408 = vset.pattern.permute.xlu0 0
  %5409 = vperm.xlu0 %5408, %v5400
  %v5410 = vpop.permute.xlu0 %5409
  %5411 = vset.pattern.permute.xlu0 0
  %5412 = vperm.xlu0 %5411, %v5401
  %v5413 = vpop.permute.xlu0 %5412
  %5414 = vset.pattern.permute.xlu0 0
  %5415 = vperm.xlu0 %5414, %v5402
  %v5416 = vpop.permute.xlu0 %5415
  %5417 = vset.pattern.permute.xlu0 0
  %5418 = vperm.xlu0 %5417, %v5403
  %v5419 = vpop.permute.xlu0 %5418
  %5420 = vset.pattern.permute.xlu0 0
  %5421 = vperm.xlu0 %5420, %v5404
  %v5422 = vpop.permute.xlu0 %5421
  %5423 = vset.pattern.permute.xlu0 0
  %5424 = vperm.xlu0 %5423, %v5405
  %v5425 = vpop.permute.xlu0 %5424
  %5426 = vset.pattern.permute.xlu0 0
  %5427 = vperm.xlu0 %5426, %v5406
  %v5428 = vpop.permute.xlu0 %5427
  %5429 = vset.pattern.permute.xlu0 0
  %5430 = vperm.xlu0 %5429, %v5407
  %v5431 = vpop.permute.xlu0 %5430
  %vm5432 = vcmp.eq.s32.totalorder %v5410, %v5343
  %vm5433 = vcmp.eq.s32.totalorder %v5413, %v5343
  %vm5434 = vcmp.eq.s32.totalorder %v5416, %v5343
  %vm5435 = vcmp.eq.s32.totalorder %v5419, %v5343
  %vm5436 = vcmp.eq.s32.totalorder %v5422, %v5343
  %vm5437 = vcmp.eq.s32.totalorder %v5425, %v5343
  %vm5438 = vcmp.eq.s32.totalorder %v5428, %v5343
  %vm5439 = vcmp.eq.s32.totalorder %v5431, %v5343
  %v5440 = vsel %vm5432, 1, 0
  %v5441 = vsel %vm5433, 1, 0
  %v5442 = vsel %vm5434, 1, 0
  %v5443 = vsel %vm5435, 1, 0
  %v5444 = vsel %vm5436, 1, 0
  %v5445 = vsel %vm5437, 1, 0
  %v5446 = vsel %vm5438, 1, 0
  %v5447 = vsel %vm5439, 1, 0
  %v5448 = vcvt.s32.f32 %v5440
  %v5449 = vcvt.s32.f32 %v5441
  %v5450 = vcvt.s32.f32 %v5442
  %v5451 = vcvt.s32.f32 %v5443
  %v5452 = vcvt.s32.f32 %v5444
  %v5453 = vcvt.s32.f32 %v5445
  %v5454 = vcvt.s32.f32 %v5446
  %v5455 = vcvt.s32.f32 %v5447
  %5456 = vmatprep.subr.mxu0 0.0
  %v5457 = vand.u32 %v5233, 4294901760
  %5458 = vmatpush1.msra.mxu0 %v5457
  %5459 = vmatprep.subr.mxu0 0.0
  %v5460 = vand.u32 %v5239, 4294901760
  %5461 = vmatpush1.msra.mxu0 %v5460
  %5462 = vmatprep.subr.mxu0 0.0
  %v5463 = vand.u32 %v5245, 4294901760
  %5464 = vmatpush1.msra.mxu0 %v5463
  %5465 = vmatprep.subr.mxu0 0.0
  %v5466 = vand.u32 %v5251, 4294901760
  %5467 = vmatpush1.msra.mxu0 %v5466
  %5468 = vmatprep.subr.mxu0 0.0
  %v5469 = vand.u32 %v5257, 4294901760
  %5470 = vmatpush1.msra.mxu0 %v5469
  %5471 = vmatprep.subr.mxu0 0.0
  %v5472 = vand.u32 %v5263, 4294901760
  %5473 = vmatpush1.msra.mxu0 %v5472
  %5474 = vmatprep.subr.mxu0 0.0
  %v5475 = vand.u32 %v5269, 4294901760
  %5476 = vmatpush1.msra.mxu0 %v5475
  %5477 = vmatprep.subr.mxu0 0.0
  %v5478 = vand.u32 %v5275, 4294901760
  %5479 = vmatpush1.msra.mxu0 %v5478
  %5480 = vmatprep.subr.mxu0 0.0
  %v5481 = vand.u32 %v5281, 4294901760
  %5482 = vmatpush1.msra.mxu0 %v5481
  %5483 = vmatprep.subr.mxu0 0.0
  %v5484 = vand.u32 %v5287, 4294901760
  %5485 = vmatpush1.msra.mxu0 %v5484
  %5486 = vmatprep.subr.mxu0 0.0
  %v5487 = vand.u32 %v5293, 4294901760
  %5488 = vmatpush1.msra.mxu0 %v5487
  %5489 = vmatprep.subr.mxu0 0.0
  %v5490 = vand.u32 %v5299, 4294901760
  %5491 = vmatpush1.msra.mxu0 %v5490
  %5492 = vmatprep.subr.mxu0 0.0
  %v5493 = vand.u32 %v5305, 4294901760
  %5494 = vmatpush1.msra.mxu0 %v5493
  %5495 = vmatprep.subr.mxu0 0.0
  %v5496 = vand.u32 %v5311, 4294901760
  %5497 = vmatpush1.msra.mxu0 %v5496
  %5498 = vmatprep.subr.mxu0 0.0
  %v5499 = vand.u32 %v5317, 4294901760
  %5500 = vmatpush1.msra.mxu0 %v5499
  %5501 = vmatprep.subr.mxu0 0.0
  %v5502 = vand.u32 %v5323, 4294901760
  %5503 = vmatpush1.msra.mxu0 %v5502
  %5504 = vmatprep.subr.mxu0 0.0
  %5505 = vmatpush1.msra.mxu0 0.0
  %5506 = vmatprep.subr.mxu0 0.0
  %5507 = vmatpush1.msra.mxu0 0.0
  %5508 = vmatprep.subr.mxu0 0.0
  %5509 = vmatpush1.msra.mxu0 0.0
  %5510 = vmatprep.subr.mxu0 0.0
  %5511 = vmatpush1.msra.mxu0 0.0
  %5512 = vmatprep.subr.mxu0 0.0
  %5513 = vmatpush1.msra.mxu0 0.0
  %5514 = vmatprep.subr.mxu0 0.0
  %5515 = vmatpush1.msra.mxu0 0.0
  %5516 = vmatprep.subr.mxu0 0.0
  %5517 = vmatpush1.msra.mxu0 0.0
  %5518 = vmatprep.subr.mxu0 0.0
  %5519 = vmatpush1.msra.mxu0 0.0
  %5520 = vmatprep.subr.mxu0 0.0
  %5521 = vmatpush1.msra.mxu0 0.0
  %5522 = vmatprep.subr.mxu0 0.0
  %5523 = vmatpush1.msra.mxu0 0.0
  %5524 = vmatprep.subr.mxu0 0.0
  %5525 = vmatpush1.msra.mxu0 0.0
  %5526 = vmatprep.subr.mxu0 0.0
  %5527 = vmatpush1.msra.mxu0 0.0
  %5528 = vmatprep.subr.mxu0 0.0
  %5529 = vmatpush1.msra.mxu0 0.0
  %5530 = vmatprep.subr.mxu0 0.0
  %5531 = vmatpush1.msra.mxu0 0.0
  %5532 = vmatprep.subr.mxu0 0.0
  %5533 = vmatpush1.msra.mxu0 0.0
  %5534 = vmatprep.subr.mxu0 0.0
  %5535 = vmatpush1.msra.mxu0 0.0
  %5536 = vmatprep.mubr.f32.mxu0 0.0
  %v5537 = vand.u32 %v5392, 4294901760
  %v5538 = vsub.f32 %v5392, %v5537
  %v5539 = vand.u32 %v5538, 4294901760
  %v5540 = vsub.f32 %v5538, %v5539
  %v5541 = vand.u32 %v5540, 4294901760
  %5542 = vmatmul.mubr.f32.gmra.mrb[0].mxu0 %v5541
  %v5543 = vpop.f32.mrb[0].mxu0
  %v5544 = vadd.f32 0.0, %v5543
  %v5545 = vpop.f32.mrb[0].mxu0
  %5546 = vmatprep.mubr.f32.mxu0 0.0
  %v5547 = vand.u32 %v5393, 4294901760
  %v5548 = vsub.f32 %v5393, %v5547
  %v5549 = vand.u32 %v5548, 4294901760
  %v5550 = vsub.f32 %v5548, %v5549
  %v5551 = vand.u32 %v5550, 4294901760
  %5552 = vmatmul.mubr.f32.gmra.mrb[0].mxu0 %v5551
  %v5553 = vpop.f32.mrb[0].mxu0
  %v5554 = vadd.f32 0.0, %v5553
  %v5555 = vpop.f32.mrb[0].mxu0
  %5556 = vmatprep.mubr.f32.mxu0 0.0
  %v5557 = vand.u32 %v5394, 4294901760
  %v5558 = vsub.f32 %v5394, %v5557
  %v5559 = vand.u32 %v5558, 4294901760
  %v5560 = vsub.f32 %v5558, %v5559
  %v5561 = vand.u32 %v5560, 4294901760
  %5562 = vmatmul.mubr.f32.gmra.mrb[0].mxu0 %v5561
  %v5563 = vpop.f32.mrb[0].mxu0
  %v5564 = vadd.f32 0.0, %v5563
  %v5565 = vpop.f32.mrb[0].mxu0
  %5566 = vmatprep.mubr.f32.mxu0 0.0
  %v5567 = vand.u32 %v5395, 4294901760
  %v5568 = vsub.f32 %v5395, %v5567
  %v5569 = vand.u32 %v5568, 4294901760
  %v5570 = vsub.f32 %v5568, %v5569
  %v5571 = vand.u32 %v5570, 4294901760
  %5572 = vmatmul.mubr.f32.gmra.mrb[0].mxu0 %v5571
  %v5573 = vpop.f32.mrb[0].mxu0
  %v5574 = vadd.f32 0.0, %v5573
  %v5575 = vpop.f32.mrb[0].mxu0
  %5576 = vmatprep.mubr.f32.mxu0 0.0
  %v5577 = vand.u32 %v5396, 4294901760
  %v5578 = vsub.f32 %v5396, %v5577
  %v5579 = vand.u32 %v5578, 4294901760
  %v5580 = vsub.f32 %v5578, %v5579
  %v5581 = vand.u32 %v5580, 4294901760
  %5582 = vmatmul.mubr.f32.gmra.mrb[0].mxu0 %v5581
  %v5583 = vpop.f32.mrb[0].mxu0
  %v5584 = vadd.f32 0.0, %v5583
  %v5585 = vpop.f32.mrb[0].mxu0
  %5586 = vmatprep.mubr.f32.mxu0 0.0
  %v5587 = vand.u32 %v5397, 4294901760
  %v5588 = vsub.f32 %v5397, %v5587
  %v5589 = vand.u32 %v5588, 4294901760
  %v5590 = vsub.f32 %v5588, %v5589
  %v5591 = vand.u32 %v5590, 4294901760
  %5592 = vmatmul.mubr.f32.gmra.mrb[0].mxu0 %v5591
  %v5593 = vpop.f32.mrb[0].mxu0
  %v5594 = vadd.f32 0.0, %v5593
  %v5595 = vpop.f32.mrb[0].mxu0
  %5596 = vmatprep.mubr.f32.mxu0 0.0
  %v5597 = vand.u32 %v5398, 4294901760
  %v5598 = vsub.f32 %v5398, %v5597
  %v5599 = vand.u32 %v5598, 4294901760
  %v5600 = vsub.f32 %v5598, %v5599
  %v5601 = vand.u32 %v5600, 4294901760
  %5602 = vmatmul.mubr.f32.gmra.mrb[0].mxu0 %v5601
  %v5603 = vpop.f32.mrb[0].mxu0
  %v5604 = vadd.f32 0.0, %v5603
  %v5605 = vpop.f32.mrb[0].mxu0
  %5606 = vmatprep.mubr.f32.mxu0 0.0
  %v5607 = vand.u32 %v5399, 4294901760
  %v5608 = vsub.f32 %v5399, %v5607
  %v5609 = vand.u32 %v5608, 4294901760
  %v5610 = vsub.f32 %v5608, %v5609
  %v5611 = vand.u32 %v5610, 4294901760
  %5612 = vmatmul.mubr.f32.gmra.mrb[0].mxu0 %v5611
  %v5613 = vpop.f32.mrb[0].mxu0
  %v5614 = vadd.f32 0.0, %v5613
  %v5615 = vpop.f32.mrb[0].mxu0
  %5616 = vdwg.mxu0
  %5617 = vmatprep.subr.mxu0 0.0
  %v5618 = vand.u32 %v5233, 4294901760
  %v5619 = vsub.f32 %v5233, %v5618
  %v5620 = vand.u32 %v5619, 4294901760
  %v5621 = vsub.f32 %v5619, %v5620
  %v5622 = vand.u32 %v5621, 4294901760
  %5623 = vmatpush1.msra.mxu0 %v5622
  %5624 = vmatprep.subr.mxu0 0.0
  %v5625 = vand.u32 %v5239, 4294901760
  %v5626 = vsub.f32 %v5239, %v5625
  %v5627 = vand.u32 %v5626, 4294901760
  %v5628 = vsub.f32 %v5626, %v5627
  %v5629 = vand.u32 %v5628, 4294901760
  %5630 = vmatpush1.msra.mxu0 %v5629
  %5631 = vmatprep.subr.mxu0 0.0
  %v5632 = vand.u32 %v5245, 4294901760
  %v5633 = vsub.f32 %v5245, %v5632
  %v5634 = vand.u32 %v5633, 4294901760
  %v5635 = vsub.f32 %v5633, %v5634
  %v5636 = vand.u32 %v5635, 4294901760
  %5637 = vmatpush1.msra.mxu0 %v5636
  %5638 = vmatprep.subr.mxu0 0.0
  %v5639 = vand.u32 %v5251, 4294901760
  %v5640 = vsub.f32 %v5251, %v5639
  %v5641 = vand.u32 %v5640, 4294901760
  %v5642 = vsub.f32 %v5640, %v5641
  %v5643 = vand.u32 %v5642, 4294901760
  %5644 = vmatpush1.msra.mxu0 %v5643
  %5645 = vmatprep.subr.mxu0 0.0
  %v5646 = vand.u32 %v5257, 4294901760
  %v5647 = vsub.f32 %v5257, %v5646
  %v5648 = vand.u32 %v5647, 4294901760
  %v5649 = vsub.f32 %v5647, %v5648
  %v5650 = vand.u32 %v5649, 4294901760
  %5651 = vmatpush1.msra.mxu0 %v5650
  %5652 = vmatprep.subr.mxu0 0.0
  %v5653 = vand.u32 %v5263, 4294901760
  %v5654 = vsub.f32 %v5263, %v5653
  %v5655 = vand.u32 %v5654, 4294901760
  %v5656 = vsub.f32 %v5654, %v5655
  %v5657 = vand.u32 %v5656, 4294901760
  %5658 = vmatpush1.msra.mxu0 %v5657
  %5659 = vmatprep.subr.mxu0 0.0
  %v5660 = vand.u32 %v5269, 4294901760
  %v5661 = vsub.f32 %v5269, %v5660
  %v5662 = vand.u32 %v5661, 4294901760
  %v5663 = vsub.f32 %v5661, %v5662
  %v5664 = vand.u32 %v5663, 4294901760
  %5665 = vmatpush1.msra.mxu0 %v5664
  %5666 = vmatprep.subr.mxu0 0.0
  %v5667 = vand.u32 %v5275, 4294901760
  %v5668 = vsub.f32 %v5275, %v5667
  %v5669 = vand.u32 %v5668, 4294901760
  %v5670 = vsub.f32 %v5668, %v5669
  %v5671 = vand.u32 %v5670, 4294901760
  %5672 = vmatpush1.msra.mxu0 %v5671
  %5673 = vmatprep.subr.mxu0 0.0
  %v5674 = vand.u32 %v5281, 4294901760
  %v5675 = vsub.f32 %v5281, %v5674
  %v5676 = vand.u32 %v5675, 4294901760
  %v5677 = vsub.f32 %v5675, %v5676
  %v5678 = vand.u32 %v5677, 4294901760
  %5679 = vmatpush1.msra.mxu0 %v5678
  %5680 = vmatprep.subr.mxu0 0.0
  %v5681 = vand.u32 %v5287, 4294901760
  %v5682 = vsub.f32 %v5287, %v5681
  %v5683 = vand.u32 %v5682, 4294901760
  %v5684 = vsub.f32 %v5682, %v5683
  %v5685 = vand.u32 %v5684, 4294901760
  %5686 = vmatpush1.msra.mxu0 %v5685
  %5687 = vmatprep.subr.mxu0 0.0
  %v5688 = vand.u32 %v5293, 4294901760
  %v5689 = vsub.f32 %v5293, %v5688
  %v5690 = vand.u32 %v5689, 4294901760
  %v5691 = vsub.f32 %v5689, %v5690
  %v5692 = vand.u32 %v5691, 4294901760
  %5693 = vmatpush1.msra.mxu0 %v5692
  %5694 = vmatprep.subr.mxu0 0.0
  %v5695 = vand.u32 %v5299, 4294901760
  %v5696 = vsub.f32 %v5299, %v5695
  %v5697 = vand.u32 %v5696, 4294901760
  %v5698 = vsub.f32 %v5696, %v5697
  %v5699 = vand.u32 %v5698, 4294901760
  %5700 = vmatpush1.msra.mxu0 %v5699
  %5701 = vmatprep.subr.mxu0 0.0
  %v5702 = vand.u32 %v5305, 4294901760
  %v5703 = vsub.f32 %v5305, %v5702
  %v5704 = vand.u32 %v5703, 4294901760
  %v5705 = vsub.f32 %v5703, %v5704
  %v5706 = vand.u32 %v5705, 4294901760
  %5707 = vmatpush1.msra.mxu0 %v5706
  %5708 = vmatprep.subr.mxu0 0.0
  %v5709 = vand.u32 %v5311, 4294901760
  %v5710 = vsub.f32 %v5311, %v5709
  %v5711 = vand.u32 %v5710, 4294901760
  %v5712 = vsub.f32 %v5710, %v5711
  %v5713 = vand.u32 %v5712, 4294901760
  %5714 = vmatpush1.msra.mxu0 %v5713
  %5715 = vmatprep.subr.mxu0 0.0
  %v5716 = vand.u32 %v5317, 4294901760
  %v5717 = vsub.f32 %v5317, %v5716
  %v5718 = vand.u32 %v5717, 4294901760
  %v5719 = vsub.f32 %v5717, %v5718
  %v5720 = vand.u32 %v5719, 4294901760
  %5721 = vmatpush1.msra.mxu0 %v5720
  %5722 = vmatprep.subr.mxu0 0.0
  %v5723 = vand.u32 %v5323, 4294901760
  %v5724 = vsub.f32 %v5323, %v5723
  %v5725 = vand.u32 %v5724, 4294901760
  %v5726 = vsub.f32 %v5724, %v5725
  %v5727 = vand.u32 %v5726, 4294901760
  %5728 = vmatpush1.msra.mxu0 %v5727
  %5729 = vmatprep.subr.mxu0 0.0
  %5730 = vmatpush1.msra.mxu0 0.0
  %5731 = vmatprep.subr.mxu0 0.0
  %5732 = vmatpush1.msra.mxu0 0.0
  %5733 = vmatprep.subr.mxu0 0.0
  %5734 = vmatpush1.msra.mxu0 0.0
  %5735 = vmatprep.subr.mxu0 0.0
  %5736 = vmatpush1.msra.mxu0 0.0
  %5737 = vmatprep.subr.mxu0 0.0
  %5738 = vmatpush1.msra.mxu0 0.0
  %5739 = vmatprep.subr.mxu0 0.0
  %5740 = vmatpush1.msra.mxu0 0.0
  %5741 = vmatprep.subr.mxu0 0.0
  %5742 = vmatpush1.msra.mxu0 0.0
  %5743 = vmatprep.subr.mxu0 0.0
  %5744 = vmatpush1.msra.mxu0 0.0
  %5745 = vmatprep.subr.mxu0 0.0
  %5746 = vmatpush1.msra.mxu0 0.0
  %5747 = vmatprep.subr.mxu0 0.0
  %5748 = vmatpush1.msra.mxu0 0.0
  %5749 = vmatprep.subr.mxu0 0.0
  %5750 = vmatpush1.msra.mxu0 0.0
  %5751 = vmatprep.subr.mxu0 0.0
  %5752 = vmatpush1.msra.mxu0 0.0
  %5753 = vmatprep.subr.mxu0 0.0
  %5754 = vmatpush1.msra.mxu0 0.0
  %5755 = vmatprep.subr.mxu0 0.0
  %5756 = vmatpush1.msra.mxu0 0.0
  %5757 = vmatprep.subr.mxu0 0.0
  %5758 = vmatpush1.msra.mxu0 0.0
  %5759 = vmatprep.subr.mxu0 0.0
  %5760 = vmatpush1.msra.mxu0 0.0
  %5761 = vmatprep.mubr.f32.mxu0 0.0
  %v5762 = vand.u32 %v5392, 4294901760
  %5763 = vmatmul.mubr.f32.gmra.mrb[0].mxu0 %v5762
  %v5764 = vpop.f32.mrb[0].mxu0
  %v5765 = vadd.f32 %v5544, %v5764
  %v5766 = vpop.f32.mrb[0].mxu0
  %5767 = vmatprep.mubr.f32.mxu0 0.0
  %v5768 = vand.u32 %v5393, 4294901760
  %5769 = vmatmul.mubr.f32.gmra.mrb[0].mxu0 %v5768
  %v5770 = vpop.f32.mrb[0].mxu0
  %v5771 = vadd.f32 %v5554, %v5770
  %v5772 = vpop.f32.mrb[0].mxu0
  %5773 = vmatprep.mubr.f32.mxu0 0.0
  %v5774 = vand.u32 %v5394, 4294901760
  %5775 = vmatmul.mubr.f32.gmra.mrb[0].mxu0 %v5774
  %v5776 = vpop.f32.mrb[0].mxu0
  %v5777 = vadd.f32 %v5564, %v5776
  %v5778 = vpop.f32.mrb[0].mxu0
  %5779 = vmatprep.mubr.f32.mxu0 0.0
  %v5780 = vand.u32 %v5395, 4294901760
  %5781 = vmatmul.mubr.f32.gmra.mrb[0].mxu0 %v5780
  %v5782 = vpop.f32.mrb[0].mxu0
  %v5783 = vadd.f32 %v5574, %v5782
  %v5784 = vpop.f32.mrb[0].mxu0
  %5785 = vmatprep.mubr.f32.mxu0 0.0
  %v5786 = vand.u32 %v5396, 4294901760
  %5787 = vmatmul.mubr.f32.gmra.mrb[0].mxu0 %v5786
  %v5788 = vpop.f32.mrb[0].mxu0
  %v5789 = vadd.f32 %v5584, %v5788
  %v5790 = vpop.f32.mrb[0].mxu0
  %5791 = vmatprep.mubr.f32.mxu0 0.0
  %v5792 = vand.u32 %v5397, 4294901760
  %5793 = vmatmul.mubr.f32.gmra.mrb[0].mxu0 %v5792
  %v5794 = vpop.f32.mrb[0].mxu0
  %v5795 = vadd.f32 %v5594, %v5794
  %v5796 = vpop.f32.mrb[0].mxu0
  %5797 = vmatprep.mubr.f32.mxu0 0.0
  %v5798 = vand.u32 %v5398, 4294901760
  %5799 = vmatmul.mubr.f32.gmra.mrb[0].mxu0 %v5798
  %v5800 = vpop.f32.mrb[0].mxu0
  %v5801 = vadd.f32 %v5604, %v5800
  %v5802 = vpop.f32.mrb[0].mxu0
  %5803 = vmatprep.mubr.f32.mxu0 0.0
  %v5804 = vand.u32 %v5399, 4294901760
  %5805 = vmatmul.mubr.f32.gmra.mrb[0].mxu0 %v5804
  %v5806 = vpop.f32.mrb[0].mxu0
  %v5807 = vadd.f32 %v5614, %v5806
  %v5808 = vpop.f32.mrb[0].mxu0
  %5809 = vdwg.mxu0
  %5810 = vmatprep.subr.mxu0 0.0
  %v5811 = vand.u32 %v5233, 4294901760
  %v5812 = vsub.f32 %v5233, %v5811
  %5813 = vmatpush1.msra.mxu0 %v5812
  %5814 = vmatprep.subr.mxu0 0.0
  %v5815 = vand.u32 %v5239, 4294901760
  %v5816 = vsub.f32 %v5239, %v5815
  %5817 = vmatpush1.msra.mxu0 %v5816
  %5818 = vmatprep.subr.mxu0 0.0
  %v5819 = vand.u32 %v5245, 4294901760
  %v5820 = vsub.f32 %v5245, %v5819
  %5821 = vmatpush1.msra.mxu0 %v5820
  %5822 = vmatprep.subr.mxu0 0.0
  %v5823 = vand.u32 %v5251, 4294901760
  %v5824 = vsub.f32 %v5251, %v5823
  %5825 = vmatpush1.msra.mxu0 %v5824
  %5826 = vmatprep.subr.mxu0 0.0
  %v5827 = vand.u32 %v5257, 4294901760
  %v5828 = vsub.f32 %v5257, %v5827
  %5829 = vmatpush1.msra.mxu0 %v5828
  %5830 = vmatprep.subr.mxu0 0.0
  %v5831 = vand.u32 %v5263, 4294901760
  %v5832 = vsub.f32 %v5263, %v5831
  %5833 = vmatpush1.msra.mxu0 %v5832
  %5834 = vmatprep.subr.mxu0 0.0
  %v5835 = vand.u32 %v5269, 4294901760
  %v5836 = vsub.f32 %v5269, %v5835
  %5837 = vmatpush1.msra.mxu0 %v5836
  %5838 = vmatprep.subr.mxu0 0.0
  %v5839 = vand.u32 %v5275, 4294901760
  %v5840 = vsub.f32 %v5275, %v5839
  %5841 = vmatpush1.msra.mxu0 %v5840
  %5842 = vmatprep.subr.mxu0 0.0
  %v5843 = vand.u32 %v5281, 4294901760
  %v5844 = vsub.f32 %v5281, %v5843
  %5845 = vmatpush1.msra.mxu0 %v5844
  %5846 = vmatprep.subr.mxu0 0.0
  %v5847 = vand.u32 %v5287, 4294901760
  %v5848 = vsub.f32 %v5287, %v5847
  %5849 = vmatpush1.msra.mxu0 %v5848
  %5850 = vmatprep.subr.mxu0 0.0
  %v5851 = vand.u32 %v5293, 4294901760
  %v5852 = vsub.f32 %v5293, %v5851
  %5853 = vmatpush1.msra.mxu0 %v5852
  %5854 = vmatprep.subr.mxu0 0.0
  %v5855 = vand.u32 %v5299, 4294901760
  %v5856 = vsub.f32 %v5299, %v5855
  %5857 = vmatpush1.msra.mxu0 %v5856
  %5858 = vmatprep.subr.mxu0 0.0
  %v5859 = vand.u32 %v5305, 4294901760
  %v5860 = vsub.f32 %v5305, %v5859
  %5861 = vmatpush1.msra.mxu0 %v5860
  %5862 = vmatprep.subr.mxu0 0.0
  %v5863 = vand.u32 %v5311, 4294901760
  %v5864 = vsub.f32 %v5311, %v5863
  %5865 = vmatpush1.msra.mxu0 %v5864
  %5866 = vmatprep.subr.mxu0 0.0
  %v5867 = vand.u32 %v5317, 4294901760
  %v5868 = vsub.f32 %v5317, %v5867
  %5869 = vmatpush1.msra.mxu0 %v5868
  %5870 = vmatprep.subr.mxu0 0.0
  %v5871 = vand.u32 %v5323, 4294901760
  %v5872 = vsub.f32 %v5323, %v5871
  %5873 = vmatpush1.msra.mxu0 %v5872
  %5874 = vmatprep.subr.mxu0 0.0
  %5875 = vmatpush1.msra.mxu0 0.0
  %5876 = vmatprep.subr.mxu0 0.0
  %5877 = vmatpush1.msra.mxu0 0.0
  %5878 = vmatprep.subr.mxu0 0.0
  %5879 = vmatpush1.msra.mxu0 0.0
  %5880 = vmatprep.subr.mxu0 0.0
  %5881 = vmatpush1.msra.mxu0 0.0
  %5882 = vmatprep.subr.mxu0 0.0
  %5883 = vmatpush1.msra.mxu0 0.0
  %5884 = vmatprep.subr.mxu0 0.0
  %5885 = vmatpush1.msra.mxu0 0.0
  %5886 = vmatprep.subr.mxu0 0.0
  %5887 = vmatpush1.msra.mxu0 0.0
  %5888 = vmatprep.subr.mxu0 0.0
  %5889 = vmatpush1.msra.mxu0 0.0
  %5890 = vmatprep.subr.mxu0 0.0
  %5891 = vmatpush1.msra.mxu0 0.0
  %5892 = vmatprep.subr.mxu0 0.0
  %5893 = vmatpush1.msra.mxu0 0.0
  %5894 = vmatprep.subr.mxu0 0.0
  %5895 = vmatpush1.msra.mxu0 0.0
  %5896 = vmatprep.subr.mxu0 0.0
  %5897 = vmatpush1.msra.mxu0 0.0
  %5898 = vmatprep.subr.mxu0 0.0
  %5899 = vmatpush1.msra.mxu0 0.0
  %5900 = vmatprep.subr.mxu0 0.0
  %5901 = vmatpush1.msra.mxu0 0.0
  %5902 = vmatprep.subr.mxu0 0.0
  %5903 = vmatpush1.msra.mxu0 0.0
  %5904 = vmatprep.subr.mxu0 0.0
  %5905 = vmatpush1.msra.mxu0 0.0
  %5906 = vmatprep.mubr.f32.mxu0 0.0
  %v5907 = vand.u32 %v5392, 4294901760
  %v5908 = vsub.f32 %v5392, %v5907
  %5909 = vmatmul.mubr.f32.gmra.mrb[0].mxu0 %v5908
  %v5910 = vpop.f32.mrb[0].mxu0
  %v5911 = vadd.f32 %v5765, %v5910
  %v5912 = vpop.f32.mrb[0].mxu0
  %5913 = vmatprep.mubr.f32.mxu0 0.0
  %v5914 = vand.u32 %v5393, 4294901760
  %v5915 = vsub.f32 %v5393, %v5914
  %5916 = vmatmul.mubr.f32.gmra.mrb[0].mxu0 %v5915
  %v5917 = vpop.f32.mrb[0].mxu0
  %v5918 = vadd.f32 %v5771, %v5917
  %v5919 = vpop.f32.mrb[0].mxu0
  %5920 = vmatprep.mubr.f32.mxu0 0.0
  %v5921 = vand.u32 %v5394, 4294901760
  %v5922 = vsub.f32 %v5394, %v5921
  %5923 = vmatmul.mubr.f32.gmra.mrb[0].mxu0 %v5922
  %v5924 = vpop.f32.mrb[0].mxu0
  %v5925 = vadd.f32 %v5777, %v5924
  %v5926 = vpop.f32.mrb[0].mxu0
  %5927 = vmatprep.mubr.f32.mxu0 0.0
  %v5928 = vand.u32 %v5395, 4294901760
  %v5929 = vsub.f32 %v5395, %v5928
  %5930 = vmatmul.mubr.f32.gmra.mrb[0].mxu0 %v5929
  %v5931 = vpop.f32.mrb[0].mxu0
  %v5932 = vadd.f32 %v5783, %v5931
  %v5933 = vpop.f32.mrb[0].mxu0
  %5934 = vmatprep.mubr.f32.mxu0 0.0
  %v5935 = vand.u32 %v5396, 4294901760
  %v5936 = vsub.f32 %v5396, %v5935
  %5937 = vmatmul.mubr.f32.gmra.mrb[0].mxu0 %v5936
  %v5938 = vpop.f32.mrb[0].mxu0
  %v5939 = vadd.f32 %v5789, %v5938
  %v5940 = vpop.f32.mrb[0].mxu0
  %5941 = vmatprep.mubr.f32.mxu0 0.0
  %v5942 = vand.u32 %v5397, 4294901760
  %v5943 = vsub.f32 %v5397, %v5942
  %5944 = vmatmul.mubr.f32.gmra.mrb[0].mxu0 %v5943
  %v5945 = vpop.f32.mrb[0].mxu0
  %v5946 = vadd.f32 %v5795, %v5945
  %v5947 = vpop.f32.mrb[0].mxu0
  %5948 = vmatprep.mubr.f32.mxu0 0.0
  %v5949 = vand.u32 %v5398, 4294901760
  %v5950 = vsub.f32 %v5398, %v5949
  %5951 = vmatmul.mubr.f32.gmra.mrb[0].mxu0 %v5950
  %v5952 = vpop.f32.mrb[0].mxu0
  %v5953 = vadd.f32 %v5801, %v5952
  %v5954 = vpop.f32.mrb[0].mxu0
  %5955 = vmatprep.mubr.f32.mxu0 0.0
  %v5956 = vand.u32 %v5399, 4294901760
  %v5957 = vsub.f32 %v5399, %v5956
  %5958 = vmatmul.mubr.f32.gmra.mrb[0].mxu0 %v5957
  %v5959 = vpop.f32.mrb[0].mxu0
  %v5960 = vadd.f32 %v5807, %v5959
  %v5961 = vpop.f32.mrb[0].mxu0
  %5962 = vdwg.mxu0
  %5963 = vmatprep.subr.mxu0 0.0
  %v5964 = vand.u32 %v5233, 4294901760
  %5965 = vmatpush1.msra.mxu0 %v5964
  %5966 = vmatprep.subr.mxu0 0.0
  %v5967 = vand.u32 %v5239, 4294901760
  %5968 = vmatpush1.msra.mxu0 %v5967
  %5969 = vmatprep.subr.mxu0 0.0
  %v5970 = vand.u32 %v5245, 4294901760
  %5971 = vmatpush1.msra.mxu0 %v5970
  %5972 = vmatprep.subr.mxu0 0.0
  %v5973 = vand.u32 %v5251, 4294901760
  %5974 = vmatpush1.msra.mxu0 %v5973
  %5975 = vmatprep.subr.mxu0 0.0
  %v5976 = vand.u32 %v5257, 4294901760
  %5977 = vmatpush1.msra.mxu0 %v5976
  %5978 = vmatprep.subr.mxu0 0.0
  %v5979 = vand.u32 %v5263, 4294901760
  %5980 = vmatpush1.msra.mxu0 %v5979
  %5981 = vmatprep.subr.mxu0 0.0
  %v5982 = vand.u32 %v5269, 4294901760
  %5983 = vmatpush1.msra.mxu0 %v5982
  %5984 = vmatprep.subr.mxu0 0.0
  %v5985 = vand.u32 %v5275, 4294901760
  %5986 = vmatpush1.msra.mxu0 %v5985
  %5987 = vmatprep.subr.mxu0 0.0
  %v5988 = vand.u32 %v5281, 4294901760
  %5989 = vmatpush1.msra.mxu0 %v5988
  %5990 = vmatprep.subr.mxu0 0.0
  %v5991 = vand.u32 %v5287, 4294901760
  %5992 = vmatpush1.msra.mxu0 %v5991
  %5993 = vmatprep.subr.mxu0 0.0
  %v5994 = vand.u32 %v5293, 4294901760
  %5995 = vmatpush1.msra.mxu0 %v5994
  %5996 = vmatprep.subr.mxu0 0.0
  %v5997 = vand.u32 %v5299, 4294901760
  %5998 = vmatpush1.msra.mxu0 %v5997
  %5999 = vmatprep.subr.mxu0 0.0
  %v6000 = vand.u32 %v5305, 4294901760
  %6001 = vmatpush1.msra.mxu0 %v6000
  %6002 = vmatprep.subr.mxu0 0.0
  %v6003 = vand.u32 %v5311, 4294901760
  %6004 = vmatpush1.msra.mxu0 %v6003
  %6005 = vmatprep.subr.mxu0 0.0
  %v6006 = vand.u32 %v5317, 4294901760
  %6007 = vmatpush1.msra.mxu0 %v6006
  %6008 = vmatprep.subr.mxu0 0.0
  %v6009 = vand.u32 %v5323, 4294901760
  %6010 = vmatpush1.msra.mxu0 %v6009
  %6011 = vmatprep.subr.mxu0 0.0
  %6012 = vmatpush1.msra.mxu0 0.0
  %6013 = vmatprep.subr.mxu0 0.0
  %6014 = vmatpush1.msra.mxu0 0.0
  %6015 = vmatprep.subr.mxu0 0.0
  %6016 = vmatpush1.msra.mxu0 0.0
  %6017 = vmatprep.subr.mxu0 0.0
  %6018 = vmatpush1.msra.mxu0 0.0
  %6019 = vmatprep.subr.mxu0 0.0
  %6020 = vmatpush1.msra.mxu0 0.0
  %6021 = vmatprep.subr.mxu0 0.0
  %6022 = vmatpush1.msra.mxu0 0.0
  %6023 = vmatprep.subr.mxu0 0.0
  %6024 = vmatpush1.msra.mxu0 0.0
  %6025 = vmatprep.subr.mxu0 0.0
  %6026 = vmatpush1.msra.mxu0 0.0
  %6027 = vmatprep.subr.mxu0 0.0
  %6028 = vmatpush1.msra.mxu0 0.0
  %6029 = vmatprep.subr.mxu0 0.0
  %6030 = vmatpush1.msra.mxu0 0.0
  %6031 = vmatprep.subr.mxu0 0.0
  %6032 = vmatpush1.msra.mxu0 0.0
  %6033 = vmatprep.subr.mxu0 0.0
  %6034 = vmatpush1.msra.mxu0 0.0
  %6035 = vmatprep.subr.mxu0 0.0
  %6036 = vmatpush1.msra.mxu0 0.0
  %6037 = vmatprep.subr.mxu0 0.0
  %6038 = vmatpush1.msra.mxu0 0.0
  %6039 = vmatprep.subr.mxu0 0.0
  %6040 = vmatpush1.msra.mxu0 0.0
  %6041 = vmatprep.subr.mxu0 0.0
  %6042 = vmatpush1.msra.mxu0 0.0
  %6043 = vmatprep.mubr.f32.mxu0 0.0
  %v6044 = vand.u32 %v5392, 4294901760
  %v6045 = vsub.f32 %v5392, %v6044
  %v6046 = vand.u32 %v6045, 4294901760
  %6047 = vmatmul.mubr.f32.gmra.mrb[0].mxu0 %v6046
  %v6048 = vpop.f32.mrb[0].mxu0
  %v6049 = vadd.f32 %v5911, %v6048
  %v6050 = vpop.f32.mrb[0].mxu0
  %6051 = vmatprep.mubr.f32.mxu0 0.0
  %v6052 = vand.u32 %v5393, 4294901760
  %v6053 = vsub.f32 %v5393, %v6052
  %v6054 = vand.u32 %v6053, 4294901760
  %6055 = vmatmul.mubr.f32.gmra.mrb[0].mxu0 %v6054
  %v6056 = vpop.f32.mrb[0].mxu0
  %v6057 = vadd.f32 %v5918, %v6056
  %v6058 = vpop.f32.mrb[0].mxu0
  %6059 = vmatprep.mubr.f32.mxu0 0.0
  %v6060 = vand.u32 %v5394, 4294901760
  %v6061 = vsub.f32 %v5394, %v6060
  %v6062 = vand.u32 %v6061, 4294901760
  %6063 = vmatmul.mubr.f32.gmra.mrb[0].mxu0 %v6062
  %v6064 = vpop.f32.mrb[0].mxu0
  %v6065 = vadd.f32 %v5925, %v6064
  %v6066 = vpop.f32.mrb[0].mxu0
  %6067 = vmatprep.mubr.f32.mxu0 0.0
  %v6068 = vand.u32 %v5395, 4294901760
  %v6069 = vsub.f32 %v5395, %v6068
  %v6070 = vand.u32 %v6069, 4294901760
  %6071 = vmatmul.mubr.f32.gmra.mrb[0].mxu0 %v6070
  %v6072 = vpop.f32.mrb[0].mxu0
  %v6073 = vadd.f32 %v5932, %v6072
  %v6074 = vpop.f32.mrb[0].mxu0
  %6075 = vmatprep.mubr.f32.mxu0 0.0
  %v6076 = vand.u32 %v5396, 4294901760
  %v6077 = vsub.f32 %v5396, %v6076
  %v6078 = vand.u32 %v6077, 4294901760
  %6079 = vmatmul.mubr.f32.gmra.mrb[0].mxu0 %v6078
  %v6080 = vpop.f32.mrb[0].mxu0
  %v6081 = vadd.f32 %v5939, %v6080
  %v6082 = vpop.f32.mrb[0].mxu0
  %6083 = vmatprep.mubr.f32.mxu0 0.0
  %v6084 = vand.u32 %v5397, 4294901760
  %v6085 = vsub.f32 %v5397, %v6084
  %v6086 = vand.u32 %v6085, 4294901760
  %6087 = vmatmul.mubr.f32.gmra.mrb[0].mxu0 %v6086
  %v6088 = vpop.f32.mrb[0].mxu0
  %v6089 = vadd.f32 %v5946, %v6088
  %v6090 = vpop.f32.mrb[0].mxu0
  %6091 = vmatprep.mubr.f32.mxu0 0.0
  %v6092 = vand.u32 %v5398, 4294901760
  %v6093 = vsub.f32 %v5398, %v6092
  %v6094 = vand.u32 %v6093, 4294901760
  %6095 = vmatmul.mubr.f32.gmra.mrb[0].mxu0 %v6094
  %v6096 = vpop.f32.mrb[0].mxu0
  %v6097 = vadd.f32 %v5953, %v6096
  %v6098 = vpop.f32.mrb[0].mxu0
  %6099 = vmatprep.mubr.f32.mxu0 0.0
  %v6100 = vand.u32 %v5399, 4294901760
  %v6101 = vsub.f32 %v5399, %v6100
  %v6102 = vand.u32 %v6101, 4294901760
  %6103 = vmatmul.mubr.f32.gmra.mrb[0].mxu0 %v6102
  %v6104 = vpop.f32.mrb[0].mxu0
  %v6105 = vadd.f32 %v5960, %v6104
  %v6106 = vpop.f32.mrb[0].mxu0
  %6107 = vdwg.mxu0
  %6108 = vmatprep.subr.mxu0 0.0
  %v6109 = vand.u32 %v5233, 4294901760
  %v6110 = vsub.f32 %v5233, %v6109
  %v6111 = vand.u32 %v6110, 4294901760
  %6112 = vmatpush1.msra.mxu0 %v6111
  %6113 = vmatprep.subr.mxu0 0.0
  %v6114 = vand.u32 %v5239, 4294901760
  %v6115 = vsub.f32 %v5239, %v6114
  %v6116 = vand.u32 %v6115, 4294901760
  %6117 = vmatpush1.msra.mxu0 %v6116
  %6118 = vmatprep.subr.mxu0 0.0
  %v6119 = vand.u32 %v5245, 4294901760
  %v6120 = vsub.f32 %v5245, %v6119
  %v6121 = vand.u32 %v6120, 4294901760
  %6122 = vmatpush1.msra.mxu0 %v6121
  %6123 = vmatprep.subr.mxu0 0.0
  %v6124 = vand.u32 %v5251, 4294901760
  %v6125 = vsub.f32 %v5251, %v6124
  %v6126 = vand.u32 %v6125, 4294901760
  %6127 = vmatpush1.msra.mxu0 %v6126
  %6128 = vmatprep.subr.mxu0 0.0
  %v6129 = vand.u32 %v5257, 4294901760
  %v6130 = vsub.f32 %v5257, %v6129
  %v6131 = vand.u32 %v6130, 4294901760
  %6132 = vmatpush1.msra.mxu0 %v6131
  %6133 = vmatprep.subr.mxu0 0.0
  %v6134 = vand.u32 %v5263, 4294901760
  %v6135 = vsub.f32 %v5263, %v6134
  %v6136 = vand.u32 %v6135, 4294901760
  %6137 = vmatpush1.msra.mxu0 %v6136
  %6138 = vmatprep.subr.mxu0 0.0
  %v6139 = vand.u32 %v5269, 4294901760
  %v6140 = vsub.f32 %v5269, %v6139
  %v6141 = vand.u32 %v6140, 4294901760
  %6142 = vmatpush1.msra.mxu0 %v6141
  %6143 = vmatprep.subr.mxu0 0.0
  %v6144 = vand.u32 %v5275, 4294901760
  %v6145 = vsub.f32 %v5275, %v6144
  %v6146 = vand.u32 %v6145, 4294901760
  %6147 = vmatpush1.msra.mxu0 %v6146
  %6148 = vmatprep.subr.mxu0 0.0
  %v6149 = vand.u32 %v5281, 4294901760
  %v6150 = vsub.f32 %v5281, %v6149
  %v6151 = vand.u32 %v6150, 4294901760
  %6152 = vmatpush1.msra.mxu0 %v6151
  %6153 = vmatprep.subr.mxu0 0.0
  %v6154 = vand.u32 %v5287, 4294901760
  %v6155 = vsub.f32 %v5287, %v6154
  %v6156 = vand.u32 %v6155, 4294901760
  %6157 = vmatpush1.msra.mxu0 %v6156
  %6158 = vmatprep.subr.mxu0 0.0
  %v6159 = vand.u32 %v5293, 4294901760
  %v6160 = vsub.f32 %v5293, %v6159
  %v6161 = vand.u32 %v6160, 4294901760
  %6162 = vmatpush1.msra.mxu0 %v6161
  %6163 = vmatprep.subr.mxu0 0.0
  %v6164 = vand.u32 %v5299, 4294901760
  %v6165 = vsub.f32 %v5299, %v6164
  %v6166 = vand.u32 %v6165, 4294901760
  %6167 = vmatpush1.msra.mxu0 %v6166
  %6168 = vmatprep.subr.mxu0 0.0
  %v6169 = vand.u32 %v5305, 4294901760
  %v6170 = vsub.f32 %v5305, %v6169
  %v6171 = vand.u32 %v6170, 4294901760
  %6172 = vmatpush1.msra.mxu0 %v6171
  %6173 = vmatprep.subr.mxu0 0.0
  %v6174 = vand.u32 %v5311, 4294901760
  %v6175 = vsub.f32 %v5311, %v6174
  %v6176 = vand.u32 %v6175, 4294901760
  %6177 = vmatpush1.msra.mxu0 %v6176
  %6178 = vmatprep.subr.mxu0 0.0
  %v6179 = vand.u32 %v5317, 4294901760
  %v6180 = vsub.f32 %v5317, %v6179
  %v6181 = vand.u32 %v6180, 4294901760
  %6182 = vmatpush1.msra.mxu0 %v6181
  %6183 = vmatprep.subr.mxu0 0.0
  %v6184 = vand.u32 %v5323, 4294901760
  %v6185 = vsub.f32 %v5323, %v6184
  %v6186 = vand.u32 %v6185, 4294901760
  %6187 = vmatpush1.msra.mxu0 %v6186
  %6188 = vmatprep.subr.mxu0 0.0
  %6189 = vmatpush1.msra.mxu0 0.0
  %6190 = vmatprep.subr.mxu0 0.0
  %6191 = vmatpush1.msra.mxu0 0.0
  %6192 = vmatprep.subr.mxu0 0.0
  %6193 = vmatpush1.msra.mxu0 0.0
  %6194 = vmatprep.subr.mxu0 0.0
  %6195 = vmatpush1.msra.mxu0 0.0
  %6196 = vmatprep.subr.mxu0 0.0
  %6197 = vmatpush1.msra.mxu0 0.0
  %6198 = vmatprep.subr.mxu0 0.0
  %6199 = vmatpush1.msra.mxu0 0.0
  %6200 = vmatprep.subr.mxu0 0.0
  %6201 = vmatpush1.msra.mxu0 0.0
  %6202 = vmatprep.subr.mxu0 0.0
  %6203 = vmatpush1.msra.mxu0 0.0
  %6204 = vmatprep.subr.mxu0 0.0
  %6205 = vmatpush1.msra.mxu0 0.0
  %6206 = vmatprep.subr.mxu0 0.0
  %6207 = vmatpush1.msra.mxu0 0.0
  %6208 = vmatprep.subr.mxu0 0.0
  %6209 = vmatpush1.msra.mxu0 0.0
  %6210 = vmatprep.subr.mxu0 0.0
  %6211 = vmatpush1.msra.mxu0 0.0
  %6212 = vmatprep.subr.mxu0 0.0
  %6213 = vmatpush1.msra.mxu0 0.0
  %6214 = vmatprep.subr.mxu0 0.0
  %6215 = vmatpush1.msra.mxu0 0.0
  %6216 = vmatprep.subr.mxu0 0.0
  %6217 = vmatpush1.msra.mxu0 0.0
  %6218 = vmatprep.subr.mxu0 0.0
  %6219 = vmatpush1.msra.mxu0 0.0
  %6220 = vmatprep.mubr.f32.mxu0 0.0
  %v6221 = vand.u32 %v5392, 4294901760
  %6222 = vmatmul.mubr.f32.gmra.mrb[0].mxu0 %v6221
  %v6223 = vpop.f32.mrb[0].mxu0
  %v6224 = vadd.f32 %v6049, %v6223
  %v6225 = vpop.f32.mrb[0].mxu0
  %6226 = vmatprep.mubr.f32.mxu0 0.0
  %v6227 = vand.u32 %v5393, 4294901760
  %6228 = vmatmul.mubr.f32.gmra.mrb[0].mxu0 %v6227
  %v6229 = vpop.f32.mrb[0].mxu0
  %v6230 = vadd.f32 %v6057, %v6229
  %v6231 = vpop.f32.mrb[0].mxu0
  %6232 = vmatprep.mubr.f32.mxu0 0.0
  %v6233 = vand.u32 %v5394, 4294901760
  %6234 = vmatmul.mubr.f32.gmra.mrb[0].mxu0 %v6233
  %v6235 = vpop.f32.mrb[0].mxu0
  %v6236 = vadd.f32 %v6065, %v6235
  %v6237 = vpop.f32.mrb[0].mxu0
  %6238 = vmatprep.mubr.f32.mxu0 0.0
  %v6239 = vand.u32 %v5395, 4294901760
  %6240 = vmatmul.mubr.f32.gmra.mrb[0].mxu0 %v6239
  %v6241 = vpop.f32.mrb[0].mxu0
  %v6242 = vadd.f32 %v6073, %v6241
  %v6243 = vpop.f32.mrb[0].mxu0
  %6244 = vmatprep.mubr.f32.mxu0 0.0
  %v6245 = vand.u32 %v5396, 4294901760
  %6246 = vmatmul.mubr.f32.gmra.mrb[0].mxu0 %v6245
  %v6247 = vpop.f32.mrb[0].mxu0
  %v6248 = vadd.f32 %v6081, %v6247
  %v6249 = vpop.f32.mrb[0].mxu0
  %6250 = vmatprep.mubr.f32.mxu0 0.0
  %v6251 = vand.u32 %v5397, 4294901760
  %6252 = vmatmul.mubr.f32.gmra.mrb[0].mxu0 %v6251
  %v6253 = vpop.f32.mrb[0].mxu0
  %v6254 = vadd.f32 %v6089, %v6253
  %v6255 = vpop.f32.mrb[0].mxu0
  %6256 = vmatprep.mubr.f32.mxu0 0.0
  %v6257 = vand.u32 %v5398, 4294901760
  %6258 = vmatmul.mubr.f32.gmra.mrb[0].mxu0 %v6257
  %v6259 = vpop.f32.mrb[0].mxu0
  %v6260 = vadd.f32 %v6097, %v6259
  %v6261 = vpop.f32.mrb[0].mxu0
  %6262 = vmatprep.mubr.f32.mxu0 0.0
  %v6263 = vand.u32 %v5399, 4294901760
  %6264 = vmatmul.mubr.f32.gmra.mrb[0].mxu0 %v6263
  %v6265 = vpop.f32.mrb[0].mxu0
  %v6266 = vadd.f32 %v6105, %v6265
  %v6267 = vpop.f32.mrb[0].mxu0
  %6268 = vdwg.mxu0
  %6269 = vmatprep.subr.mxu0 0.0
  %v6270 = vand.u32 %v5233, 4294901760
  %6271 = vmatpush1.msra.mxu0 %v6270
  %6272 = vmatprep.subr.mxu0 0.0
  %v6273 = vand.u32 %v5239, 4294901760
  %6274 = vmatpush1.msra.mxu0 %v6273
  %6275 = vmatprep.subr.mxu0 0.0
  %v6276 = vand.u32 %v5245, 4294901760
  %6277 = vmatpush1.msra.mxu0 %v6276
  %6278 = vmatprep.subr.mxu0 0.0
  %v6279 = vand.u32 %v5251, 4294901760
  %6280 = vmatpush1.msra.mxu0 %v6279
  %6281 = vmatprep.subr.mxu0 0.0
  %v6282 = vand.u32 %v5257, 4294901760
  %6283 = vmatpush1.msra.mxu0 %v6282
  %6284 = vmatprep.subr.mxu0 0.0
  %v6285 = vand.u32 %v5263, 4294901760
  %6286 = vmatpush1.msra.mxu0 %v6285
  %6287 = vmatprep.subr.mxu0 0.0
  %v6288 = vand.u32 %v5269, 4294901760
  %6289 = vmatpush1.msra.mxu0 %v6288
  %6290 = vmatprep.subr.mxu0 0.0
  %v6291 = vand.u32 %v5275, 4294901760
  %6292 = vmatpush1.msra.mxu0 %v6291
  %6293 = vmatprep.subr.mxu0 0.0
  %v6294 = vand.u32 %v5281, 4294901760
  %6295 = vmatpush1.msra.mxu0 %v6294
  %6296 = vmatprep.subr.mxu0 0.0
  %v6297 = vand.u32 %v5287, 4294901760
  %6298 = vmatpush1.msra.mxu0 %v6297
  %6299 = vmatprep.subr.mxu0 0.0
  %v6300 = vand.u32 %v5293, 4294901760
  %6301 = vmatpush1.msra.mxu0 %v6300
  %6302 = vmatprep.subr.mxu0 0.0
  %v6303 = vand.u32 %v5299, 4294901760
  %6304 = vmatpush1.msra.mxu0 %v6303
  %6305 = vmatprep.subr.mxu0 0.0
  %v6306 = vand.u32 %v5305, 4294901760
  %6307 = vmatpush1.msra.mxu0 %v6306
  %6308 = vmatprep.subr.mxu0 0.0
  %v6309 = vand.u32 %v5311, 4294901760
  %6310 = vmatpush1.msra.mxu0 %v6309
  %6311 = vmatprep.subr.mxu0 0.0
  %v6312 = vand.u32 %v5317, 4294901760
  %6313 = vmatpush1.msra.mxu0 %v6312
  %6314 = vmatprep.subr.mxu0 0.0
  %v6315 = vand.u32 %v5323, 4294901760
  %6316 = vmatpush1.msra.mxu0 %v6315
  %6317 = vmatprep.subr.mxu0 0.0
  %6318 = vmatpush1.msra.mxu0 0.0
  %6319 = vmatprep.subr.mxu0 0.0
  %6320 = vmatpush1.msra.mxu0 0.0
  %6321 = vmatprep.subr.mxu0 0.0
  %6322 = vmatpush1.msra.mxu0 0.0
  %6323 = vmatprep.subr.mxu0 0.0
  %6324 = vmatpush1.msra.mxu0 0.0
  %6325 = vmatprep.subr.mxu0 0.0
  %6326 = vmatpush1.msra.mxu0 0.0
  %6327 = vmatprep.subr.mxu0 0.0
  %6328 = vmatpush1.msra.mxu0 0.0
  %6329 = vmatprep.subr.mxu0 0.0
  %6330 = vmatpush1.msra.mxu0 0.0
  %6331 = vmatprep.subr.mxu0 0.0
  %6332 = vmatpush1.msra.mxu0 0.0
  %6333 = vmatprep.subr.mxu0 0.0
  %6334 = vmatpush1.msra.mxu0 0.0
  %6335 = vmatprep.subr.mxu0 0.0
  %6336 = vmatpush1.msra.mxu0 0.0
  %6337 = vmatprep.subr.mxu0 0.0
  %6338 = vmatpush1.msra.mxu0 0.0
  %6339 = vmatprep.subr.mxu0 0.0
  %6340 = vmatpush1.msra.mxu0 0.0
  %6341 = vmatprep.subr.mxu0 0.0
  %6342 = vmatpush1.msra.mxu0 0.0
  %6343 = vmatprep.subr.mxu0 0.0
  %6344 = vmatpush1.msra.mxu0 0.0
  %6345 = vmatprep.subr.mxu0 0.0
  %6346 = vmatpush1.msra.mxu0 0.0
  %6347 = vmatprep.subr.mxu0 0.0
  %6348 = vmatpush1.msra.mxu0 0.0
  %6349 = vmatprep.mubr.f32.mxu0 0.0
  %v6350 = vand.u32 %v5392, 4294901760
  %6351 = vmatmul.mubr.f32.gmra.mrb[0].mxu0 %v6350
  %v6352 = vpop.f32.mrb[0].mxu0
  %v6353 = vadd.f32 %v6224, %v6352
  %v6354 = vpop.f32.mrb[0].mxu0
  %6355 = vmatprep.mubr.f32.mxu0 0.0
  %v6356 = vand.u32 %v5393, 4294901760
  %6357 = vmatmul.mubr.f32.gmra.mrb[0].mxu0 %v6356
  %v6358 = vpop.f32.mrb[0].mxu0
  %v6359 = vadd.f32 %v6230, %v6358
  %v6360 = vpop.f32.mrb[0].mxu0
  %6361 = vmatprep.mubr.f32.mxu0 0.0
  %v6362 = vand.u32 %v5394, 4294901760
  %6363 = vmatmul.mubr.f32.gmra.mrb[0].mxu0 %v6362
  %v6364 = vpop.f32.mrb[0].mxu0
  %v6365 = vadd.f32 %v6236, %v6364
  %v6366 = vpop.f32.mrb[0].mxu0
  %6367 = vmatprep.mubr.f32.mxu0 0.0
  %v6368 = vand.u32 %v5395, 4294901760
  %6369 = vmatmul.mubr.f32.gmra.mrb[0].mxu0 %v6368
  %v6370 = vpop.f32.mrb[0].mxu0
  %v6371 = vadd.f32 %v6242, %v6370
  %v6372 = vpop.f32.mrb[0].mxu0
  %6373 = vmatprep.mubr.f32.mxu0 0.0
  %v6374 = vand.u32 %v5396, 4294901760
  %6375 = vmatmul.mubr.f32.gmra.mrb[0].mxu0 %v6374
  %v6376 = vpop.f32.mrb[0].mxu0
  %v6377 = vadd.f32 %v6248, %v6376
  %v6378 = vpop.f32.mrb[0].mxu0
  %6379 = vmatprep.mubr.f32.mxu0 0.0
  %v6380 = vand.u32 %v5397, 4294901760
  %6381 = vmatmul.mubr.f32.gmra.mrb[0].mxu0 %v6380
  %v6382 = vpop.f32.mrb[0].mxu0
  %v6383 = vadd.f32 %v6254, %v6382
  %v6384 = vpop.f32.mrb[0].mxu0
  %6385 = vmatprep.mubr.f32.mxu0 0.0
  %v6386 = vand.u32 %v5398, 4294901760
  %6387 = vmatmul.mubr.f32.gmra.mrb[0].mxu0 %v6386
  %v6388 = vpop.f32.mrb[0].mxu0
  %v6389 = vadd.f32 %v6260, %v6388
  %v6390 = vpop.f32.mrb[0].mxu0
  %6391 = vmatprep.mubr.f32.mxu0 0.0
  %v6392 = vand.u32 %v5399, 4294901760
  %6393 = vmatmul.mubr.f32.gmra.mrb[0].mxu0 %v6392
  %v6394 = vpop.f32.mrb[0].mxu0
  %v6395 = vadd.f32 %v6266, %v6394
  %v6396 = vpop.f32.mrb[0].mxu0
  %6397 = vdwg.mxu0
  %6398 = vmatprep.subr.mxu0 0.0
  %v6399 = vand.u32 %v5233, 4294901760
  %6400 = vmatpush1.msra.mxu0 %v6399
  %6401 = vmatprep.subr.mxu0 0.0
  %v6402 = vand.u32 %v5239, 4294901760
  %6403 = vmatpush1.msra.mxu0 %v6402
  %6404 = vmatprep.subr.mxu0 0.0
  %v6405 = vand.u32 %v5245, 4294901760
  %6406 = vmatpush1.msra.mxu0 %v6405
  %6407 = vmatprep.subr.mxu0 0.0
  %v6408 = vand.u32 %v5251, 4294901760
  %6409 = vmatpush1.msra.mxu0 %v6408
  %6410 = vmatprep.subr.mxu0 0.0
  %v6411 = vand.u32 %v5257, 4294901760
  %6412 = vmatpush1.msra.mxu0 %v6411
  %6413 = vmatprep.subr.mxu0 0.0
  %v6414 = vand.u32 %v5263, 4294901760
  %6415 = vmatpush1.msra.mxu0 %v6414
  %6416 = vmatprep.subr.mxu0 0.0
  %v6417 = vand.u32 %v5269, 4294901760
  %6418 = vmatpush1.msra.mxu0 %v6417
  %6419 = vmatprep.subr.mxu0 0.0
  %v6420 = vand.u32 %v5275, 4294901760
  %6421 = vmatpush1.msra.mxu0 %v6420
  %6422 = vmatprep.subr.mxu0 0.0
  %v6423 = vand.u32 %v5281, 4294901760
  %6424 = vmatpush1.msra.mxu0 %v6423
  %6425 = vmatprep.subr.mxu0 0.0
  %v6426 = vand.u32 %v5287, 4294901760
  %6427 = vmatpush1.msra.mxu0 %v6426
  %6428 = vmatprep.subr.mxu0 0.0
  %v6429 = vand.u32 %v5293, 4294901760
  %6430 = vmatpush1.msra.mxu0 %v6429
  %6431 = vmatprep.subr.mxu0 0.0
  %v6432 = vand.u32 %v5299, 4294901760
  %6433 = vmatpush1.msra.mxu0 %v6432
  %6434 = vmatprep.subr.mxu0 0.0
  %v6435 = vand.u32 %v5305, 4294901760
  %6436 = vmatpush1.msra.mxu0 %v6435
  %6437 = vmatprep.subr.mxu0 0.0
  %v6438 = vand.u32 %v5311, 4294901760
  %6439 = vmatpush1.msra.mxu0 %v6438
  %6440 = vmatprep.subr.mxu0 0.0
  %v6441 = vand.u32 %v5317, 4294901760
  %6442 = vmatpush1.msra.mxu0 %v6441
  %6443 = vmatprep.subr.mxu0 0.0
  %v6444 = vand.u32 %v5323, 4294901760
  %6445 = vmatpush1.msra.mxu0 %v6444
  %6446 = vmatprep.subr.mxu0 0.0
  %6447 = vmatpush1.msra.mxu0 0.0
  %6448 = vmatprep.subr.mxu0 0.0
  %6449 = vmatpush1.msra.mxu0 0.0
  %6450 = vmatprep.subr.mxu0 0.0
  %6451 = vmatpush1.msra.mxu0 0.0
  %6452 = vmatprep.subr.mxu0 0.0
  %6453 = vmatpush1.msra.mxu0 0.0
  %6454 = vmatprep.subr.mxu0 0.0
  %6455 = vmatpush1.msra.mxu0 0.0
  %6456 = vmatprep.subr.mxu0 0.0
  %6457 = vmatpush1.msra.mxu0 0.0
  %6458 = vmatprep.subr.mxu0 0.0
  %6459 = vmatpush1.msra.mxu0 0.0
  %6460 = vmatprep.subr.mxu0 0.0
  %6461 = vmatpush1.msra.mxu0 0.0
  %6462 = vmatprep.subr.mxu0 0.0
  %6463 = vmatpush1.msra.mxu0 0.0
  %6464 = vmatprep.subr.mxu0 0.0
  %6465 = vmatpush1.msra.mxu0 0.0
  %6466 = vmatprep.subr.mxu0 0.0
  %6467 = vmatpush1.msra.mxu0 0.0
  %6468 = vmatprep.subr.mxu0 0.0
  %6469 = vmatpush1.msra.mxu0 0.0
  %6470 = vmatprep.subr.mxu0 0.0
  %6471 = vmatpush1.msra.mxu0 0.0
  %6472 = vmatprep.subr.mxu0 0.0
  %6473 = vmatpush1.msra.mxu0 0.0
  %6474 = vmatprep.subr.mxu0 0.0
  %6475 = vmatpush1.msra.mxu0 0.0
  %6476 = vmatprep.subr.mxu0 0.0
  %6477 = vmatpush1.msra.mxu0 0.0
  %6478 = vmatprep.mubr.f32.mxu0 0.0
  %v6479 = vand.u32 %v5448, 4294901760
  %v6480 = vsub.f32 %v5448, %v6479
  %v6481 = vand.u32 %v6480, 4294901760
  %v6482 = vsub.f32 %v6480, %v6481
  %v6483 = vand.u32 %v6482, 4294901760
  %6484 = vmatmul.mubr.f32.gmra.mrb[0].mxu0 %v6483
  %v6485 = vpop.f32.mrb[0].mxu0
  %v6486 = vadd.f32 0.0, %v6485
  %v6487 = vpop.f32.mrb[0].mxu0
  %6488 = vmatprep.mubr.f32.mxu0 0.0
  %v6489 = vand.u32 %v5449, 4294901760
  %v6490 = vsub.f32 %v5449, %v6489
  %v6491 = vand.u32 %v6490, 4294901760
  %v6492 = vsub.f32 %v6490, %v6491
  %v6493 = vand.u32 %v6492, 4294901760
  %6494 = vmatmul.mubr.f32.gmra.mrb[0].mxu0 %v6493
  %v6495 = vpop.f32.mrb[0].mxu0
  %v6496 = vadd.f32 0.0, %v6495
  %v6497 = vpop.f32.mrb[0].mxu0
  %6498 = vmatprep.mubr.f32.mxu0 0.0
  %v6499 = vand.u32 %v5450, 4294901760
  %v6500 = vsub.f32 %v5450, %v6499
  %v6501 = vand.u32 %v6500, 4294901760
  %v6502 = vsub.f32 %v6500, %v6501
  %v6503 = vand.u32 %v6502, 4294901760
  %6504 = vmatmul.mubr.f32.gmra.mrb[0].mxu0 %v6503
  %v6505 = vpop.f32.mrb[0].mxu0
  %v6506 = vadd.f32 0.0, %v6505
  %v6507 = vpop.f32.mrb[0].mxu0
  %6508 = vmatprep.mubr.f32.mxu0 0.0
  %v6509 = vand.u32 %v5451, 4294901760
  %v6510 = vsub.f32 %v5451, %v6509
  %v6511 = vand.u32 %v6510, 4294901760
  %v6512 = vsub.f32 %v6510, %v6511
  %v6513 = vand.u32 %v6512, 4294901760
  %6514 = vmatmul.mubr.f32.gmra.mrb[0].mxu0 %v6513
  %v6515 = vpop.f32.mrb[0].mxu0
  %v6516 = vadd.f32 0.0, %v6515
  %v6517 = vpop.f32.mrb[0].mxu0
  %6518 = vmatprep.mubr.f32.mxu0 0.0
  %v6519 = vand.u32 %v5452, 4294901760
  %v6520 = vsub.f32 %v5452, %v6519
  %v6521 = vand.u32 %v6520, 4294901760
  %v6522 = vsub.f32 %v6520, %v6521
  %v6523 = vand.u32 %v6522, 4294901760
  %6524 = vmatmul.mubr.f32.gmra.mrb[0].mxu0 %v6523
  %v6525 = vpop.f32.mrb[0].mxu0
  %v6526 = vadd.f32 0.0, %v6525
  %v6527 = vpop.f32.mrb[0].mxu0
  %6528 = vmatprep.mubr.f32.mxu0 0.0
  %v6529 = vand.u32 %v5453, 4294901760
  %v6530 = vsub.f32 %v5453, %v6529
  %v6531 = vand.u32 %v6530, 4294901760
  %v6532 = vsub.f32 %v6530, %v6531
  %v6533 = vand.u32 %v6532, 4294901760
  %6534 = vmatmul.mubr.f32.gmra.mrb[0].mxu0 %v6533
  %v6535 = vpop.f32.mrb[0].mxu0
  %v6536 = vadd.f32 0.0, %v6535
  %v6537 = vpop.f32.mrb[0].mxu0
  %6538 = vmatprep.mubr.f32.mxu0 0.0
  %v6539 = vand.u32 %v5454, 4294901760
  %v6540 = vsub.f32 %v5454, %v6539
  %v6541 = vand.u32 %v6540, 4294901760
  %v6542 = vsub.f32 %v6540, %v6541
  %v6543 = vand.u32 %v6542, 4294901760
  %6544 = vmatmul.mubr.f32.gmra.mrb[0].mxu0 %v6543
  %v6545 = vpop.f32.mrb[0].mxu0
  %v6546 = vadd.f32 0.0, %v6545
  %v6547 = vpop.f32.mrb[0].mxu0
  %6548 = vmatprep.mubr.f32.mxu0 0.0
  %v6549 = vand.u32 %v5455, 4294901760
  %v6550 = vsub.f32 %v5455, %v6549
  %v6551 = vand.u32 %v6550, 4294901760
  %v6552 = vsub.f32 %v6550, %v6551
  %v6553 = vand.u32 %v6552, 4294901760
  %6554 = vmatmul.mubr.f32.gmra.mrb[0].mxu0 %v6553
  %v6555 = vpop.f32.mrb[0].mxu0
  %v6556 = vadd.f32 0.0, %v6555
  %v6557 = vpop.f32.mrb[0].mxu0
  %6558 = vdwg.mxu0
  %6559 = vmatprep.subr.mxu0 0.0
  %v6560 = vand.u32 %v5233, 4294901760
  %v6561 = vsub.f32 %v5233, %v6560
  %v6562 = vand.u32 %v6561, 4294901760
  %v6563 = vsub.f32 %v6561, %v6562
  %v6564 = vand.u32 %v6563, 4294901760
  %6565 = vmatpush1.msra.mxu0 %v6564
  %6566 = vmatprep.subr.mxu0 0.0
  %v6567 = vand.u32 %v5239, 4294901760
  %v6568 = vsub.f32 %v5239, %v6567
  %v6569 = vand.u32 %v6568, 4294901760
  %v6570 = vsub.f32 %v6568, %v6569
  %v6571 = vand.u32 %v6570, 4294901760
  %6572 = vmatpush1.msra.mxu0 %v6571
  %6573 = vmatprep.subr.mxu0 0.0
  %v6574 = vand.u32 %v5245, 4294901760
  %v6575 = vsub.f32 %v5245, %v6574
  %v6576 = vand.u32 %v6575, 4294901760
  %v6577 = vsub.f32 %v6575, %v6576
  %v6578 = vand.u32 %v6577, 4294901760
  %6579 = vmatpush1.msra.mxu0 %v6578
  %6580 = vmatprep.subr.mxu0 0.0
  %v6581 = vand.u32 %v5251, 4294901760
  %v6582 = vsub.f32 %v5251, %v6581
  %v6583 = vand.u32 %v6582, 4294901760
  %v6584 = vsub.f32 %v6582, %v6583
  %v6585 = vand.u32 %v6584, 4294901760
  %6586 = vmatpush1.msra.mxu0 %v6585
  %6587 = vmatprep.subr.mxu0 0.0
  %v6588 = vand.u32 %v5257, 4294901760
  %v6589 = vsub.f32 %v5257, %v6588
  %v6590 = vand.u32 %v6589, 4294901760
  %v6591 = vsub.f32 %v6589, %v6590
  %v6592 = vand.u32 %v6591, 4294901760
  %6593 = vmatpush1.msra.mxu0 %v6592
  %6594 = vmatprep.subr.mxu0 0.0
  %v6595 = vand.u32 %v5263, 4294901760
  %v6596 = vsub.f32 %v5263, %v6595
  %v6597 = vand.u32 %v6596, 4294901760
  %v6598 = vsub.f32 %v6596, %v6597
  %v6599 = vand.u32 %v6598, 4294901760
  %6600 = vmatpush1.msra.mxu0 %v6599
  %6601 = vmatprep.subr.mxu0 0.0
  %v6602 = vand.u32 %v5269, 4294901760
  %v6603 = vsub.f32 %v5269, %v6602
  %v6604 = vand.u32 %v6603, 4294901760
  %v6605 = vsub.f32 %v6603, %v6604
  %v6606 = vand.u32 %v6605, 4294901760
  %6607 = vmatpush1.msra.mxu0 %v6606
  %6608 = vmatprep.subr.mxu0 0.0
  %v6609 = vand.u32 %v5275, 4294901760
  %v6610 = vsub.f32 %v5275, %v6609
  %v6611 = vand.u32 %v6610, 4294901760
  %v6612 = vsub.f32 %v6610, %v6611
  %v6613 = vand.u32 %v6612, 4294901760
  %6614 = vmatpush1.msra.mxu0 %v6613
  %6615 = vmatprep.subr.mxu0 0.0
  %v6616 = vand.u32 %v5281, 4294901760
  %v6617 = vsub.f32 %v5281, %v6616
  %v6618 = vand.u32 %v6617, 4294901760
  %v6619 = vsub.f32 %v6617, %v6618
  %v6620 = vand.u32 %v6619, 4294901760
  %6621 = vmatpush1.msra.mxu0 %v6620
  %6622 = vmatprep.subr.mxu0 0.0
  %v6623 = vand.u32 %v5287, 4294901760
  %v6624 = vsub.f32 %v5287, %v6623
  %v6625 = vand.u32 %v6624, 4294901760
  %v6626 = vsub.f32 %v6624, %v6625
  %v6627 = vand.u32 %v6626, 4294901760
  %6628 = vmatpush1.msra.mxu0 %v6627
  %6629 = vmatprep.subr.mxu0 0.0
  %v6630 = vand.u32 %v5293, 4294901760
  %v6631 = vsub.f32 %v5293, %v6630
  %v6632 = vand.u32 %v6631, 4294901760
  %v6633 = vsub.f32 %v6631, %v6632
  %v6634 = vand.u32 %v6633, 4294901760
  %6635 = vmatpush1.msra.mxu0 %v6634
  %6636 = vmatprep.subr.mxu0 0.0
  %v6637 = vand.u32 %v5299, 4294901760
  %v6638 = vsub.f32 %v5299, %v6637
  %v6639 = vand.u32 %v6638, 4294901760
  %v6640 = vsub.f32 %v6638, %v6639
  %v6641 = vand.u32 %v6640, 4294901760
  %6642 = vmatpush1.msra.mxu0 %v6641
  %6643 = vmatprep.subr.mxu0 0.0
  %v6644 = vand.u32 %v5305, 4294901760
  %v6645 = vsub.f32 %v5305, %v6644
  %v6646 = vand.u32 %v6645, 4294901760
  %v6647 = vsub.f32 %v6645, %v6646
  %v6648 = vand.u32 %v6647, 4294901760
  %6649 = vmatpush1.msra.mxu0 %v6648
  %6650 = vmatprep.subr.mxu0 0.0
  %v6651 = vand.u32 %v5311, 4294901760
  %v6652 = vsub.f32 %v5311, %v6651
  %v6653 = vand.u32 %v6652, 4294901760
  %v6654 = vsub.f32 %v6652, %v6653
  %v6655 = vand.u32 %v6654, 4294901760
  %6656 = vmatpush1.msra.mxu0 %v6655
  %6657 = vmatprep.subr.mxu0 0.0
  %v6658 = vand.u32 %v5317, 4294901760
  %v6659 = vsub.f32 %v5317, %v6658
  %v6660 = vand.u32 %v6659, 4294901760
  %v6661 = vsub.f32 %v6659, %v6660
  %v6662 = vand.u32 %v6661, 4294901760
  %6663 = vmatpush1.msra.mxu0 %v6662
  %6664 = vmatprep.subr.mxu0 0.0
  %v6665 = vand.u32 %v5323, 4294901760
  %v6666 = vsub.f32 %v5323, %v6665
  %v6667 = vand.u32 %v6666, 4294901760
  %v6668 = vsub.f32 %v6666, %v6667
  %v6669 = vand.u32 %v6668, 4294901760
  %6670 = vmatpush1.msra.mxu0 %v6669
  %6671 = vmatprep.subr.mxu0 0.0
  %6672 = vmatpush1.msra.mxu0 0.0
  %6673 = vmatprep.subr.mxu0 0.0
  %6674 = vmatpush1.msra.mxu0 0.0
  %6675 = vmatprep.subr.mxu0 0.0
  %6676 = vmatpush1.msra.mxu0 0.0
  %6677 = vmatprep.subr.mxu0 0.0
  %6678 = vmatpush1.msra.mxu0 0.0
  %6679 = vmatprep.subr.mxu0 0.0
  %6680 = vmatpush1.msra.mxu0 0.0
  %6681 = vmatprep.subr.mxu0 0.0
  %6682 = vmatpush1.msra.mxu0 0.0
  %6683 = vmatprep.subr.mxu0 0.0
  %6684 = vmatpush1.msra.mxu0 0.0
  %6685 = vmatprep.subr.mxu0 0.0
  %6686 = vmatpush1.msra.mxu0 0.0
  %6687 = vmatprep.subr.mxu0 0.0
  %6688 = vmatpush1.msra.mxu0 0.0
  %6689 = vmatprep.subr.mxu0 0.0
  %6690 = vmatpush1.msra.mxu0 0.0
  %6691 = vmatprep.subr.mxu0 0.0
  %6692 = vmatpush1.msra.mxu0 0.0
  %6693 = vmatprep.subr.mxu0 0.0
  %6694 = vmatpush1.msra.mxu0 0.0
  %6695 = vmatprep.subr.mxu0 0.0
  %6696 = vmatpush1.msra.mxu0 0.0
  %6697 = vmatprep.subr.mxu0 0.0
  %6698 = vmatpush1.msra.mxu0 0.0
  %6699 = vmatprep.subr.mxu0 0.0
  %6700 = vmatpush1.msra.mxu0 0.0
  %6701 = vmatprep.subr.mxu0 0.0
  %6702 = vmatpush1.msra.mxu0 0.0
  %6703 = vmatprep.mubr.f32.mxu0 0.0
  %v6704 = vand.u32 %v5448, 4294901760
  %6705 = vmatmul.mubr.f32.gmra.mrb[0].mxu0 %v6704
  %v6706 = vpop.f32.mrb[0].mxu0
  %v6707 = vadd.f32 %v6486, %v6706
  %v6708 = vpop.f32.mrb[0].mxu0
  %6709 = vmatprep.mubr.f32.mxu0 0.0
  %v6710 = vand.u32 %v5449, 4294901760
  %6711 = vmatmul.mubr.f32.gmra.mrb[0].mxu0 %v6710
  %v6712 = vpop.f32.mrb[0].mxu0
  %v6713 = vadd.f32 %v6496, %v6712
  %v6714 = vpop.f32.mrb[0].mxu0
  %6715 = vmatprep.mubr.f32.mxu0 0.0
  %v6716 = vand.u32 %v5450, 4294901760
  %6717 = vmatmul.mubr.f32.gmra.mrb[0].mxu0 %v6716
  %v6718 = vpop.f32.mrb[0].mxu0
  %v6719 = vadd.f32 %v6506, %v6718
  %v6720 = vpop.f32.mrb[0].mxu0
  %6721 = vmatprep.mubr.f32.mxu0 0.0
  %v6722 = vand.u32 %v5451, 4294901760
  %6723 = vmatmul.mubr.f32.gmra.mrb[0].mxu0 %v6722
  %v6724 = vpop.f32.mrb[0].mxu0
  %v6725 = vadd.f32 %v6516, %v6724
  %v6726 = vpop.f32.mrb[0].mxu0
  %6727 = vmatprep.mubr.f32.mxu0 0.0
  %v6728 = vand.u32 %v5452, 4294901760
  %6729 = vmatmul.mubr.f32.gmra.mrb[0].mxu0 %v6728
  %v6730 = vpop.f32.mrb[0].mxu0
  %v6731 = vadd.f32 %v6526, %v6730
  %v6732 = vpop.f32.mrb[0].mxu0
  %6733 = vmatprep.mubr.f32.mxu0 0.0
  %v6734 = vand.u32 %v5453, 4294901760
  %6735 = vmatmul.mubr.f32.gmra.mrb[0].mxu0 %v6734
  %v6736 = vpop.f32.mrb[0].mxu0
  %v6737 = vadd.f32 %v6536, %v6736
  %v6738 = vpop.f32.mrb[0].mxu0
  %6739 = vmatprep.mubr.f32.mxu0 0.0
  %v6740 = vand.u32 %v5454, 4294901760
  %6741 = vmatmul.mubr.f32.gmra.mrb[0].mxu0 %v6740
  %v6742 = vpop.f32.mrb[0].mxu0
  %v6743 = vadd.f32 %v6546, %v6742
  %v6744 = vpop.f32.mrb[0].mxu0
  %6745 = vmatprep.mubr.f32.mxu0 0.0
  %v6746 = vand.u32 %v5455, 4294901760
  %6747 = vmatmul.mubr.f32.gmra.mrb[0].mxu0 %v6746
  %v6748 = vpop.f32.mrb[0].mxu0
  %v6749 = vadd.f32 %v6556, %v6748
  %v6750 = vpop.f32.mrb[0].mxu0
  %6751 = vdwg.mxu0
  %6752 = vmatprep.subr.mxu0 0.0
  %v6753 = vand.u32 %v5233, 4294901760
  %v6754 = vsub.f32 %v5233, %v6753
  %6755 = vmatpush1.msra.mxu0 %v6754
  %6756 = vmatprep.subr.mxu0 0.0
  %v6757 = vand.u32 %v5239, 4294901760
  %v6758 = vsub.f32 %v5239, %v6757
  %6759 = vmatpush1.msra.mxu0 %v6758
  %6760 = vmatprep.subr.mxu0 0.0
  %v6761 = vand.u32 %v5245, 4294901760
  %v6762 = vsub.f32 %v5245, %v6761
  %6763 = vmatpush1.msra.mxu0 %v6762
  %6764 = vmatprep.subr.mxu0 0.0
  %v6765 = vand.u32 %v5251, 4294901760
  %v6766 = vsub.f32 %v5251, %v6765
  %6767 = vmatpush1.msra.mxu0 %v6766
  %6768 = vmatprep.subr.mxu0 0.0
  %v6769 = vand.u32 %v5257, 4294901760
  %v6770 = vsub.f32 %v5257, %v6769
  %6771 = vmatpush1.msra.mxu0 %v6770
  %6772 = vmatprep.subr.mxu0 0.0
  %v6773 = vand.u32 %v5263, 4294901760
  %v6774 = vsub.f32 %v5263, %v6773
  %6775 = vmatpush1.msra.mxu0 %v6774
  %6776 = vmatprep.subr.mxu0 0.0
  %v6777 = vand.u32 %v5269, 4294901760
  %v6778 = vsub.f32 %v5269, %v6777
  %6779 = vmatpush1.msra.mxu0 %v6778
  %6780 = vmatprep.subr.mxu0 0.0
  %v6781 = vand.u32 %v5275, 4294901760
  %v6782 = vsub.f32 %v5275, %v6781
  %6783 = vmatpush1.msra.mxu0 %v6782
  %6784 = vmatprep.subr.mxu0 0.0
  %v6785 = vand.u32 %v5281, 4294901760
  %v6786 = vsub.f32 %v5281, %v6785
  %6787 = vmatpush1.msra.mxu0 %v6786
  %6788 = vmatprep.subr.mxu0 0.0
  %v6789 = vand.u32 %v5287, 4294901760
  %v6790 = vsub.f32 %v5287, %v6789
  %6791 = vmatpush1.msra.mxu0 %v6790
  %6792 = vmatprep.subr.mxu0 0.0
  %v6793 = vand.u32 %v5293, 4294901760
  %v6794 = vsub.f32 %v5293, %v6793
  %6795 = vmatpush1.msra.mxu0 %v6794
  %6796 = vmatprep.subr.mxu0 0.0
  %v6797 = vand.u32 %v5299, 4294901760
  %v6798 = vsub.f32 %v5299, %v6797
  %6799 = vmatpush1.msra.mxu0 %v6798
  %6800 = vmatprep.subr.mxu0 0.0
  %v6801 = vand.u32 %v5305, 4294901760
  %v6802 = vsub.f32 %v5305, %v6801
  %6803 = vmatpush1.msra.mxu0 %v6802
  %6804 = vmatprep.subr.mxu0 0.0
  %v6805 = vand.u32 %v5311, 4294901760
  %v6806 = vsub.f32 %v5311, %v6805
  %6807 = vmatpush1.msra.mxu0 %v6806
  %6808 = vmatprep.subr.mxu0 0.0
  %v6809 = vand.u32 %v5317, 4294901760
  %v6810 = vsub.f32 %v5317, %v6809
  %6811 = vmatpush1.msra.mxu0 %v6810
  %6812 = vmatprep.subr.mxu0 0.0
  %v6813 = vand.u32 %v5323, 4294901760
  %v6814 = vsub.f32 %v5323, %v6813
  %6815 = vmatpush1.msra.mxu0 %v6814
  %6816 = vmatprep.subr.mxu0 0.0
  %6817 = vmatpush1.msra.mxu0 0.0
  %6818 = vmatprep.subr.mxu0 0.0
  %6819 = vmatpush1.msra.mxu0 0.0
  %6820 = vmatprep.subr.mxu0 0.0
  %6821 = vmatpush1.msra.mxu0 0.0
  %6822 = vmatprep.subr.mxu0 0.0
  %6823 = vmatpush1.msra.mxu0 0.0
  %6824 = vmatprep.subr.mxu0 0.0
  %6825 = vmatpush1.msra.mxu0 0.0
  %6826 = vmatprep.subr.mxu0 0.0
  %6827 = vmatpush1.msra.mxu0 0.0
  %6828 = vmatprep.subr.mxu0 0.0
  %6829 = vmatpush1.msra.mxu0 0.0
  %6830 = vmatprep.subr.mxu0 0.0
  %6831 = vmatpush1.msra.mxu0 0.0
  %6832 = vmatprep.subr.mxu0 0.0
  %6833 = vmatpush1.msra.mxu0 0.0
  %6834 = vmatprep.subr.mxu0 0.0
  %6835 = vmatpush1.msra.mxu0 0.0
  %6836 = vmatprep.subr.mxu0 0.0
  %6837 = vmatpush1.msra.mxu0 0.0
  %6838 = vmatprep.subr.mxu0 0.0
  %6839 = vmatpush1.msra.mxu0 0.0
  %6840 = vmatprep.subr.mxu0 0.0
  %6841 = vmatpush1.msra.mxu0 0.0
  %6842 = vmatprep.subr.mxu0 0.0
  %6843 = vmatpush1.msra.mxu0 0.0
  %6844 = vmatprep.subr.mxu0 0.0
  %6845 = vmatpush1.msra.mxu0 0.0
  %6846 = vmatprep.subr.mxu0 0.0
  %6847 = vmatpush1.msra.mxu0 0.0
  %6848 = vmatprep.mubr.f32.mxu0 0.0
  %v6849 = vand.u32 %v5448, 4294901760
  %v6850 = vsub.f32 %v5448, %v6849
  %6851 = vmatmul.mubr.f32.gmra.mrb[0].mxu0 %v6850
  %v6852 = vpop.f32.mrb[0].mxu0
  %v6853 = vadd.f32 %v6707, %v6852
  %v6854 = vpop.f32.mrb[0].mxu0
  %6855 = vmatprep.mubr.f32.mxu0 0.0
  %v6856 = vand.u32 %v5449, 4294901760
  %v6857 = vsub.f32 %v5449, %v6856
  %6858 = vmatmul.mubr.f32.gmra.mrb[0].mxu0 %v6857
  %v6859 = vpop.f32.mrb[0].mxu0
  %v6860 = vadd.f32 %v6713, %v6859
  %v6861 = vpop.f32.mrb[0].mxu0
  %6862 = vmatprep.mubr.f32.mxu0 0.0
  %v6863 = vand.u32 %v5450, 4294901760
  %v6864 = vsub.f32 %v5450, %v6863
  %6865 = vmatmul.mubr.f32.gmra.mrb[0].mxu0 %v6864
  %v6866 = vpop.f32.mrb[0].mxu0
  %v6867 = vadd.f32 %v6719, %v6866
  %v6868 = vpop.f32.mrb[0].mxu0
  %6869 = vmatprep.mubr.f32.mxu0 0.0
  %v6870 = vand.u32 %v5451, 4294901760
  %v6871 = vsub.f32 %v5451, %v6870
  %6872 = vmatmul.mubr.f32.gmra.mrb[0].mxu0 %v6871
  %v6873 = vpop.f32.mrb[0].mxu0
  %v6874 = vadd.f32 %v6725, %v6873
  %v6875 = vpop.f32.mrb[0].mxu0
  %6876 = vmatprep.mubr.f32.mxu0 0.0
  %v6877 = vand.u32 %v5452, 4294901760
  %v6878 = vsub.f32 %v5452, %v6877
  %6879 = vmatmul.mubr.f32.gmra.mrb[0].mxu0 %v6878
  %v6880 = vpop.f32.mrb[0].mxu0
  %v6881 = vadd.f32 %v6731, %v6880
  %v6882 = vpop.f32.mrb[0].mxu0
  %6883 = vmatprep.mubr.f32.mxu0 0.0
  %v6884 = vand.u32 %v5453, 4294901760
  %v6885 = vsub.f32 %v5453, %v6884
  %6886 = vmatmul.mubr.f32.gmra.mrb[0].mxu0 %v6885
  %v6887 = vpop.f32.mrb[0].mxu0
  %v6888 = vadd.f32 %v6737, %v6887
  %v6889 = vpop.f32.mrb[0].mxu0
  %6890 = vmatprep.mubr.f32.mxu0 0.0
  %v6891 = vand.u32 %v5454, 4294901760
  %v6892 = vsub.f32 %v5454, %v6891
  %6893 = vmatmul.mubr.f32.gmra.mrb[0].mxu0 %v6892
  %v6894 = vpop.f32.mrb[0].mxu0
  %v6895 = vadd.f32 %v6743, %v6894
  %v6896 = vpop.f32.mrb[0].mxu0
  %6897 = vmatprep.mubr.f32.mxu0 0.0
  %v6898 = vand.u32 %v5455, 4294901760
  %v6899 = vsub.f32 %v5455, %v6898
  %6900 = vmatmul.mubr.f32.gmra.mrb[0].mxu0 %v6899
  %v6901 = vpop.f32.mrb[0].mxu0
  %v6902 = vadd.f32 %v6749, %v6901
  %v6903 = vpop.f32.mrb[0].mxu0
  %6904 = vdwg.mxu0
  %6905 = vmatprep.subr.mxu0 0.0
  %v6906 = vand.u32 %v5233, 4294901760
  %6907 = vmatpush1.msra.mxu0 %v6906
  %6908 = vmatprep.subr.mxu0 0.0
  %v6909 = vand.u32 %v5239, 4294901760
  %6910 = vmatpush1.msra.mxu0 %v6909
  %6911 = vmatprep.subr.mxu0 0.0
  %v6912 = vand.u32 %v5245, 4294901760
  %6913 = vmatpush1.msra.mxu0 %v6912
  %6914 = vmatprep.subr.mxu0 0.0
  %v6915 = vand.u32 %v5251, 4294901760
  %6916 = vmatpush1.msra.mxu0 %v6915
  %6917 = vmatprep.subr.mxu0 0.0
  %v6918 = vand.u32 %v5257, 4294901760
  %6919 = vmatpush1.msra.mxu0 %v6918
  %6920 = vmatprep.subr.mxu0 0.0
  %v6921 = vand.u32 %v5263, 4294901760
  %6922 = vmatpush1.msra.mxu0 %v6921
  %6923 = vmatprep.subr.mxu0 0.0
  %v6924 = vand.u32 %v5269, 4294901760
  %6925 = vmatpush1.msra.mxu0 %v6924
  %6926 = vmatprep.subr.mxu0 0.0
  %v6927 = vand.u32 %v5275, 4294901760
  %6928 = vmatpush1.msra.mxu0 %v6927
  %6929 = vmatprep.subr.mxu0 0.0
  %v6930 = vand.u32 %v5281, 4294901760
  %6931 = vmatpush1.msra.mxu0 %v6930
  %6932 = vmatprep.subr.mxu0 0.0
  %v6933 = vand.u32 %v5287, 4294901760
  %6934 = vmatpush1.msra.mxu0 %v6933
  %6935 = vmatprep.subr.mxu0 0.0
  %v6936 = vand.u32 %v5293, 4294901760
  %6937 = vmatpush1.msra.mxu0 %v6936
  %6938 = vmatprep.subr.mxu0 0.0
  %v6939 = vand.u32 %v5299, 4294901760
  %6940 = vmatpush1.msra.mxu0 %v6939
  %6941 = vmatprep.subr.mxu0 0.0
  %v6942 = vand.u32 %v5305, 4294901760
  %6943 = vmatpush1.msra.mxu0 %v6942
  %6944 = vmatprep.subr.mxu0 0.0
  %v6945 = vand.u32 %v5311, 4294901760
  %6946 = vmatpush1.msra.mxu0 %v6945
  %6947 = vmatprep.subr.mxu0 0.0
  %v6948 = vand.u32 %v5317, 4294901760
  %6949 = vmatpush1.msra.mxu0 %v6948
  %6950 = vmatprep.subr.mxu0 0.0
  %v6951 = vand.u32 %v5323, 4294901760
  %6952 = vmatpush1.msra.mxu0 %v6951
  %6953 = vmatprep.subr.mxu0 0.0
  %6954 = vmatpush1.msra.mxu0 0.0
  %6955 = vmatprep.subr.mxu0 0.0
  %6956 = vmatpush1.msra.mxu0 0.0
  %6957 = vmatprep.subr.mxu0 0.0
  %6958 = vmatpush1.msra.mxu0 0.0
  %6959 = vmatprep.subr.mxu0 0.0
  %6960 = vmatpush1.msra.mxu0 0.0
  %6961 = vmatprep.subr.mxu0 0.0
  %6962 = vmatpush1.msra.mxu0 0.0
  %6963 = vmatprep.subr.mxu0 0.0
  %6964 = vmatpush1.msra.mxu0 0.0
  %6965 = vmatprep.subr.mxu0 0.0
  %6966 = vmatpush1.msra.mxu0 0.0
  %6967 = vmatprep.subr.mxu0 0.0
  %6968 = vmatpush1.msra.mxu0 0.0
  %6969 = vmatprep.subr.mxu0 0.0
  %6970 = vmatpush1.msra.mxu0 0.0
  %6971 = vmatprep.subr.mxu0 0.0
  %6972 = vmatpush1.msra.mxu0 0.0
  %6973 = vmatprep.subr.mxu0 0.0
  %6974 = vmatpush1.msra.mxu0 0.0
  %6975 = vmatprep.subr.mxu0 0.0
  %6976 = vmatpush1.msra.mxu0 0.0
  %6977 = vmatprep.subr.mxu0 0.0
  %6978 = vmatpush1.msra.mxu0 0.0
  %6979 = vmatprep.subr.mxu0 0.0
  %6980 = vmatpush1.msra.mxu0 0.0
  %6981 = vmatprep.subr.mxu0 0.0
  %6982 = vmatpush1.msra.mxu0 0.0
  %6983 = vmatprep.subr.mxu0 0.0
  %6984 = vmatpush1.msra.mxu0 0.0
  %6985 = vmatprep.mubr.f32.mxu0 0.0
  %v6986 = vand.u32 %v5448, 4294901760
  %v6987 = vsub.f32 %v5448, %v6986
  %v6988 = vand.u32 %v6987, 4294901760
  %6989 = vmatmul.mubr.f32.gmra.mrb[0].mxu0 %v6988
  %v6990 = vpop.f32.mrb[0].mxu0
  %v6991 = vadd.f32 %v6853, %v6990
  %v6992 = vpop.f32.mrb[0].mxu0
  %6993 = vmatprep.mubr.f32.mxu0 0.0
  %v6994 = vand.u32 %v5449, 4294901760
  %v6995 = vsub.f32 %v5449, %v6994
  %v6996 = vand.u32 %v6995, 4294901760
  %6997 = vmatmul.mubr.f32.gmra.mrb[0].mxu0 %v6996
  %v6998 = vpop.f32.mrb[0].mxu0
  %v6999 = vadd.f32 %v6860, %v6998
  %v7000 = vpop.f32.mrb[0].mxu0
  %7001 = vmatprep.mubr.f32.mxu0 0.0
  %v7002 = vand.u32 %v5450, 4294901760
  %v7003 = vsub.f32 %v5450, %v7002
  %v7004 = vand.u32 %v7003, 4294901760
  %7005 = vmatmul.mubr.f32.gmra.mrb[0].mxu0 %v7004
  %v7006 = vpop.f32.mrb[0].mxu0
  %v7007 = vadd.f32 %v6867, %v7006
  %v7008 = vpop.f32.mrb[0].mxu0
  %7009 = vmatprep.mubr.f32.mxu0 0.0
  %v7010 = vand.u32 %v5451, 4294901760
  %v7011 = vsub.f32 %v5451, %v7010
  %v7012 = vand.u32 %v7011, 4294901760
  %7013 = vmatmul.mubr.f32.gmra.mrb[0].mxu0 %v7012
  %v7014 = vpop.f32.mrb[0].mxu0
  %v7015 = vadd.f32 %v6874, %v7014
  %v7016 = vpop.f32.mrb[0].mxu0
  %7017 = vmatprep.mubr.f32.mxu0 0.0
  %v7018 = vand.u32 %v5452, 4294901760
  %v7019 = vsub.f32 %v5452, %v7018
  %v7020 = vand.u32 %v7019, 4294901760
  %7021 = vmatmul.mubr.f32.gmra.mrb[0].mxu0 %v7020
  %v7022 = vpop.f32.mrb[0].mxu0
  %v7023 = vadd.f32 %v6881, %v7022
  %v7024 = vpop.f32.mrb[0].mxu0
  %7025 = vmatprep.mubr.f32.mxu0 0.0
  %v7026 = vand.u32 %v5453, 4294901760
  %v7027 = vsub.f32 %v5453, %v7026
  %v7028 = vand.u32 %v7027, 4294901760
  %7029 = vmatmul.mubr.f32.gmra.mrb[0].mxu0 %v7028
  %v7030 = vpop.f32.mrb[0].mxu0
  %v7031 = vadd.f32 %v6888, %v7030
  %v7032 = vpop.f32.mrb[0].mxu0
  %7033 = vmatprep.mubr.f32.mxu0 0.0
  %v7034 = vand.u32 %v5454, 4294901760
  %v7035 = vsub.f32 %v5454, %v7034
  %v7036 = vand.u32 %v7035, 4294901760
  %7037 = vmatmul.mubr.f32.gmra.mrb[0].mxu0 %v7036
  %v7038 = vpop.f32.mrb[0].mxu0
  %v7039 = vadd.f32 %v6895, %v7038
  %v7040 = vpop.f32.mrb[0].mxu0
  %7041 = vmatprep.mubr.f32.mxu0 0.0
  %v7042 = vand.u32 %v5455, 4294901760
  %v7043 = vsub.f32 %v5455, %v7042
  %v7044 = vand.u32 %v7043, 4294901760
  %7045 = vmatmul.mubr.f32.gmra.mrb[0].mxu0 %v7044
  %v7046 = vpop.f32.mrb[0].mxu0
  %v7047 = vadd.f32 %v6902, %v7046
  %v7048 = vpop.f32.mrb[0].mxu0
  %7049 = vdwg.mxu0
  %7050 = vmatprep.subr.mxu0 0.0
  %v7051 = vand.u32 %v5233, 4294901760
  %v7052 = vsub.f32 %v5233, %v7051
  %v7053 = vand.u32 %v7052, 4294901760
  %7054 = vmatpush1.msra.mxu0 %v7053
  %7055 = vmatprep.subr.mxu0 0.0
  %v7056 = vand.u32 %v5239, 4294901760
  %v7057 = vsub.f32 %v5239, %v7056
  %v7058 = vand.u32 %v7057, 4294901760
  %7059 = vmatpush1.msra.mxu0 %v7058
  %7060 = vmatprep.subr.mxu0 0.0
  %v7061 = vand.u32 %v5245, 4294901760
  %v7062 = vsub.f32 %v5245, %v7061
  %v7063 = vand.u32 %v7062, 4294901760
  %7064 = vmatpush1.msra.mxu0 %v7063
  %7065 = vmatprep.subr.mxu0 0.0
  %v7066 = vand.u32 %v5251, 4294901760
  %v7067 = vsub.f32 %v5251, %v7066
  %v7068 = vand.u32 %v7067, 4294901760
  %7069 = vmatpush1.msra.mxu0 %v7068
  %7070 = vmatprep.subr.mxu0 0.0
  %v7071 = vand.u32 %v5257, 4294901760
  %v7072 = vsub.f32 %v5257, %v7071
  %v7073 = vand.u32 %v7072, 4294901760
  %7074 = vmatpush1.msra.mxu0 %v7073
  %7075 = vmatprep.subr.mxu0 0.0
  %v7076 = vand.u32 %v5263, 4294901760
  %v7077 = vsub.f32 %v5263, %v7076
  %v7078 = vand.u32 %v7077, 4294901760
  %7079 = vmatpush1.msra.mxu0 %v7078
  %7080 = vmatprep.subr.mxu0 0.0
  %v7081 = vand.u32 %v5269, 4294901760
  %v7082 = vsub.f32 %v5269, %v7081
  %v7083 = vand.u32 %v7082, 4294901760
  %7084 = vmatpush1.msra.mxu0 %v7083
  %7085 = vmatprep.subr.mxu0 0.0
  %v7086 = vand.u32 %v5275, 4294901760
  %v7087 = vsub.f32 %v5275, %v7086
  %v7088 = vand.u32 %v7087, 4294901760
  %7089 = vmatpush1.msra.mxu0 %v7088
  %7090 = vmatprep.subr.mxu0 0.0
  %v7091 = vand.u32 %v5281, 4294901760
  %v7092 = vsub.f32 %v5281, %v7091
  %v7093 = vand.u32 %v7092, 4294901760
  %7094 = vmatpush1.msra.mxu0 %v7093
  %7095 = vmatprep.subr.mxu0 0.0
  %v7096 = vand.u32 %v5287, 4294901760
  %v7097 = vsub.f32 %v5287, %v7096
  %v7098 = vand.u32 %v7097, 4294901760
  %7099 = vmatpush1.msra.mxu0 %v7098
  %7100 = vmatprep.subr.mxu0 0.0
  %v7101 = vand.u32 %v5293, 4294901760
  %v7102 = vsub.f32 %v5293, %v7101
  %v7103 = vand.u32 %v7102, 4294901760
  %7104 = vmatpush1.msra.mxu0 %v7103
  %7105 = vmatprep.subr.mxu0 0.0
  %v7106 = vand.u32 %v5299, 4294901760
  %v7107 = vsub.f32 %v5299, %v7106
  %v7108 = vand.u32 %v7107, 4294901760
  %7109 = vmatpush1.msra.mxu0 %v7108
  %7110 = vmatprep.subr.mxu0 0.0
  %v7111 = vand.u32 %v5305, 4294901760
  %v7112 = vsub.f32 %v5305, %v7111
  %v7113 = vand.u32 %v7112, 4294901760
  %7114 = vmatpush1.msra.mxu0 %v7113
  %7115 = vmatprep.subr.mxu0 0.0
  %v7116 = vand.u32 %v5311, 4294901760
  %v7117 = vsub.f32 %v5311, %v7116
  %v7118 = vand.u32 %v7117, 4294901760
  %7119 = vmatpush1.msra.mxu0 %v7118
  %7120 = vmatprep.subr.mxu0 0.0
  %v7121 = vand.u32 %v5317, 4294901760
  %v7122 = vsub.f32 %v5317, %v7121
  %v7123 = vand.u32 %v7122, 4294901760
  %7124 = vmatpush1.msra.mxu0 %v7123
  %7125 = vmatprep.subr.mxu0 0.0
  %v7126 = vand.u32 %v5323, 4294901760
  %v7127 = vsub.f32 %v5323, %v7126
  %v7128 = vand.u32 %v7127, 4294901760
  %7129 = vmatpush1.msra.mxu0 %v7128
  %7130 = vmatprep.subr.mxu0 0.0
  %7131 = vmatpush1.msra.mxu0 0.0
  %7132 = vmatprep.subr.mxu0 0.0
  %7133 = vmatpush1.msra.mxu0 0.0
  %7134 = vmatprep.subr.mxu0 0.0
  %7135 = vmatpush1.msra.mxu0 0.0
  %7136 = vmatprep.subr.mxu0 0.0
  %7137 = vmatpush1.msra.mxu0 0.0
  %7138 = vmatprep.subr.mxu0 0.0
  %7139 = vmatpush1.msra.mxu0 0.0
  %7140 = vmatprep.subr.mxu0 0.0
  %7141 = vmatpush1.msra.mxu0 0.0
  %7142 = vmatprep.subr.mxu0 0.0
  %7143 = vmatpush1.msra.mxu0 0.0
  %7144 = vmatprep.subr.mxu0 0.0
  %7145 = vmatpush1.msra.mxu0 0.0
  %7146 = vmatprep.subr.mxu0 0.0
  %7147 = vmatpush1.msra.mxu0 0.0
  %7148 = vmatprep.subr.mxu0 0.0
  %7149 = vmatpush1.msra.mxu0 0.0
  %7150 = vmatprep.subr.mxu0 0.0
  %7151 = vmatpush1.msra.mxu0 0.0
  %7152 = vmatprep.subr.mxu0 0.0
  %7153 = vmatpush1.msra.mxu0 0.0
  %7154 = vmatprep.subr.mxu0 0.0
  %7155 = vmatpush1.msra.mxu0 0.0
  %7156 = vmatprep.subr.mxu0 0.0
  %7157 = vmatpush1.msra.mxu0 0.0
  %7158 = vmatprep.subr.mxu0 0.0
  %7159 = vmatpush1.msra.mxu0 0.0
  %7160 = vmatprep.subr.mxu0 0.0
  %7161 = vmatpush1.msra.mxu0 0.0
  %7162 = vmatprep.mubr.f32.mxu0 0.0
  %v7163 = vand.u32 %v5448, 4294901760
  %7164 = vmatmul.mubr.f32.gmra.mrb[0].mxu0 %v7163
  %v7165 = vpop.f32.mrb[0].mxu0
  %v7166 = vadd.f32 %v6991, %v7165
  %v7167 = vpop.f32.mrb[0].mxu0
  %7168 = vmatprep.mubr.f32.mxu0 0.0
  %v7169 = vand.u32 %v5449, 4294901760
  %7170 = vmatmul.mubr.f32.gmra.mrb[0].mxu0 %v7169
  %v7171 = vpop.f32.mrb[0].mxu0
  %v7172 = vadd.f32 %v6999, %v7171
  %v7173 = vpop.f32.mrb[0].mxu0
  %7174 = vmatprep.mubr.f32.mxu0 0.0
  %v7175 = vand.u32 %v5450, 4294901760
  %7176 = vmatmul.mubr.f32.gmra.mrb[0].mxu0 %v7175
  %v7177 = vpop.f32.mrb[0].mxu0
  %v7178 = vadd.f32 %v7007, %v7177
  %v7179 = vpop.f32.mrb[0].mxu0
  %7180 = vmatprep.mubr.f32.mxu0 0.0
  %v7181 = vand.u32 %v5451, 4294901760
  %7182 = vmatmul.mubr.f32.gmra.mrb[0].mxu0 %v7181
  %v7183 = vpop.f32.mrb[0].mxu0
  %v7184 = vadd.f32 %v7015, %v7183
  %v7185 = vpop.f32.mrb[0].mxu0
  %7186 = vmatprep.mubr.f32.mxu0 0.0
  %v7187 = vand.u32 %v5452, 4294901760
  %7188 = vmatmul.mubr.f32.gmra.mrb[0].mxu0 %v7187
  %v7189 = vpop.f32.mrb[0].mxu0
  %v7190 = vadd.f32 %v7023, %v7189
  %v7191 = vpop.f32.mrb[0].mxu0
  %7192 = vmatprep.mubr.f32.mxu0 0.0
  %v7193 = vand.u32 %v5453, 4294901760
  %7194 = vmatmul.mubr.f32.gmra.mrb[0].mxu0 %v7193
  %v7195 = vpop.f32.mrb[0].mxu0
  %v7196 = vadd.f32 %v7031, %v7195
  %v7197 = vpop.f32.mrb[0].mxu0
  %7198 = vmatprep.mubr.f32.mxu0 0.0
  %v7199 = vand.u32 %v5454, 4294901760
  %7200 = vmatmul.mubr.f32.gmra.mrb[0].mxu0 %v7199
  %v7201 = vpop.f32.mrb[0].mxu0
  %v7202 = vadd.f32 %v7039, %v7201
  %v7203 = vpop.f32.mrb[0].mxu0
  %7204 = vmatprep.mubr.f32.mxu0 0.0
  %v7205 = vand.u32 %v5455, 4294901760
  %7206 = vmatmul.mubr.f32.gmra.mrb[0].mxu0 %v7205
  %v7207 = vpop.f32.mrb[0].mxu0
  %v7208 = vadd.f32 %v7047, %v7207
  %v7209 = vpop.f32.mrb[0].mxu0
  %7210 = vdwg.mxu0
  %7211 = vmatprep.subr.mxu0 0.0
  %v7212 = vand.u32 %v5233, 4294901760
  %7213 = vmatpush1.msra.mxu0 %v7212
  %7214 = vmatprep.subr.mxu0 0.0
  %v7215 = vand.u32 %v5239, 4294901760
  %7216 = vmatpush1.msra.mxu0 %v7215
  %7217 = vmatprep.subr.mxu0 0.0
  %v7218 = vand.u32 %v5245, 4294901760
  %7219 = vmatpush1.msra.mxu0 %v7218
  %7220 = vmatprep.subr.mxu0 0.0
  %v7221 = vand.u32 %v5251, 4294901760
  %7222 = vmatpush1.msra.mxu0 %v7221
  %7223 = vmatprep.subr.mxu0 0.0
  %v7224 = vand.u32 %v5257, 4294901760
  %7225 = vmatpush1.msra.mxu0 %v7224
  %7226 = vmatprep.subr.mxu0 0.0
  %v7227 = vand.u32 %v5263, 4294901760
  %7228 = vmatpush1.msra.mxu0 %v7227
  %7229 = vmatprep.subr.mxu0 0.0
  %v7230 = vand.u32 %v5269, 4294901760
  %7231 = vmatpush1.msra.mxu0 %v7230
  %7232 = vmatprep.subr.mxu0 0.0
  %v7233 = vand.u32 %v5275, 4294901760
  %7234 = vmatpush1.msra.mxu0 %v7233
  %7235 = vmatprep.subr.mxu0 0.0
  %v7236 = vand.u32 %v5281, 4294901760
  %7237 = vmatpush1.msra.mxu0 %v7236
  %7238 = vmatprep.subr.mxu0 0.0
  %v7239 = vand.u32 %v5287, 4294901760
  %7240 = vmatpush1.msra.mxu0 %v7239
  %7241 = vmatprep.subr.mxu0 0.0
  %v7242 = vand.u32 %v5293, 4294901760
  %7243 = vmatpush1.msra.mxu0 %v7242
  %7244 = vmatprep.subr.mxu0 0.0
  %v7245 = vand.u32 %v5299, 4294901760
  %7246 = vmatpush1.msra.mxu0 %v7245
  %7247 = vmatprep.subr.mxu0 0.0
  %v7248 = vand.u32 %v5305, 4294901760
  %7249 = vmatpush1.msra.mxu0 %v7248
  %7250 = vmatprep.subr.mxu0 0.0
  %v7251 = vand.u32 %v5311, 4294901760
  %7252 = vmatpush1.msra.mxu0 %v7251
  %7253 = vmatprep.subr.mxu0 0.0
  %v7254 = vand.u32 %v5317, 4294901760
  %7255 = vmatpush1.msra.mxu0 %v7254
  %7256 = vmatprep.subr.mxu0 0.0
  %v7257 = vand.u32 %v5323, 4294901760
  %7258 = vmatpush1.msra.mxu0 %v7257
  %7259 = vmatprep.subr.mxu0 0.0
  %7260 = vmatpush1.msra.mxu0 0.0
  %7261 = vmatprep.subr.mxu0 0.0
  %7262 = vmatpush1.msra.mxu0 0.0
  %7263 = vmatprep.subr.mxu0 0.0
  %7264 = vmatpush1.msra.mxu0 0.0
  %7265 = vmatprep.subr.mxu0 0.0
  %7266 = vmatpush1.msra.mxu0 0.0
  %7267 = vmatprep.subr.mxu0 0.0
  %7268 = vmatpush1.msra.mxu0 0.0
  %7269 = vmatprep.subr.mxu0 0.0
  %7270 = vmatpush1.msra.mxu0 0.0
  %7271 = vmatprep.subr.mxu0 0.0
  %7272 = vmatpush1.msra.mxu0 0.0
  %7273 = vmatprep.subr.mxu0 0.0
  %7274 = vmatpush1.msra.mxu0 0.0
  %7275 = vmatprep.subr.mxu0 0.0
  %7276 = vmatpush1.msra.mxu0 0.0
  %7277 = vmatprep.subr.mxu0 0.0
  %7278 = vmatpush1.msra.mxu0 0.0
  %7279 = vmatprep.subr.mxu0 0.0
  %7280 = vmatpush1.msra.mxu0 0.0
  %7281 = vmatprep.subr.mxu0 0.0
  %7282 = vmatpush1.msra.mxu0 0.0
  %7283 = vmatprep.subr.mxu0 0.0
  %7284 = vmatpush1.msra.mxu0 0.0
  %7285 = vmatprep.subr.mxu0 0.0
  %7286 = vmatpush1.msra.mxu0 0.0
  %7287 = vmatprep.subr.mxu0 0.0
  %7288 = vmatpush1.msra.mxu0 0.0
  %7289 = vmatprep.subr.mxu0 0.0
  %7290 = vmatpush1.msra.mxu0 0.0
  %7291 = vmatprep.mubr.f32.mxu0 0.0
  %v7292 = vand.u32 %v5448, 4294901760
  %7293 = vmatmul.mubr.f32.gmra.mrb[0].mxu0 %v7292
  %v7294 = vpop.f32.mrb[0].mxu0
  %v7295 = vadd.f32 %v7166, %v7294
  %v7296 = vpop.f32.mrb[0].mxu0
  %7297 = vmatprep.mubr.f32.mxu0 0.0
  %v7298 = vand.u32 %v5449, 4294901760
  %7299 = vmatmul.mubr.f32.gmra.mrb[0].mxu0 %v7298
  %v7300 = vpop.f32.mrb[0].mxu0
  %v7301 = vadd.f32 %v7172, %v7300
  %v7302 = vpop.f32.mrb[0].mxu0
  %7303 = vmatprep.mubr.f32.mxu0 0.0
  %v7304 = vand.u32 %v5450, 4294901760
  %7305 = vmatmul.mubr.f32.gmra.mrb[0].mxu0 %v7304
  %v7306 = vpop.f32.mrb[0].mxu0
  %v7307 = vadd.f32 %v7178, %v7306
  %v7308 = vpop.f32.mrb[0].mxu0
  %7309 = vmatprep.mubr.f32.mxu0 0.0
  %v7310 = vand.u32 %v5451, 4294901760
  %7311 = vmatmul.mubr.f32.gmra.mrb[0].mxu0 %v7310
  %v7312 = vpop.f32.mrb[0].mxu0
  %v7313 = vadd.f32 %v7184, %v7312
  %v7314 = vpop.f32.mrb[0].mxu0
  %7315 = vmatprep.mubr.f32.mxu0 0.0
  %v7316 = vand.u32 %v5452, 4294901760
  %7317 = vmatmul.mubr.f32.gmra.mrb[0].mxu0 %v7316
  %v7318 = vpop.f32.mrb[0].mxu0
  %v7319 = vadd.f32 %v7190, %v7318
  %v7320 = vpop.f32.mrb[0].mxu0
  %7321 = vmatprep.mubr.f32.mxu0 0.0
  %v7322 = vand.u32 %v5453, 4294901760
  %7323 = vmatmul.mubr.f32.gmra.mrb[0].mxu0 %v7322
  %v7324 = vpop.f32.mrb[0].mxu0
  %v7325 = vadd.f32 %v7196, %v7324
  %v7326 = vpop.f32.mrb[0].mxu0
  %7327 = vmatprep.mubr.f32.mxu0 0.0
  %v7328 = vand.u32 %v5454, 4294901760
  %7329 = vmatmul.mubr.f32.gmra.mrb[0].mxu0 %v7328
  %v7330 = vpop.f32.mrb[0].mxu0
  %v7331 = vadd.f32 %v7202, %v7330
  %v7332 = vpop.f32.mrb[0].mxu0
  %7333 = vmatprep.mubr.f32.mxu0 0.0
  %v7334 = vand.u32 %v5455, 4294901760
  %7335 = vmatmul.mubr.f32.gmra.mrb[0].mxu0 %v7334
  %v7336 = vpop.f32.mrb[0].mxu0
  %v7337 = vadd.f32 %v7208, %v7336
  %v7338 = vpop.f32.mrb[0].mxu0
  %7339 = vdwg.mxu0
  %v7340 = vmul.f32 %v6353, %v7295
  %v7341 = vmul.f32 %v6359, %v7301
  %v7342 = vmul.f32 %v6365, %v7307
  %v7343 = vmul.f32 %v6371, %v7313
  %v7344 = vmul.f32 %v6377, %v7319
  %v7345 = vmul.f32 %v6383, %v7325
  %v7346 = vmul.f32 %v6389, %v7331
  %v7347 = vmul.f32 %v6395, %v7337
  %v7348 = vsel %vm1670, %v7340, 0.0
  %7349 = vadd.xlane.f32.xlu0 %v7348
  %v7350 = vpop.xlane.xlu0 %7349
  %v7351 = vsel %vm1670, %v7341, 0.0
  %7352 = vadd.xlane.f32.xlu0 %v7351
  %v7353 = vpop.xlane.xlu0 %7352
  %v7354 = vsel %vm1670, %v7342, 0.0
  %7355 = vadd.xlane.f32.xlu0 %v7354
  %v7356 = vpop.xlane.xlu0 %7355
  %v7357 = vsel %vm1670, %v7343, 0.0
  %7358 = vadd.xlane.f32.xlu0 %v7357
  %v7359 = vpop.xlane.xlu0 %7358
  %v7360 = vsel %vm1670, %v7344, 0.0
  %7361 = vadd.xlane.f32.xlu0 %v7360
  %v7362 = vpop.xlane.xlu0 %7361
  %v7363 = vsel %vm1670, %v7345, 0.0
  %7364 = vadd.xlane.f32.xlu0 %v7363
  %v7365 = vpop.xlane.xlu0 %7364
  %v7366 = vsel %vm1670, %v7346, 0.0
  %7367 = vadd.xlane.f32.xlu0 %v7366
  %v7368 = vpop.xlane.xlu0 %7367
  %v7369 = vsel %vm1670, %v7347, 0.0
  %7370 = vadd.xlane.f32.xlu0 %v7369
  %v7371 = vpop.xlane.xlu0 %7370
  %vm7372 = vcmask 7168
  %7373 = vst.msk [vmem:[%s8] sm:$0xff] %vm7372, %v7350
  %7374 = vst.msk [vmem:[%s8 + $0x8] sm:$0xff] %vm7372, %v7353
  %7375 = vst.msk [vmem:[%s8 + $0x10] sm:$0xff] %vm7372, %v7356
  %7376 = vst.msk [vmem:[%s8 + $0x18] sm:$0xff] %vm7372, %v7359
  %7377 = vst.msk [vmem:[%s8 + $0x20] sm:$0xff] %vm7372, %v7362
  %7378 = vst.msk [vmem:[%s8 + $0x28] sm:$0xff] %vm7372, %v7365
  %7379 = vst.msk [vmem:[%s8 + $0x30] sm:$0xff] %vm7372, %v7368
  %7380 = vst.msk [vmem:[%s8 + $0x38] sm:$0xff] %vm7372, %v7371
  // Predicated region
  $region30: #{tpu_custom_call.1} parent=0 // pred_check
    _
  $region31: #{tpu_custom_call.1} parent=0 // pred_check_branch
    %7382 = sbr.rel (0) target = $region33
  $region32: #{tpu_custom_call.1} parent=0 // pred_region
    _
  $region33: #{tpu_custom_call.1} parent=0 // pred_fallthru
    _
  // Predicated region
  $region34: #{tpu_custom_call.1} parent=0 // pred_check
    _
  $region35: #{tpu_custom_call.1} parent=0 // pred_check_branch
    %7384 = sbr.rel (0) target = $region37
  $region36: #{tpu_custom_call.1} parent=0 // pred_region
    _
  $region37: #{tpu_custom_call.1} parent=0 // pred_fallthru
    _
  // Predicated region
  $region38: #{tpu_custom_call.1} parent=0 // pred_check
    _
  $region39: #{tpu_custom_call.1} parent=0 // pred_check_branch
    %7386 = sbr.rel (0) target = $region41
  $region40: #{tpu_custom_call.1} parent=0 // pred_region
    _
  $region41: #{tpu_custom_call.1} parent=0 // pred_fallthru
    _
  // Predicated region
  $region42: #{tpu_custom_call.1} parent=0 // pred_check
    _
  $region43: #{tpu_custom_call.1} parent=0 // pred_check_branch
    %7388 = sbr.rel (0) target = $region45
  $region44: #{tpu_custom_call.1} parent=0 // pred_region
    _
  $region45: #{tpu_custom_call.1} parent=0 // pred_fallthru
    _

</llo_original>
